<compile_context>
chip_gen: v7x
topology: tpu7x:2x2x1
jax: 0.10.0
libtpu: 0.0.40
codegen_flags: <defaults>
</compile_context>

<pallas_src>
import jax
import jax.numpy as jnp
from jax.experimental import pallas as pl
from jax.experimental.pallas import tpu as pltpu

KSIZE = 4
NEG_SLOPE = 0.2
IN_EPS = 1e-5
LANE = 128
MAX_TK = 2048                      # K-tile (K_pad is always a 2^k * 128)
VMEM_LIMIT = 32 * 1024 * 1024      # safe on v5e/v6e/v7x


# ----------------------------- Pallas kernel -------------------------------

def _make_fused_conv_kernel(use_in: bool, use_lrelu: bool):
    """K-tiled MXU matmul + fused epilogue (bias [+ InstanceNorm] [+ LReLU]).

    Per grid step (n, k):
      a_ref : [M_s, tk]  bf16 im2col rows of sample n, K-chunk k
      w_ref : [tk,  C ]  bf16 weight K-chunk
      b_ref : [1,   C ]  f32  bias
      o_ref : [M_s, C ]  f32  output of sample n (written at last k)
      acc   : [M_s, C ]  f32  accumulator scratch
    Channels sit on the lane axis; the InstanceNorm reduction runs over the
    sublane (spatial) axis -> XLU, while the matmul runs on the MXU.
    """
    def kernel(a_ref, w_ref, b_ref, o_ref, acc_ref):
        @pl.when(pl.program_id(1) == 0)
        def _():
            acc_ref[...] = jnp.zeros_like(acc_ref)

        acc_ref[...] += jnp.dot(a_ref[...], w_ref[...],
                                preferred_element_type=jnp.float32)

        @pl.when(pl.program_id(1) == pl.num_programs(1) - 1)
        def _():
            y = acc_ref[...] + b_ref[...]            # f32 epilogue
            if use_in:
                mean = jnp.mean(y, axis=0, keepdims=True)
                var = jnp.mean((y - mean) * (y - mean), axis=0, keepdims=True)
                y = (y - mean) * jax.lax.rsqrt(var + IN_EPS)
            if use_lrelu:
                y = jnp.where(y >= 0, y, NEG_SLOPE * y)
            o_ref[...] = y.astype(o_ref.dtype)

    return kernel


# ------------------------------ JAX glue ------------------------------------

def _round_up(v, m):
    return (v + m - 1) // m * m


def _im2col(x_nhwc, stride, pad):
    """Extract 4x4 patches. Returns ([N, Ho*Wo, 16*C], (Ho, Wo))."""
    N, H, W, C = x_nhwc.shape
    xp = jnp.pad(x_nhwc, ((0, 0), (pad, pad), (pad, pad), (0, 0)))
    Hp, Wp = H + 2 * pad, W + 2 * pad
    Ho = (Hp - KSIZE) // stride + 1
    Wo = (Wp - KSIZE) // stride + 1
    cols = []
    for kh in range(KSIZE):
        for kw in range(KSIZE):
            cols.append(xp[:, kh:kh + stride * Ho:stride,
                           kw:kw + stride * Wo:stride, :])
    # [N, Ho, Wo, 16, C] -> [N, Ho*Wo, 16*C]  (K ordering: (kh,kw) major, C minor)
    col = jnp.stack(cols, axis=3)
    return col.reshape(N, Ho * Wo, KSIZE * KSIZE * C), (Ho, Wo)


def conv_block_pallas(x_nhwc, w_oihw, b, stride, pad, use_in, use_lrelu):
    """One Discriminator layer: conv + bias [+ InstanceNorm] [+ LeakyReLU]."""
    N = x_nhwc.shape[0]
    c_out = w_oihw.shape[0]

    cols, (Ho, Wo) = _im2col(x_nhwc, stride, pad)     # [N, M_s, K] f32
    M_s = Ho * Wo
    K = cols.shape[-1]

    # MXU / lane alignment: pad K to a multiple of 128 (layer 1: 48 -> 128)
    # and degenerate C_out up to 128 lanes (layer 5: 1 -> 128, sliced off).
    K_pad = _round_up(K, LANE)
    c_eff = _round_up(c_out, LANE)

    # [C_out, C_in, kh, kw] -> [kh, kw, C_in, C_out] -> [K, C_out]
    wmat = jnp.transpose(w_oihw, (2, 3, 1, 0)).reshape(K, c_out)
    bias = b.reshape(1, c_out).astype(jnp.float32)
    if c_eff != c_out:
        wmat = jnp.pad(wmat, ((0, 0), (0, c_eff - c_out)))
        bias = jnp.pad(bias, ((0, 0), (0, c_eff - c_out)))
    if K_pad != K:
        cols = jnp.pad(cols, ((0, 0), (0, 0), (0, K_pad - K)))
        wmat = jnp.pad(wmat, ((0, K_pad - K), (0, 0)))

    # bf16 MXU operands; accumulation and epilogue stay f32 (v5e-safe).
    cols_b = cols.astype(jnp.bfloat16)
    wmat_b = wmat.astype(jnp.bfloat16)

    tk = min(K_pad, MAX_TK)            # K_pad is a power-of-two multiple of 128
    n_k = K_pad // tk
    grid = (N, n_k)

    flops = 2 * N * M_s * K_pad * c_eff
    bytes_accessed = (cols_b.size * 2 + N * wmat_b.size * 2
                      + bias.size * 4 + N * M_s * c_eff * 4)

    out = pl.pallas_call(
        _make_fused_conv_kernel(use_in, use_lrelu),
        out_shape=jax.ShapeDtypeStruct((N, M_s, c_eff), jnp.float32),
        grid_spec=pltpu.PrefetchScalarGridSpec(
            num_scalar_prefetch=0,
            grid=grid,
            in_specs=[
                pl.BlockSpec((None, M_s, tk), lambda n, k: (n, 0, k)),
                pl.BlockSpec((tk, c_eff), lambda n, k: (k, 0)),
                pl.BlockSpec((1, c_eff), lambda n, k: (0, 0)),
            ],
            out_specs=pl.BlockSpec((None, M_s, c_eff), lambda n, k: (n, 0, 0)),
            scratch_shapes=[pltpu.VMEM((M_s, c_eff), jnp.float32)],
        ),
        compiler_params=pltpu.CompilerParams(
            dimension_semantics=("parallel", "arbitrary"),
            vmem_limit_bytes=VMEM_LIMIT),
        cost_estimate=pl.CostEstimate(
            flops=flops,
            transcendentals=N * c_eff if use_in else 0,
            bytes_accessed=bytes_accessed),
    )(cols_b, wmat_b, bias)

    if c_eff != c_out:
        out = out[:, :, :c_out]
    return out.reshape(N, Ho, Wo, c_out)


# ----------------------------- Discriminator --------------------------------

_LAYER_CFG = [
    # (c_in, c_out, stride, pad, instance_norm, leaky_relu)
    (3,   64,  2, 1, False, True),
    (64,  128, 2, 1, True,  True),
    (128, 256, 2, 1, True,  True),
    (256, 512, 1, 1, True,  True),
    (512, 1,   1, 1, False, False),
]


def init_params(key):
    params = []
    for i, (cin, cout, *_rest) in enumerate(_LAYER_CFG):
        kw_, kb_ = jax.random.split(jax.random.fold_in(key, i))
        w = 0.05 * jax.random.normal(kw_, (cout, cin, KSIZE, KSIZE), jnp.float32)
        b = 0.05 * jax.random.normal(kb_, (cout,), jnp.float32)
        params.append((w, b))
    return params


def discriminator_forward(params, x_nchw):
    # NCHW -> NHWC internally
    x = jnp.transpose(x_nchw, (0, 2, 3, 1)).astype(jnp.float32)
    for (w, b), (_ci, _co, stride, pad, use_in, use_lrelu) in zip(
            params, _LAYER_CFG):
        x = conv_block_pallas(x, w, b, stride, pad, use_in, use_lrelu)
    # NHWC -> NCHW for the output
    return jnp.transpose(x, (0, 3, 1, 2))


# --------------------------- reference (bf16-matched) ------------------------

def _reference_forward(params, x_nchw):
    """Same math with lax.conv; bf16 operands / f32 accumulation to match the
    kernel's MXU numerics (bias/IN/LReLU stay f32)."""
    x = x_nchw.astype(jnp.float32)
    for (w, b), (_ci, _co, stride, pad, use_in, use_lrelu) in zip(
            params, _LAYER_CFG):
        y = jax.lax.conv_general_dilated(
            x.astype(jnp.bfloat16), w.astype(jnp.bfloat16),
            window_strides=(stride, stride),
            padding=((pad, pad), (pad, pad)),
            dimension_numbers=("NCHW", "OIHW", "NCHW"),
            preferred_element_type=jnp.float32)
        x = y + b.reshape(1, -1, 1, 1)
        if use_in:
            mean = jnp.mean(x, axis=(2, 3), keepdims=True)
            var = jnp.mean((x - mean) ** 2, axis=(2, 3), keepdims=True)
            x = (x - mean) * jax.lax.rsqrt(var + IN_EPS)
        if use_lrelu:
            x = jnp.where(x >= 0, x, NEG_SLOPE * x)
    return x


# --------------------------------- main --------------------------------------

if __name__ == "__main__":
    key = jax.random.PRNGKey(0)
    pkey, xkey = jax.random.split(key)
    params = init_params(pkey)

    # Small input consistent with the module: NCHW, 3 channels, 32x32 spatial.
    x = jax.random.normal(xkey, (2, 3, 32, 32), jnp.float32)

    out = jax.block_until_ready(jax.jit(discriminator_forward)(params, x))
    ref = jax.block_until_ready(_reference_forward(params, x))

    assert out.shape == (2, 1, 2, 2), out.shape
    max_err = float(jnp.max(jnp.abs(out - ref)))
    assert jnp.allclose(out, ref, rtol=1e-2, atol=1e-2), max_err

    print("KERNEL_OK")
</pallas_src>

<mosaic_0001>
module attributes {stable_mosaic.version = 11 : i64} {
  func.func @kernel(%arg0: i32, %arg1: i32, %arg2: memref<1x256x128xbf16, #tpu.memory_space<vmem>>, %arg3: memref<128x128xbf16, #tpu.memory_space<vmem>>, %arg4: memref<1x128xf32, #tpu.memory_space<vmem>>, %arg5: memref<1x256x128xf32, #tpu.memory_space<vmem>>, %arg6: memref<256x128xf32, #tpu.memory_space<vmem>>) attributes {dimension_semantics = [#tpu.dimension_semantics<parallel>, #tpu.dimension_semantics<arbitrary>], iteration_bounds = array<i64: 2, 1>, scalar_prefetch = 0 : i64, scratch_operands = 1 : i64, tpu.core_type = #tpu.core_type<tc>, window_params = [{transform_indices = @transform_0, window_bounds = array<i64: 1, 256, 128>}, {transform_indices = @transform_1, window_bounds = array<i64: 128, 128>}, {pipeline_mode = #tpu.pipeline_mode<synchronous>, transform_indices = @transform_2, window_bounds = array<i64: 1, 128>}, {transform_indices = @transform_3, window_bounds = array<i64: 1, 256, 128>}]} {
    %c0_i32 = arith.constant 0 : i32
    %0 = arith.cmpi eq, %arg1, %c0_i32 : i32
    %1 = arith.extui %0 : i1 to i32
    %c0_i32_0 = arith.constant 0 : i32
    %2 = arith.cmpi ne, %1, %c0_i32_0 : i32
    scf.if %2 {
      %cst_11 = arith.constant 0.000000e+00 : f32
      %13 = vector.broadcast %cst_11 : f32 to vector<256x128xf32>
      %c0_12 = arith.constant 0 : index
      %c0_13 = arith.constant 0 : index
      %14 = vector.load %arg6[%c0_12, %c0_13] : memref<256x128xf32, #tpu.memory_space<vmem>>, vector<256x128xf32>
      tpu.vector_store %arg6[%c0_12, %c0_13], %13 {strides = array<i32>} : memref<256x128xf32, #tpu.memory_space<vmem>>, vector<256x128xf32>,
    } else {
    }
    %c0 = arith.constant 0 : index
    %c0_1 = arith.constant 0 : index
    %3 = vector.load %arg6[%c0, %c0_1] : memref<256x128xf32, #tpu.memory_space<vmem>>, vector<256x128xf32>
    %c0_2 = arith.constant 0 : index
    %c0_3 = arith.constant 0 : index
    %c0_4 = arith.constant 0 : index
    %4 = vector.load %arg2[%c0_2, %c0_3, %c0_4] : memref<1x256x128xbf16, #tpu.memory_space<vmem>>, vector<1x256x128xbf16>
    %5 = vector.shape_cast %4 : vector<1x256x128xbf16> to vector<256x128xbf16>
    %c0_5 = arith.constant 0 : index
    %c0_6 = arith.constant 0 : index
    %6 = vector.load %arg3[%c0_5, %c0_6] : memref<128x128xbf16, #tpu.memory_space<vmem>>, vector<128x128xbf16>
    %cst = arith.constant dense<0.000000e+00> : vector<256x128xf32>
    %7 = tpu.matmul %5, %6, %cst {dimension_numbers = #tpu.dot_dimension_numbers<[1], [0], [0], [1], [0, 0, 1, 1], [], []>} : vector<256x128xbf16>, vector<128x128xbf16>, vector<256x128xf32> -> vector<256x128xf32>
    %8 = arith.addf %3, %7 : vector<256x128xf32>
    %c0_7 = arith.constant 0 : index
    %c0_8 = arith.constant 0 : index
    %9 = vector.load %arg6[%c0_7, %c0_8] : memref<256x128xf32, #tpu.memory_space<vmem>>, vector<256x128xf32>
    tpu.vector_store %arg6[%c0_7, %c0_8], %8 {strides = array<i32>} : memref<256x128xf32, #tpu.memory_space<vmem>>, vector<256x128xf32>,
    %c0_i32_9 = arith.constant 0 : i32
    %10 = arith.cmpi eq, %arg1, %c0_i32_9 : i32
    %11 = arith.extui %10 : i1 to i32
    %c0_i32_10 = arith.constant 0 : i32
    %12 = arith.cmpi ne, %11, %c0_i32_10 : i32
    scf.if %12 {
      %c0_11 = arith.constant 0 : index
      %c0_12 = arith.constant 0 : index
      %13 = vector.load %arg6[%c0_11, %c0_12] : memref<256x128xf32, #tpu.memory_space<vmem>>, vector<256x128xf32>
      %c0_13 = arith.constant 0 : index
      %c0_14 = arith.constant 0 : index
      %14 = vector.load %arg4[%c0_13, %c0_14] : memref<1x128xf32, #tpu.memory_space<vmem>>, vector<1x128xf32>
      %15 = vector.broadcast %14 : vector<1x128xf32> to vector<256x128xf32>
      %16 = arith.addf %13, %15 : vector<256x128xf32>
      %cst_15 = arith.constant 0.000000e+00 : f32
      %17 = vector.broadcast %cst_15 : f32 to vector<256x128xf32>
      %18 = arith.cmpf oge, %16, %17 : vector<256x128xf32>
      %cst_16 = arith.constant 2.000000e-01 : f32
      %19 = vector.broadcast %cst_16 : f32 to vector<256x128xf32>
      %20 = arith.mulf %19, %16 : vector<256x128xf32>
      %21 = arith.select %18, %16, %20 : vector<256x128xi1>, vector<256x128xf32>
      %c0_17 = arith.constant 0 : index
      %c0_18 = arith.constant 0 : index
      %c0_19 = arith.constant 0 : index
      %22 = vector.load %arg5[%c0_17, %c0_18, %c0_19] : memref<1x256x128xf32, #tpu.memory_space<vmem>>, vector<1x256x128xf32>
      %23 = vector.shape_cast %22 : vector<1x256x128xf32> to vector<256x128xf32>
      %24 = vector.shape_cast %21 : vector<256x128xf32> to vector<1x256x128xf32>
      tpu.vector_store %arg5[%c0_17, %c0_18, %c0_19], %24 {strides = array<i32>} : memref<1x256x128xf32, #tpu.memory_space<vmem>>, vector<1x256x128xf32>,
    } else {
    }
    return
  }
  func.func @transform_0(%arg0: i32, %arg1: i32) -> (i32, i32, i32) {
    %c0_i32 = arith.constant 0 : i32
    %c0_i32_0 = arith.constant 0 : i32
    return %arg0, %c0_i32, %arg1 : i32, i32, i32
  }
  func.func @transform_1(%arg0: i32, %arg1: i32) -> (i32, i32) {
    %c0_i32 = arith.constant 0 : i32
    %c0_i32_0 = arith.constant 0 : i32
    return %arg1, %c0_i32 : i32, i32
  }
  func.func @transform_2(%arg0: i32, %arg1: i32) -> (i32, i32) {
    %c0_i32 = arith.constant 0 : i32
    %c0_i32_0 = arith.constant 0 : i32
    %c0_i32_1 = arith.constant 0 : i32
    return %c0_i32, %c0_i32_0 : i32, i32
  }
  func.func @transform_3(%arg0: i32, %arg1: i32) -> (i32, i32, i32) {
    %c0_i32 = arith.constant 0 : i32
    %c0_i32_0 = arith.constant 0 : i32
    %c0_i32_1 = arith.constant 0 : i32
    return %arg0, %c0_i32, %c0_i32_0 : i32, i32, i32
  }
}

module attributes {stable_mosaic.version = 11 : i64} {
  func.func @kernel(%arg0: i32, %arg1: i32, %arg2: memref<1x64x1024xbf16, #tpu.memory_space<vmem>>, %arg3: memref<1024x128xbf16, #tpu.memory_space<vmem>>, %arg4: memref<1x128xf32, #tpu.memory_space<vmem>>, %arg5: memref<1x64x128xf32, #tpu.memory_space<vmem>>, %arg6: memref<64x128xf32, #tpu.memory_space<vmem>>) attributes {dimension_semantics = [#tpu.dimension_semantics<parallel>, #tpu.dimension_semantics<arbitrary>], iteration_bounds = array<i64: 2, 1>, scalar_prefetch = 0 : i64, scratch_operands = 1 : i64, tpu.core_type = #tpu.core_type<tc>, window_params = [{transform_indices = @transform_0, window_bounds = array<i64: 1, 64, 1024>}, {transform_indices = @transform_1, window_bounds = array<i64: 1024, 128>}, {pipeline_mode = #tpu.pipeline_mode<synchronous>, transform_indices = @transform_2, window_bounds = array<i64: 1, 128>}, {transform_indices = @transform_3, window_bounds = array<i64: 1, 64, 128>}]} {
    %c0_i32 = arith.constant 0 : i32
    %0 = arith.cmpi eq, %arg1, %c0_i32 : i32
    %1 = arith.extui %0 : i1 to i32
    %c0_i32_0 = arith.constant 0 : i32
    %2 = arith.cmpi ne, %1, %c0_i32_0 : i32
    scf.if %2 {
      %cst_11 = arith.constant 0.000000e+00 : f32
      %13 = vector.broadcast %cst_11 : f32 to vector<64x128xf32>
      %c0_12 = arith.constant 0 : index
      %c0_13 = arith.constant 0 : index
      %14 = vector.load %arg6[%c0_12, %c0_13] : memref<64x128xf32, #tpu.memory_space<vmem>>, vector<64x128xf32>
      tpu.vector_store %arg6[%c0_12, %c0_13], %13 {strides = array<i32>} : memref<64x128xf32, #tpu.memory_space<vmem>>, vector<64x128xf32>,
    } else {
    }
    %c0 = arith.constant 0 : index
    %c0_1 = arith.constant 0 : index
    %3 = vector.load %arg6[%c0, %c0_1] : memref<64x128xf32, #tpu.memory_space<vmem>>, vector<64x128xf32>
    %c0_2 = arith.constant 0 : index
    %c0_3 = arith.constant 0 : index
    %c0_4 = arith.constant 0 : index
    %4 = vector.load %arg2[%c0_2, %c0_3, %c0_4] : memref<1x64x1024xbf16, #tpu.memory_space<vmem>>, vector<1x64x1024xbf16>
    %5 = vector.shape_cast %4 : vector<1x64x1024xbf16> to vector<64x1024xbf16>
    %c0_5 = arith.constant 0 : index
    %c0_6 = arith.constant 0 : index
    %6 = vector.load %arg3[%c0_5, %c0_6] : memref<1024x128xbf16, #tpu.memory_space<vmem>>, vector<1024x128xbf16>
    %cst = arith.constant dense<0.000000e+00> : vector<64x128xf32>
    %7 = tpu.matmul %5, %6, %cst {dimension_numbers = #tpu.dot_dimension_numbers<[1], [0], [0], [1], [0, 0, 1, 1], [], []>} : vector<64x1024xbf16>, vector<1024x128xbf16>, vector<64x128xf32> -> vector<64x128xf32>
    %8 = arith.addf %3, %7 : vector<64x128xf32>
    %c0_7 = arith.constant 0 : index
    %c0_8 = arith.constant 0 : index
    %9 = vector.load %arg6[%c0_7, %c0_8] : memref<64x128xf32, #tpu.memory_space<vmem>>, vector<64x128xf32>
    tpu.vector_store %arg6[%c0_7, %c0_8], %8 {strides = array<i32>} : memref<64x128xf32, #tpu.memory_space<vmem>>, vector<64x128xf32>,
    %c0_i32_9 = arith.constant 0 : i32
    %10 = arith.cmpi eq, %arg1, %c0_i32_9 : i32
    %11 = arith.extui %10 : i1 to i32
    %c0_i32_10 = arith.constant 0 : i32
    %12 = arith.cmpi ne, %11, %c0_i32_10 : i32
    scf.if %12 {
      %c0_11 = arith.constant 0 : index
      %c0_12 = arith.constant 0 : index
      %13 = vector.load %arg6[%c0_11, %c0_12] : memref<64x128xf32, #tpu.memory_space<vmem>>, vector<64x128xf32>
      %c0_13 = arith.constant 0 : index
      %c0_14 = arith.constant 0 : index
      %14 = vector.load %arg4[%c0_13, %c0_14] : memref<1x128xf32, #tpu.memory_space<vmem>>, vector<1x128xf32>
      %15 = vector.broadcast %14 : vector<1x128xf32> to vector<64x128xf32>
      %16 = arith.addf %13, %15 : vector<64x128xf32>
      %cst_15 = arith.constant dense<0.000000e+00> : vector<128xf32>
      %17 = vector.multi_reduction <add>, %16, %cst_15 [0] : vector<64x128xf32> to vector<128xf32>
      %18 = vector.shape_cast %17 : vector<128xf32> to vector<1x128xf32>
      %cst_16 = arith.constant 6.400000e+01 : f32
      %19 = vector.broadcast %cst_16 : f32 to vector<1x128xf32>
      %20 = arith.divf %18, %19 : vector<1x128xf32>
      %21 = vector.broadcast %20 : vector<1x128xf32> to vector<64x128xf32>
      %22 = arith.subf %16, %21 : vector<64x128xf32>
      %23 = vector.broadcast %20 : vector<1x128xf32> to vector<64x128xf32>
      %24 = arith.subf %16, %23 : vector<64x128xf32>
      %25 = arith.mulf %22, %24 : vector<64x128xf32>
      %cst_17 = arith.constant dense<0.000000e+00> : vector<128xf32>
      %26 = vector.multi_reduction <add>, %25, %cst_17 [0] : vector<64x128xf32> to vector<128xf32>
      %27 = vector.shape_cast %26 : vector<128xf32> to vector<1x128xf32>
      %cst_18 = arith.constant 6.400000e+01 : f32
      %28 = vector.broadcast %cst_18 : f32 to vector<1x128xf32>
      %29 = arith.divf %27, %28 : vector<1x128xf32>
      %30 = vector.broadcast %20 : vector<1x128xf32> to vector<64x128xf32>
      %31 = arith.subf %16, %30 : vector<64x128xf32>
      %cst_19 = arith.constant 9.99999974E-6 : f32
      %32 = vector.broadcast %cst_19 : f32 to vector<1x128xf32>
      %33 = arith.addf %29, %32 : vector<1x128xf32>
      %34 = math.rsqrt %33 : vector<1x128xf32>
      %35 = vector.broadcast %34 : vector<1x128xf32> to vector<64x128xf32>
      %36 = arith.mulf %31, %35 : vector<64x128xf32>
      %cst_20 = arith.constant 0.000000e+00 : f32
      %37 = vector.broadcast %cst_20 : f32 to vector<64x128xf32>
      %38 = arith.cmpf oge, %36, %37 : vector<64x128xf32>
      %cst_21 = arith.constant 2.000000e-01 : f32
      %39 = vector.broadcast %cst_21 : f32 to vector<64x128xf32>
      %40 = arith.mulf %39, %36 : vector<64x128xf32>
      %41 = arith.select %38, %36, %40 : vector<64x128xi1>, vector<64x128xf32>
      %c0_22 = arith.constant 0 : index
      %c0_23 = arith.constant 0 : index
      %c0_24 = arith.constant 0 : index
      %42 = vector.load %arg5[%c0_22, %c0_23, %c0_24] : memref<1x64x128xf32, #tpu.memory_space<vmem>>, vector<1x64x128xf32>
      %43 = vector.shape_cast %42 : vector<1x64x128xf32> to vector<64x128xf32>
      %44 = vector.shape_cast %41 : vector<64x128xf32> to vector<1x64x128xf32>
      tpu.vector_store %arg5[%c0_22, %c0_23, %c0_24], %44 {strides = array<i32>} : memref<1x64x128xf32, #tpu.memory_space<vmem>>, vector<1x64x128xf32>,
    } else {
    }
    return
  }
  func.func @transform_0(%arg0: i32, %arg1: i32) -> (i32, i32, i32) {
    %c0_i32 = arith.constant 0 : i32
    %c0_i32_0 = arith.constant 0 : i32
    return %arg0, %c0_i32, %arg1 : i32, i32, i32
  }
  func.func @transform_1(%arg0: i32, %arg1: i32) -> (i32, i32) {
    %c0_i32 = arith.constant 0 : i32
    %c0_i32_0 = arith.constant 0 : i32
    return %arg1, %c0_i32 : i32, i32
  }
  func.func @transform_2(%arg0: i32, %arg1: i32) -> (i32, i32) {
    %c0_i32 = arith.constant 0 : i32
    %c0_i32_0 = arith.constant 0 : i32
    %c0_i32_1 = arith.constant 0 : i32
    return %c0_i32, %c0_i32_0 : i32, i32
  }
  func.func @transform_3(%arg0: i32, %arg1: i32) -> (i32, i32, i32) {
    %c0_i32 = arith.constant 0 : i32
    %c0_i32_0 = arith.constant 0 : i32
    %c0_i32_1 = arith.constant 0 : i32
    return %arg0, %c0_i32, %c0_i32_0 : i32, i32, i32
  }
}

module attributes {stable_mosaic.version = 11 : i64} {
  func.func @kernel(%arg0: i32, %arg1: i32, %arg2: memref<1x16x2048xbf16, #tpu.memory_space<vmem>>, %arg3: memref<2048x256xbf16, #tpu.memory_space<vmem>>, %arg4: memref<1x256xf32, #tpu.memory_space<vmem>>, %arg5: memref<1x16x256xf32, #tpu.memory_space<vmem>>, %arg6: memref<16x256xf32, #tpu.memory_space<vmem>>) attributes {dimension_semantics = [#tpu.dimension_semantics<parallel>, #tpu.dimension_semantics<arbitrary>], iteration_bounds = array<i64: 2, 1>, scalar_prefetch = 0 : i64, scratch_operands = 1 : i64, tpu.core_type = #tpu.core_type<tc>, window_params = [{transform_indices = @transform_0, window_bounds = array<i64: 1, 16, 2048>}, {transform_indices = @transform_1, window_bounds = array<i64: 2048, 256>}, {pipeline_mode = #tpu.pipeline_mode<synchronous>, transform_indices = @transform_2, window_bounds = array<i64: 1, 256>}, {transform_indices = @transform_3, window_bounds = array<i64: 1, 16, 256>}]} {
    %c0_i32 = arith.constant 0 : i32
    %0 = arith.cmpi eq, %arg1, %c0_i32 : i32
    %1 = arith.extui %0 : i1 to i32
    %c0_i32_0 = arith.constant 0 : i32
    %2 = arith.cmpi ne, %1, %c0_i32_0 : i32
    scf.if %2 {
      %cst_11 = arith.constant 0.000000e+00 : f32
      %13 = vector.broadcast %cst_11 : f32 to vector<16x256xf32>
      %c0_12 = arith.constant 0 : index
      %c0_13 = arith.constant 0 : index
      %14 = vector.load %arg6[%c0_12, %c0_13] : memref<16x256xf32, #tpu.memory_space<vmem>>, vector<16x256xf32>
      tpu.vector_store %arg6[%c0_12, %c0_13], %13 {strides = array<i32>} : memref<16x256xf32, #tpu.memory_space<vmem>>, vector<16x256xf32>,
    } else {
    }
    %c0 = arith.constant 0 : index
    %c0_1 = arith.constant 0 : index
    %3 = vector.load %arg6[%c0, %c0_1] : memref<16x256xf32, #tpu.memory_space<vmem>>, vector<16x256xf32>
    %c0_2 = arith.constant 0 : index
    %c0_3 = arith.constant 0 : index
    %c0_4 = arith.constant 0 : index
    %4 = vector.load %arg2[%c0_2, %c0_3, %c0_4] : memref<1x16x2048xbf16, #tpu.memory_space<vmem>>, vector<1x16x2048xbf16>
    %5 = vector.shape_cast %4 : vector<1x16x2048xbf16> to vector<16x2048xbf16>
    %c0_5 = arith.constant 0 : index
    %c0_6 = arith.constant 0 : index
    %6 = vector.load %arg3[%c0_5, %c0_6] : memref<2048x256xbf16, #tpu.memory_space<vmem>>, vector<2048x256xbf16>
    %cst = arith.constant dense<0.000000e+00> : vector<16x256xf32>
    %7 = tpu.matmul %5, %6, %cst {dimension_numbers = #tpu.dot_dimension_numbers<[1], [0], [0], [1], [0, 0, 1, 1], [], []>} : vector<16x2048xbf16>, vector<2048x256xbf16>, vector<16x256xf32> -> vector<16x256xf32>
    %8 = arith.addf %3, %7 : vector<16x256xf32>
    %c0_7 = arith.constant 0 : index
    %c0_8 = arith.constant 0 : index
    %9 = vector.load %arg6[%c0_7, %c0_8] : memref<16x256xf32, #tpu.memory_space<vmem>>, vector<16x256xf32>
    tpu.vector_store %arg6[%c0_7, %c0_8], %8 {strides = array<i32>} : memref<16x256xf32, #tpu.memory_space<vmem>>, vector<16x256xf32>,
    %c0_i32_9 = arith.constant 0 : i32
    %10 = arith.cmpi eq, %arg1, %c0_i32_9 : i32
    %11 = arith.extui %10 : i1 to i32
    %c0_i32_10 = arith.constant 0 : i32
    %12 = arith.cmpi ne, %11, %c0_i32_10 : i32
    scf.if %12 {
      %c0_11 = arith.constant 0 : index
      %c0_12 = arith.constant 0 : index
      %13 = vector.load %arg6[%c0_11, %c0_12] : memref<16x256xf32, #tpu.memory_space<vmem>>, vector<16x256xf32>
      %c0_13 = arith.constant 0 : index
      %c0_14 = arith.constant 0 : index
      %14 = vector.load %arg4[%c0_13, %c0_14] : memref<1x256xf32, #tpu.memory_space<vmem>>, vector<1x256xf32>
      %15 = vector.broadcast %14 : vector<1x256xf32> to vector<16x256xf32>
      %16 = arith.addf %13, %15 : vector<16x256xf32>
      %cst_15 = arith.constant dense<0.000000e+00> : vector<256xf32>
      %17 = vector.multi_reduction <add>, %16, %cst_15 [0] : vector<16x256xf32> to vector<256xf32>
      %18 = vector.shape_cast %17 : vector<256xf32> to vector<1x256xf32>
      %cst_16 = arith.constant 1.600000e+01 : f32
      %19 = vector.broadcast %cst_16 : f32 to vector<1x256xf32>
      %20 = arith.divf %18, %19 : vector<1x256xf32>
      %21 = vector.broadcast %20 : vector<1x256xf32> to vector<16x256xf32>
      %22 = arith.subf %16, %21 : vector<16x256xf32>
      %23 = vector.broadcast %20 : vector<1x256xf32> to vector<16x256xf32>
      %24 = arith.subf %16, %23 : vector<16x256xf32>
      %25 = arith.mulf %22, %24 : vector<16x256xf32>
      %cst_17 = arith.constant dense<0.000000e+00> : vector<256xf32>
      %26 = vector.multi_reduction <add>, %25, %cst_17 [0] : vector<16x256xf32> to vector<256xf32>
      %27 = vector.shape_cast %26 : vector<256xf32> to vector<1x256xf32>
      %cst_18 = arith.constant 1.600000e+01 : f32
      %28 = vector.broadcast %cst_18 : f32 to vector<1x256xf32>
      %29 = arith.divf %27, %28 : vector<1x256xf32>
      %30 = vector.broadcast %20 : vector<1x256xf32> to vector<16x256xf32>
      %31 = arith.subf %16, %30 : vector<16x256xf32>
      %cst_19 = arith.constant 9.99999974E-6 : f32
      %32 = vector.broadcast %cst_19 : f32 to vector<1x256xf32>
      %33 = arith.addf %29, %32 : vector<1x256xf32>
      %34 = math.rsqrt %33 : vector<1x256xf32>
      %35 = vector.broadcast %34 : vector<1x256xf32> to vector<16x256xf32>
      %36 = arith.mulf %31, %35 : vector<16x256xf32>
      %cst_20 = arith.constant 0.000000e+00 : f32
      %37 = vector.broadcast %cst_20 : f32 to vector<16x256xf32>
      %38 = arith.cmpf oge, %36, %37 : vector<16x256xf32>
      %cst_21 = arith.constant 2.000000e-01 : f32
      %39 = vector.broadcast %cst_21 : f32 to vector<16x256xf32>
      %40 = arith.mulf %39, %36 : vector<16x256xf32>
      %41 = arith.select %38, %36, %40 : vector<16x256xi1>, vector<16x256xf32>
      %c0_22 = arith.constant 0 : index
      %c0_23 = arith.constant 0 : index
      %c0_24 = arith.constant 0 : index
      %42 = vector.load %arg5[%c0_22, %c0_23, %c0_24] : memref<1x16x256xf32, #tpu.memory_space<vmem>>, vector<1x16x256xf32>
      %43 = vector.shape_cast %42 : vector<1x16x256xf32> to vector<16x256xf32>
      %44 = vector.shape_cast %41 : vector<16x256xf32> to vector<1x16x256xf32>
      tpu.vector_store %arg5[%c0_22, %c0_23, %c0_24], %44 {strides = array<i32>} : memref<1x16x256xf32, #tpu.memory_space<vmem>>, vector<1x16x256xf32>,
    } else {
    }
    return
  }
  func.func @transform_0(%arg0: i32, %arg1: i32) -> (i32, i32, i32) {
    %c0_i32 = arith.constant 0 : i32
    %c0_i32_0 = arith.constant 0 : i32
    return %arg0, %c0_i32, %arg1 : i32, i32, i32
  }
  func.func @transform_1(%arg0: i32, %arg1: i32) -> (i32, i32) {
    %c0_i32 = arith.constant 0 : i32
    %c0_i32_0 = arith.constant 0 : i32
    return %arg1, %c0_i32 : i32, i32
  }
  func.func @transform_2(%arg0: i32, %arg1: i32) -> (i32, i32) {
    %c0_i32 = arith.constant 0 : i32
    %c0_i32_0 = arith.constant 0 : i32
    %c0_i32_1 = arith.constant 0 : i32
    return %c0_i32, %c0_i32_0 : i32, i32
  }
  func.func @transform_3(%arg0: i32, %arg1: i32) -> (i32, i32, i32) {
    %c0_i32 = arith.constant 0 : i32
    %c0_i32_0 = arith.constant 0 : i32
    %c0_i32_1 = arith.constant 0 : i32
    return %arg0, %c0_i32, %c0_i32_0 : i32, i32, i32
  }
}

module attributes {stable_mosaic.version = 11 : i64} {
  func.func @kernel(%arg0: i32, %arg1: i32, %arg2: memref<1x9x2048xbf16, #tpu.memory_space<vmem>>, %arg3: memref<2048x512xbf16, #tpu.memory_space<vmem>>, %arg4: memref<1x512xf32, #tpu.memory_space<vmem>>, %arg5: memref<1x9x512xf32, #tpu.memory_space<vmem>>, %arg6: memref<9x512xf32, #tpu.memory_space<vmem>>) attributes {dimension_semantics = [#tpu.dimension_semantics<parallel>, #tpu.dimension_semantics<arbitrary>], iteration_bounds = array<i64: 2, 2>, scalar_prefetch = 0 : i64, scratch_operands = 1 : i64, tpu.core_type = #tpu.core_type<tc>, window_params = [{transform_indices = @transform_0, window_bounds = array<i64: 1, 9, 2048>}, {transform_indices = @transform_1, window_bounds = array<i64: 2048, 512>}, {pipeline_mode = #tpu.pipeline_mode<synchronous>, transform_indices = @transform_2, window_bounds = array<i64: 1, 512>}, {transform_indices = @transform_3, window_bounds = array<i64: 1, 9, 512>}]} {
    %c0_i32 = arith.constant 0 : i32
    %0 = arith.cmpi eq, %arg1, %c0_i32 : i32
    %1 = arith.extui %0 : i1 to i32
    %c0_i32_0 = arith.constant 0 : i32
    %2 = arith.cmpi ne, %1, %c0_i32_0 : i32
    scf.if %2 {
      %cst_10 = arith.constant 0.000000e+00 : f32
      %13 = vector.broadcast %cst_10 : f32 to vector<9x512xf32>
      %c0_11 = arith.constant 0 : index
      %c0_12 = arith.constant 0 : index
      %14 = vector.load %arg6[%c0_11, %c0_12] : memref<9x512xf32, #tpu.memory_space<vmem>>, vector<9x512xf32>
      tpu.vector_store %arg6[%c0_11, %c0_12], %13 {strides = array<i32>} : memref<9x512xf32, #tpu.memory_space<vmem>>, vector<9x512xf32>,
    } else {
    }
    %c0 = arith.constant 0 : index
    %c0_1 = arith.constant 0 : index
    %3 = vector.load %arg6[%c0, %c0_1] : memref<9x512xf32, #tpu.memory_space<vmem>>, vector<9x512xf32>
    %c0_2 = arith.constant 0 : index
    %c0_3 = arith.constant 0 : index
    %c0_4 = arith.constant 0 : index
    %4 = vector.load %arg2[%c0_2, %c0_3, %c0_4] : memref<1x9x2048xbf16, #tpu.memory_space<vmem>>, vector<1x9x2048xbf16>
    %5 = vector.shape_cast %4 : vector<1x9x2048xbf16> to vector<9x2048xbf16>
    %c0_5 = arith.constant 0 : index
    %c0_6 = arith.constant 0 : index
    %6 = vector.load %arg3[%c0_5, %c0_6] : memref<2048x512xbf16, #tpu.memory_space<vmem>>, vector<2048x512xbf16>
    %cst = arith.constant dense<0.000000e+00> : vector<9x512xf32>
    %7 = tpu.matmul %5, %6, %cst {dimension_numbers = #tpu.dot_dimension_numbers<[1], [0], [0], [1], [0, 0, 1, 1], [], []>} : vector<9x2048xbf16>, vector<2048x512xbf16>, vector<9x512xf32> -> vector<9x512xf32>
    %8 = arith.addf %3, %7 : vector<9x512xf32>
    %c0_7 = arith.constant 0 : index
    %c0_8 = arith.constant 0 : index
    %9 = vector.load %arg6[%c0_7, %c0_8] : memref<9x512xf32, #tpu.memory_space<vmem>>, vector<9x512xf32>
    tpu.vector_store %arg6[%c0_7, %c0_8], %8 {strides = array<i32>} : memref<9x512xf32, #tpu.memory_space<vmem>>, vector<9x512xf32>,
    %c1_i32 = arith.constant 1 : i32
    %10 = arith.cmpi eq, %arg1, %c1_i32 : i32
    %11 = arith.extui %10 : i1 to i32
    %c0_i32_9 = arith.constant 0 : i32
    %12 = arith.cmpi ne, %11, %c0_i32_9 : i32
    scf.if %12 {
      %c0_10 = arith.constant 0 : index
      %c0_11 = arith.constant 0 : index
      %13 = vector.load %arg6[%c0_10, %c0_11] : memref<9x512xf32, #tpu.memory_space<vmem>>, vector<9x512xf32>
      %c0_12 = arith.constant 0 : index
      %c0_13 = arith.constant 0 : index
      %14 = vector.load %arg4[%c0_12, %c0_13] : memref<1x512xf32, #tpu.memory_space<vmem>>, vector<1x512xf32>
      %15 = vector.broadcast %14 : vector<1x512xf32> to vector<9x512xf32>
      %16 = arith.addf %13, %15 : vector<9x512xf32>
      %cst_14 = arith.constant dense<0.000000e+00> : vector<512xf32>
      %17 = vector.multi_reduction <add>, %16, %cst_14 [0] : vector<9x512xf32> to vector<512xf32>
      %18 = vector.shape_cast %17 : vector<512xf32> to vector<1x512xf32>
      %cst_15 = arith.constant 9.000000e+00 : f32
      %19 = vector.broadcast %cst_15 : f32 to vector<1x512xf32>
      %20 = arith.divf %18, %19 : vector<1x512xf32>
      %21 = vector.broadcast %20 : vector<1x512xf32> to vector<9x512xf32>
      %22 = arith.subf %16, %21 : vector<9x512xf32>
      %23 = vector.broadcast %20 : vector<1x512xf32> to vector<9x512xf32>
      %24 = arith.subf %16, %23 : vector<9x512xf32>
      %25 = arith.mulf %22, %24 : vector<9x512xf32>
      %cst_16 = arith.constant dense<0.000000e+00> : vector<512xf32>
      %26 = vector.multi_reduction <add>, %25, %cst_16 [0] : vector<9x512xf32> to vector<512xf32>
      %27 = vector.shape_cast %26 : vector<512xf32> to vector<1x512xf32>
      %cst_17 = arith.constant 9.000000e+00 : f32
      %28 = vector.broadcast %cst_17 : f32 to vector<1x512xf32>
      %29 = arith.divf %27, %28 : vector<1x512xf32>
      %30 = vector.broadcast %20 : vector<1x512xf32> to vector<9x512xf32>
      %31 = arith.subf %16, %30 : vector<9x512xf32>
      %cst_18 = arith.constant 9.99999974E-6 : f32
      %32 = vector.broadcast %cst_18 : f32 to vector<1x512xf32>
      %33 = arith.addf %29, %32 : vector<1x512xf32>
      %34 = math.rsqrt %33 : vector<1x512xf32>
      %35 = vector.broadcast %34 : vector<1x512xf32> to vector<9x512xf32>
      %36 = arith.mulf %31, %35 : vector<9x512xf32>
      %cst_19 = arith.constant 0.000000e+00 : f32
      %37 = vector.broadcast %cst_19 : f32 to vector<9x512xf32>
      %38 = arith.cmpf oge, %36, %37 : vector<9x512xf32>
      %cst_20 = arith.constant 2.000000e-01 : f32
      %39 = vector.broadcast %cst_20 : f32 to vector<9x512xf32>
      %40 = arith.mulf %39, %36 : vector<9x512xf32>
      %41 = arith.select %38, %36, %40 : vector<9x512xi1>, vector<9x512xf32>
      %c0_21 = arith.constant 0 : index
      %c0_22 = arith.constant 0 : index
      %c0_23 = arith.constant 0 : index
      %42 = vector.load %arg5[%c0_21, %c0_22, %c0_23] : memref<1x9x512xf32, #tpu.memory_space<vmem>>, vector<1x9x512xf32>
      %43 = vector.shape_cast %42 : vector<1x9x512xf32> to vector<9x512xf32>
      %44 = vector.shape_cast %41 : vector<9x512xf32> to vector<1x9x512xf32>
      tpu.vector_store %arg5[%c0_21, %c0_22, %c0_23], %44 {strides = array<i32>} : memref<1x9x512xf32, #tpu.memory_space<vmem>>, vector<1x9x512xf32>,
    } else {
    }
    return
  }
  func.func @transform_0(%arg0: i32, %arg1: i32) -> (i32, i32, i32) {
    %c0_i32 = arith.constant 0 : i32
    %c0_i32_0 = arith.constant 0 : i32
    return %arg0, %c0_i32, %arg1 : i32, i32, i32
  }
  func.func @transform_1(%arg0: i32, %arg1: i32) -> (i32, i32) {
    %c0_i32 = arith.constant 0 : i32
    %c0_i32_0 = arith.constant 0 : i32
    return %arg1, %c0_i32 : i32, i32
  }
  func.func @transform_2(%arg0: i32, %arg1: i32) -> (i32, i32) {
    %c0_i32 = arith.constant 0 : i32
    %c0_i32_0 = arith.constant 0 : i32
    %c0_i32_1 = arith.constant 0 : i32
    return %c0_i32, %c0_i32_0 : i32, i32
  }
  func.func @transform_3(%arg0: i32, %arg1: i32) -> (i32, i32, i32) {
    %c0_i32 = arith.constant 0 : i32
    %c0_i32_0 = arith.constant 0 : i32
    %c0_i32_1 = arith.constant 0 : i32
    return %arg0, %c0_i32, %c0_i32_0 : i32, i32, i32
  }
}

module attributes {stable_mosaic.version = 11 : i64} {
  func.func @kernel(%arg0: i32, %arg1: i32, %arg2: memref<1x4x2048xbf16, #tpu.memory_space<vmem>>, %arg3: memref<2048x128xbf16, #tpu.memory_space<vmem>>, %arg4: memref<1x128xf32, #tpu.memory_space<vmem>>, %arg5: memref<1x4x128xf32, #tpu.memory_space<vmem>>, %arg6: memref<4x128xf32, #tpu.memory_space<vmem>>) attributes {dimension_semantics = [#tpu.dimension_semantics<parallel>, #tpu.dimension_semantics<arbitrary>], iteration_bounds = array<i64: 2, 4>, scalar_prefetch = 0 : i64, scratch_operands = 1 : i64, tpu.core_type = #tpu.core_type<tc>, window_params = [{transform_indices = @transform_0, window_bounds = array<i64: 1, 4, 2048>}, {transform_indices = @transform_1, window_bounds = array<i64: 2048, 128>}, {pipeline_mode = #tpu.pipeline_mode<synchronous>, transform_indices = @transform_2, window_bounds = array<i64: 1, 128>}, {transform_indices = @transform_3, window_bounds = array<i64: 1, 4, 128>}]} {
    %c0_i32 = arith.constant 0 : i32
    %0 = arith.cmpi eq, %arg1, %c0_i32 : i32
    %1 = arith.extui %0 : i1 to i32
    %c0_i32_0 = arith.constant 0 : i32
    %2 = arith.cmpi ne, %1, %c0_i32_0 : i32
    scf.if %2 {
      %cst_10 = arith.constant 0.000000e+00 : f32
      %13 = vector.broadcast %cst_10 : f32 to vector<4x128xf32>
      %c0_11 = arith.constant 0 : index
      %c0_12 = arith.constant 0 : index
      %14 = vector.load %arg6[%c0_11, %c0_12] : memref<4x128xf32, #tpu.memory_space<vmem>>, vector<4x128xf32>
      tpu.vector_store %arg6[%c0_11, %c0_12], %13 {strides = array<i32>} : memref<4x128xf32, #tpu.memory_space<vmem>>, vector<4x128xf32>,
    } else {
    }
    %c0 = arith.constant 0 : index
    %c0_1 = arith.constant 0 : index
    %3 = vector.load %arg6[%c0, %c0_1] : memref<4x128xf32, #tpu.memory_space<vmem>>, vector<4x128xf32>
    %c0_2 = arith.constant 0 : index
    %c0_3 = arith.constant 0 : index
    %c0_4 = arith.constant 0 : index
    %4 = vector.load %arg2[%c0_2, %c0_3, %c0_4] : memref<1x4x2048xbf16, #tpu.memory_space<vmem>>, vector<1x4x2048xbf16>
    %5 = vector.shape_cast %4 : vector<1x4x2048xbf16> to vector<4x2048xbf16>
    %c0_5 = arith.constant 0 : index
    %c0_6 = arith.constant 0 : index
    %6 = vector.load %arg3[%c0_5, %c0_6] : memref<2048x128xbf16, #tpu.memory_space<vmem>>, vector<2048x128xbf16>
    %cst = arith.constant dense<0.000000e+00> : vector<4x128xf32>
    %7 = tpu.matmul %5, %6, %cst {dimension_numbers = #tpu.dot_dimension_numbers<[1], [0], [0], [1], [0, 0, 1, 1], [], []>} : vector<4x2048xbf16>, vector<2048x128xbf16>, vector<4x128xf32> -> vector<4x128xf32>
    %8 = arith.addf %3, %7 : vector<4x128xf32>
    %c0_7 = arith.constant 0 : index
    %c0_8 = arith.constant 0 : index
    %9 = vector.load %arg6[%c0_7, %c0_8] : memref<4x128xf32, #tpu.memory_space<vmem>>, vector<4x128xf32>
    tpu.vector_store %arg6[%c0_7, %c0_8], %8 {strides = array<i32>} : memref<4x128xf32, #tpu.memory_space<vmem>>, vector<4x128xf32>,
    %c3_i32 = arith.constant 3 : i32
    %10 = arith.cmpi eq, %arg1, %c3_i32 : i32
    %11 = arith.extui %10 : i1 to i32
    %c0_i32_9 = arith.constant 0 : i32
    %12 = arith.cmpi ne, %11, %c0_i32_9 : i32
    scf.if %12 {
      %c0_10 = arith.constant 0 : index
      %c0_11 = arith.constant 0 : index
      %13 = vector.load %arg6[%c0_10, %c0_11] : memref<4x128xf32, #tpu.memory_space<vmem>>, vector<4x128xf32>
      %c0_12 = arith.constant 0 : index
      %c0_13 = arith.constant 0 : index
      %14 = vector.load %arg4[%c0_12, %c0_13] : memref<1x128xf32, #tpu.memory_space<vmem>>, vector<1x128xf32>
      %15 = vector.broadcast %14 : vector<1x128xf32> to vector<4x128xf32>
      %16 = arith.addf %13, %15 : vector<4x128xf32>
      %c0_14 = arith.constant 0 : index
      %c0_15 = arith.constant 0 : index
      %c0_16 = arith.constant 0 : index
      %17 = vector.load %arg5[%c0_14, %c0_15, %c0_16] : memref<1x4x128xf32, #tpu.memory_space<vmem>>, vector<1x4x128xf32>
      %18 = vector.shape_cast %17 : vector<1x4x128xf32> to vector<4x128xf32>
      %19 = vector.shape_cast %16 : vector<4x128xf32> to vector<1x4x128xf32>
      tpu.vector_store %arg5[%c0_14, %c0_15, %c0_16], %19 {strides = array<i32>} : memref<1x4x128xf32, #tpu.memory_space<vmem>>, vector<1x4x128xf32>,
    } else {
    }
    return
  }
  func.func @transform_0(%arg0: i32, %arg1: i32) -> (i32, i32, i32) {
    %c0_i32 = arith.constant 0 : i32
    %c0_i32_0 = arith.constant 0 : i32
    return %arg0, %c0_i32, %arg1 : i32, i32, i32
  }
  func.func @transform_1(%arg0: i32, %arg1: i32) -> (i32, i32) {
    %c0_i32 = arith.constant 0 : i32
    %c0_i32_0 = arith.constant 0 : i32
    return %arg1, %c0_i32 : i32, i32
  }
  func.func @transform_2(%arg0: i32, %arg1: i32) -> (i32, i32) {
    %c0_i32 = arith.constant 0 : i32
    %c0_i32_0 = arith.constant 0 : i32
    %c0_i32_1 = arith.constant 0 : i32
    return %c0_i32, %c0_i32_0 : i32, i32
  }
  func.func @transform_3(%arg0: i32, %arg1: i32) -> (i32, i32, i32) {
    %c0_i32 = arith.constant 0 : i32
    %c0_i32_0 = arith.constant 0 : i32
    %c0_i32_1 = arith.constant 0 : i32
    return %arg0, %c0_i32, %c0_i32_0 : i32, i32, i32
  }
}

</mosaic_0001>

<llo_original>
// kernel: discriminator_forward.5
$region0: #{discriminator_forward.5}
  #allocation0 [shape = 'u32[]', space=smem, size = 0x4, offset = 0x4, fixed_abs, tag = 'smem constant byte address 0x4 - core index']
  #allocation1 [shape = 'u32[144,128]{1,0:T(1,128)}', space=vmem, size = 0x12000, scoped, tag = 'internal scratch']
  #allocation2 [shape = 'f32[256,128]{1,0:T(8,128)}', space=vmem, size = 0x20000, scoped, tag = 'scratch operand']
  %s0 = inlined_call_operand.vmem [shape: bf16[2,256,128], index: 0, kind: input, shape index: {}]
  %s1 = inlined_call_operand.vmem [shape: bf16[128,128], index: 1, kind: input, shape index: {}]
  %s2 = inlined_call_operand.vmem [shape: f32[1,128], index: 2, kind: input, shape index: {}]
  %s3 = inlined_call_operand.vmem [shape: f32[2,256,128], index: 3, kind: output, shape index: {}]
  %s4 = sld [smem:[#allocation0]]
  $region53: #{discriminator_forward.5} parent=0
    _
  %s6 = ssub.s32 1, %s4
  %s7 = scalar_select 0, %s6, %s4
  loop: start=0, step=1, limit=4
  $region2: #{discriminator_forward.5} parent=0 // loop_pre_header
    _
  $region3: #{discriminator_forward.5} parent=0 // loop_header
    %s9 = sphi 0, %s13
    %p10 = scmp.ge.s32.totalorder %s9, 4
    %s16 = sphi 0, %s28
    %s17 = sphi 0, %s24
    %s18 = sphi 0, %s16
    %s19 = sphi 0, %s17
    %s20 = sphi 0, %s18
    %s21 = sphi 0, %s19
    %s33 = sphi 0, %s35
    %s36 = sphi 0, %s33
    %s37 = sphi 0, %s36
    %s53 = sphi 0, %s37
    %s59 = sphi 0, %s61
    %s62 = sphi 0, %s59
    %s63 = sphi 0, %s62
    %s79 = sphi 0, %s63
    %s83 = sphi 0, %s83
    %s85 = sphi 0, %s83
    %s86 = sphi 0, %s85
    %s100 = sphi 0, %s86
    %s106 = sphi 0, %s108
    %s109 = sphi 0, %s106
    %s110 = sphi 0, %s109
    %s126 = sphi 0, %s110
  $region4: #{discriminator_forward.5} parent=0 // loop_header_branch
    %12 = sbr.rel (%p10) target = $region8
  $region5: #{discriminator_forward.5} parent=0 // loop_body
    %s14 = ssub.s32 %s9, 1
    %s15 = ssub.s32 %s9, 2
    %s22 = sadd.s32 1, %s17
    %p23 = scmp.ge.s32.totalorder %s22, 1
    %s24 = scalar_select %p23, 0, %s22
    %s25 = sadd.s32 1, %s16
    %s26 = scalar_select %p23, %s25, %s16
    %p27 = scmp.ge.s32.totalorder %s26, 2
    %s28 = scalar_select %p27, 0, %s26
    %s29 = ssub.s32 %s16, %s28
    %s30 = ssub.s32 %s17, %s24
    %s31 = sor.u32 %s29, %s30
    %p32 = scmp.eq.s32.totalorder %s31, 0
    %s34 = sadd.s32 %s33, 1
    %s35 = scalar_select %p32, %s33, %s34
    %p38 = pneg %p32
    %p39 = scmp.eq.s32.totalorder %s9, 1
    %p40 = por %p38, %p39
    %p41 = scmp.ne.s32.totalorder %s33, %s36
    %p42 = scmp.eq.s32.totalorder %s9, 0
    %p43 = por %p41, %p42
    %p44 = scmp.ne.s32.totalorder %s33, %s36
    %p45 = scmp.eq.s32.totalorder %s14, 1
    %p46 = por %p44, %p45
    %p47 = scmp.ne.s32.totalorder %s36, %s37
    %p48 = scmp.eq.s32.totalorder %s14, 0
    %p49 = por %p47, %p48
    %p50 = scmp.ne.s32.totalorder %s36, %s37
    %p51 = scmp.eq.s32.totalorder %s15, 1
    %p52 = por %p50, %p51
    %p54 = scmp.ne.s32.totalorder %s37, %s53
    %p55 = scmp.eq.s32.totalorder %s15, 0
    %p56 = por %p54, %p55
    %s57 = ssub.s32 %s17, %s24
    %p58 = scmp.eq.s32.totalorder %s57, 0
    %s60 = sadd.s32 %s59, 1
    %s61 = scalar_select %p58, %s59, %s60
    %p64 = pneg %p58
    %p65 = scmp.eq.s32.totalorder %s9, 1
    %p66 = por %p64, %p65
    %p67 = scmp.ne.s32.totalorder %s59, %s62
    %p68 = scmp.eq.s32.totalorder %s9, 0
    %p69 = por %p67, %p68
    %p70 = scmp.ne.s32.totalorder %s59, %s62
    %p71 = scmp.eq.s32.totalorder %s14, 1
    %p72 = por %p70, %p71
    %p73 = scmp.ne.s32.totalorder %s62, %s63
    %p74 = scmp.eq.s32.totalorder %s14, 0
    %p75 = por %p73, %p74
    %p76 = scmp.ne.s32.totalorder %s62, %s63
    %p77 = scmp.eq.s32.totalorder %s15, 1
    %p78 = por %p76, %p77
    %p80 = scmp.ne.s32.totalorder %s63, %s79
    %p81 = scmp.eq.s32.totalorder %s15, 0
    %p82 = por %p80, %p81
    %s84 = sadd.s32 %s83, 1
    %p87 = scmp.eq.s32.totalorder %s9, 1
    %p88 = scmp.ne.s32.totalorder %s83, %s85
    %p89 = scmp.eq.s32.totalorder %s9, 0
    %p90 = por %p88, %p89
    %p91 = scmp.ne.s32.totalorder %s83, %s85
    %p92 = scmp.eq.s32.totalorder %s14, 1
    %p93 = por %p91, %p92
    %p94 = scmp.ne.s32.totalorder %s85, %s86
    %p95 = scmp.eq.s32.totalorder %s14, 0
    %p96 = por %p94, %p95
    %p97 = scmp.ne.s32.totalorder %s85, %s86
    %p98 = scmp.eq.s32.totalorder %s15, 1
    %p99 = por %p97, %p98
    %p101 = scmp.ne.s32.totalorder %s86, %s100
    %p102 = scmp.eq.s32.totalorder %s15, 0
    %p103 = por %p101, %p102
    %s104 = ssub.s32 %s16, %s28
    %p105 = scmp.eq.s32.totalorder %s104, 0
    %s107 = sadd.s32 %s106, 1
    %s108 = scalar_select %p105, %s106, %s107
    %p111 = pneg %p105
    %p112 = scmp.eq.s32.totalorder %s9, 1
    %p113 = por %p111, %p112
    %p114 = scmp.ne.s32.totalorder %s106, %s109
    %p115 = scmp.eq.s32.totalorder %s9, 0
    %p116 = por %p114, %p115
    %p117 = scmp.ne.s32.totalorder %s106, %s109
    %p118 = scmp.eq.s32.totalorder %s14, 1
    %p119 = por %p117, %p118
    %p120 = scmp.ne.s32.totalorder %s109, %s110
    %p121 = scmp.eq.s32.totalorder %s14, 0
    %p122 = por %p120, %p121
    %p123 = scmp.ne.s32.totalorder %s109, %s110
    %p124 = scmp.eq.s32.totalorder %s15, 1
    %p125 = por %p123, %p124
    %p127 = scmp.ne.s32.totalorder %s110, %s126
    %p128 = scmp.eq.s32.totalorder %s15, 0
    %p129 = por %p127, %p128
    %p130 = scmp.le.s32.totalorder 1, %s9
    %p131 = scmp.lt.s32.totalorder %s9, 3
    %p132 = pnand %p130, %p131
    %p133 = pneg %p132
    // Predicated region
    $region9: #{discriminator_forward.5} parent=5 // pred_check
      _
    $region10: #{discriminator_forward.5} parent=5 // pred_check_branch
      %135 = sbr.rel (%p132) target = $region12
    $region11: #{discriminator_forward.5} parent=5 // pred_region
      %s136 = ssub.s32 %s9, 1
      // Predicated region
      $region13: #{discriminator_forward.5} parent=11 // pred_check
        %p137 = pneg %p75
      $region14: #{discriminator_forward.5} parent=11 // pred_check_branch
        %139 = sbr.rel (%p137) target = $region16
      $region15: #{discriminator_forward.5} parent=11 // pred_region
        %s140 = smul.u32 16, %s19
        %p141 = scmp.lt.s32.totalorder %s140, 15
        %s142 = scalar_select %p141, %s140, 15
        %s143 = smul.addr %s142, 4
        %s144 = scalar_lea.vmem %s1, %s143
        %s145 = smul.u32 16, %s19
      $region16: #{discriminator_forward.5} parent=11 // pred_fallthru
        _
      // Predicated region
      $region17: #{discriminator_forward.5} parent=11 // pred_check
        %p146 = pneg %p96
      $region18: #{discriminator_forward.5} parent=11 // pred_check_branch
        %148 = sbr.rel (%p146) target = $region20
      $region19: #{discriminator_forward.5} parent=11 // pred_region
        _
      $region20: #{discriminator_forward.5} parent=11 // pred_fallthru
        _
    $region12: #{discriminator_forward.5} parent=5 // pred_fallthru
      _
    %p149 = scmp.lt.s32.totalorder %s9, 2
    // Predicated region
    $region21: #{discriminator_forward.5} parent=5 // pred_check
      %p150 = pneg %p149
    $region22: #{discriminator_forward.5} parent=5 // pred_check_branch
      %152 = sbr.rel (%p150) target = $region24
    $region23: #{discriminator_forward.5} parent=5 // pred_region
      // Predicated region
      $region25: #{discriminator_forward.5} parent=23 // pred_check
        %p153 = pneg %p43
      $region26: #{discriminator_forward.5} parent=23 // pred_check_branch
        %155 = sbr.rel (%p153) target = $region28
      $region27: #{discriminator_forward.5} parent=23 // pred_region
        %p156 = scmp.lt.s32.totalorder %s16, 1
        %s157 = scalar_select %p156, %s16, 1
        %p158 = scmp.lt.s32.totalorder %s17, 0
        %s159 = scalar_select %p158, %s17, 0
        %s160 = smul.addr %s157, 32
        %s161 = sadd.s32 %s159, %s160
        %s162 = smul.addr %s161, 4
        %s163 = scalar_lea.vmem %s0, %s162
      $region28: #{discriminator_forward.5} parent=23 // pred_fallthru
        _
    $region24: #{discriminator_forward.5} parent=5 // pred_fallthru
      _
    %p164 = scmp.le.s32.totalorder 1, %s9
    %p165 = scmp.lt.s32.totalorder %s9, 3
    %p166 = pnand %p164, %p165
    %p167 = pneg %p166
    // Predicated region
    $region29: #{discriminator_forward.5} parent=5 // pred_check
      _
    $region30: #{discriminator_forward.5} parent=5 // pred_check_branch
      %169 = sbr.rel (%p166) target = $region32
    $region31: #{discriminator_forward.5} parent=5 // pred_region
      %s170 = ssub.s32 %s9, 1
      %p171 = scmp.lt.s32.totalorder %s18, 1
      %s172 = scalar_select %p171, %s18, 1
      %p173 = scmp.lt.s32.totalorder %s19, 0
      %s174 = scalar_select %p173, %s19, 0
      %s175 = smul.addr %s172, 32
      %s176 = sadd.s32 %s174, %s175
      %s177 = smul.addr %s176, 4
      %s178 = scalar_lea.vmem %s0, %s177
      %p179 = pneg %p49
      %p180 = pneg %p46
      %s181 = smul.u32 16, %s19
      %p182 = scmp.lt.s32.totalorder %s181, 15
      %s183 = scalar_select %p182, %s181, 15
      %s184 = smul.addr %s183, 4
      %s185 = scalar_lea.vmem %s1, %s184
      %p186 = pneg %p75
      %p187 = pneg %p72
      %p188 = pneg %p96
      %p189 = pneg %p93
      %p190 = pneg %p122
      %p191 = pneg %p119
      %p192 = scmp.lt.s32.totalorder %s18, 1
      %s193 = scalar_select %p192, %s18, 1
      %s194 = smul.addr %s193, 32
      %s195 = smul.addr %s194, 8
      %s196 = scalar_lea.vmem %s3, %s195
      %p197 = scmp.lt.s32.totalorder %s18, 1
      %s198 = scalar_select %p197, %s18, 1
      %p199 = scmp.lt.s32.totalorder %s19, 0
      %s200 = scalar_select %p199, %s19, 0
      %s201 = smul.addr %s198, 32
      %s202 = sadd.s32 %s200, %s201
      %s203 = smul.addr %s202, 4
      %s204 = scalar_lea.vmem %s0, %s203
      %s205 = smul.u32 16, %s19
      %p206 = scmp.lt.s32.totalorder %s205, 15
      %s207 = scalar_select %p206, %s205, 15
      %s208 = smul.addr %s207, 4
      %s209 = scalar_lea.vmem %s1, %s208
      %s210 = smul.u32 16, %s19
      %p211 = scmp.lt.s32.totalorder %s18, 1
      %s212 = scalar_select %p211, %s18, 1
      %s213 = smul.addr %s212, 32
      %s214 = smul.addr %s213, 8
      %s215 = scalar_lea.vmem %s3, %s214
      %p217 = scmp.eq.s32.totalorder %s19, 0
      // Predicated region
      $region33: #{discriminator_forward.5} parent=31 // pred_check
        %p218 = pneg %p217
      $region34: #{discriminator_forward.5} parent=31 // pred_check_branch
        %220 = sbr.rel (%p218) target = $region36
      $region35: #{discriminator_forward.5} parent=31 // pred_region
        %221 = vst [vmem:[#allocation2] sm:$0xff] 0.0
        %222 = vst [vmem:[#allocation2 + $0x8] sm:$0xff] 0.0
        %223 = vst [vmem:[#allocation2 + $0x10] sm:$0xff] 0.0
        %224 = vst [vmem:[#allocation2 + $0x18] sm:$0xff] 0.0
        %225 = vst [vmem:[#allocation2 + $0x20] sm:$0xff] 0.0
        %226 = vst [vmem:[#allocation2 + $0x28] sm:$0xff] 0.0
        %227 = vst [vmem:[#allocation2 + $0x30] sm:$0xff] 0.0
        %228 = vst [vmem:[#allocation2 + $0x38] sm:$0xff] 0.0
        %229 = vst [vmem:[#allocation2 + $0x40] sm:$0xff] 0.0
        %230 = vst [vmem:[#allocation2 + $0x48] sm:$0xff] 0.0
        %231 = vst [vmem:[#allocation2 + $0x50] sm:$0xff] 0.0
        %232 = vst [vmem:[#allocation2 + $0x58] sm:$0xff] 0.0
        %233 = vst [vmem:[#allocation2 + $0x60] sm:$0xff] 0.0
        %234 = vst [vmem:[#allocation2 + $0x68] sm:$0xff] 0.0
        %235 = vst [vmem:[#allocation2 + $0x70] sm:$0xff] 0.0
        %236 = vst [vmem:[#allocation2 + $0x78] sm:$0xff] 0.0
        %237 = vst [vmem:[#allocation2 + $0x80] sm:$0xff] 0.0
        %238 = vst [vmem:[#allocation2 + $0x88] sm:$0xff] 0.0
        %239 = vst [vmem:[#allocation2 + $0x90] sm:$0xff] 0.0
        %240 = vst [vmem:[#allocation2 + $0x98] sm:$0xff] 0.0
        %241 = vst [vmem:[#allocation2 + $0xa0] sm:$0xff] 0.0
        %242 = vst [vmem:[#allocation2 + $0xa8] sm:$0xff] 0.0
        %243 = vst [vmem:[#allocation2 + $0xb0] sm:$0xff] 0.0
        %244 = vst [vmem:[#allocation2 + $0xb8] sm:$0xff] 0.0
        %245 = vst [vmem:[#allocation2 + $0xc0] sm:$0xff] 0.0
        %246 = vst [vmem:[#allocation2 + $0xc8] sm:$0xff] 0.0
        %247 = vst [vmem:[#allocation2 + $0xd0] sm:$0xff] 0.0
        %248 = vst [vmem:[#allocation2 + $0xd8] sm:$0xff] 0.0
        %249 = vst [vmem:[#allocation2 + $0xe0] sm:$0xff] 0.0
        %250 = vst [vmem:[#allocation2 + $0xe8] sm:$0xff] 0.0
        %251 = vst [vmem:[#allocation2 + $0xf0] sm:$0xff] 0.0
        %252 = vst [vmem:[#allocation2 + $0xf8] sm:$0xff] 0.0
      $region36: #{discriminator_forward.5} parent=31 // pred_fallthru
        _
      %v253 = vld [vmem:[#allocation2] sm:$0xff]
      %v254 = vld [vmem:[#allocation2 + $0x8] sm:$0xff]
      %v255 = vld [vmem:[#allocation2 + $0x10] sm:$0xff]
      %v256 = vld [vmem:[#allocation2 + $0x18] sm:$0xff]
      %v257 = vld [vmem:[#allocation2 + $0x20] sm:$0xff]
      %v258 = vld [vmem:[#allocation2 + $0x28] sm:$0xff]
      %v259 = vld [vmem:[#allocation2 + $0x30] sm:$0xff]
      %v260 = vld [vmem:[#allocation2 + $0x38] sm:$0xff]
      %v261 = vld [vmem:[#allocation2 + $0x40] sm:$0xff]
      %v262 = vld [vmem:[#allocation2 + $0x48] sm:$0xff]
      %v263 = vld [vmem:[#allocation2 + $0x50] sm:$0xff]
      %v264 = vld [vmem:[#allocation2 + $0x58] sm:$0xff]
      %v265 = vld [vmem:[#allocation2 + $0x60] sm:$0xff]
      %v266 = vld [vmem:[#allocation2 + $0x68] sm:$0xff]
      %v267 = vld [vmem:[#allocation2 + $0x70] sm:$0xff]
      %v268 = vld [vmem:[#allocation2 + $0x78] sm:$0xff]
      %v269 = vld [vmem:[#allocation2 + $0x80] sm:$0xff]
      %v270 = vld [vmem:[#allocation2 + $0x88] sm:$0xff]
      %v271 = vld [vmem:[#allocation2 + $0x90] sm:$0xff]
      %v272 = vld [vmem:[#allocation2 + $0x98] sm:$0xff]
      %v273 = vld [vmem:[#allocation2 + $0xa0] sm:$0xff]
      %v274 = vld [vmem:[#allocation2 + $0xa8] sm:$0xff]
      %v275 = vld [vmem:[#allocation2 + $0xb0] sm:$0xff]
      %v276 = vld [vmem:[#allocation2 + $0xb8] sm:$0xff]
      %v277 = vld [vmem:[#allocation2 + $0xc0] sm:$0xff]
      %v278 = vld [vmem:[#allocation2 + $0xc8] sm:$0xff]
      %v279 = vld [vmem:[#allocation2 + $0xd0] sm:$0xff]
      %v280 = vld [vmem:[#allocation2 + $0xd8] sm:$0xff]
      %v281 = vld [vmem:[#allocation2 + $0xe0] sm:$0xff]
      %v282 = vld [vmem:[#allocation2 + $0xe8] sm:$0xff]
      %v283 = vld [vmem:[#allocation2 + $0xf0] sm:$0xff]
      %v284 = vld [vmem:[#allocation2 + $0xf8] sm:$0xff]
      %v285 = vld [vmem:[%s204] sm:$0xf]
      %v286 = vld [vmem:[%s204 + $0x4] sm:$0xf]
      %v287 = vld [vmem:[%s204 + $0x8] sm:$0xf]
      %v288 = vld [vmem:[%s204 + $0xc] sm:$0xf]
      %v289 = vld [vmem:[%s204 + $0x10] sm:$0xf]
      %v290 = vld [vmem:[%s204 + $0x14] sm:$0xf]
      %v291 = vld [vmem:[%s204 + $0x18] sm:$0xf]
      %v292 = vld [vmem:[%s204 + $0x1c] sm:$0xf]
      %v293 = vld [vmem:[%s204 + $0x20] sm:$0xf]
      %v294 = vld [vmem:[%s204 + $0x24] sm:$0xf]
      %v295 = vld [vmem:[%s204 + $0x28] sm:$0xf]
      %v296 = vld [vmem:[%s204 + $0x2c] sm:$0xf]
      %v297 = vld [vmem:[%s204 + $0x30] sm:$0xf]
      %v298 = vld [vmem:[%s204 + $0x34] sm:$0xf]
      %v299 = vld [vmem:[%s204 + $0x38] sm:$0xf]
      %v300 = vld [vmem:[%s204 + $0x3c] sm:$0xf]
      %v301 = vld [vmem:[%s204 + $0x40] sm:$0xf]
      %v302 = vld [vmem:[%s204 + $0x44] sm:$0xf]
      %v303 = vld [vmem:[%s204 + $0x48] sm:$0xf]
      %v304 = vld [vmem:[%s204 + $0x4c] sm:$0xf]
      %v305 = vld [vmem:[%s204 + $0x50] sm:$0xf]
      %v306 = vld [vmem:[%s204 + $0x54] sm:$0xf]
      %v307 = vld [vmem:[%s204 + $0x58] sm:$0xf]
      %v308 = vld [vmem:[%s204 + $0x5c] sm:$0xf]
      %v309 = vld [vmem:[%s204 + $0x60] sm:$0xf]
      %v310 = vld [vmem:[%s204 + $0x64] sm:$0xf]
      %v311 = vld [vmem:[%s204 + $0x68] sm:$0xf]
      %v312 = vld [vmem:[%s204 + $0x6c] sm:$0xf]
      %v313 = vld [vmem:[%s204 + $0x70] sm:$0xf]
      %v314 = vld [vmem:[%s204 + $0x74] sm:$0xf]
      %v315 = vld [vmem:[%s204 + $0x78] sm:$0xf]
      %v316 = vld [vmem:[%s204 + $0x7c] sm:$0xf]
      %v317 = vld [vmem:[%s209] sm:$0xf]
      %v318 = vld [vmem:[%s209 + $0x4] sm:$0xf]
      %v319 = vld [vmem:[%s209 + $0x8] sm:$0xf]
      %v320 = vld [vmem:[%s209 + $0xc] sm:$0xf]
      %v321 = vld [vmem:[%s209 + $0x10] sm:$0xf]
      %v322 = vld [vmem:[%s209 + $0x14] sm:$0xf]
      %v323 = vld [vmem:[%s209 + $0x18] sm:$0xf]
      %v324 = vld [vmem:[%s209 + $0x1c] sm:$0xf]
      %v325 = vld [vmem:[%s209 + $0x20] sm:$0xf]
      %v326 = vld [vmem:[%s209 + $0x24] sm:$0xf]
      %v327 = vld [vmem:[%s209 + $0x28] sm:$0xf]
      %v328 = vld [vmem:[%s209 + $0x2c] sm:$0xf]
      %v329 = vld [vmem:[%s209 + $0x30] sm:$0xf]
      %v330 = vld [vmem:[%s209 + $0x34] sm:$0xf]
      %v331 = vld [vmem:[%s209 + $0x38] sm:$0xf]
      %v332 = vld [vmem:[%s209 + $0x3c] sm:$0xf]
      %v365 = vunpack.c.l.b16 %v285
      %v366 = vunpack.c.l.b16 %v286
      %v367 = vunpack.c.l.b16 %v287
      %v368 = vunpack.c.l.b16 %v288
      %v369 = vunpack.c.l.b16 %v289
      %v370 = vunpack.c.l.b16 %v290
      %v371 = vunpack.c.l.b16 %v291
      %v372 = vunpack.c.l.b16 %v292
      %v373 = vunpack.c.l.b16 %v293
      %v374 = vunpack.c.l.b16 %v294
      %v375 = vunpack.c.l.b16 %v295
      %v376 = vunpack.c.l.b16 %v296
      %v377 = vunpack.c.l.b16 %v297
      %v378 = vunpack.c.l.b16 %v298
      %v379 = vunpack.c.l.b16 %v299
      %v380 = vunpack.c.l.b16 %v300
      %v381 = vunpack.c.l.b16 %v301
      %v382 = vunpack.c.l.b16 %v302
      %v383 = vunpack.c.l.b16 %v303
      %v384 = vunpack.c.l.b16 %v304
      %v385 = vunpack.c.l.b16 %v305
      %v386 = vunpack.c.l.b16 %v306
      %v387 = vunpack.c.l.b16 %v307
      %v388 = vunpack.c.l.b16 %v308
      %v389 = vunpack.c.l.b16 %v309
      %v390 = vunpack.c.l.b16 %v310
      %v391 = vunpack.c.l.b16 %v311
      %v392 = vunpack.c.l.b16 %v312
      %v393 = vunpack.c.l.b16 %v313
      %v394 = vunpack.c.l.b16 %v314
      %v395 = vunpack.c.l.b16 %v315
      %v396 = vunpack.c.l.b16 %v316
      %v397 = vpack.c.b16 %v366, %v365
      %v398 = vpack.c.b16 %v368, %v367
      %v399 = vpack.c.b16 %v370, %v369
      %v400 = vpack.c.b16 %v372, %v371
      %v401 = vpack.c.b16 %v374, %v373
      %v402 = vpack.c.b16 %v376, %v375
      %v403 = vpack.c.b16 %v378, %v377
      %v404 = vpack.c.b16 %v380, %v379
      %v405 = vpack.c.b16 %v382, %v381
      %v406 = vpack.c.b16 %v384, %v383
      %v407 = vpack.c.b16 %v386, %v385
      %v408 = vpack.c.b16 %v388, %v387
      %v409 = vpack.c.b16 %v390, %v389
      %v410 = vpack.c.b16 %v392, %v391
      %v411 = vpack.c.b16 %v394, %v393
      %v412 = vpack.c.b16 %v396, %v395
      %v445 = vunpack.c.l.b16 %v317
      %v446 = vunpack.c.l.b16 %v318
      %v447 = vunpack.c.l.b16 %v319
      %v448 = vunpack.c.l.b16 %v320
      %v449 = vunpack.c.l.b16 %v321
      %v450 = vunpack.c.l.b16 %v322
      %v451 = vunpack.c.l.b16 %v323
      %v452 = vunpack.c.l.b16 %v324
      %v453 = vunpack.c.l.b16 %v325
      %v454 = vunpack.c.l.b16 %v326
      %v455 = vunpack.c.l.b16 %v327
      %v456 = vunpack.c.l.b16 %v328
      %v457 = vunpack.c.l.b16 %v329
      %v458 = vunpack.c.l.b16 %v330
      %v459 = vunpack.c.l.b16 %v331
      %v460 = vunpack.c.l.b16 %v332
      %v461 = vpack.c.b16 %v446, %v445
      %v462 = vpack.c.b16 %v448, %v447
      %v463 = vpack.c.b16 %v450, %v449
      %v464 = vpack.c.b16 %v452, %v451
      %v465 = vpack.c.b16 %v454, %v453
      %v466 = vpack.c.b16 %v456, %v455
      %v467 = vpack.c.b16 %v458, %v457
      %v468 = vpack.c.b16 %v460, %v459
      %477 = vmatprep.subr.bf16.mxu0 0
      %478 = vmatpush1.bf16.msra.mxu0 %v461
      %479 = vmatprep.subr.bf16.mxu0 0
      %480 = vmatpush1.bf16.msra.mxu0 %v462
      %481 = vmatprep.subr.bf16.mxu0 0
      %482 = vmatpush1.bf16.msra.mxu0 %v463
      %483 = vmatprep.subr.bf16.mxu0 0
      %484 = vmatpush1.bf16.msra.mxu0 %v464
      %485 = vmatprep.subr.bf16.mxu0 0
      %486 = vmatpush1.bf16.msra.mxu0 %v465
      %487 = vmatprep.subr.bf16.mxu0 0
      %488 = vmatpush1.bf16.msra.mxu0 %v466
      %489 = vmatprep.subr.bf16.mxu0 0
      %490 = vmatpush1.bf16.msra.mxu0 %v467
      %491 = vmatprep.subr.bf16.mxu0 0
      %492 = vmatpush1.bf16.msra.mxu0 %v468
      %493 = vmatprep.subr.bf16.mxu0 0
      %494 = vmatpush1.bf16.msra.mxu0 0
      %495 = vmatprep.subr.bf16.mxu0 0
      %496 = vmatpush1.bf16.msra.mxu0 0
      %497 = vmatprep.subr.bf16.mxu0 0
      %498 = vmatpush1.bf16.msra.mxu0 0
      %499 = vmatprep.subr.bf16.mxu0 0
      %500 = vmatpush1.bf16.msra.mxu0 0
      %501 = vmatprep.subr.bf16.mxu0 0
      %502 = vmatpush1.bf16.msra.mxu0 0
      %503 = vmatprep.subr.bf16.mxu0 0
      %504 = vmatpush1.bf16.msra.mxu0 0
      %505 = vmatprep.subr.bf16.mxu0 0
      %506 = vmatpush1.bf16.msra.mxu0 0
      %507 = vmatprep.subr.bf16.mxu0 0
      %508 = vmatpush1.bf16.msra.mxu0 0
      %509 = vmatprep.mubr.bf16.mxu0 0
      %510 = vmatmul.mubr.bf16.gmra.mrb[0].mxu0 %v397
      %v511 = vpop.f32.mrb[0].mxu0
      %v512 = vadd.f32 0.0, %v511
      %v513 = vpop.f32.mrb[0].mxu0
      %v514 = vpop.f32.mrb[0].mxu0
      %v515 = vadd.f32 0.0, %v514
      %v516 = vpop.f32.mrb[0].mxu0
      %517 = vmatprep.mubr.bf16.mxu0 0
      %518 = vmatmul.mubr.bf16.gmra.mrb[0].mxu0 %v398
      %v519 = vpop.f32.mrb[0].mxu0
      %v520 = vadd.f32 0.0, %v519
      %v521 = vpop.f32.mrb[0].mxu0
      %v522 = vpop.f32.mrb[0].mxu0
      %v523 = vadd.f32 0.0, %v522
      %v524 = vpop.f32.mrb[0].mxu0
      %525 = vmatprep.mubr.bf16.mxu0 0
      %526 = vmatmul.mubr.bf16.gmra.mrb[0].mxu0 %v399
      %v527 = vpop.f32.mrb[0].mxu0
      %v528 = vadd.f32 0.0, %v527
      %v529 = vpop.f32.mrb[0].mxu0
      %v530 = vpop.f32.mrb[0].mxu0
      %v531 = vadd.f32 0.0, %v530
      %v532 = vpop.f32.mrb[0].mxu0
      %533 = vmatprep.mubr.bf16.mxu0 0
      %534 = vmatmul.mubr.bf16.gmra.mrb[0].mxu0 %v400
      %v535 = vpop.f32.mrb[0].mxu0
      %v536 = vadd.f32 0.0, %v535
      %v537 = vpop.f32.mrb[0].mxu0
      %v538 = vpop.f32.mrb[0].mxu0
      %v539 = vadd.f32 0.0, %v538
      %v540 = vpop.f32.mrb[0].mxu0
      %541 = vmatprep.mubr.bf16.mxu0 0
      %542 = vmatmul.mubr.bf16.gmra.mrb[0].mxu0 %v401
      %v543 = vpop.f32.mrb[0].mxu0
      %v544 = vadd.f32 0.0, %v543
      %v545 = vpop.f32.mrb[0].mxu0
      %v546 = vpop.f32.mrb[0].mxu0
      %v547 = vadd.f32 0.0, %v546
      %v548 = vpop.f32.mrb[0].mxu0
      %549 = vmatprep.mubr.bf16.mxu0 0
      %550 = vmatmul.mubr.bf16.gmra.mrb[0].mxu0 %v402
      %v551 = vpop.f32.mrb[0].mxu0
      %v552 = vadd.f32 0.0, %v551
      %v553 = vpop.f32.mrb[0].mxu0
      %v554 = vpop.f32.mrb[0].mxu0
      %v555 = vadd.f32 0.0, %v554
      %v556 = vpop.f32.mrb[0].mxu0
      %557 = vmatprep.mubr.bf16.mxu0 0
      %558 = vmatmul.mubr.bf16.gmra.mrb[0].mxu0 %v403
      %v559 = vpop.f32.mrb[0].mxu0
      %v560 = vadd.f32 0.0, %v559
      %v561 = vpop.f32.mrb[0].mxu0
      %v562 = vpop.f32.mrb[0].mxu0
      %v563 = vadd.f32 0.0, %v562
      %v564 = vpop.f32.mrb[0].mxu0
      %565 = vmatprep.mubr.bf16.mxu0 0
      %566 = vmatmul.mubr.bf16.gmra.mrb[0].mxu0 %v404
      %v567 = vpop.f32.mrb[0].mxu0
      %v568 = vadd.f32 0.0, %v567
      %v569 = vpop.f32.mrb[0].mxu0
      %v570 = vpop.f32.mrb[0].mxu0
      %v571 = vadd.f32 0.0, %v570
      %v572 = vpop.f32.mrb[0].mxu0
      %573 = vmatprep.mubr.bf16.mxu0 0
      %574 = vmatmul.mubr.bf16.gmra.mrb[0].mxu0 %v405
      %v575 = vpop.f32.mrb[0].mxu0
      %v576 = vadd.f32 0.0, %v575
      %v577 = vpop.f32.mrb[0].mxu0
      %v578 = vpop.f32.mrb[0].mxu0
      %v579 = vadd.f32 0.0, %v578
      %v580 = vpop.f32.mrb[0].mxu0
      %581 = vmatprep.mubr.bf16.mxu0 0
      %582 = vmatmul.mubr.bf16.gmra.mrb[0].mxu0 %v406
      %v583 = vpop.f32.mrb[0].mxu0
      %v584 = vadd.f32 0.0, %v583
      %v585 = vpop.f32.mrb[0].mxu0
      %v586 = vpop.f32.mrb[0].mxu0
      %v587 = vadd.f32 0.0, %v586
      %v588 = vpop.f32.mrb[0].mxu0
      %589 = vmatprep.mubr.bf16.mxu0 0
      %590 = vmatmul.mubr.bf16.gmra.mrb[0].mxu0 %v407
      %v591 = vpop.f32.mrb[0].mxu0
      %v592 = vadd.f32 0.0, %v591
      %v593 = vpop.f32.mrb[0].mxu0
      %v594 = vpop.f32.mrb[0].mxu0
      %v595 = vadd.f32 0.0, %v594
      %v596 = vpop.f32.mrb[0].mxu0
      %597 = vmatprep.mubr.bf16.mxu0 0
      %598 = vmatmul.mubr.bf16.gmra.mrb[0].mxu0 %v408
      %v599 = vpop.f32.mrb[0].mxu0
      %v600 = vadd.f32 0.0, %v599
      %v601 = vpop.f32.mrb[0].mxu0
      %v602 = vpop.f32.mrb[0].mxu0
      %v603 = vadd.f32 0.0, %v602
      %v604 = vpop.f32.mrb[0].mxu0
      %605 = vmatprep.mubr.bf16.mxu0 0
      %606 = vmatmul.mubr.bf16.gmra.mrb[0].mxu0 %v409
      %v607 = vpop.f32.mrb[0].mxu0
      %v608 = vadd.f32 0.0, %v607
      %v609 = vpop.f32.mrb[0].mxu0
      %v610 = vpop.f32.mrb[0].mxu0
      %v611 = vadd.f32 0.0, %v610
      %v612 = vpop.f32.mrb[0].mxu0
      %613 = vmatprep.mubr.bf16.mxu0 0
      %614 = vmatmul.mubr.bf16.gmra.mrb[0].mxu0 %v410
      %v615 = vpop.f32.mrb[0].mxu0
      %v616 = vadd.f32 0.0, %v615
      %v617 = vpop.f32.mrb[0].mxu0
      %v618 = vpop.f32.mrb[0].mxu0
      %v619 = vadd.f32 0.0, %v618
      %v620 = vpop.f32.mrb[0].mxu0
      %621 = vmatprep.mubr.bf16.mxu0 0
      %622 = vmatmul.mubr.bf16.gmra.mrb[0].mxu0 %v411
      %v623 = vpop.f32.mrb[0].mxu0
      %v624 = vadd.f32 0.0, %v623
      %v625 = vpop.f32.mrb[0].mxu0
      %v626 = vpop.f32.mrb[0].mxu0
      %v627 = vadd.f32 0.0, %v626
      %v628 = vpop.f32.mrb[0].mxu0
      %629 = vmatprep.mubr.bf16.mxu0 0
      %630 = vmatmul.mubr.bf16.gmra.mrb[0].mxu0 %v412
      %v631 = vpop.f32.mrb[0].mxu0
      %v632 = vadd.f32 0.0, %v631
      %v633 = vpop.f32.mrb[0].mxu0
      %v634 = vpop.f32.mrb[0].mxu0
      %v635 = vadd.f32 0.0, %v634
      %v636 = vpop.f32.mrb[0].mxu0
      %637 = vdwg.mxu0
      %v638 = vadd.f32 %v253, %v512
      %v639 = vadd.f32 %v254, %v515
      %v640 = vadd.f32 %v255, %v520
      %v641 = vadd.f32 %v256, %v523
      %v642 = vadd.f32 %v257, %v528
      %v643 = vadd.f32 %v258, %v531
      %v644 = vadd.f32 %v259, %v536
      %v645 = vadd.f32 %v260, %v539
      %v646 = vadd.f32 %v261, %v544
      %v647 = vadd.f32 %v262, %v547
      %v648 = vadd.f32 %v263, %v552
      %v649 = vadd.f32 %v264, %v555
      %v650 = vadd.f32 %v265, %v560
      %v651 = vadd.f32 %v266, %v563
      %v652 = vadd.f32 %v267, %v568
      %v653 = vadd.f32 %v268, %v571
      %v654 = vadd.f32 %v269, %v576
      %v655 = vadd.f32 %v270, %v579
      %v656 = vadd.f32 %v271, %v584
      %v657 = vadd.f32 %v272, %v587
      %v658 = vadd.f32 %v273, %v592
      %v659 = vadd.f32 %v274, %v595
      %v660 = vadd.f32 %v275, %v600
      %v661 = vadd.f32 %v276, %v603
      %v662 = vadd.f32 %v277, %v608
      %v663 = vadd.f32 %v278, %v611
      %v664 = vadd.f32 %v279, %v616
      %v665 = vadd.f32 %v280, %v619
      %v666 = vadd.f32 %v281, %v624
      %v667 = vadd.f32 %v282, %v627
      %v668 = vadd.f32 %v283, %v632
      %v669 = vadd.f32 %v284, %v635
      %670 = vst [vmem:[#allocation2] sm:$0xff] %v638
      %671 = vst [vmem:[#allocation2 + $0x8] sm:$0xff] %v639
      %672 = vst [vmem:[#allocation2 + $0x10] sm:$0xff] %v640
      %673 = vst [vmem:[#allocation2 + $0x18] sm:$0xff] %v641
      %674 = vst [vmem:[#allocation2 + $0x20] sm:$0xff] %v642
      %675 = vst [vmem:[#allocation2 + $0x28] sm:$0xff] %v643
      %676 = vst [vmem:[#allocation2 + $0x30] sm:$0xff] %v644
      %677 = vst [vmem:[#allocation2 + $0x38] sm:$0xff] %v645
      %678 = vst [vmem:[#allocation2 + $0x40] sm:$0xff] %v646
      %679 = vst [vmem:[#allocation2 + $0x48] sm:$0xff] %v647
      %680 = vst [vmem:[#allocation2 + $0x50] sm:$0xff] %v648
      %681 = vst [vmem:[#allocation2 + $0x58] sm:$0xff] %v649
      %682 = vst [vmem:[#allocation2 + $0x60] sm:$0xff] %v650
      %683 = vst [vmem:[#allocation2 + $0x68] sm:$0xff] %v651
      %684 = vst [vmem:[#allocation2 + $0x70] sm:$0xff] %v652
      %685 = vst [vmem:[#allocation2 + $0x78] sm:$0xff] %v653
      %686 = vst [vmem:[#allocation2 + $0x80] sm:$0xff] %v654
      %687 = vst [vmem:[#allocation2 + $0x88] sm:$0xff] %v655
      %688 = vst [vmem:[#allocation2 + $0x90] sm:$0xff] %v656
      %689 = vst [vmem:[#allocation2 + $0x98] sm:$0xff] %v657
      %690 = vst [vmem:[#allocation2 + $0xa0] sm:$0xff] %v658
      %691 = vst [vmem:[#allocation2 + $0xa8] sm:$0xff] %v659
      %692 = vst [vmem:[#allocation2 + $0xb0] sm:$0xff] %v660
      %693 = vst [vmem:[#allocation2 + $0xb8] sm:$0xff] %v661
      %694 = vst [vmem:[#allocation2 + $0xc0] sm:$0xff] %v662
      %695 = vst [vmem:[#allocation2 + $0xc8] sm:$0xff] %v663
      %696 = vst [vmem:[#allocation2 + $0xd0] sm:$0xff] %v664
      %697 = vst [vmem:[#allocation2 + $0xd8] sm:$0xff] %v665
      %698 = vst [vmem:[#allocation2 + $0xe0] sm:$0xff] %v666
      %699 = vst [vmem:[#allocation2 + $0xe8] sm:$0xff] %v667
      %700 = vst [vmem:[#allocation2 + $0xf0] sm:$0xff] %v668
      %701 = vst [vmem:[#allocation2 + $0xf8] sm:$0xff] %v669
      // Predicated region
      $region37: #{discriminator_forward.5} parent=31 // pred_check
        %p702 = pneg %p217
      $region38: #{discriminator_forward.5} parent=31 // pred_check_branch
        %704 = sbr.rel (%p702) target = $region40
      $region39: #{discriminator_forward.5} parent=31 // pred_region
        %v705 = vld [vmem:[#allocation2] sm:$0xff]
        %v706 = vld [vmem:[#allocation2 + $0x8] sm:$0xff]
        %v707 = vld [vmem:[#allocation2 + $0x10] sm:$0xff]
        %v708 = vld [vmem:[#allocation2 + $0x18] sm:$0xff]
        %v709 = vld [vmem:[#allocation2 + $0x20] sm:$0xff]
        %v710 = vld [vmem:[#allocation2 + $0x28] sm:$0xff]
        %v711 = vld [vmem:[#allocation2 + $0x30] sm:$0xff]
        %v712 = vld [vmem:[#allocation2 + $0x38] sm:$0xff]
        %v713 = vld [vmem:[#allocation2 + $0x40] sm:$0xff]
        %v714 = vld [vmem:[#allocation2 + $0x48] sm:$0xff]
        %v715 = vld [vmem:[#allocation2 + $0x50] sm:$0xff]
        %v716 = vld [vmem:[#allocation2 + $0x58] sm:$0xff]
        %v717 = vld [vmem:[#allocation2 + $0x60] sm:$0xff]
        %v718 = vld [vmem:[#allocation2 + $0x68] sm:$0xff]
        %v719 = vld [vmem:[#allocation2 + $0x70] sm:$0xff]
        %v720 = vld [vmem:[#allocation2 + $0x78] sm:$0xff]
        %v721 = vld [vmem:[#allocation2 + $0x80] sm:$0xff]
        %v722 = vld [vmem:[#allocation2 + $0x88] sm:$0xff]
        %v723 = vld [vmem:[#allocation2 + $0x90] sm:$0xff]
        %v724 = vld [vmem:[#allocation2 + $0x98] sm:$0xff]
        %v725 = vld [vmem:[#allocation2 + $0xa0] sm:$0xff]
        %v726 = vld [vmem:[#allocation2 + $0xa8] sm:$0xff]
        %v727 = vld [vmem:[#allocation2 + $0xb0] sm:$0xff]
        %v728 = vld [vmem:[#allocation2 + $0xb8] sm:$0xff]
        %v729 = vld [vmem:[#allocation2 + $0xc0] sm:$0xff]
        %v730 = vld [vmem:[#allocation2 + $0xc8] sm:$0xff]
        %v731 = vld [vmem:[#allocation2 + $0xd0] sm:$0xff]
        %v732 = vld [vmem:[#allocation2 + $0xd8] sm:$0xff]
        %v733 = vld [vmem:[#allocation2 + $0xe0] sm:$0xff]
        %v734 = vld [vmem:[#allocation2 + $0xe8] sm:$0xff]
        %v735 = vld [vmem:[#allocation2 + $0xf0] sm:$0xff]
        %v736 = vld [vmem:[#allocation2 + $0xf8] sm:$0xff]
        %v737 = vld [vmem:[%s2] sm:$0x1]
        %v739 = vlaneseq
        %v740 = vshrl.u32 %v739, 7
        %v741 = vsub.s32 0, %v740
        %v742 = vrot.slane %v737, %v741
        %v744 = vadd.f32 %v705, %v742
        %v745 = vadd.f32 %v706, %v742
        %v746 = vadd.f32 %v707, %v742
        %v747 = vadd.f32 %v708, %v742
        %v748 = vadd.f32 %v709, %v742
        %v749 = vadd.f32 %v710, %v742
        %v750 = vadd.f32 %v711, %v742
        %v751 = vadd.f32 %v712, %v742
        %v752 = vadd.f32 %v713, %v742
        %v753 = vadd.f32 %v714, %v742
        %v754 = vadd.f32 %v715, %v742
        %v755 = vadd.f32 %v716, %v742
        %v756 = vadd.f32 %v717, %v742
        %v757 = vadd.f32 %v718, %v742
        %v758 = vadd.f32 %v719, %v742
        %v759 = vadd.f32 %v720, %v742
        %v760 = vadd.f32 %v721, %v742
        %v761 = vadd.f32 %v722, %v742
        %v762 = vadd.f32 %v723, %v742
        %v763 = vadd.f32 %v724, %v742
        %v764 = vadd.f32 %v725, %v742
        %v765 = vadd.f32 %v726, %v742
        %v766 = vadd.f32 %v727, %v742
        %v767 = vadd.f32 %v728, %v742
        %v768 = vadd.f32 %v729, %v742
        %v769 = vadd.f32 %v730, %v742
        %v770 = vadd.f32 %v731, %v742
        %v771 = vadd.f32 %v732, %v742
        %v772 = vadd.f32 %v733, %v742
        %v773 = vadd.f32 %v734, %v742
        %v774 = vadd.f32 %v735, %v742
        %v775 = vadd.f32 %v736, %v742
        %vm776 = vcmp.ge.f32.partialorder %v744, 0.0
        %vm777 = vcmp.ge.f32.partialorder %v745, 0.0
        %vm778 = vcmp.ge.f32.partialorder %v746, 0.0
        %vm779 = vcmp.ge.f32.partialorder %v747, 0.0
        %vm780 = vcmp.ge.f32.partialorder %v748, 0.0
        %vm781 = vcmp.ge.f32.partialorder %v749, 0.0
        %vm782 = vcmp.ge.f32.partialorder %v750, 0.0
        %vm783 = vcmp.ge.f32.partialorder %v751, 0.0
        %vm784 = vcmp.ge.f32.partialorder %v752, 0.0
        %vm785 = vcmp.ge.f32.partialorder %v753, 0.0
        %vm786 = vcmp.ge.f32.partialorder %v754, 0.0
        %vm787 = vcmp.ge.f32.partialorder %v755, 0.0
        %vm788 = vcmp.ge.f32.partialorder %v756, 0.0
        %vm789 = vcmp.ge.f32.partialorder %v757, 0.0
        %vm790 = vcmp.ge.f32.partialorder %v758, 0.0
        %vm791 = vcmp.ge.f32.partialorder %v759, 0.0
        %vm792 = vcmp.ge.f32.partialorder %v760, 0.0
        %vm793 = vcmp.ge.f32.partialorder %v761, 0.0
        %vm794 = vcmp.ge.f32.partialorder %v762, 0.0
        %vm795 = vcmp.ge.f32.partialorder %v763, 0.0
        %vm796 = vcmp.ge.f32.partialorder %v764, 0.0
        %vm797 = vcmp.ge.f32.partialorder %v765, 0.0
        %vm798 = vcmp.ge.f32.partialorder %v766, 0.0
        %vm799 = vcmp.ge.f32.partialorder %v767, 0.0
        %vm800 = vcmp.ge.f32.partialorder %v768, 0.0
        %vm801 = vcmp.ge.f32.partialorder %v769, 0.0
        %vm802 = vcmp.ge.f32.partialorder %v770, 0.0
        %vm803 = vcmp.ge.f32.partialorder %v771, 0.0
        %vm804 = vcmp.ge.f32.partialorder %v772, 0.0
        %vm805 = vcmp.ge.f32.partialorder %v773, 0.0
        %vm806 = vcmp.ge.f32.partialorder %v774, 0.0
        %vm807 = vcmp.ge.f32.partialorder %v775, 0.0
        %v808 = vmul.f32 %v744, 0.2
        %v809 = vmul.f32 %v745, 0.2
        %v810 = vmul.f32 %v746, 0.2
        %v811 = vmul.f32 %v747, 0.2
        %v812 = vmul.f32 %v748, 0.2
        %v813 = vmul.f32 %v749, 0.2
        %v814 = vmul.f32 %v750, 0.2
        %v815 = vmul.f32 %v751, 0.2
        %v816 = vmul.f32 %v752, 0.2
        %v817 = vmul.f32 %v753, 0.2
        %v818 = vmul.f32 %v754, 0.2
        %v819 = vmul.f32 %v755, 0.2
        %v820 = vmul.f32 %v756, 0.2
        %v821 = vmul.f32 %v757, 0.2
        %v822 = vmul.f32 %v758, 0.2
        %v823 = vmul.f32 %v759, 0.2
        %v824 = vmul.f32 %v760, 0.2
        %v825 = vmul.f32 %v761, 0.2
        %v826 = vmul.f32 %v762, 0.2
        %v827 = vmul.f32 %v763, 0.2
        %v828 = vmul.f32 %v764, 0.2
        %v829 = vmul.f32 %v765, 0.2
        %v830 = vmul.f32 %v766, 0.2
        %v831 = vmul.f32 %v767, 0.2
        %v832 = vmul.f32 %v768, 0.2
        %v833 = vmul.f32 %v769, 0.2
        %v834 = vmul.f32 %v770, 0.2
        %v835 = vmul.f32 %v771, 0.2
        %v836 = vmul.f32 %v772, 0.2
        %v837 = vmul.f32 %v773, 0.2
        %v838 = vmul.f32 %v774, 0.2
        %v839 = vmul.f32 %v775, 0.2
        %v840 = vsel %vm776, %v744, %v808
        %v841 = vsel %vm777, %v745, %v809
        %v842 = vsel %vm778, %v746, %v810
        %v843 = vsel %vm779, %v747, %v811
        %v844 = vsel %vm780, %v748, %v812
        %v845 = vsel %vm781, %v749, %v813
        %v846 = vsel %vm782, %v750, %v814
        %v847 = vsel %vm783, %v751, %v815
        %v848 = vsel %vm784, %v752, %v816
        %v849 = vsel %vm785, %v753, %v817
        %v850 = vsel %vm786, %v754, %v818
        %v851 = vsel %vm787, %v755, %v819
        %v852 = vsel %vm788, %v756, %v820
        %v853 = vsel %vm789, %v757, %v821
        %v854 = vsel %vm790, %v758, %v822
        %v855 = vsel %vm791, %v759, %v823
        %v856 = vsel %vm792, %v760, %v824
        %v857 = vsel %vm793, %v761, %v825
        %v858 = vsel %vm794, %v762, %v826
        %v859 = vsel %vm795, %v763, %v827
        %v860 = vsel %vm796, %v764, %v828
        %v861 = vsel %vm797, %v765, %v829
        %v862 = vsel %vm798, %v766, %v830
        %v863 = vsel %vm799, %v767, %v831
        %v864 = vsel %vm800, %v768, %v832
        %v865 = vsel %vm801, %v769, %v833
        %v866 = vsel %vm802, %v770, %v834
        %v867 = vsel %vm803, %v771, %v835
        %v868 = vsel %vm804, %v772, %v836
        %v869 = vsel %vm805, %v773, %v837
        %v870 = vsel %vm806, %v774, %v838
        %v871 = vsel %vm807, %v775, %v839
        %872 = vst [vmem:[%s215] sm:$0xff] %v840
        %873 = vst [vmem:[%s215 + $0x8] sm:$0xff] %v841
        %874 = vst [vmem:[%s215 + $0x10] sm:$0xff] %v842
        %875 = vst [vmem:[%s215 + $0x18] sm:$0xff] %v843
        %876 = vst [vmem:[%s215 + $0x20] sm:$0xff] %v844
        %877 = vst [vmem:[%s215 + $0x28] sm:$0xff] %v845
        %878 = vst [vmem:[%s215 + $0x30] sm:$0xff] %v846
        %879 = vst [vmem:[%s215 + $0x38] sm:$0xff] %v847
        %880 = vst [vmem:[%s215 + $0x40] sm:$0xff] %v848
        %881 = vst [vmem:[%s215 + $0x48] sm:$0xff] %v849
        %882 = vst [vmem:[%s215 + $0x50] sm:$0xff] %v850
        %883 = vst [vmem:[%s215 + $0x58] sm:$0xff] %v851
        %884 = vst [vmem:[%s215 + $0x60] sm:$0xff] %v852
        %885 = vst [vmem:[%s215 + $0x68] sm:$0xff] %v853
        %886 = vst [vmem:[%s215 + $0x70] sm:$0xff] %v854
        %887 = vst [vmem:[%s215 + $0x78] sm:$0xff] %v855
        %888 = vst [vmem:[%s215 + $0x80] sm:$0xff] %v856
        %889 = vst [vmem:[%s215 + $0x88] sm:$0xff] %v857
        %890 = vst [vmem:[%s215 + $0x90] sm:$0xff] %v858
        %891 = vst [vmem:[%s215 + $0x98] sm:$0xff] %v859
        %892 = vst [vmem:[%s215 + $0xa0] sm:$0xff] %v860
        %893 = vst [vmem:[%s215 + $0xa8] sm:$0xff] %v861
        %894 = vst [vmem:[%s215 + $0xb0] sm:$0xff] %v862
        %895 = vst [vmem:[%s215 + $0xb8] sm:$0xff] %v863
        %896 = vst [vmem:[%s215 + $0xc0] sm:$0xff] %v864
        %897 = vst [vmem:[%s215 + $0xc8] sm:$0xff] %v865
        %898 = vst [vmem:[%s215 + $0xd0] sm:$0xff] %v866
        %899 = vst [vmem:[%s215 + $0xd8] sm:$0xff] %v867
        %900 = vst [vmem:[%s215 + $0xe0] sm:$0xff] %v868
        %901 = vst [vmem:[%s215 + $0xe8] sm:$0xff] %v869
        %902 = vst [vmem:[%s215 + $0xf0] sm:$0xff] %v870
        %903 = vst [vmem:[%s215 + $0xf8] sm:$0xff] %v871
      $region40: #{discriminator_forward.5} parent=31 // pred_fallthru
        _
      %p904 = scmp.lt.s32.totalorder %s18, 1
      %s905 = scalar_select %p904, %s18, 1
      %s906 = smul.addr %s905, 32
      %s907 = smul.addr %s906, 8
      %s908 = scalar_lea.vmem %s3, %s907
      // Predicated region
      $region41: #{discriminator_forward.5} parent=31 // pred_check
        %p909 = pneg %p119
      $region42: #{discriminator_forward.5} parent=31 // pred_check_branch
        %911 = sbr.rel (%p909) target = $region44
      $region43: #{discriminator_forward.5} parent=31 // pred_region
        _
      $region44: #{discriminator_forward.5} parent=31 // pred_fallthru
        _
    $region32: #{discriminator_forward.5} parent=5 // pred_fallthru
      _
    %p912 = scmp.le.s32.totalorder 2, %s9
    // Predicated region
    $region45: #{discriminator_forward.5} parent=5 // pred_check
      %p913 = pneg %p912
    $region46: #{discriminator_forward.5} parent=5 // pred_check_branch
      %915 = sbr.rel (%p913) target = $region48
    $region47: #{discriminator_forward.5} parent=5 // pred_region
      %s916 = ssub.s32 %s9, 2
      // Predicated region
      $region49: #{discriminator_forward.5} parent=47 // pred_check
        %p917 = pneg %p125
      $region50: #{discriminator_forward.5} parent=47 // pred_check_branch
        %919 = sbr.rel (%p917) target = $region52
      $region51: #{discriminator_forward.5} parent=47 // pred_region
        %p920 = scmp.lt.s32.totalorder %s20, 1
        %s921 = scalar_select %p920, %s20, 1
        %s922 = smul.addr %s921, 32
        %s923 = smul.addr %s922, 8
        %s924 = scalar_lea.vmem %s3, %s923
      $region52: #{discriminator_forward.5} parent=47 // pred_fallthru
        _
    $region48: #{discriminator_forward.5} parent=5 // pred_fallthru
      _
  $region6: #{discriminator_forward.5} parent=0 // loop_footer
    %s13 = sadd.s32 1, %s9
  $region7: #{discriminator_forward.5} parent=0 // loop_footer_branch
    %8 = sbr.rel target = $region3
  $region8: #{discriminator_forward.5} parent=0 // loop_exit
    _

// kernel: discriminator_forward.6
$region0: #{discriminator_forward.6}
  #allocation0 [shape = 'u32[]', space=smem, size = 0x4, offset = 0x4, fixed_abs, tag = 'smem constant byte address 0x4 - core index']
  #allocation1 [shape = 'u32[144,128]{1,0:T(1,128)}', space=vmem, size = 0x12000, scoped, tag = 'internal scratch']
  #allocation2 [shape = 'f32[64,128]{1,0:T(8,128)}', space=vmem, size = 0x8000, scoped, tag = 'scratch operand']
  %s0 = inlined_call_operand.vmem [shape: bf16[2,64,1024], index: 0, kind: input, shape index: {}]
  %s1 = inlined_call_operand.vmem [shape: bf16[1024,128], index: 1, kind: input, shape index: {}]
  %s2 = inlined_call_operand.vmem [shape: f32[1,128], index: 2, kind: input, shape index: {}]
  %s3 = inlined_call_operand.vmem [shape: f32[2,64,128], index: 3, kind: output, shape index: {}]
  %s4 = sld [smem:[#allocation0]]
  $region53: #{discriminator_forward.6} parent=0
    _
  %s6 = ssub.s32 1, %s4
  %s7 = scalar_select 0, %s6, %s4
  loop: start=0, step=1, limit=4
  $region2: #{discriminator_forward.6} parent=0 // loop_pre_header
    _
  $region3: #{discriminator_forward.6} parent=0 // loop_header
    %s9 = sphi 0, %s13
    %p10 = scmp.ge.s32.totalorder %s9, 4
    %s16 = sphi 0, %s28
    %s17 = sphi 0, %s24
    %s18 = sphi 0, %s16
    %s19 = sphi 0, %s17
    %s20 = sphi 0, %s18
    %s21 = sphi 0, %s19
    %s33 = sphi 0, %s35
    %s36 = sphi 0, %s33
    %s37 = sphi 0, %s36
    %s53 = sphi 0, %s37
    %s59 = sphi 0, %s61
    %s62 = sphi 0, %s59
    %s63 = sphi 0, %s62
    %s79 = sphi 0, %s63
    %s83 = sphi 0, %s83
    %s85 = sphi 0, %s83
    %s86 = sphi 0, %s85
    %s100 = sphi 0, %s86
    %s106 = sphi 0, %s108
    %s109 = sphi 0, %s106
    %s110 = sphi 0, %s109
    %s126 = sphi 0, %s110
  $region4: #{discriminator_forward.6} parent=0 // loop_header_branch
    %12 = sbr.rel (%p10) target = $region8
  $region5: #{discriminator_forward.6} parent=0 // loop_body
    %s14 = ssub.s32 %s9, 1
    %s15 = ssub.s32 %s9, 2
    %s22 = sadd.s32 1, %s17
    %p23 = scmp.ge.s32.totalorder %s22, 1
    %s24 = scalar_select %p23, 0, %s22
    %s25 = sadd.s32 1, %s16
    %s26 = scalar_select %p23, %s25, %s16
    %p27 = scmp.ge.s32.totalorder %s26, 2
    %s28 = scalar_select %p27, 0, %s26
    %s29 = ssub.s32 %s16, %s28
    %s30 = ssub.s32 %s17, %s24
    %s31 = sor.u32 %s29, %s30
    %p32 = scmp.eq.s32.totalorder %s31, 0
    %s34 = sadd.s32 %s33, 1
    %s35 = scalar_select %p32, %s33, %s34
    %p38 = pneg %p32
    %p39 = scmp.eq.s32.totalorder %s9, 1
    %p40 = por %p38, %p39
    %p41 = scmp.ne.s32.totalorder %s33, %s36
    %p42 = scmp.eq.s32.totalorder %s9, 0
    %p43 = por %p41, %p42
    %p44 = scmp.ne.s32.totalorder %s33, %s36
    %p45 = scmp.eq.s32.totalorder %s14, 1
    %p46 = por %p44, %p45
    %p47 = scmp.ne.s32.totalorder %s36, %s37
    %p48 = scmp.eq.s32.totalorder %s14, 0
    %p49 = por %p47, %p48
    %p50 = scmp.ne.s32.totalorder %s36, %s37
    %p51 = scmp.eq.s32.totalorder %s15, 1
    %p52 = por %p50, %p51
    %p54 = scmp.ne.s32.totalorder %s37, %s53
    %p55 = scmp.eq.s32.totalorder %s15, 0
    %p56 = por %p54, %p55
    %s57 = ssub.s32 %s17, %s24
    %p58 = scmp.eq.s32.totalorder %s57, 0
    %s60 = sadd.s32 %s59, 1
    %s61 = scalar_select %p58, %s59, %s60
    %p64 = pneg %p58
    %p65 = scmp.eq.s32.totalorder %s9, 1
    %p66 = por %p64, %p65
    %p67 = scmp.ne.s32.totalorder %s59, %s62
    %p68 = scmp.eq.s32.totalorder %s9, 0
    %p69 = por %p67, %p68
    %p70 = scmp.ne.s32.totalorder %s59, %s62
    %p71 = scmp.eq.s32.totalorder %s14, 1
    %p72 = por %p70, %p71
    %p73 = scmp.ne.s32.totalorder %s62, %s63
    %p74 = scmp.eq.s32.totalorder %s14, 0
    %p75 = por %p73, %p74
    %p76 = scmp.ne.s32.totalorder %s62, %s63
    %p77 = scmp.eq.s32.totalorder %s15, 1
    %p78 = por %p76, %p77
    %p80 = scmp.ne.s32.totalorder %s63, %s79
    %p81 = scmp.eq.s32.totalorder %s15, 0
    %p82 = por %p80, %p81
    %s84 = sadd.s32 %s83, 1
    %p87 = scmp.eq.s32.totalorder %s9, 1
    %p88 = scmp.ne.s32.totalorder %s83, %s85
    %p89 = scmp.eq.s32.totalorder %s9, 0
    %p90 = por %p88, %p89
    %p91 = scmp.ne.s32.totalorder %s83, %s85
    %p92 = scmp.eq.s32.totalorder %s14, 1
    %p93 = por %p91, %p92
    %p94 = scmp.ne.s32.totalorder %s85, %s86
    %p95 = scmp.eq.s32.totalorder %s14, 0
    %p96 = por %p94, %p95
    %p97 = scmp.ne.s32.totalorder %s85, %s86
    %p98 = scmp.eq.s32.totalorder %s15, 1
    %p99 = por %p97, %p98
    %p101 = scmp.ne.s32.totalorder %s86, %s100
    %p102 = scmp.eq.s32.totalorder %s15, 0
    %p103 = por %p101, %p102
    %s104 = ssub.s32 %s16, %s28
    %p105 = scmp.eq.s32.totalorder %s104, 0
    %s107 = sadd.s32 %s106, 1
    %s108 = scalar_select %p105, %s106, %s107
    %p111 = pneg %p105
    %p112 = scmp.eq.s32.totalorder %s9, 1
    %p113 = por %p111, %p112
    %p114 = scmp.ne.s32.totalorder %s106, %s109
    %p115 = scmp.eq.s32.totalorder %s9, 0
    %p116 = por %p114, %p115
    %p117 = scmp.ne.s32.totalorder %s106, %s109
    %p118 = scmp.eq.s32.totalorder %s14, 1
    %p119 = por %p117, %p118
    %p120 = scmp.ne.s32.totalorder %s109, %s110
    %p121 = scmp.eq.s32.totalorder %s14, 0
    %p122 = por %p120, %p121
    %p123 = scmp.ne.s32.totalorder %s109, %s110
    %p124 = scmp.eq.s32.totalorder %s15, 1
    %p125 = por %p123, %p124
    %p127 = scmp.ne.s32.totalorder %s110, %s126
    %p128 = scmp.eq.s32.totalorder %s15, 0
    %p129 = por %p127, %p128
    %p130 = scmp.le.s32.totalorder 1, %s9
    %p131 = scmp.lt.s32.totalorder %s9, 3
    %p132 = pnand %p130, %p131
    %p133 = pneg %p132
    // Predicated region
    $region9: #{discriminator_forward.6} parent=5 // pred_check
      _
    $region10: #{discriminator_forward.6} parent=5 // pred_check_branch
      %135 = sbr.rel (%p132) target = $region12
    $region11: #{discriminator_forward.6} parent=5 // pred_region
      %s136 = ssub.s32 %s9, 1
      // Predicated region
      $region13: #{discriminator_forward.6} parent=11 // pred_check
        %p137 = pneg %p75
      $region14: #{discriminator_forward.6} parent=11 // pred_check_branch
        %139 = sbr.rel (%p137) target = $region16
      $region15: #{discriminator_forward.6} parent=11 // pred_region
        %s140 = smul.u32 128, %s19
        %p141 = scmp.lt.s32.totalorder %s140, 127
        %s142 = scalar_select %p141, %s140, 127
        %s143 = smul.addr %s142, 4
        %s144 = scalar_lea.vmem %s1, %s143
        %s145 = smul.u32 128, %s19
      $region16: #{discriminator_forward.6} parent=11 // pred_fallthru
        _
      // Predicated region
      $region17: #{discriminator_forward.6} parent=11 // pred_check
        %p146 = pneg %p96
      $region18: #{discriminator_forward.6} parent=11 // pred_check_branch
        %148 = sbr.rel (%p146) target = $region20
      $region19: #{discriminator_forward.6} parent=11 // pred_region
        _
      $region20: #{discriminator_forward.6} parent=11 // pred_fallthru
        _
    $region12: #{discriminator_forward.6} parent=5 // pred_fallthru
      _
    %p149 = scmp.lt.s32.totalorder %s9, 2
    // Predicated region
    $region21: #{discriminator_forward.6} parent=5 // pred_check
      %p150 = pneg %p149
    $region22: #{discriminator_forward.6} parent=5 // pred_check_branch
      %152 = sbr.rel (%p150) target = $region24
    $region23: #{discriminator_forward.6} parent=5 // pred_region
      // Predicated region
      $region25: #{discriminator_forward.6} parent=23 // pred_check
        %p153 = pneg %p43
      $region26: #{discriminator_forward.6} parent=23 // pred_check_branch
        %155 = sbr.rel (%p153) target = $region28
      $region27: #{discriminator_forward.6} parent=23 // pred_region
        %s156 = smul.u32 8, %s17
        %p157 = scmp.lt.s32.totalorder %s16, 1
        %s158 = scalar_select %p157, %s16, 1
        %p159 = scmp.lt.s32.totalorder %s156, 7
        %s160 = scalar_select %p159, %s156, 7
        %s161 = smul.addr %s158, 64
        %s162 = sadd.s32 %s160, %s161
        %s163 = smul.addr %s162, 4
        %s164 = scalar_lea.vmem %s0, %s163
        %s165 = smul.u32 8, %s17
      $region28: #{discriminator_forward.6} parent=23 // pred_fallthru
        _
    $region24: #{discriminator_forward.6} parent=5 // pred_fallthru
      _
    %p166 = scmp.le.s32.totalorder 1, %s9
    %p167 = scmp.lt.s32.totalorder %s9, 3
    %p168 = pnand %p166, %p167
    %p169 = pneg %p168
    // Predicated region
    $region29: #{discriminator_forward.6} parent=5 // pred_check
      _
    $region30: #{discriminator_forward.6} parent=5 // pred_check_branch
      %171 = sbr.rel (%p168) target = $region32
    $region31: #{discriminator_forward.6} parent=5 // pred_region
      %s172 = ssub.s32 %s9, 1
      %s173 = smul.u32 8, %s19
      %p174 = scmp.lt.s32.totalorder %s18, 1
      %s175 = scalar_select %p174, %s18, 1
      %p176 = scmp.lt.s32.totalorder %s173, 7
      %s177 = scalar_select %p176, %s173, 7
      %s178 = smul.addr %s175, 64
      %s179 = sadd.s32 %s177, %s178
      %s180 = smul.addr %s179, 4
      %s181 = scalar_lea.vmem %s0, %s180
      %p182 = pneg %p49
      %p183 = pneg %p46
      %s184 = smul.u32 128, %s19
      %p185 = scmp.lt.s32.totalorder %s184, 127
      %s186 = scalar_select %p185, %s184, 127
      %s187 = smul.addr %s186, 4
      %s188 = scalar_lea.vmem %s1, %s187
      %p189 = pneg %p75
      %p190 = pneg %p72
      %p191 = pneg %p96
      %p192 = pneg %p93
      %p193 = pneg %p122
      %p194 = pneg %p119
      %p195 = scmp.lt.s32.totalorder %s18, 1
      %s196 = scalar_select %p195, %s18, 1
      %s197 = smul.addr %s196, 8
      %s198 = smul.addr %s197, 8
      %s199 = scalar_lea.vmem %s3, %s198
      %s200 = smul.u32 8, %s19
      %p201 = scmp.lt.s32.totalorder %s18, 1
      %s202 = scalar_select %p201, %s18, 1
      %p203 = scmp.lt.s32.totalorder %s200, 7
      %s204 = scalar_select %p203, %s200, 7
      %s205 = smul.addr %s202, 64
      %s206 = sadd.s32 %s204, %s205
      %s207 = smul.addr %s206, 4
      %s208 = scalar_lea.vmem %s0, %s207
      %s209 = smul.u32 8, %s19
      %s210 = smul.u32 128, %s19
      %p211 = scmp.lt.s32.totalorder %s210, 127
      %s212 = scalar_select %p211, %s210, 127
      %s213 = smul.addr %s212, 4
      %s214 = scalar_lea.vmem %s1, %s213
      %s215 = smul.u32 128, %s19
      %p216 = scmp.lt.s32.totalorder %s18, 1
      %s217 = scalar_select %p216, %s18, 1
      %s218 = smul.addr %s217, 8
      %s219 = smul.addr %s218, 8
      %s220 = scalar_lea.vmem %s3, %s219
      %p222 = scmp.eq.s32.totalorder %s19, 0
      // Predicated region
      $region33: #{discriminator_forward.6} parent=31 // pred_check
        %p223 = pneg %p222
      $region34: #{discriminator_forward.6} parent=31 // pred_check_branch
        %225 = sbr.rel (%p223) target = $region36
      $region35: #{discriminator_forward.6} parent=31 // pred_region
        %226 = vst [vmem:[#allocation2] sm:$0xff] 0.0
        %227 = vst [vmem:[#allocation2 + $0x8] sm:$0xff] 0.0
        %228 = vst [vmem:[#allocation2 + $0x10] sm:$0xff] 0.0
        %229 = vst [vmem:[#allocation2 + $0x18] sm:$0xff] 0.0
        %230 = vst [vmem:[#allocation2 + $0x20] sm:$0xff] 0.0
        %231 = vst [vmem:[#allocation2 + $0x28] sm:$0xff] 0.0
        %232 = vst [vmem:[#allocation2 + $0x30] sm:$0xff] 0.0
        %233 = vst [vmem:[#allocation2 + $0x38] sm:$0xff] 0.0
      $region36: #{discriminator_forward.6} parent=31 // pred_fallthru
        _
      %v234 = vld [vmem:[#allocation2] sm:$0xff]
      %v235 = vld [vmem:[#allocation2 + $0x8] sm:$0xff]
      %v236 = vld [vmem:[#allocation2 + $0x10] sm:$0xff]
      %v237 = vld [vmem:[#allocation2 + $0x18] sm:$0xff]
      %v238 = vld [vmem:[#allocation2 + $0x20] sm:$0xff]
      %v239 = vld [vmem:[#allocation2 + $0x28] sm:$0xff]
      %v240 = vld [vmem:[#allocation2 + $0x30] sm:$0xff]
      %v241 = vld [vmem:[#allocation2 + $0x38] sm:$0xff]
      %v242 = vld [vmem:[%s208] sm:$0xff]
      %v243 = vld [vmem:[%s208 + $0x8] sm:$0xff]
      %v244 = vld [vmem:[%s208 + $0x10] sm:$0xff]
      %v245 = vld [vmem:[%s208 + $0x18] sm:$0xff]
      %v246 = vld [vmem:[%s208 + $0x20] sm:$0xff]
      %v247 = vld [vmem:[%s208 + $0x28] sm:$0xff]
      %v248 = vld [vmem:[%s208 + $0x30] sm:$0xff]
      %v249 = vld [vmem:[%s208 + $0x38] sm:$0xff]
      %v250 = vld [vmem:[%s208 + $0x40] sm:$0xff]
      %v251 = vld [vmem:[%s208 + $0x48] sm:$0xff]
      %v252 = vld [vmem:[%s208 + $0x50] sm:$0xff]
      %v253 = vld [vmem:[%s208 + $0x58] sm:$0xff]
      %v254 = vld [vmem:[%s208 + $0x60] sm:$0xff]
      %v255 = vld [vmem:[%s208 + $0x68] sm:$0xff]
      %v256 = vld [vmem:[%s208 + $0x70] sm:$0xff]
      %v257 = vld [vmem:[%s208 + $0x78] sm:$0xff]
      %v258 = vld [vmem:[%s208 + $0x80] sm:$0xff]
      %v259 = vld [vmem:[%s208 + $0x88] sm:$0xff]
      %v260 = vld [vmem:[%s208 + $0x90] sm:$0xff]
      %v261 = vld [vmem:[%s208 + $0x98] sm:$0xff]
      %v262 = vld [vmem:[%s208 + $0xa0] sm:$0xff]
      %v263 = vld [vmem:[%s208 + $0xa8] sm:$0xff]
      %v264 = vld [vmem:[%s208 + $0xb0] sm:$0xff]
      %v265 = vld [vmem:[%s208 + $0xb8] sm:$0xff]
      %v266 = vld [vmem:[%s208 + $0xc0] sm:$0xff]
      %v267 = vld [vmem:[%s208 + $0xc8] sm:$0xff]
      %v268 = vld [vmem:[%s208 + $0xd0] sm:$0xff]
      %v269 = vld [vmem:[%s208 + $0xd8] sm:$0xff]
      %v270 = vld [vmem:[%s208 + $0xe0] sm:$0xff]
      %v271 = vld [vmem:[%s208 + $0xe8] sm:$0xff]
      %v272 = vld [vmem:[%s208 + $0xf0] sm:$0xff]
      %v273 = vld [vmem:[%s208 + $0xf8] sm:$0xff]
      %v274 = vld [vmem:[%s214] sm:$0xf]
      %v275 = vld [vmem:[%s214 + $0x4] sm:$0xf]
      %v276 = vld [vmem:[%s214 + $0x8] sm:$0xf]
      %v277 = vld [vmem:[%s214 + $0xc] sm:$0xf]
      %v278 = vld [vmem:[%s214 + $0x10] sm:$0xf]
      %v279 = vld [vmem:[%s214 + $0x14] sm:$0xf]
      %v280 = vld [vmem:[%s214 + $0x18] sm:$0xf]
      %v281 = vld [vmem:[%s214 + $0x1c] sm:$0xf]
      %v282 = vld [vmem:[%s214 + $0x20] sm:$0xf]
      %v283 = vld [vmem:[%s214 + $0x24] sm:$0xf]
      %v284 = vld [vmem:[%s214 + $0x28] sm:$0xf]
      %v285 = vld [vmem:[%s214 + $0x2c] sm:$0xf]
      %v286 = vld [vmem:[%s214 + $0x30] sm:$0xf]
      %v287 = vld [vmem:[%s214 + $0x34] sm:$0xf]
      %v288 = vld [vmem:[%s214 + $0x38] sm:$0xf]
      %v289 = vld [vmem:[%s214 + $0x3c] sm:$0xf]
      %v290 = vld [vmem:[%s214 + $0x40] sm:$0xf]
      %v291 = vld [vmem:[%s214 + $0x44] sm:$0xf]
      %v292 = vld [vmem:[%s214 + $0x48] sm:$0xf]
      %v293 = vld [vmem:[%s214 + $0x4c] sm:$0xf]
      %v294 = vld [vmem:[%s214 + $0x50] sm:$0xf]
      %v295 = vld [vmem:[%s214 + $0x54] sm:$0xf]
      %v296 = vld [vmem:[%s214 + $0x58] sm:$0xf]
      %v297 = vld [vmem:[%s214 + $0x5c] sm:$0xf]
      %v298 = vld [vmem:[%s214 + $0x60] sm:$0xf]
      %v299 = vld [vmem:[%s214 + $0x64] sm:$0xf]
      %v300 = vld [vmem:[%s214 + $0x68] sm:$0xf]
      %v301 = vld [vmem:[%s214 + $0x6c] sm:$0xf]
      %v302 = vld [vmem:[%s214 + $0x70] sm:$0xf]
      %v303 = vld [vmem:[%s214 + $0x74] sm:$0xf]
      %v304 = vld [vmem:[%s214 + $0x78] sm:$0xf]
      %v305 = vld [vmem:[%s214 + $0x7c] sm:$0xf]
      %v306 = vld [vmem:[%s214 + $0x80] sm:$0xf]
      %v307 = vld [vmem:[%s214 + $0x84] sm:$0xf]
      %v308 = vld [vmem:[%s214 + $0x88] sm:$0xf]
      %v309 = vld [vmem:[%s214 + $0x8c] sm:$0xf]
      %v310 = vld [vmem:[%s214 + $0x90] sm:$0xf]
      %v311 = vld [vmem:[%s214 + $0x94] sm:$0xf]
      %v312 = vld [vmem:[%s214 + $0x98] sm:$0xf]
      %v313 = vld [vmem:[%s214 + $0x9c] sm:$0xf]
      %v314 = vld [vmem:[%s214 + $0xa0] sm:$0xf]
      %v315 = vld [vmem:[%s214 + $0xa4] sm:$0xf]
      %v316 = vld [vmem:[%s214 + $0xa8] sm:$0xf]
      %v317 = vld [vmem:[%s214 + $0xac] sm:$0xf]
      %v318 = vld [vmem:[%s214 + $0xb0] sm:$0xf]
      %v319 = vld [vmem:[%s214 + $0xb4] sm:$0xf]
      %v320 = vld [vmem:[%s214 + $0xb8] sm:$0xf]
      %v321 = vld [vmem:[%s214 + $0xbc] sm:$0xf]
      %v322 = vld [vmem:[%s214 + $0xc0] sm:$0xf]
      %v323 = vld [vmem:[%s214 + $0xc4] sm:$0xf]
      %v324 = vld [vmem:[%s214 + $0xc8] sm:$0xf]
      %v325 = vld [vmem:[%s214 + $0xcc] sm:$0xf]
      %v326 = vld [vmem:[%s214 + $0xd0] sm:$0xf]
      %v327 = vld [vmem:[%s214 + $0xd4] sm:$0xf]
      %v328 = vld [vmem:[%s214 + $0xd8] sm:$0xf]
      %v329 = vld [vmem:[%s214 + $0xdc] sm:$0xf]
      %v330 = vld [vmem:[%s214 + $0xe0] sm:$0xf]
      %v331 = vld [vmem:[%s214 + $0xe4] sm:$0xf]
      %v332 = vld [vmem:[%s214 + $0xe8] sm:$0xf]
      %v333 = vld [vmem:[%s214 + $0xec] sm:$0xf]
      %v334 = vld [vmem:[%s214 + $0xf0] sm:$0xf]
      %v335 = vld [vmem:[%s214 + $0xf4] sm:$0xf]
      %v336 = vld [vmem:[%s214 + $0xf8] sm:$0xf]
      %v337 = vld [vmem:[%s214 + $0xfc] sm:$0xf]
      %v338 = vld [vmem:[%s214 + $0x100] sm:$0xf]
      %v339 = vld [vmem:[%s214 + $0x104] sm:$0xf]
      %v340 = vld [vmem:[%s214 + $0x108] sm:$0xf]
      %v341 = vld [vmem:[%s214 + $0x10c] sm:$0xf]
      %v342 = vld [vmem:[%s214 + $0x110] sm:$0xf]
      %v343 = vld [vmem:[%s214 + $0x114] sm:$0xf]
      %v344 = vld [vmem:[%s214 + $0x118] sm:$0xf]
      %v345 = vld [vmem:[%s214 + $0x11c] sm:$0xf]
      %v346 = vld [vmem:[%s214 + $0x120] sm:$0xf]
      %v347 = vld [vmem:[%s214 + $0x124] sm:$0xf]
      %v348 = vld [vmem:[%s214 + $0x128] sm:$0xf]
      %v349 = vld [vmem:[%s214 + $0x12c] sm:$0xf]
      %v350 = vld [vmem:[%s214 + $0x130] sm:$0xf]
      %v351 = vld [vmem:[%s214 + $0x134] sm:$0xf]
      %v352 = vld [vmem:[%s214 + $0x138] sm:$0xf]
      %v353 = vld [vmem:[%s214 + $0x13c] sm:$0xf]
      %v354 = vld [vmem:[%s214 + $0x140] sm:$0xf]
      %v355 = vld [vmem:[%s214 + $0x144] sm:$0xf]
      %v356 = vld [vmem:[%s214 + $0x148] sm:$0xf]
      %v357 = vld [vmem:[%s214 + $0x14c] sm:$0xf]
      %v358 = vld [vmem:[%s214 + $0x150] sm:$0xf]
      %v359 = vld [vmem:[%s214 + $0x154] sm:$0xf]
      %v360 = vld [vmem:[%s214 + $0x158] sm:$0xf]
      %v361 = vld [vmem:[%s214 + $0x15c] sm:$0xf]
      %v362 = vld [vmem:[%s214 + $0x160] sm:$0xf]
      %v363 = vld [vmem:[%s214 + $0x164] sm:$0xf]
      %v364 = vld [vmem:[%s214 + $0x168] sm:$0xf]
      %v365 = vld [vmem:[%s214 + $0x16c] sm:$0xf]
      %v366 = vld [vmem:[%s214 + $0x170] sm:$0xf]
      %v367 = vld [vmem:[%s214 + $0x174] sm:$0xf]
      %v368 = vld [vmem:[%s214 + $0x178] sm:$0xf]
      %v369 = vld [vmem:[%s214 + $0x17c] sm:$0xf]
      %v370 = vld [vmem:[%s214 + $0x180] sm:$0xf]
      %v371 = vld [vmem:[%s214 + $0x184] sm:$0xf]
      %v372 = vld [vmem:[%s214 + $0x188] sm:$0xf]
      %v373 = vld [vmem:[%s214 + $0x18c] sm:$0xf]
      %v374 = vld [vmem:[%s214 + $0x190] sm:$0xf]
      %v375 = vld [vmem:[%s214 + $0x194] sm:$0xf]
      %v376 = vld [vmem:[%s214 + $0x198] sm:$0xf]
      %v377 = vld [vmem:[%s214 + $0x19c] sm:$0xf]
      %v378 = vld [vmem:[%s214 + $0x1a0] sm:$0xf]
      %v379 = vld [vmem:[%s214 + $0x1a4] sm:$0xf]
      %v380 = vld [vmem:[%s214 + $0x1a8] sm:$0xf]
      %v381 = vld [vmem:[%s214 + $0x1ac] sm:$0xf]
      %v382 = vld [vmem:[%s214 + $0x1b0] sm:$0xf]
      %v383 = vld [vmem:[%s214 + $0x1b4] sm:$0xf]
      %v384 = vld [vmem:[%s214 + $0x1b8] sm:$0xf]
      %v385 = vld [vmem:[%s214 + $0x1bc] sm:$0xf]
      %v386 = vld [vmem:[%s214 + $0x1c0] sm:$0xf]
      %v387 = vld [vmem:[%s214 + $0x1c4] sm:$0xf]
      %v388 = vld [vmem:[%s214 + $0x1c8] sm:$0xf]
      %v389 = vld [vmem:[%s214 + $0x1cc] sm:$0xf]
      %v390 = vld [vmem:[%s214 + $0x1d0] sm:$0xf]
      %v391 = vld [vmem:[%s214 + $0x1d4] sm:$0xf]
      %v392 = vld [vmem:[%s214 + $0x1d8] sm:$0xf]
      %v393 = vld [vmem:[%s214 + $0x1dc] sm:$0xf]
      %v394 = vld [vmem:[%s214 + $0x1e0] sm:$0xf]
      %v395 = vld [vmem:[%s214 + $0x1e4] sm:$0xf]
      %v396 = vld [vmem:[%s214 + $0x1e8] sm:$0xf]
      %v397 = vld [vmem:[%s214 + $0x1ec] sm:$0xf]
      %v398 = vld [vmem:[%s214 + $0x1f0] sm:$0xf]
      %v399 = vld [vmem:[%s214 + $0x1f4] sm:$0xf]
      %v400 = vld [vmem:[%s214 + $0x1f8] sm:$0xf]
      %v401 = vld [vmem:[%s214 + $0x1fc] sm:$0xf]
      %v434 = vunpack.c.l.b16 %v242
      %v435 = vunpack.c.h.b16 %v242
      %v436 = vunpack.c.l.b16 %v243
      %v437 = vunpack.c.h.b16 %v243
      %v438 = vunpack.c.l.b16 %v244
      %v439 = vunpack.c.h.b16 %v244
      %v440 = vunpack.c.l.b16 %v245
      %v441 = vunpack.c.h.b16 %v245
      %v442 = vunpack.c.l.b16 %v246
      %v443 = vunpack.c.h.b16 %v246
      %v444 = vunpack.c.l.b16 %v247
      %v445 = vunpack.c.h.b16 %v247
      %v446 = vunpack.c.l.b16 %v248
      %v447 = vunpack.c.h.b16 %v248
      %v448 = vunpack.c.l.b16 %v249
      %v449 = vunpack.c.h.b16 %v249
      %v450 = vunpack.c.l.b16 %v250
      %v451 = vunpack.c.h.b16 %v250
      %v452 = vunpack.c.l.b16 %v251
      %v453 = vunpack.c.h.b16 %v251
      %v454 = vunpack.c.l.b16 %v252
      %v455 = vunpack.c.h.b16 %v252
      %v456 = vunpack.c.l.b16 %v253
      %v457 = vunpack.c.h.b16 %v253
      %v458 = vunpack.c.l.b16 %v254
      %v459 = vunpack.c.h.b16 %v254
      %v460 = vunpack.c.l.b16 %v255
      %v461 = vunpack.c.h.b16 %v255
      %v462 = vunpack.c.l.b16 %v256
      %v463 = vunpack.c.h.b16 %v256
      %v464 = vunpack.c.l.b16 %v257
      %v465 = vunpack.c.h.b16 %v257
      %v466 = vunpack.c.l.b16 %v258
      %v467 = vunpack.c.h.b16 %v258
      %v468 = vunpack.c.l.b16 %v259
      %v469 = vunpack.c.h.b16 %v259
      %v470 = vunpack.c.l.b16 %v260
      %v471 = vunpack.c.h.b16 %v260
      %v472 = vunpack.c.l.b16 %v261
      %v473 = vunpack.c.h.b16 %v261
      %v474 = vunpack.c.l.b16 %v262
      %v475 = vunpack.c.h.b16 %v262
      %v476 = vunpack.c.l.b16 %v263
      %v477 = vunpack.c.h.b16 %v263
      %v478 = vunpack.c.l.b16 %v264
      %v479 = vunpack.c.h.b16 %v264
      %v480 = vunpack.c.l.b16 %v265
      %v481 = vunpack.c.h.b16 %v265
      %v482 = vunpack.c.l.b16 %v266
      %v483 = vunpack.c.h.b16 %v266
      %v484 = vunpack.c.l.b16 %v267
      %v485 = vunpack.c.h.b16 %v267
      %v486 = vunpack.c.l.b16 %v268
      %v487 = vunpack.c.h.b16 %v268
      %v488 = vunpack.c.l.b16 %v269
      %v489 = vunpack.c.h.b16 %v269
      %v490 = vunpack.c.l.b16 %v270
      %v491 = vunpack.c.h.b16 %v270
      %v492 = vunpack.c.l.b16 %v271
      %v493 = vunpack.c.h.b16 %v271
      %v494 = vunpack.c.l.b16 %v272
      %v495 = vunpack.c.h.b16 %v272
      %v496 = vunpack.c.l.b16 %v273
      %v497 = vunpack.c.h.b16 %v273
      %v498 = vpack.c.b16 %v442, %v434
      %v499 = vpack.c.b16 %v443, %v435
      %v500 = vpack.c.b16 %v444, %v436
      %v501 = vpack.c.b16 %v445, %v437
      %v502 = vpack.c.b16 %v446, %v438
      %v503 = vpack.c.b16 %v447, %v439
      %v504 = vpack.c.b16 %v448, %v440
      %v505 = vpack.c.b16 %v449, %v441
      %v506 = vpack.c.b16 %v458, %v450
      %v507 = vpack.c.b16 %v459, %v451
      %v508 = vpack.c.b16 %v460, %v452
      %v509 = vpack.c.b16 %v461, %v453
      %v510 = vpack.c.b16 %v462, %v454
      %v511 = vpack.c.b16 %v463, %v455
      %v512 = vpack.c.b16 %v464, %v456
      %v513 = vpack.c.b16 %v465, %v457
      %v514 = vpack.c.b16 %v474, %v466
      %v515 = vpack.c.b16 %v475, %v467
      %v516 = vpack.c.b16 %v476, %v468
      %v517 = vpack.c.b16 %v477, %v469
      %v518 = vpack.c.b16 %v478, %v470
      %v519 = vpack.c.b16 %v479, %v471
      %v520 = vpack.c.b16 %v480, %v472
      %v521 = vpack.c.b16 %v481, %v473
      %v522 = vpack.c.b16 %v490, %v482
      %v523 = vpack.c.b16 %v491, %v483
      %v524 = vpack.c.b16 %v492, %v484
      %v525 = vpack.c.b16 %v493, %v485
      %v526 = vpack.c.b16 %v494, %v486
      %v527 = vpack.c.b16 %v495, %v487
      %v528 = vpack.c.b16 %v496, %v488
      %v529 = vpack.c.b16 %v497, %v489
      %v690 = vunpack.c.l.b16 %v274
      %v691 = vunpack.c.l.b16 %v275
      %v692 = vunpack.c.l.b16 %v276
      %v693 = vunpack.c.l.b16 %v277
      %v694 = vunpack.c.l.b16 %v278
      %v695 = vunpack.c.l.b16 %v279
      %v696 = vunpack.c.l.b16 %v280
      %v697 = vunpack.c.l.b16 %v281
      %v698 = vunpack.c.l.b16 %v282
      %v699 = vunpack.c.l.b16 %v283
      %v700 = vunpack.c.l.b16 %v284
      %v701 = vunpack.c.l.b16 %v285
      %v702 = vunpack.c.l.b16 %v286
      %v703 = vunpack.c.l.b16 %v287
      %v704 = vunpack.c.l.b16 %v288
      %v705 = vunpack.c.l.b16 %v289
      %v706 = vunpack.c.l.b16 %v290
      %v707 = vunpack.c.l.b16 %v291
      %v708 = vunpack.c.l.b16 %v292
      %v709 = vunpack.c.l.b16 %v293
      %v710 = vunpack.c.l.b16 %v294
      %v711 = vunpack.c.l.b16 %v295
      %v712 = vunpack.c.l.b16 %v296
      %v713 = vunpack.c.l.b16 %v297
      %v714 = vunpack.c.l.b16 %v298
      %v715 = vunpack.c.l.b16 %v299
      %v716 = vunpack.c.l.b16 %v300
      %v717 = vunpack.c.l.b16 %v301
      %v718 = vunpack.c.l.b16 %v302
      %v719 = vunpack.c.l.b16 %v303
      %v720 = vunpack.c.l.b16 %v304
      %v721 = vunpack.c.l.b16 %v305
      %v722 = vunpack.c.l.b16 %v306
      %v723 = vunpack.c.l.b16 %v307
      %v724 = vunpack.c.l.b16 %v308
      %v725 = vunpack.c.l.b16 %v309
      %v726 = vunpack.c.l.b16 %v310
      %v727 = vunpack.c.l.b16 %v311
      %v728 = vunpack.c.l.b16 %v312
      %v729 = vunpack.c.l.b16 %v313
      %v730 = vunpack.c.l.b16 %v314
      %v731 = vunpack.c.l.b16 %v315
      %v732 = vunpack.c.l.b16 %v316
      %v733 = vunpack.c.l.b16 %v317
      %v734 = vunpack.c.l.b16 %v318
      %v735 = vunpack.c.l.b16 %v319
      %v736 = vunpack.c.l.b16 %v320
      %v737 = vunpack.c.l.b16 %v321
      %v738 = vunpack.c.l.b16 %v322
      %v739 = vunpack.c.l.b16 %v323
      %v740 = vunpack.c.l.b16 %v324
      %v741 = vunpack.c.l.b16 %v325
      %v742 = vunpack.c.l.b16 %v326
      %v743 = vunpack.c.l.b16 %v327
      %v744 = vunpack.c.l.b16 %v328
      %v745 = vunpack.c.l.b16 %v329
      %v746 = vunpack.c.l.b16 %v330
      %v747 = vunpack.c.l.b16 %v331
      %v748 = vunpack.c.l.b16 %v332
      %v749 = vunpack.c.l.b16 %v333
      %v750 = vunpack.c.l.b16 %v334
      %v751 = vunpack.c.l.b16 %v335
      %v752 = vunpack.c.l.b16 %v336
      %v753 = vunpack.c.l.b16 %v337
      %v754 = vunpack.c.l.b16 %v338
      %v755 = vunpack.c.l.b16 %v339
      %v756 = vunpack.c.l.b16 %v340
      %v757 = vunpack.c.l.b16 %v341
      %v758 = vunpack.c.l.b16 %v342
      %v759 = vunpack.c.l.b16 %v343
      %v760 = vunpack.c.l.b16 %v344
      %v761 = vunpack.c.l.b16 %v345
      %v762 = vunpack.c.l.b16 %v346
      %v763 = vunpack.c.l.b16 %v347
      %v764 = vunpack.c.l.b16 %v348
      %v765 = vunpack.c.l.b16 %v349
      %v766 = vunpack.c.l.b16 %v350
      %v767 = vunpack.c.l.b16 %v351
      %v768 = vunpack.c.l.b16 %v352
      %v769 = vunpack.c.l.b16 %v353
      %v770 = vunpack.c.l.b16 %v354
      %v771 = vunpack.c.l.b16 %v355
      %v772 = vunpack.c.l.b16 %v356
      %v773 = vunpack.c.l.b16 %v357
      %v774 = vunpack.c.l.b16 %v358
      %v775 = vunpack.c.l.b16 %v359
      %v776 = vunpack.c.l.b16 %v360
      %v777 = vunpack.c.l.b16 %v361
      %v778 = vunpack.c.l.b16 %v362
      %v779 = vunpack.c.l.b16 %v363
      %v780 = vunpack.c.l.b16 %v364
      %v781 = vunpack.c.l.b16 %v365
      %v782 = vunpack.c.l.b16 %v366
      %v783 = vunpack.c.l.b16 %v367
      %v784 = vunpack.c.l.b16 %v368
      %v785 = vunpack.c.l.b16 %v369
      %v786 = vunpack.c.l.b16 %v370
      %v787 = vunpack.c.l.b16 %v371
      %v788 = vunpack.c.l.b16 %v372
      %v789 = vunpack.c.l.b16 %v373
      %v790 = vunpack.c.l.b16 %v374
      %v791 = vunpack.c.l.b16 %v375
      %v792 = vunpack.c.l.b16 %v376
      %v793 = vunpack.c.l.b16 %v377
      %v794 = vunpack.c.l.b16 %v378
      %v795 = vunpack.c.l.b16 %v379
      %v796 = vunpack.c.l.b16 %v380
      %v797 = vunpack.c.l.b16 %v381
      %v798 = vunpack.c.l.b16 %v382
      %v799 = vunpack.c.l.b16 %v383
      %v800 = vunpack.c.l.b16 %v384
      %v801 = vunpack.c.l.b16 %v385
      %v802 = vunpack.c.l.b16 %v386
      %v803 = vunpack.c.l.b16 %v387
      %v804 = vunpack.c.l.b16 %v388
      %v805 = vunpack.c.l.b16 %v389
      %v806 = vunpack.c.l.b16 %v390
      %v807 = vunpack.c.l.b16 %v391
      %v808 = vunpack.c.l.b16 %v392
      %v809 = vunpack.c.l.b16 %v393
      %v810 = vunpack.c.l.b16 %v394
      %v811 = vunpack.c.l.b16 %v395
      %v812 = vunpack.c.l.b16 %v396
      %v813 = vunpack.c.l.b16 %v397
      %v814 = vunpack.c.l.b16 %v398
      %v815 = vunpack.c.l.b16 %v399
      %v816 = vunpack.c.l.b16 %v400
      %v817 = vunpack.c.l.b16 %v401
      %v818 = vpack.c.b16 %v691, %v690
      %v819 = vpack.c.b16 %v693, %v692
      %v820 = vpack.c.b16 %v695, %v694
      %v821 = vpack.c.b16 %v697, %v696
      %v822 = vpack.c.b16 %v699, %v698
      %v823 = vpack.c.b16 %v701, %v700
      %v824 = vpack.c.b16 %v703, %v702
      %v825 = vpack.c.b16 %v705, %v704
      %v826 = vpack.c.b16 %v707, %v706
      %v827 = vpack.c.b16 %v709, %v708
      %v828 = vpack.c.b16 %v711, %v710
      %v829 = vpack.c.b16 %v713, %v712
      %v830 = vpack.c.b16 %v715, %v714
      %v831 = vpack.c.b16 %v717, %v716
      %v832 = vpack.c.b16 %v719, %v718
      %v833 = vpack.c.b16 %v721, %v720
      %v834 = vpack.c.b16 %v723, %v722
      %v835 = vpack.c.b16 %v725, %v724
      %v836 = vpack.c.b16 %v727, %v726
      %v837 = vpack.c.b16 %v729, %v728
      %v838 = vpack.c.b16 %v731, %v730
      %v839 = vpack.c.b16 %v733, %v732
      %v840 = vpack.c.b16 %v735, %v734
      %v841 = vpack.c.b16 %v737, %v736
      %v842 = vpack.c.b16 %v739, %v738
      %v843 = vpack.c.b16 %v741, %v740
      %v844 = vpack.c.b16 %v743, %v742
      %v845 = vpack.c.b16 %v745, %v744
      %v846 = vpack.c.b16 %v747, %v746
      %v847 = vpack.c.b16 %v749, %v748
      %v848 = vpack.c.b16 %v751, %v750
      %v849 = vpack.c.b16 %v753, %v752
      %v850 = vpack.c.b16 %v755, %v754
      %v851 = vpack.c.b16 %v757, %v756
      %v852 = vpack.c.b16 %v759, %v758
      %v853 = vpack.c.b16 %v761, %v760
      %v854 = vpack.c.b16 %v763, %v762
      %v855 = vpack.c.b16 %v765, %v764
      %v856 = vpack.c.b16 %v767, %v766
      %v857 = vpack.c.b16 %v769, %v768
      %v858 = vpack.c.b16 %v771, %v770
      %v859 = vpack.c.b16 %v773, %v772
      %v860 = vpack.c.b16 %v775, %v774
      %v861 = vpack.c.b16 %v777, %v776
      %v862 = vpack.c.b16 %v779, %v778
      %v863 = vpack.c.b16 %v781, %v780
      %v864 = vpack.c.b16 %v783, %v782
      %v865 = vpack.c.b16 %v785, %v784
      %v866 = vpack.c.b16 %v787, %v786
      %v867 = vpack.c.b16 %v789, %v788
      %v868 = vpack.c.b16 %v791, %v790
      %v869 = vpack.c.b16 %v793, %v792
      %v870 = vpack.c.b16 %v795, %v794
      %v871 = vpack.c.b16 %v797, %v796
      %v872 = vpack.c.b16 %v799, %v798
      %v873 = vpack.c.b16 %v801, %v800
      %v874 = vpack.c.b16 %v803, %v802
      %v875 = vpack.c.b16 %v805, %v804
      %v876 = vpack.c.b16 %v807, %v806
      %v877 = vpack.c.b16 %v809, %v808
      %v878 = vpack.c.b16 %v811, %v810
      %v879 = vpack.c.b16 %v813, %v812
      %v880 = vpack.c.b16 %v815, %v814
      %v881 = vpack.c.b16 %v817, %v816
      %946 = vmatprep.subr.bf16.mxu0 0
      %947 = vmatpush1.bf16.msra.mxu0 %v818
      %948 = vmatprep.subr.bf16.mxu0 0
      %949 = vmatpush1.bf16.msra.mxu0 %v819
      %950 = vmatprep.subr.bf16.mxu0 0
      %951 = vmatpush1.bf16.msra.mxu0 %v820
      %952 = vmatprep.subr.bf16.mxu0 0
      %953 = vmatpush1.bf16.msra.mxu0 %v821
      %954 = vmatprep.subr.bf16.mxu0 0
      %955 = vmatpush1.bf16.msra.mxu0 %v822
      %956 = vmatprep.subr.bf16.mxu0 0
      %957 = vmatpush1.bf16.msra.mxu0 %v823
      %958 = vmatprep.subr.bf16.mxu0 0
      %959 = vmatpush1.bf16.msra.mxu0 %v824
      %960 = vmatprep.subr.bf16.mxu0 0
      %961 = vmatpush1.bf16.msra.mxu0 %v825
      %962 = vmatprep.subr.bf16.mxu0 0
      %963 = vmatpush1.bf16.msra.mxu0 %v826
      %964 = vmatprep.subr.bf16.mxu0 0
      %965 = vmatpush1.bf16.msra.mxu0 %v827
      %966 = vmatprep.subr.bf16.mxu0 0
      %967 = vmatpush1.bf16.msra.mxu0 %v828
      %968 = vmatprep.subr.bf16.mxu0 0
      %969 = vmatpush1.bf16.msra.mxu0 %v829
      %970 = vmatprep.subr.bf16.mxu0 0
      %971 = vmatpush1.bf16.msra.mxu0 %v830
      %972 = vmatprep.subr.bf16.mxu0 0
      %973 = vmatpush1.bf16.msra.mxu0 %v831
      %974 = vmatprep.subr.bf16.mxu0 0
      %975 = vmatpush1.bf16.msra.mxu0 %v832
      %976 = vmatprep.subr.bf16.mxu0 0
      %977 = vmatpush1.bf16.msra.mxu0 %v833
      %978 = vmatprep.mubr.bf16.mxu0 %v499
      %979 = vmatmul.mubr.bf16.gmra.mrb[0].mxu0 %v498
      %v980 = vpop.f32.mrb[0].mxu0
      %v981 = vadd.f32 0.0, %v980
      %v982 = vpop.f32.mrb[0].mxu0
      %v983 = vpop.f32.mrb[0].mxu0
      %v984 = vadd.f32 0.0, %v983
      %v985 = vpop.f32.mrb[0].mxu0
      %986 = vmatprep.mubr.bf16.mxu0 %v507
      %987 = vmatmul.mubr.bf16.gmra.mrb[0].mxu0 %v506
      %v988 = vpop.f32.mrb[0].mxu0
      %v989 = vadd.f32 0.0, %v988
      %v990 = vpop.f32.mrb[0].mxu0
      %v991 = vpop.f32.mrb[0].mxu0
      %v992 = vadd.f32 0.0, %v991
      %v993 = vpop.f32.mrb[0].mxu0
      %994 = vmatprep.mubr.bf16.mxu0 %v515
      %995 = vmatmul.mubr.bf16.gmra.mrb[0].mxu0 %v514
      %v996 = vpop.f32.mrb[0].mxu0
      %v997 = vadd.f32 0.0, %v996
      %v998 = vpop.f32.mrb[0].mxu0
      %v999 = vpop.f32.mrb[0].mxu0
      %v1000 = vadd.f32 0.0, %v999
      %v1001 = vpop.f32.mrb[0].mxu0
      %1002 = vmatprep.mubr.bf16.mxu0 %v523
      %1003 = vmatmul.mubr.bf16.gmra.mrb[0].mxu0 %v522
      %v1004 = vpop.f32.mrb[0].mxu0
      %v1005 = vadd.f32 0.0, %v1004
      %v1006 = vpop.f32.mrb[0].mxu0
      %v1007 = vpop.f32.mrb[0].mxu0
      %v1008 = vadd.f32 0.0, %v1007
      %v1009 = vpop.f32.mrb[0].mxu0
      %1010 = vdwg.mxu0
      %1011 = vmatprep.subr.bf16.mxu0 0
      %1012 = vmatpush1.bf16.msra.mxu0 %v834
      %1013 = vmatprep.subr.bf16.mxu0 0
      %1014 = vmatpush1.bf16.msra.mxu0 %v835
      %1015 = vmatprep.subr.bf16.mxu0 0
      %1016 = vmatpush1.bf16.msra.mxu0 %v836
      %1017 = vmatprep.subr.bf16.mxu0 0
      %1018 = vmatpush1.bf16.msra.mxu0 %v837
      %1019 = vmatprep.subr.bf16.mxu0 0
      %1020 = vmatpush1.bf16.msra.mxu0 %v838
      %1021 = vmatprep.subr.bf16.mxu0 0
      %1022 = vmatpush1.bf16.msra.mxu0 %v839
      %1023 = vmatprep.subr.bf16.mxu0 0
      %1024 = vmatpush1.bf16.msra.mxu0 %v840
      %1025 = vmatprep.subr.bf16.mxu0 0
      %1026 = vmatpush1.bf16.msra.mxu0 %v841
      %1027 = vmatprep.subr.bf16.mxu0 0
      %1028 = vmatpush1.bf16.msra.mxu0 %v842
      %1029 = vmatprep.subr.bf16.mxu0 0
      %1030 = vmatpush1.bf16.msra.mxu0 %v843
      %1031 = vmatprep.subr.bf16.mxu0 0
      %1032 = vmatpush1.bf16.msra.mxu0 %v844
      %1033 = vmatprep.subr.bf16.mxu0 0
      %1034 = vmatpush1.bf16.msra.mxu0 %v845
      %1035 = vmatprep.subr.bf16.mxu0 0
      %1036 = vmatpush1.bf16.msra.mxu0 %v846
      %1037 = vmatprep.subr.bf16.mxu0 0
      %1038 = vmatpush1.bf16.msra.mxu0 %v847
      %1039 = vmatprep.subr.bf16.mxu0 0
      %1040 = vmatpush1.bf16.msra.mxu0 %v848
      %1041 = vmatprep.subr.bf16.mxu0 0
      %1042 = vmatpush1.bf16.msra.mxu0 %v849
      %1043 = vmatprep.mubr.bf16.mxu0 %v501
      %1044 = vmatmul.mubr.bf16.gmra.mrb[0].mxu0 %v500
      %v1045 = vpop.f32.mrb[0].mxu0
      %v1046 = vadd.f32 %v981, %v1045
      %v1047 = vpop.f32.mrb[0].mxu0
      %v1048 = vpop.f32.mrb[0].mxu0
      %v1049 = vadd.f32 %v984, %v1048
      %v1050 = vpop.f32.mrb[0].mxu0
      %1051 = vmatprep.mubr.bf16.mxu0 %v509
      %1052 = vmatmul.mubr.bf16.gmra.mrb[0].mxu0 %v508
      %v1053 = vpop.f32.mrb[0].mxu0
      %v1054 = vadd.f32 %v989, %v1053
      %v1055 = vpop.f32.mrb[0].mxu0
      %v1056 = vpop.f32.mrb[0].mxu0
      %v1057 = vadd.f32 %v992, %v1056
      %v1058 = vpop.f32.mrb[0].mxu0
      %1059 = vmatprep.mubr.bf16.mxu0 %v517
      %1060 = vmatmul.mubr.bf16.gmra.mrb[0].mxu0 %v516
      %v1061 = vpop.f32.mrb[0].mxu0
      %v1062 = vadd.f32 %v997, %v1061
      %v1063 = vpop.f32.mrb[0].mxu0
      %v1064 = vpop.f32.mrb[0].mxu0
      %v1065 = vadd.f32 %v1000, %v1064
      %v1066 = vpop.f32.mrb[0].mxu0
      %1067 = vmatprep.mubr.bf16.mxu0 %v525
      %1068 = vmatmul.mubr.bf16.gmra.mrb[0].mxu0 %v524
      %v1069 = vpop.f32.mrb[0].mxu0
      %v1070 = vadd.f32 %v1005, %v1069
      %v1071 = vpop.f32.mrb[0].mxu0
      %v1072 = vpop.f32.mrb[0].mxu0
      %v1073 = vadd.f32 %v1008, %v1072
      %v1074 = vpop.f32.mrb[0].mxu0
      %1075 = vdwg.mxu0
      %1076 = vmatprep.subr.bf16.mxu0 0
      %1077 = vmatpush1.bf16.msra.mxu0 %v850
      %1078 = vmatprep.subr.bf16.mxu0 0
      %1079 = vmatpush1.bf16.msra.mxu0 %v851
      %1080 = vmatprep.subr.bf16.mxu0 0
      %1081 = vmatpush1.bf16.msra.mxu0 %v852
      %1082 = vmatprep.subr.bf16.mxu0 0
      %1083 = vmatpush1.bf16.msra.mxu0 %v853
      %1084 = vmatprep.subr.bf16.mxu0 0
      %1085 = vmatpush1.bf16.msra.mxu0 %v854
      %1086 = vmatprep.subr.bf16.mxu0 0
      %1087 = vmatpush1.bf16.msra.mxu0 %v855
      %1088 = vmatprep.subr.bf16.mxu0 0
      %1089 = vmatpush1.bf16.msra.mxu0 %v856
      %1090 = vmatprep.subr.bf16.mxu0 0
      %1091 = vmatpush1.bf16.msra.mxu0 %v857
      %1092 = vmatprep.subr.bf16.mxu0 0
      %1093 = vmatpush1.bf16.msra.mxu0 %v858
      %1094 = vmatprep.subr.bf16.mxu0 0
      %1095 = vmatpush1.bf16.msra.mxu0 %v859
      %1096 = vmatprep.subr.bf16.mxu0 0
      %1097 = vmatpush1.bf16.msra.mxu0 %v860
      %1098 = vmatprep.subr.bf16.mxu0 0
      %1099 = vmatpush1.bf16.msra.mxu0 %v861
      %1100 = vmatprep.subr.bf16.mxu0 0
      %1101 = vmatpush1.bf16.msra.mxu0 %v862
      %1102 = vmatprep.subr.bf16.mxu0 0
      %1103 = vmatpush1.bf16.msra.mxu0 %v863
      %1104 = vmatprep.subr.bf16.mxu0 0
      %1105 = vmatpush1.bf16.msra.mxu0 %v864
      %1106 = vmatprep.subr.bf16.mxu0 0
      %1107 = vmatpush1.bf16.msra.mxu0 %v865
      %1108 = vmatprep.mubr.bf16.mxu0 %v503
      %1109 = vmatmul.mubr.bf16.gmra.mrb[0].mxu0 %v502
      %v1110 = vpop.f32.mrb[0].mxu0
      %v1111 = vadd.f32 %v1046, %v1110
      %v1112 = vpop.f32.mrb[0].mxu0
      %v1113 = vpop.f32.mrb[0].mxu0
      %v1114 = vadd.f32 %v1049, %v1113
      %v1115 = vpop.f32.mrb[0].mxu0
      %1116 = vmatprep.mubr.bf16.mxu0 %v511
      %1117 = vmatmul.mubr.bf16.gmra.mrb[0].mxu0 %v510
      %v1118 = vpop.f32.mrb[0].mxu0
      %v1119 = vadd.f32 %v1054, %v1118
      %v1120 = vpop.f32.mrb[0].mxu0
      %v1121 = vpop.f32.mrb[0].mxu0
      %v1122 = vadd.f32 %v1057, %v1121
      %v1123 = vpop.f32.mrb[0].mxu0
      %1124 = vmatprep.mubr.bf16.mxu0 %v519
      %1125 = vmatmul.mubr.bf16.gmra.mrb[0].mxu0 %v518
      %v1126 = vpop.f32.mrb[0].mxu0
      %v1127 = vadd.f32 %v1062, %v1126
      %v1128 = vpop.f32.mrb[0].mxu0
      %v1129 = vpop.f32.mrb[0].mxu0
      %v1130 = vadd.f32 %v1065, %v1129
      %v1131 = vpop.f32.mrb[0].mxu0
      %1132 = vmatprep.mubr.bf16.mxu0 %v527
      %1133 = vmatmul.mubr.bf16.gmra.mrb[0].mxu0 %v526
      %v1134 = vpop.f32.mrb[0].mxu0
      %v1135 = vadd.f32 %v1070, %v1134
      %v1136 = vpop.f32.mrb[0].mxu0
      %v1137 = vpop.f32.mrb[0].mxu0
      %v1138 = vadd.f32 %v1073, %v1137
      %v1139 = vpop.f32.mrb[0].mxu0
      %1140 = vdwg.mxu0
      %1141 = vmatprep.subr.bf16.mxu0 0
      %1142 = vmatpush1.bf16.msra.mxu0 %v866
      %1143 = vmatprep.subr.bf16.mxu0 0
      %1144 = vmatpush1.bf16.msra.mxu0 %v867
      %1145 = vmatprep.subr.bf16.mxu0 0
      %1146 = vmatpush1.bf16.msra.mxu0 %v868
      %1147 = vmatprep.subr.bf16.mxu0 0
      %1148 = vmatpush1.bf16.msra.mxu0 %v869
      %1149 = vmatprep.subr.bf16.mxu0 0
      %1150 = vmatpush1.bf16.msra.mxu0 %v870
      %1151 = vmatprep.subr.bf16.mxu0 0
      %1152 = vmatpush1.bf16.msra.mxu0 %v871
      %1153 = vmatprep.subr.bf16.mxu0 0
      %1154 = vmatpush1.bf16.msra.mxu0 %v872
      %1155 = vmatprep.subr.bf16.mxu0 0
      %1156 = vmatpush1.bf16.msra.mxu0 %v873
      %1157 = vmatprep.subr.bf16.mxu0 0
      %1158 = vmatpush1.bf16.msra.mxu0 %v874
      %1159 = vmatprep.subr.bf16.mxu0 0
      %1160 = vmatpush1.bf16.msra.mxu0 %v875
      %1161 = vmatprep.subr.bf16.mxu0 0
      %1162 = vmatpush1.bf16.msra.mxu0 %v876
      %1163 = vmatprep.subr.bf16.mxu0 0
      %1164 = vmatpush1.bf16.msra.mxu0 %v877
      %1165 = vmatprep.subr.bf16.mxu0 0
      %1166 = vmatpush1.bf16.msra.mxu0 %v878
      %1167 = vmatprep.subr.bf16.mxu0 0
      %1168 = vmatpush1.bf16.msra.mxu0 %v879
      %1169 = vmatprep.subr.bf16.mxu0 0
      %1170 = vmatpush1.bf16.msra.mxu0 %v880
      %1171 = vmatprep.subr.bf16.mxu0 0
      %1172 = vmatpush1.bf16.msra.mxu0 %v881
      %1173 = vmatprep.mubr.bf16.mxu0 %v505
      %1174 = vmatmul.mubr.bf16.gmra.mrb[0].mxu0 %v504
      %v1175 = vpop.f32.mrb[0].mxu0
      %v1176 = vadd.f32 %v1111, %v1175
      %v1177 = vpop.f32.mrb[0].mxu0
      %v1178 = vpop.f32.mrb[0].mxu0
      %v1179 = vadd.f32 %v1114, %v1178
      %v1180 = vpop.f32.mrb[0].mxu0
      %1181 = vmatprep.mubr.bf16.mxu0 %v513
      %1182 = vmatmul.mubr.bf16.gmra.mrb[0].mxu0 %v512
      %v1183 = vpop.f32.mrb[0].mxu0
      %v1184 = vadd.f32 %v1119, %v1183
      %v1185 = vpop.f32.mrb[0].mxu0
      %v1186 = vpop.f32.mrb[0].mxu0
      %v1187 = vadd.f32 %v1122, %v1186
      %v1188 = vpop.f32.mrb[0].mxu0
      %1189 = vmatprep.mubr.bf16.mxu0 %v521
      %1190 = vmatmul.mubr.bf16.gmra.mrb[0].mxu0 %v520
      %v1191 = vpop.f32.mrb[0].mxu0
      %v1192 = vadd.f32 %v1127, %v1191
      %v1193 = vpop.f32.mrb[0].mxu0
      %v1194 = vpop.f32.mrb[0].mxu0
      %v1195 = vadd.f32 %v1130, %v1194
      %v1196 = vpop.f32.mrb[0].mxu0
      %1197 = vmatprep.mubr.bf16.mxu0 %v529
      %1198 = vmatmul.mubr.bf16.gmra.mrb[0].mxu0 %v528
      %v1199 = vpop.f32.mrb[0].mxu0
      %v1200 = vadd.f32 %v1135, %v1199
      %v1201 = vpop.f32.mrb[0].mxu0
      %v1202 = vpop.f32.mrb[0].mxu0
      %v1203 = vadd.f32 %v1138, %v1202
      %v1204 = vpop.f32.mrb[0].mxu0
      %1205 = vdwg.mxu0
      %v1206 = vadd.f32 %v234, %v1176
      %v1207 = vadd.f32 %v235, %v1179
      %v1208 = vadd.f32 %v236, %v1184
      %v1209 = vadd.f32 %v237, %v1187
      %v1210 = vadd.f32 %v238, %v1192
      %v1211 = vadd.f32 %v239, %v1195
      %v1212 = vadd.f32 %v240, %v1200
      %v1213 = vadd.f32 %v241, %v1203
      %1214 = vst [vmem:[#allocation2] sm:$0xff] %v1206
      %1215 = vst [vmem:[#allocation2 + $0x8] sm:$0xff] %v1207
      %1216 = vst [vmem:[#allocation2 + $0x10] sm:$0xff] %v1208
      %1217 = vst [vmem:[#allocation2 + $0x18] sm:$0xff] %v1209
      %1218 = vst [vmem:[#allocation2 + $0x20] sm:$0xff] %v1210
      %1219 = vst [vmem:[#allocation2 + $0x28] sm:$0xff] %v1211
      %1220 = vst [vmem:[#allocation2 + $0x30] sm:$0xff] %v1212
      %1221 = vst [vmem:[#allocation2 + $0x38] sm:$0xff] %v1213
      // Predicated region
      $region37: #{discriminator_forward.6} parent=31 // pred_check
        %p1222 = pneg %p222
      $region38: #{discriminator_forward.6} parent=31 // pred_check_branch
        %1224 = sbr.rel (%p1222) target = $region40
      $region39: #{discriminator_forward.6} parent=31 // pred_region
        %v1225 = vld [vmem:[#allocation2] sm:$0xff]
        %v1226 = vld [vmem:[#allocation2 + $0x8] sm:$0xff]
        %v1227 = vld [vmem:[#allocation2 + $0x10] sm:$0xff]
        %v1228 = vld [vmem:[#allocation2 + $0x18] sm:$0xff]
        %v1229 = vld [vmem:[#allocation2 + $0x20] sm:$0xff]
        %v1230 = vld [vmem:[#allocation2 + $0x28] sm:$0xff]
        %v1231 = vld [vmem:[#allocation2 + $0x30] sm:$0xff]
        %v1232 = vld [vmem:[#allocation2 + $0x38] sm:$0xff]
        %v1233 = vld [vmem:[%s2] sm:$0x1]
        %v1235 = vlaneseq
        %v1236 = vshrl.u32 %v1235, 7
        %v1237 = vsub.s32 0, %v1236
        %v1238 = vrot.slane %v1233, %v1237
        %v1240 = vadd.f32 %v1225, %v1238
        %v1241 = vadd.f32 %v1226, %v1238
        %v1242 = vadd.f32 %v1227, %v1238
        %v1243 = vadd.f32 %v1228, %v1238
        %v1244 = vadd.f32 %v1229, %v1238
        %v1245 = vadd.f32 %v1230, %v1238
        %v1246 = vadd.f32 %v1231, %v1238
        %v1247 = vadd.f32 %v1232, %v1238
        %v1248 = vadd.f32 %v1240, %v1241
        %v1249 = vadd.f32 %v1248, %v1242
        %v1250 = vadd.f32 %v1249, %v1243
        %v1251 = vadd.f32 %v1250, %v1244
        %v1252 = vadd.f32 %v1251, %v1245
        %v1253 = vadd.f32 %v1252, %v1246
        %v1254 = vadd.f32 %v1253, %v1247
        %v1255 = vrot.slane %v1254, 4
        %v1256 = vadd.f32 %v1254, %v1255
        %v1257 = vrot.slane %v1256, 2
        %v1258 = vadd.f32 %v1256, %v1257
        %v1259 = vrot.slane %v1258, 1
        %v1260 = vadd.f32 %v1258, %v1259
        %v1261 = vrcp.pop 64.0
        %v1262 = vmul.f32 %v1260, %v1261
        %v1263 = vsub.f32 %v1240, %v1262
        %v1264 = vsub.f32 %v1241, %v1262
        %v1265 = vsub.f32 %v1242, %v1262
        %v1266 = vsub.f32 %v1243, %v1262
        %v1267 = vsub.f32 %v1244, %v1262
        %v1268 = vsub.f32 %v1245, %v1262
        %v1269 = vsub.f32 %v1246, %v1262
        %v1270 = vsub.f32 %v1247, %v1262
        %v1271 = vmul.f32 %v1263, %v1263
        %v1272 = vmul.f32 %v1264, %v1264
        %v1273 = vmul.f32 %v1265, %v1265
        %v1274 = vmul.f32 %v1266, %v1266
        %v1275 = vmul.f32 %v1267, %v1267
        %v1276 = vmul.f32 %v1268, %v1268
        %v1277 = vmul.f32 %v1269, %v1269
        %v1278 = vmul.f32 %v1270, %v1270
        %v1279 = vadd.f32 %v1271, %v1272
        %v1280 = vadd.f32 %v1279, %v1273
        %v1281 = vadd.f32 %v1280, %v1274
        %v1282 = vadd.f32 %v1281, %v1275
        %v1283 = vadd.f32 %v1282, %v1276
        %v1284 = vadd.f32 %v1283, %v1277
        %v1285 = vadd.f32 %v1284, %v1278
        %v1286 = vrot.slane %v1285, 4
        %v1287 = vadd.f32 %v1285, %v1286
        %v1288 = vrot.slane %v1287, 2
        %v1289 = vadd.f32 %v1287, %v1288
        %v1290 = vrot.slane %v1289, 1
        %v1291 = vadd.f32 %v1289, %v1290
        %v1292 = vmul.f32 %v1291, %v1261
        %v1293 = vadd.f32 %v1292, 1e-05
        %v1294 = vrsqrt.pop %v1293
        %v1295 = vmul.f32 %v1263, %v1294
        %v1296 = vmul.f32 %v1264, %v1294
        %v1297 = vmul.f32 %v1265, %v1294
        %v1298 = vmul.f32 %v1266, %v1294
        %v1299 = vmul.f32 %v1267, %v1294
        %v1300 = vmul.f32 %v1268, %v1294
        %v1301 = vmul.f32 %v1269, %v1294
        %v1302 = vmul.f32 %v1270, %v1294
        %vm1303 = vcmp.ge.f32.partialorder %v1295, 0.0
        %vm1304 = vcmp.ge.f32.partialorder %v1296, 0.0
        %vm1305 = vcmp.ge.f32.partialorder %v1297, 0.0
        %vm1306 = vcmp.ge.f32.partialorder %v1298, 0.0
        %vm1307 = vcmp.ge.f32.partialorder %v1299, 0.0
        %vm1308 = vcmp.ge.f32.partialorder %v1300, 0.0
        %vm1309 = vcmp.ge.f32.partialorder %v1301, 0.0
        %vm1310 = vcmp.ge.f32.partialorder %v1302, 0.0
        %v1311 = vmul.f32 %v1295, 0.2
        %v1312 = vmul.f32 %v1296, 0.2
        %v1313 = vmul.f32 %v1297, 0.2
        %v1314 = vmul.f32 %v1298, 0.2
        %v1315 = vmul.f32 %v1299, 0.2
        %v1316 = vmul.f32 %v1300, 0.2
        %v1317 = vmul.f32 %v1301, 0.2
        %v1318 = vmul.f32 %v1302, 0.2
        %v1319 = vsel %vm1303, %v1295, %v1311
        %v1320 = vsel %vm1304, %v1296, %v1312
        %v1321 = vsel %vm1305, %v1297, %v1313
        %v1322 = vsel %vm1306, %v1298, %v1314
        %v1323 = vsel %vm1307, %v1299, %v1315
        %v1324 = vsel %vm1308, %v1300, %v1316
        %v1325 = vsel %vm1309, %v1301, %v1317
        %v1326 = vsel %vm1310, %v1302, %v1318
        %1327 = vst [vmem:[%s220] sm:$0xff] %v1319
        %1328 = vst [vmem:[%s220 + $0x8] sm:$0xff] %v1320
        %1329 = vst [vmem:[%s220 + $0x10] sm:$0xff] %v1321
        %1330 = vst [vmem:[%s220 + $0x18] sm:$0xff] %v1322
        %1331 = vst [vmem:[%s220 + $0x20] sm:$0xff] %v1323
        %1332 = vst [vmem:[%s220 + $0x28] sm:$0xff] %v1324
        %1333 = vst [vmem:[%s220 + $0x30] sm:$0xff] %v1325
        %1334 = vst [vmem:[%s220 + $0x38] sm:$0xff] %v1326
      $region40: #{discriminator_forward.6} parent=31 // pred_fallthru
        _
      %p1335 = scmp.lt.s32.totalorder %s18, 1
      %s1336 = scalar_select %p1335, %s18, 1
      %s1337 = smul.addr %s1336, 8
      %s1338 = smul.addr %s1337, 8
      %s1339 = scalar_lea.vmem %s3, %s1338
      // Predicated region
      $region41: #{discriminator_forward.6} parent=31 // pred_check
        %p1340 = pneg %p119
      $region42: #{discriminator_forward.6} parent=31 // pred_check_branch
        %1342 = sbr.rel (%p1340) target = $region44
      $region43: #{discriminator_forward.6} parent=31 // pred_region
        _
      $region44: #{discriminator_forward.6} parent=31 // pred_fallthru
        _
    $region32: #{discriminator_forward.6} parent=5 // pred_fallthru
      _
    %p1343 = scmp.le.s32.totalorder 2, %s9
    // Predicated region
    $region45: #{discriminator_forward.6} parent=5 // pred_check
      %p1344 = pneg %p1343
    $region46: #{discriminator_forward.6} parent=5 // pred_check_branch
      %1346 = sbr.rel (%p1344) target = $region48
    $region47: #{discriminator_forward.6} parent=5 // pred_region
      %s1347 = ssub.s32 %s9, 2
      // Predicated region
      $region49: #{discriminator_forward.6} parent=47 // pred_check
        %p1348 = pneg %p125
      $region50: #{discriminator_forward.6} parent=47 // pred_check_branch
        %1350 = sbr.rel (%p1348) target = $region52
      $region51: #{discriminator_forward.6} parent=47 // pred_region
        %p1351 = scmp.lt.s32.totalorder %s20, 1
        %s1352 = scalar_select %p1351, %s20, 1
        %s1353 = smul.addr %s1352, 8
        %s1354 = smul.addr %s1353, 8
        %s1355 = scalar_lea.vmem %s3, %s1354
      $region52: #{discriminator_forward.6} parent=47 // pred_fallthru
        _
    $region48: #{discriminator_forward.6} parent=5 // pred_fallthru
      _
  $region6: #{discriminator_forward.6} parent=0 // loop_footer
    %s13 = sadd.s32 1, %s9
  $region7: #{discriminator_forward.6} parent=0 // loop_footer_branch
    %8 = sbr.rel target = $region3
  $region8: #{discriminator_forward.6} parent=0 // loop_exit
    _

// kernel: discriminator_forward.7
$region0: #{discriminator_forward.7}
  #allocation0 [shape = 'u32[]', space=smem, size = 0x4, offset = 0x4, fixed_abs, tag = 'smem constant byte address 0x4 - core index']
  #allocation1 [shape = 'u32[144,128]{1,0:T(1,128)}', space=vmem, size = 0x12000, scoped, tag = 'internal scratch']
  #allocation2 [shape = 'f32[16,256]{1,0:T(8,128)}', space=vmem, size = 0x4000, scoped, tag = 'scratch operand']
  %s0 = inlined_call_operand.vmem [shape: bf16[2,16,2048], index: 0, kind: input, shape index: {}]
  %s1 = inlined_call_operand.vmem [shape: bf16[2048,256], index: 1, kind: input, shape index: {}]
  %s2 = inlined_call_operand.vmem [shape: f32[1,256], index: 2, kind: input, shape index: {}]
  %s3 = inlined_call_operand.vmem [shape: f32[2,16,256], index: 3, kind: output, shape index: {}]
  %s4 = sld [smem:[#allocation0]]
  $region53: #{discriminator_forward.7} parent=0
    _
  %s6 = ssub.s32 1, %s4
  %s7 = scalar_select 0, %s6, %s4
  loop: start=0, step=1, limit=4
  $region2: #{discriminator_forward.7} parent=0 // loop_pre_header
    _
  $region3: #{discriminator_forward.7} parent=0 // loop_header
    %s9 = sphi 0, %s13
    %p10 = scmp.ge.s32.totalorder %s9, 4
    %s16 = sphi 0, %s28
    %s17 = sphi 0, %s24
    %s18 = sphi 0, %s16
    %s19 = sphi 0, %s17
    %s20 = sphi 0, %s18
    %s21 = sphi 0, %s19
    %s33 = sphi 0, %s35
    %s36 = sphi 0, %s33
    %s37 = sphi 0, %s36
    %s53 = sphi 0, %s37
    %s59 = sphi 0, %s61
    %s62 = sphi 0, %s59
    %s63 = sphi 0, %s62
    %s79 = sphi 0, %s63
    %s83 = sphi 0, %s83
    %s85 = sphi 0, %s83
    %s86 = sphi 0, %s85
    %s100 = sphi 0, %s86
    %s106 = sphi 0, %s108
    %s109 = sphi 0, %s106
    %s110 = sphi 0, %s109
    %s126 = sphi 0, %s110
  $region4: #{discriminator_forward.7} parent=0 // loop_header_branch
    %12 = sbr.rel (%p10) target = $region8
  $region5: #{discriminator_forward.7} parent=0 // loop_body
    %s14 = ssub.s32 %s9, 1
    %s15 = ssub.s32 %s9, 2
    %s22 = sadd.s32 1, %s17
    %p23 = scmp.ge.s32.totalorder %s22, 1
    %s24 = scalar_select %p23, 0, %s22
    %s25 = sadd.s32 1, %s16
    %s26 = scalar_select %p23, %s25, %s16
    %p27 = scmp.ge.s32.totalorder %s26, 2
    %s28 = scalar_select %p27, 0, %s26
    %s29 = ssub.s32 %s16, %s28
    %s30 = ssub.s32 %s17, %s24
    %s31 = sor.u32 %s29, %s30
    %p32 = scmp.eq.s32.totalorder %s31, 0
    %s34 = sadd.s32 %s33, 1
    %s35 = scalar_select %p32, %s33, %s34
    %p38 = pneg %p32
    %p39 = scmp.eq.s32.totalorder %s9, 1
    %p40 = por %p38, %p39
    %p41 = scmp.ne.s32.totalorder %s33, %s36
    %p42 = scmp.eq.s32.totalorder %s9, 0
    %p43 = por %p41, %p42
    %p44 = scmp.ne.s32.totalorder %s33, %s36
    %p45 = scmp.eq.s32.totalorder %s14, 1
    %p46 = por %p44, %p45
    %p47 = scmp.ne.s32.totalorder %s36, %s37
    %p48 = scmp.eq.s32.totalorder %s14, 0
    %p49 = por %p47, %p48
    %p50 = scmp.ne.s32.totalorder %s36, %s37
    %p51 = scmp.eq.s32.totalorder %s15, 1
    %p52 = por %p50, %p51
    %p54 = scmp.ne.s32.totalorder %s37, %s53
    %p55 = scmp.eq.s32.totalorder %s15, 0
    %p56 = por %p54, %p55
    %s57 = ssub.s32 %s17, %s24
    %p58 = scmp.eq.s32.totalorder %s57, 0
    %s60 = sadd.s32 %s59, 1
    %s61 = scalar_select %p58, %s59, %s60
    %p64 = pneg %p58
    %p65 = scmp.eq.s32.totalorder %s9, 1
    %p66 = por %p64, %p65
    %p67 = scmp.ne.s32.totalorder %s59, %s62
    %p68 = scmp.eq.s32.totalorder %s9, 0
    %p69 = por %p67, %p68
    %p70 = scmp.ne.s32.totalorder %s59, %s62
    %p71 = scmp.eq.s32.totalorder %s14, 1
    %p72 = por %p70, %p71
    %p73 = scmp.ne.s32.totalorder %s62, %s63
    %p74 = scmp.eq.s32.totalorder %s14, 0
    %p75 = por %p73, %p74
    %p76 = scmp.ne.s32.totalorder %s62, %s63
    %p77 = scmp.eq.s32.totalorder %s15, 1
    %p78 = por %p76, %p77
    %p80 = scmp.ne.s32.totalorder %s63, %s79
    %p81 = scmp.eq.s32.totalorder %s15, 0
    %p82 = por %p80, %p81
    %s84 = sadd.s32 %s83, 1
    %p87 = scmp.eq.s32.totalorder %s9, 1
    %p88 = scmp.ne.s32.totalorder %s83, %s85
    %p89 = scmp.eq.s32.totalorder %s9, 0
    %p90 = por %p88, %p89
    %p91 = scmp.ne.s32.totalorder %s83, %s85
    %p92 = scmp.eq.s32.totalorder %s14, 1
    %p93 = por %p91, %p92
    %p94 = scmp.ne.s32.totalorder %s85, %s86
    %p95 = scmp.eq.s32.totalorder %s14, 0
    %p96 = por %p94, %p95
    %p97 = scmp.ne.s32.totalorder %s85, %s86
    %p98 = scmp.eq.s32.totalorder %s15, 1
    %p99 = por %p97, %p98
    %p101 = scmp.ne.s32.totalorder %s86, %s100
    %p102 = scmp.eq.s32.totalorder %s15, 0
    %p103 = por %p101, %p102
    %s104 = ssub.s32 %s16, %s28
    %p105 = scmp.eq.s32.totalorder %s104, 0
    %s107 = sadd.s32 %s106, 1
    %s108 = scalar_select %p105, %s106, %s107
    %p111 = pneg %p105
    %p112 = scmp.eq.s32.totalorder %s9, 1
    %p113 = por %p111, %p112
    %p114 = scmp.ne.s32.totalorder %s106, %s109
    %p115 = scmp.eq.s32.totalorder %s9, 0
    %p116 = por %p114, %p115
    %p117 = scmp.ne.s32.totalorder %s106, %s109
    %p118 = scmp.eq.s32.totalorder %s14, 1
    %p119 = por %p117, %p118
    %p120 = scmp.ne.s32.totalorder %s109, %s110
    %p121 = scmp.eq.s32.totalorder %s14, 0
    %p122 = por %p120, %p121
    %p123 = scmp.ne.s32.totalorder %s109, %s110
    %p124 = scmp.eq.s32.totalorder %s15, 1
    %p125 = por %p123, %p124
    %p127 = scmp.ne.s32.totalorder %s110, %s126
    %p128 = scmp.eq.s32.totalorder %s15, 0
    %p129 = por %p127, %p128
    %p130 = scmp.le.s32.totalorder 1, %s9
    %p131 = scmp.lt.s32.totalorder %s9, 3
    %p132 = pnand %p130, %p131
    %p133 = pneg %p132
    // Predicated region
    $region9: #{discriminator_forward.7} parent=5 // pred_check
      _
    $region10: #{discriminator_forward.7} parent=5 // pred_check_branch
      %135 = sbr.rel (%p132) target = $region12
    $region11: #{discriminator_forward.7} parent=5 // pred_region
      %s136 = ssub.s32 %s9, 1
      // Predicated region
      $region13: #{discriminator_forward.7} parent=11 // pred_check
        %p137 = pneg %p75
      $region14: #{discriminator_forward.7} parent=11 // pred_check_branch
        %139 = sbr.rel (%p137) target = $region16
      $region15: #{discriminator_forward.7} parent=11 // pred_region
        %s140 = smul.u32 256, %s19
        %p141 = scmp.lt.s32.totalorder %s140, 255
        %s142 = scalar_select %p141, %s140, 255
        %s143 = smul.addr %s142, 2
        %s144 = smul.addr %s143, 4
        %s145 = scalar_lea.vmem %s1, %s144
        %s146 = smul.u32 256, %s19
      $region16: #{discriminator_forward.7} parent=11 // pred_fallthru
        _
      // Predicated region
      $region17: #{discriminator_forward.7} parent=11 // pred_check
        %p147 = pneg %p96
      $region18: #{discriminator_forward.7} parent=11 // pred_check_branch
        %149 = sbr.rel (%p147) target = $region20
      $region19: #{discriminator_forward.7} parent=11 // pred_region
        _
      $region20: #{discriminator_forward.7} parent=11 // pred_fallthru
        _
    $region12: #{discriminator_forward.7} parent=5 // pred_fallthru
      _
    %p150 = scmp.lt.s32.totalorder %s9, 2
    // Predicated region
    $region21: #{discriminator_forward.7} parent=5 // pred_check
      %p151 = pneg %p150
    $region22: #{discriminator_forward.7} parent=5 // pred_check_branch
      %153 = sbr.rel (%p151) target = $region24
    $region23: #{discriminator_forward.7} parent=5 // pred_region
      // Predicated region
      $region25: #{discriminator_forward.7} parent=23 // pred_check
        %p154 = pneg %p43
      $region26: #{discriminator_forward.7} parent=23 // pred_check_branch
        %156 = sbr.rel (%p154) target = $region28
      $region27: #{discriminator_forward.7} parent=23 // pred_region
        %s157 = smul.u32 16, %s17
        %p158 = scmp.lt.s32.totalorder %s16, 1
        %s159 = scalar_select %p158, %s16, 1
        %p160 = scmp.lt.s32.totalorder %s157, 15
        %s161 = scalar_select %p160, %s157, 15
        %s162 = smul.addr %s159, 32
        %s163 = sadd.s32 %s161, %s162
        %s164 = smul.addr %s163, 4
        %s165 = scalar_lea.vmem %s0, %s164
        %s166 = smul.u32 16, %s17
      $region28: #{discriminator_forward.7} parent=23 // pred_fallthru
        _
    $region24: #{discriminator_forward.7} parent=5 // pred_fallthru
      _
    %p167 = scmp.le.s32.totalorder 1, %s9
    %p168 = scmp.lt.s32.totalorder %s9, 3
    %p169 = pnand %p167, %p168
    %p170 = pneg %p169
    // Predicated region
    $region29: #{discriminator_forward.7} parent=5 // pred_check
      _
    $region30: #{discriminator_forward.7} parent=5 // pred_check_branch
      %172 = sbr.rel (%p169) target = $region32
    $region31: #{discriminator_forward.7} parent=5 // pred_region
      %s173 = ssub.s32 %s9, 1
      %s174 = smul.u32 16, %s19
      %p175 = scmp.lt.s32.totalorder %s18, 1
      %s176 = scalar_select %p175, %s18, 1
      %p177 = scmp.lt.s32.totalorder %s174, 15
      %s178 = scalar_select %p177, %s174, 15
      %s179 = smul.addr %s176, 32
      %s180 = sadd.s32 %s178, %s179
      %s181 = smul.addr %s180, 4
      %s182 = scalar_lea.vmem %s0, %s181
      %p183 = pneg %p49
      %p184 = pneg %p46
      %s185 = smul.u32 256, %s19
      %p186 = scmp.lt.s32.totalorder %s185, 255
      %s187 = scalar_select %p186, %s185, 255
      %s188 = smul.addr %s187, 2
      %s189 = smul.addr %s188, 4
      %s190 = scalar_lea.vmem %s1, %s189
      %p191 = pneg %p75
      %p192 = pneg %p72
      %p193 = pneg %p96
      %p194 = pneg %p93
      %p195 = pneg %p122
      %p196 = pneg %p119
      %p197 = scmp.lt.s32.totalorder %s18, 1
      %s198 = scalar_select %p197, %s18, 1
      %s199 = smul.addr %s198, 4
      %s200 = smul.addr %s199, 8
      %s201 = scalar_lea.vmem %s3, %s200
      %s202 = smul.u32 16, %s19
      %p203 = scmp.lt.s32.totalorder %s18, 1
      %s204 = scalar_select %p203, %s18, 1
      %p205 = scmp.lt.s32.totalorder %s202, 15
      %s206 = scalar_select %p205, %s202, 15
      %s207 = smul.addr %s204, 32
      %s208 = sadd.s32 %s206, %s207
      %s209 = smul.addr %s208, 4
      %s210 = scalar_lea.vmem %s0, %s209
      %s211 = smul.u32 16, %s19
      %s212 = smul.u32 256, %s19
      %p213 = scmp.lt.s32.totalorder %s212, 255
      %s214 = scalar_select %p213, %s212, 255
      %s215 = smul.addr %s214, 2
      %s216 = smul.addr %s215, 4
      %s217 = scalar_lea.vmem %s1, %s216
      %s218 = smul.u32 256, %s19
      %p219 = scmp.lt.s32.totalorder %s18, 1
      %s220 = scalar_select %p219, %s18, 1
      %s221 = smul.addr %s220, 4
      %s222 = smul.addr %s221, 8
      %s223 = scalar_lea.vmem %s3, %s222
      %p224 = scmp.eq.s32.totalorder %s19, 0
      // Predicated region
      $region33: #{discriminator_forward.7} parent=31 // pred_check
        %p225 = pneg %p224
      $region34: #{discriminator_forward.7} parent=31 // pred_check_branch
        %227 = sbr.rel (%p225) target = $region36
      $region35: #{discriminator_forward.7} parent=31 // pred_region
        %228 = vst [vmem:[#allocation2] sm:$0xff] 0.0
        %229 = vst [vmem:[#allocation2 + $0x8] sm:$0xff] 0.0
        %230 = vst [vmem:[#allocation2 + $0x10] sm:$0xff] 0.0
        %231 = vst [vmem:[#allocation2 + $0x18] sm:$0xff] 0.0
      $region36: #{discriminator_forward.7} parent=31 // pred_fallthru
        _
      %v232 = vld [vmem:[#allocation2] sm:$0xff]
      %v233 = vld [vmem:[#allocation2 + $0x8] sm:$0xff]
      %v234 = vld [vmem:[#allocation2 + $0x10] sm:$0xff]
      %v235 = vld [vmem:[#allocation2 + $0x18] sm:$0xff]
      %v236 = vld [vmem:[%s210] sm:$0xff]
      %v237 = vld [vmem:[%s210 + $0x8] sm:$0xff]
      %v238 = vld [vmem:[%s210 + $0x10] sm:$0xff]
      %v239 = vld [vmem:[%s210 + $0x18] sm:$0xff]
      %v240 = vld [vmem:[%s210 + $0x20] sm:$0xff]
      %v241 = vld [vmem:[%s210 + $0x28] sm:$0xff]
      %v242 = vld [vmem:[%s210 + $0x30] sm:$0xff]
      %v243 = vld [vmem:[%s210 + $0x38] sm:$0xff]
      %v244 = vld [vmem:[%s210 + $0x40] sm:$0xff]
      %v245 = vld [vmem:[%s210 + $0x48] sm:$0xff]
      %v246 = vld [vmem:[%s210 + $0x50] sm:$0xff]
      %v247 = vld [vmem:[%s210 + $0x58] sm:$0xff]
      %v248 = vld [vmem:[%s210 + $0x60] sm:$0xff]
      %v249 = vld [vmem:[%s210 + $0x68] sm:$0xff]
      %v250 = vld [vmem:[%s210 + $0x70] sm:$0xff]
      %v251 = vld [vmem:[%s210 + $0x78] sm:$0xff]
      %v252 = vld [vmem:[%s217] sm:$0xff]
      %v253 = vld [vmem:[%s217 + $0x8] sm:$0xff]
      %v254 = vld [vmem:[%s217 + $0x10] sm:$0xff]
      %v255 = vld [vmem:[%s217 + $0x18] sm:$0xff]
      %v256 = vld [vmem:[%s217 + $0x20] sm:$0xff]
      %v257 = vld [vmem:[%s217 + $0x28] sm:$0xff]
      %v258 = vld [vmem:[%s217 + $0x30] sm:$0xff]
      %v259 = vld [vmem:[%s217 + $0x38] sm:$0xff]
      %v260 = vld [vmem:[%s217 + $0x40] sm:$0xff]
      %v261 = vld [vmem:[%s217 + $0x48] sm:$0xff]
      %v262 = vld [vmem:[%s217 + $0x50] sm:$0xff]
      %v263 = vld [vmem:[%s217 + $0x58] sm:$0xff]
      %v264 = vld [vmem:[%s217 + $0x60] sm:$0xff]
      %v265 = vld [vmem:[%s217 + $0x68] sm:$0xff]
      %v266 = vld [vmem:[%s217 + $0x70] sm:$0xff]
      %v267 = vld [vmem:[%s217 + $0x78] sm:$0xff]
      %v268 = vld [vmem:[%s217 + $0x80] sm:$0xff]
      %v269 = vld [vmem:[%s217 + $0x88] sm:$0xff]
      %v270 = vld [vmem:[%s217 + $0x90] sm:$0xff]
      %v271 = vld [vmem:[%s217 + $0x98] sm:$0xff]
      %v272 = vld [vmem:[%s217 + $0xa0] sm:$0xff]
      %v273 = vld [vmem:[%s217 + $0xa8] sm:$0xff]
      %v274 = vld [vmem:[%s217 + $0xb0] sm:$0xff]
      %v275 = vld [vmem:[%s217 + $0xb8] sm:$0xff]
      %v276 = vld [vmem:[%s217 + $0xc0] sm:$0xff]
      %v277 = vld [vmem:[%s217 + $0xc8] sm:$0xff]
      %v278 = vld [vmem:[%s217 + $0xd0] sm:$0xff]
      %v279 = vld [vmem:[%s217 + $0xd8] sm:$0xff]
      %v280 = vld [vmem:[%s217 + $0xe0] sm:$0xff]
      %v281 = vld [vmem:[%s217 + $0xe8] sm:$0xff]
      %v282 = vld [vmem:[%s217 + $0xf0] sm:$0xff]
      %v283 = vld [vmem:[%s217 + $0xf8] sm:$0xff]
      %v284 = vld [vmem:[%s217 + $0x100] sm:$0xff]
      %v285 = vld [vmem:[%s217 + $0x108] sm:$0xff]
      %v286 = vld [vmem:[%s217 + $0x110] sm:$0xff]
      %v287 = vld [vmem:[%s217 + $0x118] sm:$0xff]
      %v288 = vld [vmem:[%s217 + $0x120] sm:$0xff]
      %v289 = vld [vmem:[%s217 + $0x128] sm:$0xff]
      %v290 = vld [vmem:[%s217 + $0x130] sm:$0xff]
      %v291 = vld [vmem:[%s217 + $0x138] sm:$0xff]
      %v292 = vld [vmem:[%s217 + $0x140] sm:$0xff]
      %v293 = vld [vmem:[%s217 + $0x148] sm:$0xff]
      %v294 = vld [vmem:[%s217 + $0x150] sm:$0xff]
      %v295 = vld [vmem:[%s217 + $0x158] sm:$0xff]
      %v296 = vld [vmem:[%s217 + $0x160] sm:$0xff]
      %v297 = vld [vmem:[%s217 + $0x168] sm:$0xff]
      %v298 = vld [vmem:[%s217 + $0x170] sm:$0xff]
      %v299 = vld [vmem:[%s217 + $0x178] sm:$0xff]
      %v300 = vld [vmem:[%s217 + $0x180] sm:$0xff]
      %v301 = vld [vmem:[%s217 + $0x188] sm:$0xff]
      %v302 = vld [vmem:[%s217 + $0x190] sm:$0xff]
      %v303 = vld [vmem:[%s217 + $0x198] sm:$0xff]
      %v304 = vld [vmem:[%s217 + $0x1a0] sm:$0xff]
      %v305 = vld [vmem:[%s217 + $0x1a8] sm:$0xff]
      %v306 = vld [vmem:[%s217 + $0x1b0] sm:$0xff]
      %v307 = vld [vmem:[%s217 + $0x1b8] sm:$0xff]
      %v308 = vld [vmem:[%s217 + $0x1c0] sm:$0xff]
      %v309 = vld [vmem:[%s217 + $0x1c8] sm:$0xff]
      %v310 = vld [vmem:[%s217 + $0x1d0] sm:$0xff]
      %v311 = vld [vmem:[%s217 + $0x1d8] sm:$0xff]
      %v312 = vld [vmem:[%s217 + $0x1e0] sm:$0xff]
      %v313 = vld [vmem:[%s217 + $0x1e8] sm:$0xff]
      %v314 = vld [vmem:[%s217 + $0x1f0] sm:$0xff]
      %v315 = vld [vmem:[%s217 + $0x1f8] sm:$0xff]
      %v316 = vld [vmem:[%s217 + $0x200] sm:$0xff]
      %v317 = vld [vmem:[%s217 + $0x208] sm:$0xff]
      %v318 = vld [vmem:[%s217 + $0x210] sm:$0xff]
      %v319 = vld [vmem:[%s217 + $0x218] sm:$0xff]
      %v320 = vld [vmem:[%s217 + $0x220] sm:$0xff]
      %v321 = vld [vmem:[%s217 + $0x228] sm:$0xff]
      %v322 = vld [vmem:[%s217 + $0x230] sm:$0xff]
      %v323 = vld [vmem:[%s217 + $0x238] sm:$0xff]
      %v324 = vld [vmem:[%s217 + $0x240] sm:$0xff]
      %v325 = vld [vmem:[%s217 + $0x248] sm:$0xff]
      %v326 = vld [vmem:[%s217 + $0x250] sm:$0xff]
      %v327 = vld [vmem:[%s217 + $0x258] sm:$0xff]
      %v328 = vld [vmem:[%s217 + $0x260] sm:$0xff]
      %v329 = vld [vmem:[%s217 + $0x268] sm:$0xff]
      %v330 = vld [vmem:[%s217 + $0x270] sm:$0xff]
      %v331 = vld [vmem:[%s217 + $0x278] sm:$0xff]
      %v332 = vld [vmem:[%s217 + $0x280] sm:$0xff]
      %v333 = vld [vmem:[%s217 + $0x288] sm:$0xff]
      %v334 = vld [vmem:[%s217 + $0x290] sm:$0xff]
      %v335 = vld [vmem:[%s217 + $0x298] sm:$0xff]
      %v336 = vld [vmem:[%s217 + $0x2a0] sm:$0xff]
      %v337 = vld [vmem:[%s217 + $0x2a8] sm:$0xff]
      %v338 = vld [vmem:[%s217 + $0x2b0] sm:$0xff]
      %v339 = vld [vmem:[%s217 + $0x2b8] sm:$0xff]
      %v340 = vld [vmem:[%s217 + $0x2c0] sm:$0xff]
      %v341 = vld [vmem:[%s217 + $0x2c8] sm:$0xff]
      %v342 = vld [vmem:[%s217 + $0x2d0] sm:$0xff]
      %v343 = vld [vmem:[%s217 + $0x2d8] sm:$0xff]
      %v344 = vld [vmem:[%s217 + $0x2e0] sm:$0xff]
      %v345 = vld [vmem:[%s217 + $0x2e8] sm:$0xff]
      %v346 = vld [vmem:[%s217 + $0x2f0] sm:$0xff]
      %v347 = vld [vmem:[%s217 + $0x2f8] sm:$0xff]
      %v348 = vld [vmem:[%s217 + $0x300] sm:$0xff]
      %v349 = vld [vmem:[%s217 + $0x308] sm:$0xff]
      %v350 = vld [vmem:[%s217 + $0x310] sm:$0xff]
      %v351 = vld [vmem:[%s217 + $0x318] sm:$0xff]
      %v352 = vld [vmem:[%s217 + $0x320] sm:$0xff]
      %v353 = vld [vmem:[%s217 + $0x328] sm:$0xff]
      %v354 = vld [vmem:[%s217 + $0x330] sm:$0xff]
      %v355 = vld [vmem:[%s217 + $0x338] sm:$0xff]
      %v356 = vld [vmem:[%s217 + $0x340] sm:$0xff]
      %v357 = vld [vmem:[%s217 + $0x348] sm:$0xff]
      %v358 = vld [vmem:[%s217 + $0x350] sm:$0xff]
      %v359 = vld [vmem:[%s217 + $0x358] sm:$0xff]
      %v360 = vld [vmem:[%s217 + $0x360] sm:$0xff]
      %v361 = vld [vmem:[%s217 + $0x368] sm:$0xff]
      %v362 = vld [vmem:[%s217 + $0x370] sm:$0xff]
      %v363 = vld [vmem:[%s217 + $0x378] sm:$0xff]
      %v364 = vld [vmem:[%s217 + $0x380] sm:$0xff]
      %v365 = vld [vmem:[%s217 + $0x388] sm:$0xff]
      %v366 = vld [vmem:[%s217 + $0x390] sm:$0xff]
      %v367 = vld [vmem:[%s217 + $0x398] sm:$0xff]
      %v368 = vld [vmem:[%s217 + $0x3a0] sm:$0xff]
      %v369 = vld [vmem:[%s217 + $0x3a8] sm:$0xff]
      %v370 = vld [vmem:[%s217 + $0x3b0] sm:$0xff]
      %v371 = vld [vmem:[%s217 + $0x3b8] sm:$0xff]
      %v372 = vld [vmem:[%s217 + $0x3c0] sm:$0xff]
      %v373 = vld [vmem:[%s217 + $0x3c8] sm:$0xff]
      %v374 = vld [vmem:[%s217 + $0x3d0] sm:$0xff]
      %v375 = vld [vmem:[%s217 + $0x3d8] sm:$0xff]
      %v376 = vld [vmem:[%s217 + $0x3e0] sm:$0xff]
      %v377 = vld [vmem:[%s217 + $0x3e8] sm:$0xff]
      %v378 = vld [vmem:[%s217 + $0x3f0] sm:$0xff]
      %v379 = vld [vmem:[%s217 + $0x3f8] sm:$0xff]
      %v380 = vld [vmem:[%s217 + $0x400] sm:$0xff]
      %v381 = vld [vmem:[%s217 + $0x408] sm:$0xff]
      %v382 = vld [vmem:[%s217 + $0x410] sm:$0xff]
      %v383 = vld [vmem:[%s217 + $0x418] sm:$0xff]
      %v384 = vld [vmem:[%s217 + $0x420] sm:$0xff]
      %v385 = vld [vmem:[%s217 + $0x428] sm:$0xff]
      %v386 = vld [vmem:[%s217 + $0x430] sm:$0xff]
      %v387 = vld [vmem:[%s217 + $0x438] sm:$0xff]
      %v388 = vld [vmem:[%s217 + $0x440] sm:$0xff]
      %v389 = vld [vmem:[%s217 + $0x448] sm:$0xff]
      %v390 = vld [vmem:[%s217 + $0x450] sm:$0xff]
      %v391 = vld [vmem:[%s217 + $0x458] sm:$0xff]
      %v392 = vld [vmem:[%s217 + $0x460] sm:$0xff]
      %v393 = vld [vmem:[%s217 + $0x468] sm:$0xff]
      %v394 = vld [vmem:[%s217 + $0x470] sm:$0xff]
      %v395 = vld [vmem:[%s217 + $0x478] sm:$0xff]
      %v396 = vld [vmem:[%s217 + $0x480] sm:$0xff]
      %v397 = vld [vmem:[%s217 + $0x488] sm:$0xff]
      %v398 = vld [vmem:[%s217 + $0x490] sm:$0xff]
      %v399 = vld [vmem:[%s217 + $0x498] sm:$0xff]
      %v400 = vld [vmem:[%s217 + $0x4a0] sm:$0xff]
      %v401 = vld [vmem:[%s217 + $0x4a8] sm:$0xff]
      %v402 = vld [vmem:[%s217 + $0x4b0] sm:$0xff]
      %v403 = vld [vmem:[%s217 + $0x4b8] sm:$0xff]
      %v404 = vld [vmem:[%s217 + $0x4c0] sm:$0xff]
      %v405 = vld [vmem:[%s217 + $0x4c8] sm:$0xff]
      %v406 = vld [vmem:[%s217 + $0x4d0] sm:$0xff]
      %v407 = vld [vmem:[%s217 + $0x4d8] sm:$0xff]
      %v408 = vld [vmem:[%s217 + $0x4e0] sm:$0xff]
      %v409 = vld [vmem:[%s217 + $0x4e8] sm:$0xff]
      %v410 = vld [vmem:[%s217 + $0x4f0] sm:$0xff]
      %v411 = vld [vmem:[%s217 + $0x4f8] sm:$0xff]
      %v412 = vld [vmem:[%s217 + $0x500] sm:$0xff]
      %v413 = vld [vmem:[%s217 + $0x508] sm:$0xff]
      %v414 = vld [vmem:[%s217 + $0x510] sm:$0xff]
      %v415 = vld [vmem:[%s217 + $0x518] sm:$0xff]
      %v416 = vld [vmem:[%s217 + $0x520] sm:$0xff]
      %v417 = vld [vmem:[%s217 + $0x528] sm:$0xff]
      %v418 = vld [vmem:[%s217 + $0x530] sm:$0xff]
      %v419 = vld [vmem:[%s217 + $0x538] sm:$0xff]
      %v420 = vld [vmem:[%s217 + $0x540] sm:$0xff]
      %v421 = vld [vmem:[%s217 + $0x548] sm:$0xff]
      %v422 = vld [vmem:[%s217 + $0x550] sm:$0xff]
      %v423 = vld [vmem:[%s217 + $0x558] sm:$0xff]
      %v424 = vld [vmem:[%s217 + $0x560] sm:$0xff]
      %v425 = vld [vmem:[%s217 + $0x568] sm:$0xff]
      %v426 = vld [vmem:[%s217 + $0x570] sm:$0xff]
      %v427 = vld [vmem:[%s217 + $0x578] sm:$0xff]
      %v428 = vld [vmem:[%s217 + $0x580] sm:$0xff]
      %v429 = vld [vmem:[%s217 + $0x588] sm:$0xff]
      %v430 = vld [vmem:[%s217 + $0x590] sm:$0xff]
      %v431 = vld [vmem:[%s217 + $0x598] sm:$0xff]
      %v432 = vld [vmem:[%s217 + $0x5a0] sm:$0xff]
      %v433 = vld [vmem:[%s217 + $0x5a8] sm:$0xff]
      %v434 = vld [vmem:[%s217 + $0x5b0] sm:$0xff]
      %v435 = vld [vmem:[%s217 + $0x5b8] sm:$0xff]
      %v436 = vld [vmem:[%s217 + $0x5c0] sm:$0xff]
      %v437 = vld [vmem:[%s217 + $0x5c8] sm:$0xff]
      %v438 = vld [vmem:[%s217 + $0x5d0] sm:$0xff]
      %v439 = vld [vmem:[%s217 + $0x5d8] sm:$0xff]
      %v440 = vld [vmem:[%s217 + $0x5e0] sm:$0xff]
      %v441 = vld [vmem:[%s217 + $0x5e8] sm:$0xff]
      %v442 = vld [vmem:[%s217 + $0x5f0] sm:$0xff]
      %v443 = vld [vmem:[%s217 + $0x5f8] sm:$0xff]
      %v444 = vld [vmem:[%s217 + $0x600] sm:$0xff]
      %v445 = vld [vmem:[%s217 + $0x608] sm:$0xff]
      %v446 = vld [vmem:[%s217 + $0x610] sm:$0xff]
      %v447 = vld [vmem:[%s217 + $0x618] sm:$0xff]
      %v448 = vld [vmem:[%s217 + $0x620] sm:$0xff]
      %v449 = vld [vmem:[%s217 + $0x628] sm:$0xff]
      %v450 = vld [vmem:[%s217 + $0x630] sm:$0xff]
      %v451 = vld [vmem:[%s217 + $0x638] sm:$0xff]
      %v452 = vld [vmem:[%s217 + $0x640] sm:$0xff]
      %v453 = vld [vmem:[%s217 + $0x648] sm:$0xff]
      %v454 = vld [vmem:[%s217 + $0x650] sm:$0xff]
      %v455 = vld [vmem:[%s217 + $0x658] sm:$0xff]
      %v456 = vld [vmem:[%s217 + $0x660] sm:$0xff]
      %v457 = vld [vmem:[%s217 + $0x668] sm:$0xff]
      %v458 = vld [vmem:[%s217 + $0x670] sm:$0xff]
      %v459 = vld [vmem:[%s217 + $0x678] sm:$0xff]
      %v460 = vld [vmem:[%s217 + $0x680] sm:$0xff]
      %v461 = vld [vmem:[%s217 + $0x688] sm:$0xff]
      %v462 = vld [vmem:[%s217 + $0x690] sm:$0xff]
      %v463 = vld [vmem:[%s217 + $0x698] sm:$0xff]
      %v464 = vld [vmem:[%s217 + $0x6a0] sm:$0xff]
      %v465 = vld [vmem:[%s217 + $0x6a8] sm:$0xff]
      %v466 = vld [vmem:[%s217 + $0x6b0] sm:$0xff]
      %v467 = vld [vmem:[%s217 + $0x6b8] sm:$0xff]
      %v468 = vld [vmem:[%s217 + $0x6c0] sm:$0xff]
      %v469 = vld [vmem:[%s217 + $0x6c8] sm:$0xff]
      %v470 = vld [vmem:[%s217 + $0x6d0] sm:$0xff]
      %v471 = vld [vmem:[%s217 + $0x6d8] sm:$0xff]
      %v472 = vld [vmem:[%s217 + $0x6e0] sm:$0xff]
      %v473 = vld [vmem:[%s217 + $0x6e8] sm:$0xff]
      %v474 = vld [vmem:[%s217 + $0x6f0] sm:$0xff]
      %v475 = vld [vmem:[%s217 + $0x6f8] sm:$0xff]
      %v476 = vld [vmem:[%s217 + $0x700] sm:$0xff]
      %v477 = vld [vmem:[%s217 + $0x708] sm:$0xff]
      %v478 = vld [vmem:[%s217 + $0x710] sm:$0xff]
      %v479 = vld [vmem:[%s217 + $0x718] sm:$0xff]
      %v480 = vld [vmem:[%s217 + $0x720] sm:$0xff]
      %v481 = vld [vmem:[%s217 + $0x728] sm:$0xff]
      %v482 = vld [vmem:[%s217 + $0x730] sm:$0xff]
      %v483 = vld [vmem:[%s217 + $0x738] sm:$0xff]
      %v484 = vld [vmem:[%s217 + $0x740] sm:$0xff]
      %v485 = vld [vmem:[%s217 + $0x748] sm:$0xff]
      %v486 = vld [vmem:[%s217 + $0x750] sm:$0xff]
      %v487 = vld [vmem:[%s217 + $0x758] sm:$0xff]
      %v488 = vld [vmem:[%s217 + $0x760] sm:$0xff]
      %v489 = vld [vmem:[%s217 + $0x768] sm:$0xff]
      %v490 = vld [vmem:[%s217 + $0x770] sm:$0xff]
      %v491 = vld [vmem:[%s217 + $0x778] sm:$0xff]
      %v492 = vld [vmem:[%s217 + $0x780] sm:$0xff]
      %v493 = vld [vmem:[%s217 + $0x788] sm:$0xff]
      %v494 = vld [vmem:[%s217 + $0x790] sm:$0xff]
      %v495 = vld [vmem:[%s217 + $0x798] sm:$0xff]
      %v496 = vld [vmem:[%s217 + $0x7a0] sm:$0xff]
      %v497 = vld [vmem:[%s217 + $0x7a8] sm:$0xff]
      %v498 = vld [vmem:[%s217 + $0x7b0] sm:$0xff]
      %v499 = vld [vmem:[%s217 + $0x7b8] sm:$0xff]
      %v500 = vld [vmem:[%s217 + $0x7c0] sm:$0xff]
      %v501 = vld [vmem:[%s217 + $0x7c8] sm:$0xff]
      %v502 = vld [vmem:[%s217 + $0x7d0] sm:$0xff]
      %v503 = vld [vmem:[%s217 + $0x7d8] sm:$0xff]
      %v504 = vld [vmem:[%s217 + $0x7e0] sm:$0xff]
      %v505 = vld [vmem:[%s217 + $0x7e8] sm:$0xff]
      %v506 = vld [vmem:[%s217 + $0x7f0] sm:$0xff]
      %v507 = vld [vmem:[%s217 + $0x7f8] sm:$0xff]
      %v524 = vunpack.c.l.b16 %v236
      %v525 = vunpack.c.h.b16 %v236
      %v526 = vunpack.c.l.b16 %v237
      %v527 = vunpack.c.h.b16 %v237
      %v528 = vunpack.c.l.b16 %v238
      %v529 = vunpack.c.h.b16 %v238
      %v530 = vunpack.c.l.b16 %v239
      %v531 = vunpack.c.h.b16 %v239
      %v532 = vunpack.c.l.b16 %v240
      %v533 = vunpack.c.h.b16 %v240
      %v534 = vunpack.c.l.b16 %v241
      %v535 = vunpack.c.h.b16 %v241
      %v536 = vunpack.c.l.b16 %v242
      %v537 = vunpack.c.h.b16 %v242
      %v538 = vunpack.c.l.b16 %v243
      %v539 = vunpack.c.h.b16 %v243
      %v540 = vunpack.c.l.b16 %v244
      %v541 = vunpack.c.h.b16 %v244
      %v542 = vunpack.c.l.b16 %v245
      %v543 = vunpack.c.h.b16 %v245
      %v544 = vunpack.c.l.b16 %v246
      %v545 = vunpack.c.h.b16 %v246
      %v546 = vunpack.c.l.b16 %v247
      %v547 = vunpack.c.h.b16 %v247
      %v548 = vunpack.c.l.b16 %v248
      %v549 = vunpack.c.h.b16 %v248
      %v550 = vunpack.c.l.b16 %v249
      %v551 = vunpack.c.h.b16 %v249
      %v552 = vunpack.c.l.b16 %v250
      %v553 = vunpack.c.h.b16 %v250
      %v554 = vunpack.c.l.b16 %v251
      %v555 = vunpack.c.h.b16 %v251
      %v556 = vpack.c.b16 %v540, %v524
      %v557 = vpack.c.b16 %v541, %v525
      %v558 = vpack.c.b16 %v542, %v526
      %v559 = vpack.c.b16 %v543, %v527
      %v560 = vpack.c.b16 %v544, %v528
      %v561 = vpack.c.b16 %v545, %v529
      %v562 = vpack.c.b16 %v546, %v530
      %v563 = vpack.c.b16 %v547, %v531
      %v564 = vpack.c.b16 %v548, %v532
      %v565 = vpack.c.b16 %v549, %v533
      %v566 = vpack.c.b16 %v550, %v534
      %v567 = vpack.c.b16 %v551, %v535
      %v568 = vpack.c.b16 %v552, %v536
      %v569 = vpack.c.b16 %v553, %v537
      %v570 = vpack.c.b16 %v554, %v538
      %v571 = vpack.c.b16 %v555, %v539
      %v844 = vunpack.c.l.b16 %v252
      %v845 = vunpack.c.h.b16 %v252
      %v846 = vunpack.c.l.b16 %v253
      %v847 = vunpack.c.h.b16 %v253
      %v848 = vunpack.c.l.b16 %v254
      %v849 = vunpack.c.h.b16 %v254
      %v850 = vunpack.c.l.b16 %v255
      %v851 = vunpack.c.h.b16 %v255
      %v852 = vunpack.c.l.b16 %v256
      %v853 = vunpack.c.h.b16 %v256
      %v854 = vunpack.c.l.b16 %v257
      %v855 = vunpack.c.h.b16 %v257
      %v856 = vunpack.c.l.b16 %v258
      %v857 = vunpack.c.h.b16 %v258
      %v858 = vunpack.c.l.b16 %v259
      %v859 = vunpack.c.h.b16 %v259
      %v860 = vunpack.c.l.b16 %v260
      %v861 = vunpack.c.h.b16 %v260
      %v862 = vunpack.c.l.b16 %v261
      %v863 = vunpack.c.h.b16 %v261
      %v864 = vunpack.c.l.b16 %v262
      %v865 = vunpack.c.h.b16 %v262
      %v866 = vunpack.c.l.b16 %v263
      %v867 = vunpack.c.h.b16 %v263
      %v868 = vunpack.c.l.b16 %v264
      %v869 = vunpack.c.h.b16 %v264
      %v870 = vunpack.c.l.b16 %v265
      %v871 = vunpack.c.h.b16 %v265
      %v872 = vunpack.c.l.b16 %v266
      %v873 = vunpack.c.h.b16 %v266
      %v874 = vunpack.c.l.b16 %v267
      %v875 = vunpack.c.h.b16 %v267
      %v876 = vunpack.c.l.b16 %v268
      %v877 = vunpack.c.h.b16 %v268
      %v878 = vunpack.c.l.b16 %v269
      %v879 = vunpack.c.h.b16 %v269
      %v880 = vunpack.c.l.b16 %v270
      %v881 = vunpack.c.h.b16 %v270
      %v882 = vunpack.c.l.b16 %v271
      %v883 = vunpack.c.h.b16 %v271
      %v884 = vunpack.c.l.b16 %v272
      %v885 = vunpack.c.h.b16 %v272
      %v886 = vunpack.c.l.b16 %v273
      %v887 = vunpack.c.h.b16 %v273
      %v888 = vunpack.c.l.b16 %v274
      %v889 = vunpack.c.h.b16 %v274
      %v890 = vunpack.c.l.b16 %v275
      %v891 = vunpack.c.h.b16 %v275
      %v892 = vunpack.c.l.b16 %v276
      %v893 = vunpack.c.h.b16 %v276
      %v894 = vunpack.c.l.b16 %v277
      %v895 = vunpack.c.h.b16 %v277
      %v896 = vunpack.c.l.b16 %v278
      %v897 = vunpack.c.h.b16 %v278
      %v898 = vunpack.c.l.b16 %v279
      %v899 = vunpack.c.h.b16 %v279
      %v900 = vunpack.c.l.b16 %v280
      %v901 = vunpack.c.h.b16 %v280
      %v902 = vunpack.c.l.b16 %v281
      %v903 = vunpack.c.h.b16 %v281
      %v904 = vunpack.c.l.b16 %v282
      %v905 = vunpack.c.h.b16 %v282
      %v906 = vunpack.c.l.b16 %v283
      %v907 = vunpack.c.h.b16 %v283
      %v908 = vunpack.c.l.b16 %v284
      %v909 = vunpack.c.h.b16 %v284
      %v910 = vunpack.c.l.b16 %v285
      %v911 = vunpack.c.h.b16 %v285
      %v912 = vunpack.c.l.b16 %v286
      %v913 = vunpack.c.h.b16 %v286
      %v914 = vunpack.c.l.b16 %v287
      %v915 = vunpack.c.h.b16 %v287
      %v916 = vunpack.c.l.b16 %v288
      %v917 = vunpack.c.h.b16 %v288
      %v918 = vunpack.c.l.b16 %v289
      %v919 = vunpack.c.h.b16 %v289
      %v920 = vunpack.c.l.b16 %v290
      %v921 = vunpack.c.h.b16 %v290
      %v922 = vunpack.c.l.b16 %v291
      %v923 = vunpack.c.h.b16 %v291
      %v924 = vunpack.c.l.b16 %v292
      %v925 = vunpack.c.h.b16 %v292
      %v926 = vunpack.c.l.b16 %v293
      %v927 = vunpack.c.h.b16 %v293
      %v928 = vunpack.c.l.b16 %v294
      %v929 = vunpack.c.h.b16 %v294
      %v930 = vunpack.c.l.b16 %v295
      %v931 = vunpack.c.h.b16 %v295
      %v932 = vunpack.c.l.b16 %v296
      %v933 = vunpack.c.h.b16 %v296
      %v934 = vunpack.c.l.b16 %v297
      %v935 = vunpack.c.h.b16 %v297
      %v936 = vunpack.c.l.b16 %v298
      %v937 = vunpack.c.h.b16 %v298
      %v938 = vunpack.c.l.b16 %v299
      %v939 = vunpack.c.h.b16 %v299
      %v940 = vunpack.c.l.b16 %v300
      %v941 = vunpack.c.h.b16 %v300
      %v942 = vunpack.c.l.b16 %v301
      %v943 = vunpack.c.h.b16 %v301
      %v944 = vunpack.c.l.b16 %v302
      %v945 = vunpack.c.h.b16 %v302
      %v946 = vunpack.c.l.b16 %v303
      %v947 = vunpack.c.h.b16 %v303
      %v948 = vunpack.c.l.b16 %v304
      %v949 = vunpack.c.h.b16 %v304
      %v950 = vunpack.c.l.b16 %v305
      %v951 = vunpack.c.h.b16 %v305
      %v952 = vunpack.c.l.b16 %v306
      %v953 = vunpack.c.h.b16 %v306
      %v954 = vunpack.c.l.b16 %v307
      %v955 = vunpack.c.h.b16 %v307
      %v956 = vunpack.c.l.b16 %v308
      %v957 = vunpack.c.h.b16 %v308
      %v958 = vunpack.c.l.b16 %v309
      %v959 = vunpack.c.h.b16 %v309
      %v960 = vunpack.c.l.b16 %v310
      %v961 = vunpack.c.h.b16 %v310
      %v962 = vunpack.c.l.b16 %v311
      %v963 = vunpack.c.h.b16 %v311
      %v964 = vunpack.c.l.b16 %v312
      %v965 = vunpack.c.h.b16 %v312
      %v966 = vunpack.c.l.b16 %v313
      %v967 = vunpack.c.h.b16 %v313
      %v968 = vunpack.c.l.b16 %v314
      %v969 = vunpack.c.h.b16 %v314
      %v970 = vunpack.c.l.b16 %v315
      %v971 = vunpack.c.h.b16 %v315
      %v972 = vunpack.c.l.b16 %v316
      %v973 = vunpack.c.h.b16 %v316
      %v974 = vunpack.c.l.b16 %v317
      %v975 = vunpack.c.h.b16 %v317
      %v976 = vunpack.c.l.b16 %v318
      %v977 = vunpack.c.h.b16 %v318
      %v978 = vunpack.c.l.b16 %v319
      %v979 = vunpack.c.h.b16 %v319
      %v980 = vunpack.c.l.b16 %v320
      %v981 = vunpack.c.h.b16 %v320
      %v982 = vunpack.c.l.b16 %v321
      %v983 = vunpack.c.h.b16 %v321
      %v984 = vunpack.c.l.b16 %v322
      %v985 = vunpack.c.h.b16 %v322
      %v986 = vunpack.c.l.b16 %v323
      %v987 = vunpack.c.h.b16 %v323
      %v988 = vunpack.c.l.b16 %v324
      %v989 = vunpack.c.h.b16 %v324
      %v990 = vunpack.c.l.b16 %v325
      %v991 = vunpack.c.h.b16 %v325
      %v992 = vunpack.c.l.b16 %v326
      %v993 = vunpack.c.h.b16 %v326
      %v994 = vunpack.c.l.b16 %v327
      %v995 = vunpack.c.h.b16 %v327
      %v996 = vunpack.c.l.b16 %v328
      %v997 = vunpack.c.h.b16 %v328
      %v998 = vunpack.c.l.b16 %v329
      %v999 = vunpack.c.h.b16 %v329
      %v1000 = vunpack.c.l.b16 %v330
      %v1001 = vunpack.c.h.b16 %v330
      %v1002 = vunpack.c.l.b16 %v331
      %v1003 = vunpack.c.h.b16 %v331
      %v1004 = vunpack.c.l.b16 %v332
      %v1005 = vunpack.c.h.b16 %v332
      %v1006 = vunpack.c.l.b16 %v333
      %v1007 = vunpack.c.h.b16 %v333
      %v1008 = vunpack.c.l.b16 %v334
      %v1009 = vunpack.c.h.b16 %v334
      %v1010 = vunpack.c.l.b16 %v335
      %v1011 = vunpack.c.h.b16 %v335
      %v1012 = vunpack.c.l.b16 %v336
      %v1013 = vunpack.c.h.b16 %v336
      %v1014 = vunpack.c.l.b16 %v337
      %v1015 = vunpack.c.h.b16 %v337
      %v1016 = vunpack.c.l.b16 %v338
      %v1017 = vunpack.c.h.b16 %v338
      %v1018 = vunpack.c.l.b16 %v339
      %v1019 = vunpack.c.h.b16 %v339
      %v1020 = vunpack.c.l.b16 %v340
      %v1021 = vunpack.c.h.b16 %v340
      %v1022 = vunpack.c.l.b16 %v341
      %v1023 = vunpack.c.h.b16 %v341
      %v1024 = vunpack.c.l.b16 %v342
      %v1025 = vunpack.c.h.b16 %v342
      %v1026 = vunpack.c.l.b16 %v343
      %v1027 = vunpack.c.h.b16 %v343
      %v1028 = vunpack.c.l.b16 %v344
      %v1029 = vunpack.c.h.b16 %v344
      %v1030 = vunpack.c.l.b16 %v345
      %v1031 = vunpack.c.h.b16 %v345
      %v1032 = vunpack.c.l.b16 %v346
      %v1033 = vunpack.c.h.b16 %v346
      %v1034 = vunpack.c.l.b16 %v347
      %v1035 = vunpack.c.h.b16 %v347
      %v1036 = vunpack.c.l.b16 %v348
      %v1037 = vunpack.c.h.b16 %v348
      %v1038 = vunpack.c.l.b16 %v349
      %v1039 = vunpack.c.h.b16 %v349
      %v1040 = vunpack.c.l.b16 %v350
      %v1041 = vunpack.c.h.b16 %v350
      %v1042 = vunpack.c.l.b16 %v351
      %v1043 = vunpack.c.h.b16 %v351
      %v1044 = vunpack.c.l.b16 %v352
      %v1045 = vunpack.c.h.b16 %v352
      %v1046 = vunpack.c.l.b16 %v353
      %v1047 = vunpack.c.h.b16 %v353
      %v1048 = vunpack.c.l.b16 %v354
      %v1049 = vunpack.c.h.b16 %v354
      %v1050 = vunpack.c.l.b16 %v355
      %v1051 = vunpack.c.h.b16 %v355
      %v1052 = vunpack.c.l.b16 %v356
      %v1053 = vunpack.c.h.b16 %v356
      %v1054 = vunpack.c.l.b16 %v357
      %v1055 = vunpack.c.h.b16 %v357
      %v1056 = vunpack.c.l.b16 %v358
      %v1057 = vunpack.c.h.b16 %v358
      %v1058 = vunpack.c.l.b16 %v359
      %v1059 = vunpack.c.h.b16 %v359
      %v1060 = vunpack.c.l.b16 %v360
      %v1061 = vunpack.c.h.b16 %v360
      %v1062 = vunpack.c.l.b16 %v361
      %v1063 = vunpack.c.h.b16 %v361
      %v1064 = vunpack.c.l.b16 %v362
      %v1065 = vunpack.c.h.b16 %v362
      %v1066 = vunpack.c.l.b16 %v363
      %v1067 = vunpack.c.h.b16 %v363
      %v1068 = vunpack.c.l.b16 %v364
      %v1069 = vunpack.c.h.b16 %v364
      %v1070 = vunpack.c.l.b16 %v365
      %v1071 = vunpack.c.h.b16 %v365
      %v1072 = vunpack.c.l.b16 %v366
      %v1073 = vunpack.c.h.b16 %v366
      %v1074 = vunpack.c.l.b16 %v367
      %v1075 = vunpack.c.h.b16 %v367
      %v1076 = vunpack.c.l.b16 %v368
      %v1077 = vunpack.c.h.b16 %v368
      %v1078 = vunpack.c.l.b16 %v369
      %v1079 = vunpack.c.h.b16 %v369
      %v1080 = vunpack.c.l.b16 %v370
      %v1081 = vunpack.c.h.b16 %v370
      %v1082 = vunpack.c.l.b16 %v371
      %v1083 = vunpack.c.h.b16 %v371
      %v1084 = vunpack.c.l.b16 %v372
      %v1085 = vunpack.c.h.b16 %v372
      %v1086 = vunpack.c.l.b16 %v373
      %v1087 = vunpack.c.h.b16 %v373
      %v1088 = vunpack.c.l.b16 %v374
      %v1089 = vunpack.c.h.b16 %v374
      %v1090 = vunpack.c.l.b16 %v375
      %v1091 = vunpack.c.h.b16 %v375
      %v1092 = vunpack.c.l.b16 %v376
      %v1093 = vunpack.c.h.b16 %v376
      %v1094 = vunpack.c.l.b16 %v377
      %v1095 = vunpack.c.h.b16 %v377
      %v1096 = vunpack.c.l.b16 %v378
      %v1097 = vunpack.c.h.b16 %v378
      %v1098 = vunpack.c.l.b16 %v379
      %v1099 = vunpack.c.h.b16 %v379
      %v1100 = vunpack.c.l.b16 %v380
      %v1101 = vunpack.c.h.b16 %v380
      %v1102 = vunpack.c.l.b16 %v381
      %v1103 = vunpack.c.h.b16 %v381
      %v1104 = vunpack.c.l.b16 %v382
      %v1105 = vunpack.c.h.b16 %v382
      %v1106 = vunpack.c.l.b16 %v383
      %v1107 = vunpack.c.h.b16 %v383
      %v1108 = vunpack.c.l.b16 %v384
      %v1109 = vunpack.c.h.b16 %v384
      %v1110 = vunpack.c.l.b16 %v385
      %v1111 = vunpack.c.h.b16 %v385
      %v1112 = vunpack.c.l.b16 %v386
      %v1113 = vunpack.c.h.b16 %v386
      %v1114 = vunpack.c.l.b16 %v387
      %v1115 = vunpack.c.h.b16 %v387
      %v1116 = vunpack.c.l.b16 %v388
      %v1117 = vunpack.c.h.b16 %v388
      %v1118 = vunpack.c.l.b16 %v389
      %v1119 = vunpack.c.h.b16 %v389
      %v1120 = vunpack.c.l.b16 %v390
      %v1121 = vunpack.c.h.b16 %v390
      %v1122 = vunpack.c.l.b16 %v391
      %v1123 = vunpack.c.h.b16 %v391
      %v1124 = vunpack.c.l.b16 %v392
      %v1125 = vunpack.c.h.b16 %v392
      %v1126 = vunpack.c.l.b16 %v393
      %v1127 = vunpack.c.h.b16 %v393
      %v1128 = vunpack.c.l.b16 %v394
      %v1129 = vunpack.c.h.b16 %v394
      %v1130 = vunpack.c.l.b16 %v395
      %v1131 = vunpack.c.h.b16 %v395
      %v1132 = vunpack.c.l.b16 %v396
      %v1133 = vunpack.c.h.b16 %v396
      %v1134 = vunpack.c.l.b16 %v397
      %v1135 = vunpack.c.h.b16 %v397
      %v1136 = vunpack.c.l.b16 %v398
      %v1137 = vunpack.c.h.b16 %v398
      %v1138 = vunpack.c.l.b16 %v399
      %v1139 = vunpack.c.h.b16 %v399
      %v1140 = vunpack.c.l.b16 %v400
      %v1141 = vunpack.c.h.b16 %v400
      %v1142 = vunpack.c.l.b16 %v401
      %v1143 = vunpack.c.h.b16 %v401
      %v1144 = vunpack.c.l.b16 %v402
      %v1145 = vunpack.c.h.b16 %v402
      %v1146 = vunpack.c.l.b16 %v403
      %v1147 = vunpack.c.h.b16 %v403
      %v1148 = vunpack.c.l.b16 %v404
      %v1149 = vunpack.c.h.b16 %v404
      %v1150 = vunpack.c.l.b16 %v405
      %v1151 = vunpack.c.h.b16 %v405
      %v1152 = vunpack.c.l.b16 %v406
      %v1153 = vunpack.c.h.b16 %v406
      %v1154 = vunpack.c.l.b16 %v407
      %v1155 = vunpack.c.h.b16 %v407
      %v1156 = vunpack.c.l.b16 %v408
      %v1157 = vunpack.c.h.b16 %v408
      %v1158 = vunpack.c.l.b16 %v409
      %v1159 = vunpack.c.h.b16 %v409
      %v1160 = vunpack.c.l.b16 %v410
      %v1161 = vunpack.c.h.b16 %v410
      %v1162 = vunpack.c.l.b16 %v411
      %v1163 = vunpack.c.h.b16 %v411
      %v1164 = vunpack.c.l.b16 %v412
      %v1165 = vunpack.c.h.b16 %v412
      %v1166 = vunpack.c.l.b16 %v413
      %v1167 = vunpack.c.h.b16 %v413
      %v1168 = vunpack.c.l.b16 %v414
      %v1169 = vunpack.c.h.b16 %v414
      %v1170 = vunpack.c.l.b16 %v415
      %v1171 = vunpack.c.h.b16 %v415
      %v1172 = vunpack.c.l.b16 %v416
      %v1173 = vunpack.c.h.b16 %v416
      %v1174 = vunpack.c.l.b16 %v417
      %v1175 = vunpack.c.h.b16 %v417
      %v1176 = vunpack.c.l.b16 %v418
      %v1177 = vunpack.c.h.b16 %v418
      %v1178 = vunpack.c.l.b16 %v419
      %v1179 = vunpack.c.h.b16 %v419
      %v1180 = vunpack.c.l.b16 %v420
      %v1181 = vunpack.c.h.b16 %v420
      %v1182 = vunpack.c.l.b16 %v421
      %v1183 = vunpack.c.h.b16 %v421
      %v1184 = vunpack.c.l.b16 %v422
      %v1185 = vunpack.c.h.b16 %v422
      %v1186 = vunpack.c.l.b16 %v423
      %v1187 = vunpack.c.h.b16 %v423
      %v1188 = vunpack.c.l.b16 %v424
      %v1189 = vunpack.c.h.b16 %v424
      %v1190 = vunpack.c.l.b16 %v425
      %v1191 = vunpack.c.h.b16 %v425
      %v1192 = vunpack.c.l.b16 %v426
      %v1193 = vunpack.c.h.b16 %v426
      %v1194 = vunpack.c.l.b16 %v427
      %v1195 = vunpack.c.h.b16 %v427
      %v1196 = vunpack.c.l.b16 %v428
      %v1197 = vunpack.c.h.b16 %v428
      %v1198 = vunpack.c.l.b16 %v429
      %v1199 = vunpack.c.h.b16 %v429
      %v1200 = vunpack.c.l.b16 %v430
      %v1201 = vunpack.c.h.b16 %v430
      %v1202 = vunpack.c.l.b16 %v431
      %v1203 = vunpack.c.h.b16 %v431
      %v1204 = vunpack.c.l.b16 %v432
      %v1205 = vunpack.c.h.b16 %v432
      %v1206 = vunpack.c.l.b16 %v433
      %v1207 = vunpack.c.h.b16 %v433
      %v1208 = vunpack.c.l.b16 %v434
      %v1209 = vunpack.c.h.b16 %v434
      %v1210 = vunpack.c.l.b16 %v435
      %v1211 = vunpack.c.h.b16 %v435
      %v1212 = vunpack.c.l.b16 %v436
      %v1213 = vunpack.c.h.b16 %v436
      %v1214 = vunpack.c.l.b16 %v437
      %v1215 = vunpack.c.h.b16 %v437
      %v1216 = vunpack.c.l.b16 %v438
      %v1217 = vunpack.c.h.b16 %v438
      %v1218 = vunpack.c.l.b16 %v439
      %v1219 = vunpack.c.h.b16 %v439
      %v1220 = vunpack.c.l.b16 %v440
      %v1221 = vunpack.c.h.b16 %v440
      %v1222 = vunpack.c.l.b16 %v441
      %v1223 = vunpack.c.h.b16 %v441
      %v1224 = vunpack.c.l.b16 %v442
      %v1225 = vunpack.c.h.b16 %v442
      %v1226 = vunpack.c.l.b16 %v443
      %v1227 = vunpack.c.h.b16 %v443
      %v1228 = vunpack.c.l.b16 %v444
      %v1229 = vunpack.c.h.b16 %v444
      %v1230 = vunpack.c.l.b16 %v445
      %v1231 = vunpack.c.h.b16 %v445
      %v1232 = vunpack.c.l.b16 %v446
      %v1233 = vunpack.c.h.b16 %v446
      %v1234 = vunpack.c.l.b16 %v447
      %v1235 = vunpack.c.h.b16 %v447
      %v1236 = vunpack.c.l.b16 %v448
      %v1237 = vunpack.c.h.b16 %v448
      %v1238 = vunpack.c.l.b16 %v449
      %v1239 = vunpack.c.h.b16 %v449
      %v1240 = vunpack.c.l.b16 %v450
      %v1241 = vunpack.c.h.b16 %v450
      %v1242 = vunpack.c.l.b16 %v451
      %v1243 = vunpack.c.h.b16 %v451
      %v1244 = vunpack.c.l.b16 %v452
      %v1245 = vunpack.c.h.b16 %v452
      %v1246 = vunpack.c.l.b16 %v453
      %v1247 = vunpack.c.h.b16 %v453
      %v1248 = vunpack.c.l.b16 %v454
      %v1249 = vunpack.c.h.b16 %v454
      %v1250 = vunpack.c.l.b16 %v455
      %v1251 = vunpack.c.h.b16 %v455
      %v1252 = vunpack.c.l.b16 %v456
      %v1253 = vunpack.c.h.b16 %v456
      %v1254 = vunpack.c.l.b16 %v457
      %v1255 = vunpack.c.h.b16 %v457
      %v1256 = vunpack.c.l.b16 %v458
      %v1257 = vunpack.c.h.b16 %v458
      %v1258 = vunpack.c.l.b16 %v459
      %v1259 = vunpack.c.h.b16 %v459
      %v1260 = vunpack.c.l.b16 %v460
      %v1261 = vunpack.c.h.b16 %v460
      %v1262 = vunpack.c.l.b16 %v461
      %v1263 = vunpack.c.h.b16 %v461
      %v1264 = vunpack.c.l.b16 %v462
      %v1265 = vunpack.c.h.b16 %v462
      %v1266 = vunpack.c.l.b16 %v463
      %v1267 = vunpack.c.h.b16 %v463
      %v1268 = vunpack.c.l.b16 %v464
      %v1269 = vunpack.c.h.b16 %v464
      %v1270 = vunpack.c.l.b16 %v465
      %v1271 = vunpack.c.h.b16 %v465
      %v1272 = vunpack.c.l.b16 %v466
      %v1273 = vunpack.c.h.b16 %v466
      %v1274 = vunpack.c.l.b16 %v467
      %v1275 = vunpack.c.h.b16 %v467
      %v1276 = vunpack.c.l.b16 %v468
      %v1277 = vunpack.c.h.b16 %v468
      %v1278 = vunpack.c.l.b16 %v469
      %v1279 = vunpack.c.h.b16 %v469
      %v1280 = vunpack.c.l.b16 %v470
      %v1281 = vunpack.c.h.b16 %v470
      %v1282 = vunpack.c.l.b16 %v471
      %v1283 = vunpack.c.h.b16 %v471
      %v1284 = vunpack.c.l.b16 %v472
      %v1285 = vunpack.c.h.b16 %v472
      %v1286 = vunpack.c.l.b16 %v473
      %v1287 = vunpack.c.h.b16 %v473
      %v1288 = vunpack.c.l.b16 %v474
      %v1289 = vunpack.c.h.b16 %v474
      %v1290 = vunpack.c.l.b16 %v475
      %v1291 = vunpack.c.h.b16 %v475
      %v1292 = vunpack.c.l.b16 %v476
      %v1293 = vunpack.c.h.b16 %v476
      %v1294 = vunpack.c.l.b16 %v477
      %v1295 = vunpack.c.h.b16 %v477
      %v1296 = vunpack.c.l.b16 %v478
      %v1297 = vunpack.c.h.b16 %v478
      %v1298 = vunpack.c.l.b16 %v479
      %v1299 = vunpack.c.h.b16 %v479
      %v1300 = vunpack.c.l.b16 %v480
      %v1301 = vunpack.c.h.b16 %v480
      %v1302 = vunpack.c.l.b16 %v481
      %v1303 = vunpack.c.h.b16 %v481
      %v1304 = vunpack.c.l.b16 %v482
      %v1305 = vunpack.c.h.b16 %v482
      %v1306 = vunpack.c.l.b16 %v483
      %v1307 = vunpack.c.h.b16 %v483
      %v1308 = vunpack.c.l.b16 %v484
      %v1309 = vunpack.c.h.b16 %v484
      %v1310 = vunpack.c.l.b16 %v485
      %v1311 = vunpack.c.h.b16 %v485
      %v1312 = vunpack.c.l.b16 %v486
      %v1313 = vunpack.c.h.b16 %v486
      %v1314 = vunpack.c.l.b16 %v487
      %v1315 = vunpack.c.h.b16 %v487
      %v1316 = vunpack.c.l.b16 %v488
      %v1317 = vunpack.c.h.b16 %v488
      %v1318 = vunpack.c.l.b16 %v489
      %v1319 = vunpack.c.h.b16 %v489
      %v1320 = vunpack.c.l.b16 %v490
      %v1321 = vunpack.c.h.b16 %v490
      %v1322 = vunpack.c.l.b16 %v491
      %v1323 = vunpack.c.h.b16 %v491
      %v1324 = vunpack.c.l.b16 %v492
      %v1325 = vunpack.c.h.b16 %v492
      %v1326 = vunpack.c.l.b16 %v493
      %v1327 = vunpack.c.h.b16 %v493
      %v1328 = vunpack.c.l.b16 %v494
      %v1329 = vunpack.c.h.b16 %v494
      %v1330 = vunpack.c.l.b16 %v495
      %v1331 = vunpack.c.h.b16 %v495
      %v1332 = vunpack.c.l.b16 %v496
      %v1333 = vunpack.c.h.b16 %v496
      %v1334 = vunpack.c.l.b16 %v497
      %v1335 = vunpack.c.h.b16 %v497
      %v1336 = vunpack.c.l.b16 %v498
      %v1337 = vunpack.c.h.b16 %v498
      %v1338 = vunpack.c.l.b16 %v499
      %v1339 = vunpack.c.h.b16 %v499
      %v1340 = vunpack.c.l.b16 %v500
      %v1341 = vunpack.c.h.b16 %v500
      %v1342 = vunpack.c.l.b16 %v501
      %v1343 = vunpack.c.h.b16 %v501
      %v1344 = vunpack.c.l.b16 %v502
      %v1345 = vunpack.c.h.b16 %v502
      %v1346 = vunpack.c.l.b16 %v503
      %v1347 = vunpack.c.h.b16 %v503
      %v1348 = vunpack.c.l.b16 %v504
      %v1349 = vunpack.c.h.b16 %v504
      %v1350 = vunpack.c.l.b16 %v505
      %v1351 = vunpack.c.h.b16 %v505
      %v1352 = vunpack.c.l.b16 %v506
      %v1353 = vunpack.c.h.b16 %v506
      %v1354 = vunpack.c.l.b16 %v507
      %v1355 = vunpack.c.h.b16 %v507
      %v1356 = vpack.c.b16 %v846, %v844
      %v1357 = vpack.c.b16 %v847, %v845
      %v1358 = vpack.c.b16 %v850, %v848
      %v1359 = vpack.c.b16 %v851, %v849
      %v1360 = vpack.c.b16 %v854, %v852
      %v1361 = vpack.c.b16 %v855, %v853
      %v1362 = vpack.c.b16 %v858, %v856
      %v1363 = vpack.c.b16 %v859, %v857
      %v1364 = vpack.c.b16 %v862, %v860
      %v1365 = vpack.c.b16 %v863, %v861
      %v1366 = vpack.c.b16 %v866, %v864
      %v1367 = vpack.c.b16 %v867, %v865
      %v1368 = vpack.c.b16 %v870, %v868
      %v1369 = vpack.c.b16 %v871, %v869
      %v1370 = vpack.c.b16 %v874, %v872
      %v1371 = vpack.c.b16 %v875, %v873
      %v1372 = vpack.c.b16 %v878, %v876
      %v1373 = vpack.c.b16 %v879, %v877
      %v1374 = vpack.c.b16 %v882, %v880
      %v1375 = vpack.c.b16 %v883, %v881
      %v1376 = vpack.c.b16 %v886, %v884
      %v1377 = vpack.c.b16 %v887, %v885
      %v1378 = vpack.c.b16 %v890, %v888
      %v1379 = vpack.c.b16 %v891, %v889
      %v1380 = vpack.c.b16 %v894, %v892
      %v1381 = vpack.c.b16 %v895, %v893
      %v1382 = vpack.c.b16 %v898, %v896
      %v1383 = vpack.c.b16 %v899, %v897
      %v1384 = vpack.c.b16 %v902, %v900
      %v1385 = vpack.c.b16 %v903, %v901
      %v1386 = vpack.c.b16 %v906, %v904
      %v1387 = vpack.c.b16 %v907, %v905
      %v1388 = vpack.c.b16 %v910, %v908
      %v1389 = vpack.c.b16 %v911, %v909
      %v1390 = vpack.c.b16 %v914, %v912
      %v1391 = vpack.c.b16 %v915, %v913
      %v1392 = vpack.c.b16 %v918, %v916
      %v1393 = vpack.c.b16 %v919, %v917
      %v1394 = vpack.c.b16 %v922, %v920
      %v1395 = vpack.c.b16 %v923, %v921
      %v1396 = vpack.c.b16 %v926, %v924
      %v1397 = vpack.c.b16 %v927, %v925
      %v1398 = vpack.c.b16 %v930, %v928
      %v1399 = vpack.c.b16 %v931, %v929
      %v1400 = vpack.c.b16 %v934, %v932
      %v1401 = vpack.c.b16 %v935, %v933
      %v1402 = vpack.c.b16 %v938, %v936
      %v1403 = vpack.c.b16 %v939, %v937
      %v1404 = vpack.c.b16 %v942, %v940
      %v1405 = vpack.c.b16 %v943, %v941
      %v1406 = vpack.c.b16 %v946, %v944
      %v1407 = vpack.c.b16 %v947, %v945
      %v1408 = vpack.c.b16 %v950, %v948
      %v1409 = vpack.c.b16 %v951, %v949
      %v1410 = vpack.c.b16 %v954, %v952
      %v1411 = vpack.c.b16 %v955, %v953
      %v1412 = vpack.c.b16 %v958, %v956
      %v1413 = vpack.c.b16 %v959, %v957
      %v1414 = vpack.c.b16 %v962, %v960
      %v1415 = vpack.c.b16 %v963, %v961
      %v1416 = vpack.c.b16 %v966, %v964
      %v1417 = vpack.c.b16 %v967, %v965
      %v1418 = vpack.c.b16 %v970, %v968
      %v1419 = vpack.c.b16 %v971, %v969
      %v1420 = vpack.c.b16 %v974, %v972
      %v1421 = vpack.c.b16 %v975, %v973
      %v1422 = vpack.c.b16 %v978, %v976
      %v1423 = vpack.c.b16 %v979, %v977
      %v1424 = vpack.c.b16 %v982, %v980
      %v1425 = vpack.c.b16 %v983, %v981
      %v1426 = vpack.c.b16 %v986, %v984
      %v1427 = vpack.c.b16 %v987, %v985
      %v1428 = vpack.c.b16 %v990, %v988
      %v1429 = vpack.c.b16 %v991, %v989
      %v1430 = vpack.c.b16 %v994, %v992
      %v1431 = vpack.c.b16 %v995, %v993
      %v1432 = vpack.c.b16 %v998, %v996
      %v1433 = vpack.c.b16 %v999, %v997
      %v1434 = vpack.c.b16 %v1002, %v1000
      %v1435 = vpack.c.b16 %v1003, %v1001
      %v1436 = vpack.c.b16 %v1006, %v1004
      %v1437 = vpack.c.b16 %v1007, %v1005
      %v1438 = vpack.c.b16 %v1010, %v1008
      %v1439 = vpack.c.b16 %v1011, %v1009
      %v1440 = vpack.c.b16 %v1014, %v1012
      %v1441 = vpack.c.b16 %v1015, %v1013
      %v1442 = vpack.c.b16 %v1018, %v1016
      %v1443 = vpack.c.b16 %v1019, %v1017
      %v1444 = vpack.c.b16 %v1022, %v1020
      %v1445 = vpack.c.b16 %v1023, %v1021
      %v1446 = vpack.c.b16 %v1026, %v1024
      %v1447 = vpack.c.b16 %v1027, %v1025
      %v1448 = vpack.c.b16 %v1030, %v1028
      %v1449 = vpack.c.b16 %v1031, %v1029
      %v1450 = vpack.c.b16 %v1034, %v1032
      %v1451 = vpack.c.b16 %v1035, %v1033
      %v1452 = vpack.c.b16 %v1038, %v1036
      %v1453 = vpack.c.b16 %v1039, %v1037
      %v1454 = vpack.c.b16 %v1042, %v1040
      %v1455 = vpack.c.b16 %v1043, %v1041
      %v1456 = vpack.c.b16 %v1046, %v1044
      %v1457 = vpack.c.b16 %v1047, %v1045
      %v1458 = vpack.c.b16 %v1050, %v1048
      %v1459 = vpack.c.b16 %v1051, %v1049
      %v1460 = vpack.c.b16 %v1054, %v1052
      %v1461 = vpack.c.b16 %v1055, %v1053
      %v1462 = vpack.c.b16 %v1058, %v1056
      %v1463 = vpack.c.b16 %v1059, %v1057
      %v1464 = vpack.c.b16 %v1062, %v1060
      %v1465 = vpack.c.b16 %v1063, %v1061
      %v1466 = vpack.c.b16 %v1066, %v1064
      %v1467 = vpack.c.b16 %v1067, %v1065
      %v1468 = vpack.c.b16 %v1070, %v1068
      %v1469 = vpack.c.b16 %v1071, %v1069
      %v1470 = vpack.c.b16 %v1074, %v1072
      %v1471 = vpack.c.b16 %v1075, %v1073
      %v1472 = vpack.c.b16 %v1078, %v1076
      %v1473 = vpack.c.b16 %v1079, %v1077
      %v1474 = vpack.c.b16 %v1082, %v1080
      %v1475 = vpack.c.b16 %v1083, %v1081
      %v1476 = vpack.c.b16 %v1086, %v1084
      %v1477 = vpack.c.b16 %v1087, %v1085
      %v1478 = vpack.c.b16 %v1090, %v1088
      %v1479 = vpack.c.b16 %v1091, %v1089
      %v1480 = vpack.c.b16 %v1094, %v1092
      %v1481 = vpack.c.b16 %v1095, %v1093
      %v1482 = vpack.c.b16 %v1098, %v1096
      %v1483 = vpack.c.b16 %v1099, %v1097
      %v1484 = vpack.c.b16 %v1102, %v1100
      %v1485 = vpack.c.b16 %v1103, %v1101
      %v1486 = vpack.c.b16 %v1106, %v1104
      %v1487 = vpack.c.b16 %v1107, %v1105
      %v1488 = vpack.c.b16 %v1110, %v1108
      %v1489 = vpack.c.b16 %v1111, %v1109
      %v1490 = vpack.c.b16 %v1114, %v1112
      %v1491 = vpack.c.b16 %v1115, %v1113
      %v1492 = vpack.c.b16 %v1118, %v1116
      %v1493 = vpack.c.b16 %v1119, %v1117
      %v1494 = vpack.c.b16 %v1122, %v1120
      %v1495 = vpack.c.b16 %v1123, %v1121
      %v1496 = vpack.c.b16 %v1126, %v1124
      %v1497 = vpack.c.b16 %v1127, %v1125
      %v1498 = vpack.c.b16 %v1130, %v1128
      %v1499 = vpack.c.b16 %v1131, %v1129
      %v1500 = vpack.c.b16 %v1134, %v1132
      %v1501 = vpack.c.b16 %v1135, %v1133
      %v1502 = vpack.c.b16 %v1138, %v1136
      %v1503 = vpack.c.b16 %v1139, %v1137
      %v1504 = vpack.c.b16 %v1142, %v1140
      %v1505 = vpack.c.b16 %v1143, %v1141
      %v1506 = vpack.c.b16 %v1146, %v1144
      %v1507 = vpack.c.b16 %v1147, %v1145
      %v1508 = vpack.c.b16 %v1150, %v1148
      %v1509 = vpack.c.b16 %v1151, %v1149
      %v1510 = vpack.c.b16 %v1154, %v1152
      %v1511 = vpack.c.b16 %v1155, %v1153
      %v1512 = vpack.c.b16 %v1158, %v1156
      %v1513 = vpack.c.b16 %v1159, %v1157
      %v1514 = vpack.c.b16 %v1162, %v1160
      %v1515 = vpack.c.b16 %v1163, %v1161
      %v1516 = vpack.c.b16 %v1166, %v1164
      %v1517 = vpack.c.b16 %v1167, %v1165
      %v1518 = vpack.c.b16 %v1170, %v1168
      %v1519 = vpack.c.b16 %v1171, %v1169
      %v1520 = vpack.c.b16 %v1174, %v1172
      %v1521 = vpack.c.b16 %v1175, %v1173
      %v1522 = vpack.c.b16 %v1178, %v1176
      %v1523 = vpack.c.b16 %v1179, %v1177
      %v1524 = vpack.c.b16 %v1182, %v1180
      %v1525 = vpack.c.b16 %v1183, %v1181
      %v1526 = vpack.c.b16 %v1186, %v1184
      %v1527 = vpack.c.b16 %v1187, %v1185
      %v1528 = vpack.c.b16 %v1190, %v1188
      %v1529 = vpack.c.b16 %v1191, %v1189
      %v1530 = vpack.c.b16 %v1194, %v1192
      %v1531 = vpack.c.b16 %v1195, %v1193
      %v1532 = vpack.c.b16 %v1198, %v1196
      %v1533 = vpack.c.b16 %v1199, %v1197
      %v1534 = vpack.c.b16 %v1202, %v1200
      %v1535 = vpack.c.b16 %v1203, %v1201
      %v1536 = vpack.c.b16 %v1206, %v1204
      %v1537 = vpack.c.b16 %v1207, %v1205
      %v1538 = vpack.c.b16 %v1210, %v1208
      %v1539 = vpack.c.b16 %v1211, %v1209
      %v1540 = vpack.c.b16 %v1214, %v1212
      %v1541 = vpack.c.b16 %v1215, %v1213
      %v1542 = vpack.c.b16 %v1218, %v1216
      %v1543 = vpack.c.b16 %v1219, %v1217
      %v1544 = vpack.c.b16 %v1222, %v1220
      %v1545 = vpack.c.b16 %v1223, %v1221
      %v1546 = vpack.c.b16 %v1226, %v1224
      %v1547 = vpack.c.b16 %v1227, %v1225
      %v1548 = vpack.c.b16 %v1230, %v1228
      %v1549 = vpack.c.b16 %v1231, %v1229
      %v1550 = vpack.c.b16 %v1234, %v1232
      %v1551 = vpack.c.b16 %v1235, %v1233
      %v1552 = vpack.c.b16 %v1238, %v1236
      %v1553 = vpack.c.b16 %v1239, %v1237
      %v1554 = vpack.c.b16 %v1242, %v1240
      %v1555 = vpack.c.b16 %v1243, %v1241
      %v1556 = vpack.c.b16 %v1246, %v1244
      %v1557 = vpack.c.b16 %v1247, %v1245
      %v1558 = vpack.c.b16 %v1250, %v1248
      %v1559 = vpack.c.b16 %v1251, %v1249
      %v1560 = vpack.c.b16 %v1254, %v1252
      %v1561 = vpack.c.b16 %v1255, %v1253
      %v1562 = vpack.c.b16 %v1258, %v1256
      %v1563 = vpack.c.b16 %v1259, %v1257
      %v1564 = vpack.c.b16 %v1262, %v1260
      %v1565 = vpack.c.b16 %v1263, %v1261
      %v1566 = vpack.c.b16 %v1266, %v1264
      %v1567 = vpack.c.b16 %v1267, %v1265
      %v1568 = vpack.c.b16 %v1270, %v1268
      %v1569 = vpack.c.b16 %v1271, %v1269
      %v1570 = vpack.c.b16 %v1274, %v1272
      %v1571 = vpack.c.b16 %v1275, %v1273
      %v1572 = vpack.c.b16 %v1278, %v1276
      %v1573 = vpack.c.b16 %v1279, %v1277
      %v1574 = vpack.c.b16 %v1282, %v1280
      %v1575 = vpack.c.b16 %v1283, %v1281
      %v1576 = vpack.c.b16 %v1286, %v1284
      %v1577 = vpack.c.b16 %v1287, %v1285
      %v1578 = vpack.c.b16 %v1290, %v1288
      %v1579 = vpack.c.b16 %v1291, %v1289
      %v1580 = vpack.c.b16 %v1294, %v1292
      %v1581 = vpack.c.b16 %v1295, %v1293
      %v1582 = vpack.c.b16 %v1298, %v1296
      %v1583 = vpack.c.b16 %v1299, %v1297
      %v1584 = vpack.c.b16 %v1302, %v1300
      %v1585 = vpack.c.b16 %v1303, %v1301
      %v1586 = vpack.c.b16 %v1306, %v1304
      %v1587 = vpack.c.b16 %v1307, %v1305
      %v1588 = vpack.c.b16 %v1310, %v1308
      %v1589 = vpack.c.b16 %v1311, %v1309
      %v1590 = vpack.c.b16 %v1314, %v1312
      %v1591 = vpack.c.b16 %v1315, %v1313
      %v1592 = vpack.c.b16 %v1318, %v1316
      %v1593 = vpack.c.b16 %v1319, %v1317
      %v1594 = vpack.c.b16 %v1322, %v1320
      %v1595 = vpack.c.b16 %v1323, %v1321
      %v1596 = vpack.c.b16 %v1326, %v1324
      %v1597 = vpack.c.b16 %v1327, %v1325
      %v1598 = vpack.c.b16 %v1330, %v1328
      %v1599 = vpack.c.b16 %v1331, %v1329
      %v1600 = vpack.c.b16 %v1334, %v1332
      %v1601 = vpack.c.b16 %v1335, %v1333
      %v1602 = vpack.c.b16 %v1338, %v1336
      %v1603 = vpack.c.b16 %v1339, %v1337
      %v1604 = vpack.c.b16 %v1342, %v1340
      %v1605 = vpack.c.b16 %v1343, %v1341
      %v1606 = vpack.c.b16 %v1346, %v1344
      %v1607 = vpack.c.b16 %v1347, %v1345
      %v1608 = vpack.c.b16 %v1350, %v1348
      %v1609 = vpack.c.b16 %v1351, %v1349
      %v1610 = vpack.c.b16 %v1354, %v1352
      %v1611 = vpack.c.b16 %v1355, %v1353
      %1868 = vmatprep.subr.bf16.mxu0 %v1357
      %1869 = vmatpush1.bf16.msra.mxu0 %v1356
      %1870 = vmatprep.subr.bf16.mxu0 %v1359
      %1871 = vmatpush1.bf16.msra.mxu0 %v1358
      %1872 = vmatprep.subr.bf16.mxu0 %v1361
      %1873 = vmatpush1.bf16.msra.mxu0 %v1360
      %1874 = vmatprep.subr.bf16.mxu0 %v1363
      %1875 = vmatpush1.bf16.msra.mxu0 %v1362
      %1876 = vmatprep.subr.bf16.mxu0 %v1365
      %1877 = vmatpush1.bf16.msra.mxu0 %v1364
      %1878 = vmatprep.subr.bf16.mxu0 %v1367
      %1879 = vmatpush1.bf16.msra.mxu0 %v1366
      %1880 = vmatprep.subr.bf16.mxu0 %v1369
      %1881 = vmatpush1.bf16.msra.mxu0 %v1368
      %1882 = vmatprep.subr.bf16.mxu0 %v1371
      %1883 = vmatpush1.bf16.msra.mxu0 %v1370
      %1884 = vmatprep.subr.bf16.mxu0 %v1373
      %1885 = vmatpush1.bf16.msra.mxu0 %v1372
      %1886 = vmatprep.subr.bf16.mxu0 %v1375
      %1887 = vmatpush1.bf16.msra.mxu0 %v1374
      %1888 = vmatprep.subr.bf16.mxu0 %v1377
      %1889 = vmatpush1.bf16.msra.mxu0 %v1376
      %1890 = vmatprep.subr.bf16.mxu0 %v1379
      %1891 = vmatpush1.bf16.msra.mxu0 %v1378
      %1892 = vmatprep.subr.bf16.mxu0 %v1381
      %1893 = vmatpush1.bf16.msra.mxu0 %v1380
      %1894 = vmatprep.subr.bf16.mxu0 %v1383
      %1895 = vmatpush1.bf16.msra.mxu0 %v1382
      %1896 = vmatprep.subr.bf16.mxu0 %v1385
      %1897 = vmatpush1.bf16.msra.mxu0 %v1384
      %1898 = vmatprep.subr.bf16.mxu0 %v1387
      %1899 = vmatpush1.bf16.msra.mxu0 %v1386
      %1900 = vmatprep.mubr.bf16.mxu0 %v557
      %1901 = vmatmul.mubr.bf16.gmra.mrb[0].mxu0 %v556
      %v1902 = vpop.f32.mrb[0].mxu0
      %v1903 = vadd.f32 0.0, %v1902
      %v1904 = vpop.f32.mrb[0].mxu0
      %v1905 = vadd.f32 0.0, %v1904
      %v1906 = vpop.f32.mrb[0].mxu0
      %v1907 = vadd.f32 0.0, %v1906
      %v1908 = vpop.f32.mrb[0].mxu0
      %v1909 = vadd.f32 0.0, %v1908
      %1910 = vdwg.mxu0
      %1911 = vmatprep.subr.bf16.mxu0 %v1389
      %1912 = vmatpush1.bf16.msra.mxu0 %v1388
      %1913 = vmatprep.subr.bf16.mxu0 %v1391
      %1914 = vmatpush1.bf16.msra.mxu0 %v1390
      %1915 = vmatprep.subr.bf16.mxu0 %v1393
      %1916 = vmatpush1.bf16.msra.mxu0 %v1392
      %1917 = vmatprep.subr.bf16.mxu0 %v1395
      %1918 = vmatpush1.bf16.msra.mxu0 %v1394
      %1919 = vmatprep.subr.bf16.mxu0 %v1397
      %1920 = vmatpush1.bf16.msra.mxu0 %v1396
      %1921 = vmatprep.subr.bf16.mxu0 %v1399
      %1922 = vmatpush1.bf16.msra.mxu0 %v1398
      %1923 = vmatprep.subr.bf16.mxu0 %v1401
      %1924 = vmatpush1.bf16.msra.mxu0 %v1400
      %1925 = vmatprep.subr.bf16.mxu0 %v1403
      %1926 = vmatpush1.bf16.msra.mxu0 %v1402
      %1927 = vmatprep.subr.bf16.mxu0 %v1405
      %1928 = vmatpush1.bf16.msra.mxu0 %v1404
      %1929 = vmatprep.subr.bf16.mxu0 %v1407
      %1930 = vmatpush1.bf16.msra.mxu0 %v1406
      %1931 = vmatprep.subr.bf16.mxu0 %v1409
      %1932 = vmatpush1.bf16.msra.mxu0 %v1408
      %1933 = vmatprep.subr.bf16.mxu0 %v1411
      %1934 = vmatpush1.bf16.msra.mxu0 %v1410
      %1935 = vmatprep.subr.bf16.mxu0 %v1413
      %1936 = vmatpush1.bf16.msra.mxu0 %v1412
      %1937 = vmatprep.subr.bf16.mxu0 %v1415
      %1938 = vmatpush1.bf16.msra.mxu0 %v1414
      %1939 = vmatprep.subr.bf16.mxu0 %v1417
      %1940 = vmatpush1.bf16.msra.mxu0 %v1416
      %1941 = vmatprep.subr.bf16.mxu0 %v1419
      %1942 = vmatpush1.bf16.msra.mxu0 %v1418
      %1943 = vmatprep.mubr.bf16.mxu0 %v559
      %1944 = vmatmul.mubr.bf16.gmra.mrb[0].mxu0 %v558
      %v1945 = vpop.f32.mrb[0].mxu0
      %v1946 = vadd.f32 %v1903, %v1945
      %v1947 = vpop.f32.mrb[0].mxu0
      %v1948 = vadd.f32 %v1905, %v1947
      %v1949 = vpop.f32.mrb[0].mxu0
      %v1950 = vadd.f32 %v1907, %v1949
      %v1951 = vpop.f32.mrb[0].mxu0
      %v1952 = vadd.f32 %v1909, %v1951
      %1953 = vdwg.mxu0
      %1954 = vmatprep.subr.bf16.mxu0 %v1421
      %1955 = vmatpush1.bf16.msra.mxu0 %v1420
      %1956 = vmatprep.subr.bf16.mxu0 %v1423
      %1957 = vmatpush1.bf16.msra.mxu0 %v1422
      %1958 = vmatprep.subr.bf16.mxu0 %v1425
      %1959 = vmatpush1.bf16.msra.mxu0 %v1424
      %1960 = vmatprep.subr.bf16.mxu0 %v1427
      %1961 = vmatpush1.bf16.msra.mxu0 %v1426
      %1962 = vmatprep.subr.bf16.mxu0 %v1429
      %1963 = vmatpush1.bf16.msra.mxu0 %v1428
      %1964 = vmatprep.subr.bf16.mxu0 %v1431
      %1965 = vmatpush1.bf16.msra.mxu0 %v1430
      %1966 = vmatprep.subr.bf16.mxu0 %v1433
      %1967 = vmatpush1.bf16.msra.mxu0 %v1432
      %1968 = vmatprep.subr.bf16.mxu0 %v1435
      %1969 = vmatpush1.bf16.msra.mxu0 %v1434
      %1970 = vmatprep.subr.bf16.mxu0 %v1437
      %1971 = vmatpush1.bf16.msra.mxu0 %v1436
      %1972 = vmatprep.subr.bf16.mxu0 %v1439
      %1973 = vmatpush1.bf16.msra.mxu0 %v1438
      %1974 = vmatprep.subr.bf16.mxu0 %v1441
      %1975 = vmatpush1.bf16.msra.mxu0 %v1440
      %1976 = vmatprep.subr.bf16.mxu0 %v1443
      %1977 = vmatpush1.bf16.msra.mxu0 %v1442
      %1978 = vmatprep.subr.bf16.mxu0 %v1445
      %1979 = vmatpush1.bf16.msra.mxu0 %v1444
      %1980 = vmatprep.subr.bf16.mxu0 %v1447
      %1981 = vmatpush1.bf16.msra.mxu0 %v1446
      %1982 = vmatprep.subr.bf16.mxu0 %v1449
      %1983 = vmatpush1.bf16.msra.mxu0 %v1448
      %1984 = vmatprep.subr.bf16.mxu0 %v1451
      %1985 = vmatpush1.bf16.msra.mxu0 %v1450
      %1986 = vmatprep.mubr.bf16.mxu0 %v561
      %1987 = vmatmul.mubr.bf16.gmra.mrb[0].mxu0 %v560
      %v1988 = vpop.f32.mrb[0].mxu0
      %v1989 = vadd.f32 %v1946, %v1988
      %v1990 = vpop.f32.mrb[0].mxu0
      %v1991 = vadd.f32 %v1948, %v1990
      %v1992 = vpop.f32.mrb[0].mxu0
      %v1993 = vadd.f32 %v1950, %v1992
      %v1994 = vpop.f32.mrb[0].mxu0
      %v1995 = vadd.f32 %v1952, %v1994
      %1996 = vdwg.mxu0
      %1997 = vmatprep.subr.bf16.mxu0 %v1453
      %1998 = vmatpush1.bf16.msra.mxu0 %v1452
      %1999 = vmatprep.subr.bf16.mxu0 %v1455
      %2000 = vmatpush1.bf16.msra.mxu0 %v1454
      %2001 = vmatprep.subr.bf16.mxu0 %v1457
      %2002 = vmatpush1.bf16.msra.mxu0 %v1456
      %2003 = vmatprep.subr.bf16.mxu0 %v1459
      %2004 = vmatpush1.bf16.msra.mxu0 %v1458
      %2005 = vmatprep.subr.bf16.mxu0 %v1461
      %2006 = vmatpush1.bf16.msra.mxu0 %v1460
      %2007 = vmatprep.subr.bf16.mxu0 %v1463
      %2008 = vmatpush1.bf16.msra.mxu0 %v1462
      %2009 = vmatprep.subr.bf16.mxu0 %v1465
      %2010 = vmatpush1.bf16.msra.mxu0 %v1464
      %2011 = vmatprep.subr.bf16.mxu0 %v1467
      %2012 = vmatpush1.bf16.msra.mxu0 %v1466
      %2013 = vmatprep.subr.bf16.mxu0 %v1469
      %2014 = vmatpush1.bf16.msra.mxu0 %v1468
      %2015 = vmatprep.subr.bf16.mxu0 %v1471
      %2016 = vmatpush1.bf16.msra.mxu0 %v1470
      %2017 = vmatprep.subr.bf16.mxu0 %v1473
      %2018 = vmatpush1.bf16.msra.mxu0 %v1472
      %2019 = vmatprep.subr.bf16.mxu0 %v1475
      %2020 = vmatpush1.bf16.msra.mxu0 %v1474
      %2021 = vmatprep.subr.bf16.mxu0 %v1477
      %2022 = vmatpush1.bf16.msra.mxu0 %v1476
      %2023 = vmatprep.subr.bf16.mxu0 %v1479
      %2024 = vmatpush1.bf16.msra.mxu0 %v1478
      %2025 = vmatprep.subr.bf16.mxu0 %v1481
      %2026 = vmatpush1.bf16.msra.mxu0 %v1480
      %2027 = vmatprep.subr.bf16.mxu0 %v1483
      %2028 = vmatpush1.bf16.msra.mxu0 %v1482
      %2029 = vmatprep.mubr.bf16.mxu0 %v563
      %2030 = vmatmul.mubr.bf16.gmra.mrb[0].mxu0 %v562
      %v2031 = vpop.f32.mrb[0].mxu0
      %v2032 = vadd.f32 %v1989, %v2031
      %v2033 = vpop.f32.mrb[0].mxu0
      %v2034 = vadd.f32 %v1991, %v2033
      %v2035 = vpop.f32.mrb[0].mxu0
      %v2036 = vadd.f32 %v1993, %v2035
      %v2037 = vpop.f32.mrb[0].mxu0
      %v2038 = vadd.f32 %v1995, %v2037
      %2039 = vdwg.mxu0
      %2040 = vmatprep.subr.bf16.mxu0 %v1485
      %2041 = vmatpush1.bf16.msra.mxu0 %v1484
      %2042 = vmatprep.subr.bf16.mxu0 %v1487
      %2043 = vmatpush1.bf16.msra.mxu0 %v1486
      %2044 = vmatprep.subr.bf16.mxu0 %v1489
      %2045 = vmatpush1.bf16.msra.mxu0 %v1488
      %2046 = vmatprep.subr.bf16.mxu0 %v1491
      %2047 = vmatpush1.bf16.msra.mxu0 %v1490
      %2048 = vmatprep.subr.bf16.mxu0 %v1493
      %2049 = vmatpush1.bf16.msra.mxu0 %v1492
      %2050 = vmatprep.subr.bf16.mxu0 %v1495
      %2051 = vmatpush1.bf16.msra.mxu0 %v1494
      %2052 = vmatprep.subr.bf16.mxu0 %v1497
      %2053 = vmatpush1.bf16.msra.mxu0 %v1496
      %2054 = vmatprep.subr.bf16.mxu0 %v1499
      %2055 = vmatpush1.bf16.msra.mxu0 %v1498
      %2056 = vmatprep.subr.bf16.mxu0 %v1501
      %2057 = vmatpush1.bf16.msra.mxu0 %v1500
      %2058 = vmatprep.subr.bf16.mxu0 %v1503
      %2059 = vmatpush1.bf16.msra.mxu0 %v1502
      %2060 = vmatprep.subr.bf16.mxu0 %v1505
      %2061 = vmatpush1.bf16.msra.mxu0 %v1504
      %2062 = vmatprep.subr.bf16.mxu0 %v1507
      %2063 = vmatpush1.bf16.msra.mxu0 %v1506
      %2064 = vmatprep.subr.bf16.mxu0 %v1509
      %2065 = vmatpush1.bf16.msra.mxu0 %v1508
      %2066 = vmatprep.subr.bf16.mxu0 %v1511
      %2067 = vmatpush1.bf16.msra.mxu0 %v1510
      %2068 = vmatprep.subr.bf16.mxu0 %v1513
      %2069 = vmatpush1.bf16.msra.mxu0 %v1512
      %2070 = vmatprep.subr.bf16.mxu0 %v1515
      %2071 = vmatpush1.bf16.msra.mxu0 %v1514
      %2072 = vmatprep.mubr.bf16.mxu0 %v565
      %2073 = vmatmul.mubr.bf16.gmra.mrb[0].mxu0 %v564
      %v2074 = vpop.f32.mrb[0].mxu0
      %v2075 = vadd.f32 %v2032, %v2074
      %v2076 = vpop.f32.mrb[0].mxu0
      %v2077 = vadd.f32 %v2034, %v2076
      %v2078 = vpop.f32.mrb[0].mxu0
      %v2079 = vadd.f32 %v2036, %v2078
      %v2080 = vpop.f32.mrb[0].mxu0
      %v2081 = vadd.f32 %v2038, %v2080
      %2082 = vdwg.mxu0
      %2083 = vmatprep.subr.bf16.mxu0 %v1517
      %2084 = vmatpush1.bf16.msra.mxu0 %v1516
      %2085 = vmatprep.subr.bf16.mxu0 %v1519
      %2086 = vmatpush1.bf16.msra.mxu0 %v1518
      %2087 = vmatprep.subr.bf16.mxu0 %v1521
      %2088 = vmatpush1.bf16.msra.mxu0 %v1520
      %2089 = vmatprep.subr.bf16.mxu0 %v1523
      %2090 = vmatpush1.bf16.msra.mxu0 %v1522
      %2091 = vmatprep.subr.bf16.mxu0 %v1525
      %2092 = vmatpush1.bf16.msra.mxu0 %v1524
      %2093 = vmatprep.subr.bf16.mxu0 %v1527
      %2094 = vmatpush1.bf16.msra.mxu0 %v1526
      %2095 = vmatprep.subr.bf16.mxu0 %v1529
      %2096 = vmatpush1.bf16.msra.mxu0 %v1528
      %2097 = vmatprep.subr.bf16.mxu0 %v1531
      %2098 = vmatpush1.bf16.msra.mxu0 %v1530
      %2099 = vmatprep.subr.bf16.mxu0 %v1533
      %2100 = vmatpush1.bf16.msra.mxu0 %v1532
      %2101 = vmatprep.subr.bf16.mxu0 %v1535
      %2102 = vmatpush1.bf16.msra.mxu0 %v1534
      %2103 = vmatprep.subr.bf16.mxu0 %v1537
      %2104 = vmatpush1.bf16.msra.mxu0 %v1536
      %2105 = vmatprep.subr.bf16.mxu0 %v1539
      %2106 = vmatpush1.bf16.msra.mxu0 %v1538
      %2107 = vmatprep.subr.bf16.mxu0 %v1541
      %2108 = vmatpush1.bf16.msra.mxu0 %v1540
      %2109 = vmatprep.subr.bf16.mxu0 %v1543
      %2110 = vmatpush1.bf16.msra.mxu0 %v1542
      %2111 = vmatprep.subr.bf16.mxu0 %v1545
      %2112 = vmatpush1.bf16.msra.mxu0 %v1544
      %2113 = vmatprep.subr.bf16.mxu0 %v1547
      %2114 = vmatpush1.bf16.msra.mxu0 %v1546
      %2115 = vmatprep.mubr.bf16.mxu0 %v567
      %2116 = vmatmul.mubr.bf16.gmra.mrb[0].mxu0 %v566
      %v2117 = vpop.f32.mrb[0].mxu0
      %v2118 = vadd.f32 %v2075, %v2117
      %v2119 = vpop.f32.mrb[0].mxu0
      %v2120 = vadd.f32 %v2077, %v2119
      %v2121 = vpop.f32.mrb[0].mxu0
      %v2122 = vadd.f32 %v2079, %v2121
      %v2123 = vpop.f32.mrb[0].mxu0
      %v2124 = vadd.f32 %v2081, %v2123
      %2125 = vdwg.mxu0
      %2126 = vmatprep.subr.bf16.mxu0 %v1549
      %2127 = vmatpush1.bf16.msra.mxu0 %v1548
      %2128 = vmatprep.subr.bf16.mxu0 %v1551
      %2129 = vmatpush1.bf16.msra.mxu0 %v1550
      %2130 = vmatprep.subr.bf16.mxu0 %v1553
      %2131 = vmatpush1.bf16.msra.mxu0 %v1552
      %2132 = vmatprep.subr.bf16.mxu0 %v1555
      %2133 = vmatpush1.bf16.msra.mxu0 %v1554
      %2134 = vmatprep.subr.bf16.mxu0 %v1557
      %2135 = vmatpush1.bf16.msra.mxu0 %v1556
      %2136 = vmatprep.subr.bf16.mxu0 %v1559
      %2137 = vmatpush1.bf16.msra.mxu0 %v1558
      %2138 = vmatprep.subr.bf16.mxu0 %v1561
      %2139 = vmatpush1.bf16.msra.mxu0 %v1560
      %2140 = vmatprep.subr.bf16.mxu0 %v1563
      %2141 = vmatpush1.bf16.msra.mxu0 %v1562
      %2142 = vmatprep.subr.bf16.mxu0 %v1565
      %2143 = vmatpush1.bf16.msra.mxu0 %v1564
      %2144 = vmatprep.subr.bf16.mxu0 %v1567
      %2145 = vmatpush1.bf16.msra.mxu0 %v1566
      %2146 = vmatprep.subr.bf16.mxu0 %v1569
      %2147 = vmatpush1.bf16.msra.mxu0 %v1568
      %2148 = vmatprep.subr.bf16.mxu0 %v1571
      %2149 = vmatpush1.bf16.msra.mxu0 %v1570
      %2150 = vmatprep.subr.bf16.mxu0 %v1573
      %2151 = vmatpush1.bf16.msra.mxu0 %v1572
      %2152 = vmatprep.subr.bf16.mxu0 %v1575
      %2153 = vmatpush1.bf16.msra.mxu0 %v1574
      %2154 = vmatprep.subr.bf16.mxu0 %v1577
      %2155 = vmatpush1.bf16.msra.mxu0 %v1576
      %2156 = vmatprep.subr.bf16.mxu0 %v1579
      %2157 = vmatpush1.bf16.msra.mxu0 %v1578
      %2158 = vmatprep.mubr.bf16.mxu0 %v569
      %2159 = vmatmul.mubr.bf16.gmra.mrb[0].mxu0 %v568
      %v2160 = vpop.f32.mrb[0].mxu0
      %v2161 = vadd.f32 %v2118, %v2160
      %v2162 = vpop.f32.mrb[0].mxu0
      %v2163 = vadd.f32 %v2120, %v2162
      %v2164 = vpop.f32.mrb[0].mxu0
      %v2165 = vadd.f32 %v2122, %v2164
      %v2166 = vpop.f32.mrb[0].mxu0
      %v2167 = vadd.f32 %v2124, %v2166
      %2168 = vdwg.mxu0
      %2169 = vmatprep.subr.bf16.mxu0 %v1581
      %2170 = vmatpush1.bf16.msra.mxu0 %v1580
      %2171 = vmatprep.subr.bf16.mxu0 %v1583
      %2172 = vmatpush1.bf16.msra.mxu0 %v1582
      %2173 = vmatprep.subr.bf16.mxu0 %v1585
      %2174 = vmatpush1.bf16.msra.mxu0 %v1584
      %2175 = vmatprep.subr.bf16.mxu0 %v1587
      %2176 = vmatpush1.bf16.msra.mxu0 %v1586
      %2177 = vmatprep.subr.bf16.mxu0 %v1589
      %2178 = vmatpush1.bf16.msra.mxu0 %v1588
      %2179 = vmatprep.subr.bf16.mxu0 %v1591
      %2180 = vmatpush1.bf16.msra.mxu0 %v1590
      %2181 = vmatprep.subr.bf16.mxu0 %v1593
      %2182 = vmatpush1.bf16.msra.mxu0 %v1592
      %2183 = vmatprep.subr.bf16.mxu0 %v1595
      %2184 = vmatpush1.bf16.msra.mxu0 %v1594
      %2185 = vmatprep.subr.bf16.mxu0 %v1597
      %2186 = vmatpush1.bf16.msra.mxu0 %v1596
      %2187 = vmatprep.subr.bf16.mxu0 %v1599
      %2188 = vmatpush1.bf16.msra.mxu0 %v1598
      %2189 = vmatprep.subr.bf16.mxu0 %v1601
      %2190 = vmatpush1.bf16.msra.mxu0 %v1600
      %2191 = vmatprep.subr.bf16.mxu0 %v1603
      %2192 = vmatpush1.bf16.msra.mxu0 %v1602
      %2193 = vmatprep.subr.bf16.mxu0 %v1605
      %2194 = vmatpush1.bf16.msra.mxu0 %v1604
      %2195 = vmatprep.subr.bf16.mxu0 %v1607
      %2196 = vmatpush1.bf16.msra.mxu0 %v1606
      %2197 = vmatprep.subr.bf16.mxu0 %v1609
      %2198 = vmatpush1.bf16.msra.mxu0 %v1608
      %2199 = vmatprep.subr.bf16.mxu0 %v1611
      %2200 = vmatpush1.bf16.msra.mxu0 %v1610
      %2201 = vmatprep.mubr.bf16.mxu0 %v571
      %2202 = vmatmul.mubr.bf16.gmra.mrb[0].mxu0 %v570
      %v2203 = vpop.f32.mrb[0].mxu0
      %v2204 = vadd.f32 %v2161, %v2203
      %v2205 = vpop.f32.mrb[0].mxu0
      %v2206 = vadd.f32 %v2163, %v2205
      %v2207 = vpop.f32.mrb[0].mxu0
      %v2208 = vadd.f32 %v2165, %v2207
      %v2209 = vpop.f32.mrb[0].mxu0
      %v2210 = vadd.f32 %v2167, %v2209
      %2211 = vdwg.mxu0
      %v2212 = vadd.f32 %v232, %v2204
      %v2213 = vadd.f32 %v233, %v2206
      %v2214 = vadd.f32 %v234, %v2208
      %v2215 = vadd.f32 %v235, %v2210
      %2216 = vst [vmem:[#allocation2] sm:$0xff] %v2212
      %2217 = vst [vmem:[#allocation2 + $0x8] sm:$0xff] %v2213
      %2218 = vst [vmem:[#allocation2 + $0x10] sm:$0xff] %v2214
      %2219 = vst [vmem:[#allocation2 + $0x18] sm:$0xff] %v2215
      // Predicated region
      $region37: #{discriminator_forward.7} parent=31 // pred_check
        %p2220 = pneg %p224
      $region38: #{discriminator_forward.7} parent=31 // pred_check_branch
        %2222 = sbr.rel (%p2220) target = $region40
      $region39: #{discriminator_forward.7} parent=31 // pred_region
        %v2223 = vld [vmem:[#allocation2] sm:$0xff]
        %v2224 = vld [vmem:[#allocation2 + $0x8] sm:$0xff]
        %v2225 = vld [vmem:[#allocation2 + $0x10] sm:$0xff]
        %v2226 = vld [vmem:[#allocation2 + $0x18] sm:$0xff]
        %v2227 = vld [vmem:[%s2] sm:$0x3]
        %v2229 = vlaneseq
        %v2230 = vshrl.u32 %v2229, 7
        %v2231 = vsub.s32 0, %v2230
        %v2232 = vrot.slane %v2227, %v2231
        %v2233 = vlaneseq
        %v2234 = vshrl.u32 %v2233, 7
        %v2235 = vsub.s32 1, %v2234
        %v2236 = vrot.slane %v2227, %v2235
        %v2239 = vadd.f32 %v2223, %v2232
        %v2240 = vadd.f32 %v2224, %v2236
        %v2241 = vadd.f32 %v2225, %v2232
        %v2242 = vadd.f32 %v2226, %v2236
        %v2243 = vadd.f32 %v2239, %v2241
        %v2244 = vrot.slane %v2243, 4
        %v2245 = vadd.f32 %v2243, %v2244
        %v2246 = vrot.slane %v2245, 2
        %v2247 = vadd.f32 %v2245, %v2246
        %v2248 = vrot.slane %v2247, 1
        %v2249 = vadd.f32 %v2247, %v2248
        %v2250 = vadd.f32 %v2240, %v2242
        %v2251 = vrot.slane %v2250, 4
        %v2252 = vadd.f32 %v2250, %v2251
        %v2253 = vrot.slane %v2252, 2
        %v2254 = vadd.f32 %v2252, %v2253
        %v2255 = vrot.slane %v2254, 1
        %v2256 = vadd.f32 %v2254, %v2255
        %v2257 = vrcp.pop 16.0
        %v2258 = vmul.f32 %v2249, %v2257
        %v2259 = vmul.f32 %v2256, %v2257
        %v2260 = vsub.f32 %v2239, %v2258
        %v2261 = vsub.f32 %v2240, %v2259
        %v2262 = vsub.f32 %v2241, %v2258
        %v2263 = vsub.f32 %v2242, %v2259
        %v2264 = vmul.f32 %v2260, %v2260
        %v2265 = vmul.f32 %v2261, %v2261
        %v2266 = vmul.f32 %v2262, %v2262
        %v2267 = vmul.f32 %v2263, %v2263
        %v2268 = vadd.f32 %v2264, %v2266
        %v2269 = vrot.slane %v2268, 4
        %v2270 = vadd.f32 %v2268, %v2269
        %v2271 = vrot.slane %v2270, 2
        %v2272 = vadd.f32 %v2270, %v2271
        %v2273 = vrot.slane %v2272, 1
        %v2274 = vadd.f32 %v2272, %v2273
        %v2275 = vadd.f32 %v2265, %v2267
        %v2276 = vrot.slane %v2275, 4
        %v2277 = vadd.f32 %v2275, %v2276
        %v2278 = vrot.slane %v2277, 2
        %v2279 = vadd.f32 %v2277, %v2278
        %v2280 = vrot.slane %v2279, 1
        %v2281 = vadd.f32 %v2279, %v2280
        %v2282 = vmul.f32 %v2274, %v2257
        %v2283 = vmul.f32 %v2281, %v2257
        %v2284 = vadd.f32 %v2282, 1e-05
        %v2285 = vadd.f32 %v2283, 1e-05
        %v2286 = vrsqrt.pop %v2284
        %v2287 = vrsqrt.pop %v2285
        %v2288 = vmul.f32 %v2260, %v2286
        %v2289 = vmul.f32 %v2261, %v2287
        %v2290 = vmul.f32 %v2262, %v2286
        %v2291 = vmul.f32 %v2263, %v2287
        %vm2292 = vcmp.ge.f32.partialorder %v2288, 0.0
        %vm2293 = vcmp.ge.f32.partialorder %v2289, 0.0
        %vm2294 = vcmp.ge.f32.partialorder %v2290, 0.0
        %vm2295 = vcmp.ge.f32.partialorder %v2291, 0.0
        %v2296 = vmul.f32 %v2288, 0.2
        %v2297 = vmul.f32 %v2289, 0.2
        %v2298 = vmul.f32 %v2290, 0.2
        %v2299 = vmul.f32 %v2291, 0.2
        %v2300 = vsel %vm2292, %v2288, %v2296
        %v2301 = vsel %vm2293, %v2289, %v2297
        %v2302 = vsel %vm2294, %v2290, %v2298
        %v2303 = vsel %vm2295, %v2291, %v2299
        %2304 = vst [vmem:[%s223] sm:$0xff] %v2300
        %2305 = vst [vmem:[%s223 + $0x8] sm:$0xff] %v2301
        %2306 = vst [vmem:[%s223 + $0x10] sm:$0xff] %v2302
        %2307 = vst [vmem:[%s223 + $0x18] sm:$0xff] %v2303
      $region40: #{discriminator_forward.7} parent=31 // pred_fallthru
        _
      %p2308 = scmp.lt.s32.totalorder %s18, 1
      %s2309 = scalar_select %p2308, %s18, 1
      %s2310 = smul.addr %s2309, 4
      %s2311 = smul.addr %s2310, 8
      %s2312 = scalar_lea.vmem %s3, %s2311
      // Predicated region
      $region41: #{discriminator_forward.7} parent=31 // pred_check
        %p2313 = pneg %p119
      $region42: #{discriminator_forward.7} parent=31 // pred_check_branch
        %2315 = sbr.rel (%p2313) target = $region44
      $region43: #{discriminator_forward.7} parent=31 // pred_region
        _
      $region44: #{discriminator_forward.7} parent=31 // pred_fallthru
        _
    $region32: #{discriminator_forward.7} parent=5 // pred_fallthru
      _
    %p2316 = scmp.le.s32.totalorder 2, %s9
    // Predicated region
    $region45: #{discriminator_forward.7} parent=5 // pred_check
      %p2317 = pneg %p2316
    $region46: #{discriminator_forward.7} parent=5 // pred_check_branch
      %2319 = sbr.rel (%p2317) target = $region48
    $region47: #{discriminator_forward.7} parent=5 // pred_region
      %s2320 = ssub.s32 %s9, 2
      // Predicated region
      $region49: #{discriminator_forward.7} parent=47 // pred_check
        %p2321 = pneg %p125
      $region50: #{discriminator_forward.7} parent=47 // pred_check_branch
        %2323 = sbr.rel (%p2321) target = $region52
      $region51: #{discriminator_forward.7} parent=47 // pred_region
        %p2324 = scmp.lt.s32.totalorder %s20, 1
        %s2325 = scalar_select %p2324, %s20, 1
        %s2326 = smul.addr %s2325, 4
        %s2327 = smul.addr %s2326, 8
        %s2328 = scalar_lea.vmem %s3, %s2327
      $region52: #{discriminator_forward.7} parent=47 // pred_fallthru
        _
    $region48: #{discriminator_forward.7} parent=5 // pred_fallthru
      _
  $region6: #{discriminator_forward.7} parent=0 // loop_footer
    %s13 = sadd.s32 1, %s9
  $region7: #{discriminator_forward.7} parent=0 // loop_footer_branch
    %8 = sbr.rel target = $region3
  $region8: #{discriminator_forward.7} parent=0 // loop_exit
    _

// kernel: discriminator_forward.8
$region0: #{discriminator_forward.8}
  #allocation0 [shape = 'u32[]', space=smem, size = 0x4, offset = 0x4, fixed_abs, tag = 'smem constant byte address 0x4 - core index']
  #allocation1 [shape = 'u32[144,128]{1,0:T(1,128)}', space=vmem, size = 0x12000, scoped, tag = 'internal scratch']
  #allocation2 [shape = 'f32[9,512]{1,0:T(8,128)}', space=vmem, size = 0x8000, scoped, tag = 'scratch operand']
  %s0 = inlined_call_operand.vmem [shape: bf16[2,9,4096], index: 0, kind: input, shape index: {}]
  %s1 = inlined_call_operand.vmem [shape: bf16[4096,512], index: 1, kind: input, shape index: {}]
  %s2 = inlined_call_operand.vmem [shape: f32[1,512], index: 2, kind: input, shape index: {}]
  %s3 = inlined_call_operand.vmem [shape: f32[2,9,512], index: 3, kind: output, shape index: {}]
  %s4 = sld [smem:[#allocation0]]
  $region76: #{discriminator_forward.8} parent=0
    _
  %s6 = ssub.s32 1, %s4
  %s7 = scalar_select 0, %s6, %s4
  $region1: #{discriminator_forward.8} parent=0
    #allocation3 [shape = 'u8[131072]{0}', space=vmem, size = 0x20000, scoped, tag = 'input window, operand 0']
    loop: start=0, step=1, limit=6
    $region2: #{discriminator_forward.8} parent=1 // loop_pre_header
      _
    $region3: #{discriminator_forward.8} parent=1 // loop_header
      %s9 = sphi 0, %s13
      %p10 = scmp.ge.s32.totalorder %s9, 6
      %s16 = sphi 0, %s28
      %s17 = sphi 0, %s24
      %s18 = sphi 0, %s16
      %s19 = sphi 0, %s17
      %s20 = sphi 0, %s18
      %s21 = sphi 0, %s19
      %s33 = sphi 0, %s35
      %s36 = sphi 0, %s33
      %s37 = sphi 0, %s36
      %s53 = sphi 0, %s37
      %s59 = sphi 0, %s61
      %s62 = sphi 0, %s59
      %s63 = sphi 0, %s62
      %s79 = sphi 0, %s63
      %s83 = sphi 0, %s83
      %s85 = sphi 0, %s83
      %s86 = sphi 0, %s85
      %s100 = sphi 0, %s86
      %s106 = sphi 0, %s108
      %s109 = sphi 0, %s106
      %s110 = sphi 0, %s109
      %s126 = sphi 0, %s110
    $region4: #{discriminator_forward.8} parent=1 // loop_header_branch
      %12 = sbr.rel (%p10) target = $region8
    $region5: #{discriminator_forward.8} parent=1 // loop_body
      %s14 = ssub.s32 %s9, 1
      %s15 = ssub.s32 %s9, 2
      %s22 = sadd.s32 1, %s17
      %p23 = scmp.ge.s32.totalorder %s22, 2
      %s24 = scalar_select %p23, 0, %s22
      %s25 = sadd.s32 1, %s16
      %s26 = scalar_select %p23, %s25, %s16
      %p27 = scmp.ge.s32.totalorder %s26, 2
      %s28 = scalar_select %p27, 0, %s26
      %s29 = ssub.s32 %s16, %s28
      %s30 = ssub.s32 %s17, %s24
      %s31 = sor.u32 %s29, %s30
      %p32 = scmp.eq.s32.totalorder %s31, 0
      %s34 = sadd.s32 %s33, 1
      %s35 = scalar_select %p32, %s33, %s34
      %p38 = pneg %p32
      %p39 = scmp.eq.s32.totalorder %s9, 3
      %p40 = por %p38, %p39
      %p41 = scmp.ne.s32.totalorder %s33, %s36
      %p42 = scmp.eq.s32.totalorder %s9, 0
      %p43 = por %p41, %p42
      %p44 = scmp.ne.s32.totalorder %s33, %s36
      %p45 = scmp.eq.s32.totalorder %s14, 3
      %p46 = por %p44, %p45
      %p47 = scmp.ne.s32.totalorder %s36, %s37
      %p48 = scmp.eq.s32.totalorder %s14, 0
      %p49 = por %p47, %p48
      %p50 = scmp.ne.s32.totalorder %s36, %s37
      %p51 = scmp.eq.s32.totalorder %s15, 3
      %p52 = por %p50, %p51
      %p54 = scmp.ne.s32.totalorder %s37, %s53
      %p55 = scmp.eq.s32.totalorder %s15, 0
      %p56 = por %p54, %p55
      %s57 = ssub.s32 %s17, %s24
      %p58 = scmp.eq.s32.totalorder %s57, 0
      %s60 = sadd.s32 %s59, 1
      %s61 = scalar_select %p58, %s59, %s60
      %p64 = pneg %p58
      %p65 = scmp.eq.s32.totalorder %s9, 3
      %p66 = por %p64, %p65
      %p67 = scmp.ne.s32.totalorder %s59, %s62
      %p68 = scmp.eq.s32.totalorder %s9, 0
      %p69 = por %p67, %p68
      %p70 = scmp.ne.s32.totalorder %s59, %s62
      %p71 = scmp.eq.s32.totalorder %s14, 3
      %p72 = por %p70, %p71
      %p73 = scmp.ne.s32.totalorder %s62, %s63
      %p74 = scmp.eq.s32.totalorder %s14, 0
      %p75 = por %p73, %p74
      %p76 = scmp.ne.s32.totalorder %s62, %s63
      %p77 = scmp.eq.s32.totalorder %s15, 3
      %p78 = por %p76, %p77
      %p80 = scmp.ne.s32.totalorder %s63, %s79
      %p81 = scmp.eq.s32.totalorder %s15, 0
      %p82 = por %p80, %p81
      %s84 = sadd.s32 %s83, 1
      %p87 = scmp.eq.s32.totalorder %s9, 3
      %p88 = scmp.ne.s32.totalorder %s83, %s85
      %p89 = scmp.eq.s32.totalorder %s9, 0
      %p90 = por %p88, %p89
      %p91 = scmp.ne.s32.totalorder %s83, %s85
      %p92 = scmp.eq.s32.totalorder %s14, 3
      %p93 = por %p91, %p92
      %p94 = scmp.ne.s32.totalorder %s85, %s86
      %p95 = scmp.eq.s32.totalorder %s14, 0
      %p96 = por %p94, %p95
      %p97 = scmp.ne.s32.totalorder %s85, %s86
      %p98 = scmp.eq.s32.totalorder %s15, 3
      %p99 = por %p97, %p98
      %p101 = scmp.ne.s32.totalorder %s86, %s100
      %p102 = scmp.eq.s32.totalorder %s15, 0
      %p103 = por %p101, %p102
      %s104 = ssub.s32 %s16, %s28
      %p105 = scmp.eq.s32.totalorder %s104, 0
      %s107 = sadd.s32 %s106, 1
      %s108 = scalar_select %p105, %s106, %s107
      %p111 = pneg %p105
      %p112 = scmp.eq.s32.totalorder %s9, 3
      %p113 = por %p111, %p112
      %p114 = scmp.ne.s32.totalorder %s106, %s109
      %p115 = scmp.eq.s32.totalorder %s9, 0
      %p116 = por %p114, %p115
      %p117 = scmp.ne.s32.totalorder %s106, %s109
      %p118 = scmp.eq.s32.totalorder %s14, 3
      %p119 = por %p117, %p118
      %p120 = scmp.ne.s32.totalorder %s109, %s110
      %p121 = scmp.eq.s32.totalorder %s14, 0
      %p122 = por %p120, %p121
      %p123 = scmp.ne.s32.totalorder %s109, %s110
      %p124 = scmp.eq.s32.totalorder %s15, 3
      %p125 = por %p123, %p124
      %p127 = scmp.ne.s32.totalorder %s110, %s126
      %p128 = scmp.eq.s32.totalorder %s15, 0
      %p129 = por %p127, %p128
      %p130 = scmp.le.s32.totalorder 1, %s9
      %p131 = scmp.lt.s32.totalorder %s9, 5
      %p132 = pnand %p130, %p131
      %p133 = pneg %p132
      // Predicated region
      $region9: #{discriminator_forward.8} parent=5 // pred_check
        _
      $region10: #{discriminator_forward.8} parent=5 // pred_check_branch
        %135 = sbr.rel (%p132) target = $region12
      $region11: #{discriminator_forward.8} parent=5 // pred_region
        %s136 = ssub.s32 %s9, 1
        // Predicated region
        $region13: #{discriminator_forward.8} parent=11 // pred_check
          %p137 = pneg %p96
        $region14: #{discriminator_forward.8} parent=11 // pred_check_branch
          %139 = sbr.rel (%p137) target = $region16
        $region15: #{discriminator_forward.8} parent=11 // pred_region
          _
        $region16: #{discriminator_forward.8} parent=11 // pred_fallthru
          _
      $region12: #{discriminator_forward.8} parent=5 // pred_fallthru
        _
      %p140 = scmp.lt.s32.totalorder %s9, 4
      // Predicated region
      $region17: #{discriminator_forward.8} parent=5 // pred_check
        %p141 = pneg %p140
      $region18: #{discriminator_forward.8} parent=5 // pred_check_branch
        %143 = sbr.rel (%p141) target = $region20
      $region19: #{discriminator_forward.8} parent=5 // pred_region
        // Predicated region
        $region21: #{discriminator_forward.8} parent=19 // pred_check
          %p144 = pneg %p43
        $region22: #{discriminator_forward.8} parent=19 // pred_check_branch
          %146 = sbr.rel (%p144) target = $region24
        $region23: #{discriminator_forward.8} parent=19 // pred_region
          %s147 = sand.u32 %s33, 1
          %s148 = sand.u32 %s33, 1
          %s149 = smul.addr %s148, 128
          %s150 = scalar_lea.vmem [#allocation3], %s149
          %s151 = smul.u32 16, %s17
          %s152 = smul.addr %s16, 64
          %s153 = sadd.s32 %s151, %s152
          %s154 = smul.addr %s153, 4
          %s155 = scalar_lea.vmem %s0, %s154
          // Predicated region
          $region25: #{discriminator_forward.8} parent=23 // pred_check
            _
          $region26: #{discriminator_forward.8} parent=23 // pred_check_branch
            %157 = sbr.rel (0) target = $region28
          $region27: #{discriminator_forward.8} parent=23 // pred_region
            // Predicated region
            $region29: #{discriminator_forward.8} parent=27 // pred_check
              _
            $region30: #{discriminator_forward.8} parent=27 // pred_check_branch
              %159 = sbr.rel (0) target = $region32
            $region31: #{discriminator_forward.8} parent=27 // pred_region
              loop: start=0, step=1, limit=1
              $region33: #{discriminator_forward.8} parent=31 // loop_pre_header
                _
              $region34: #{discriminator_forward.8} parent=31 // loop_header
                %s161 = sphi 0, %s165
                %p162 = scmp.ge.s32.totalorder %s161, 1
                %s166 = sphi %s155, %s155
                %s167 = sphi %s150, %s150
              $region35: #{discriminator_forward.8} parent=31 // loop_header_branch
                %164 = sbr.rel (%p162) target = $region39
              $region36: #{discriminator_forward.8} parent=31 // loop_body
                %v168 = vld [vmem:[%s166] sm:$0xff]
                %169 = vst [vmem:[%s167] sm:$0xff] %v168
                %v170 = vld [vmem:[%s166 + $0x8] sm:$0xff]
                %171 = vst [vmem:[%s167 + $0x8] sm:$0xff] %v170
                %v172 = vld [vmem:[%s166 + $0x10] sm:$0xff]
                %173 = vst [vmem:[%s167 + $0x10] sm:$0xff] %v172
                %v174 = vld [vmem:[%s166 + $0x18] sm:$0xff]
                %175 = vst [vmem:[%s167 + $0x18] sm:$0xff] %v174
                %v176 = vld [vmem:[%s166 + $0x20] sm:$0xff]
                %177 = vst [vmem:[%s167 + $0x20] sm:$0xff] %v176
                %v178 = vld [vmem:[%s166 + $0x28] sm:$0xff]
                %179 = vst [vmem:[%s167 + $0x28] sm:$0xff] %v178
                %v180 = vld [vmem:[%s166 + $0x30] sm:$0xff]
                %181 = vst [vmem:[%s167 + $0x30] sm:$0xff] %v180
                %v182 = vld [vmem:[%s166 + $0x38] sm:$0xff]
                %183 = vst [vmem:[%s167 + $0x38] sm:$0xff] %v182
                %v184 = vld [vmem:[%s166 + $0x80] sm:$0xff]
                %185 = vst [vmem:[%s167 + $0x40] sm:$0xff] %v184
                %v186 = vld [vmem:[%s166 + $0x88] sm:$0xff]
                %187 = vst [vmem:[%s167 + $0x48] sm:$0xff] %v186
                %v188 = vld [vmem:[%s166 + $0x90] sm:$0xff]
                %189 = vst [vmem:[%s167 + $0x50] sm:$0xff] %v188
                %v190 = vld [vmem:[%s166 + $0x98] sm:$0xff]
                %191 = vst [vmem:[%s167 + $0x58] sm:$0xff] %v190
                %v192 = vld [vmem:[%s166 + $0xa0] sm:$0xff]
                %193 = vst [vmem:[%s167 + $0x60] sm:$0xff] %v192
                %v194 = vld [vmem:[%s166 + $0xa8] sm:$0xff]
                %195 = vst [vmem:[%s167 + $0x68] sm:$0xff] %v194
                %v196 = vld [vmem:[%s166 + $0xb0] sm:$0xff]
                %197 = vst [vmem:[%s167 + $0x70] sm:$0xff] %v196
                %v198 = vld [vmem:[%s166 + $0xb8] sm:$0xff]
                %199 = vst [vmem:[%s167 + $0x78] sm:$0xff] %v198
              $region37: #{discriminator_forward.8} parent=31 // loop_footer
                %s165 = sadd.s32 1, %s161
              $region38: #{discriminator_forward.8} parent=31 // loop_footer_branch
                %160 = sbr.rel target = $region34
              $region39: #{discriminator_forward.8} parent=31 // loop_exit
                _
            $region32: #{discriminator_forward.8} parent=27 // pred_fallthru
              _
            // Predicated region
            $region40: #{discriminator_forward.8} parent=27 // pred_check
              _
            $region41: #{discriminator_forward.8} parent=27 // pred_check_branch
              %201 = sbr.rel target = $region43
            $region42: #{discriminator_forward.8} parent=27 // pred_region
              _
            $region43: #{discriminator_forward.8} parent=27 // pred_fallthru
              _
          $region28: #{discriminator_forward.8} parent=23 // pred_fallthru
            _
          %202 = vnop
        $region24: #{discriminator_forward.8} parent=19 // pred_fallthru
          _
        // Predicated region
        $region44: #{discriminator_forward.8} parent=19 // pred_check
          %p203 = pneg %p69
        $region45: #{discriminator_forward.8} parent=19 // pred_check_branch
          %205 = sbr.rel (%p203) target = $region47
        $region46: #{discriminator_forward.8} parent=19 // pred_region
          %s206 = smul.u32 256, %s17
          %p207 = scmp.lt.s32.totalorder %s206, 511
          %s208 = scalar_select %p207, %s206, 511
          %s209 = smul.addr %s208, 4
          %s210 = smul.addr %s209, 4
          %s211 = scalar_lea.vmem %s1, %s210
          %s212 = smul.u32 256, %s17
        $region47: #{discriminator_forward.8} parent=19 // pred_fallthru
          _
      $region20: #{discriminator_forward.8} parent=5 // pred_fallthru
        _
      %p213 = scmp.le.s32.totalorder 1, %s9
      %p214 = scmp.lt.s32.totalorder %s9, 5
      %p215 = pnand %p213, %p214
      %p216 = pneg %p215
      // Predicated region
      $region48: #{discriminator_forward.8} parent=5 // pred_check
        _
      $region49: #{discriminator_forward.8} parent=5 // pred_check_branch
        %218 = sbr.rel (%p215) target = $region51
      $region50: #{discriminator_forward.8} parent=5 // pred_region
        %s219 = ssub.s32 %s9, 1
        %s220 = sand.u32 %s36, 1
        %s221 = sand.u32 %s36, 1
        %s222 = smul.addr %s221, 128
        %s223 = scalar_lea.vmem [#allocation3], %s222
        // Predicated region
        $region52: #{discriminator_forward.8} parent=50 // pred_check
          %p224 = pneg %p49
        $region53: #{discriminator_forward.8} parent=50 // pred_check_branch
          %226 = sbr.rel (%p224) target = $region55
        $region54: #{discriminator_forward.8} parent=50 // pred_region
          _
        $region55: #{discriminator_forward.8} parent=50 // pred_fallthru
          _
        %s227 = sand.u32 %s36, 1
        %s228 = sand.u32 %s36, 1
        %s229 = smul.addr %s228, 128
        %s230 = scalar_lea.vmem [#allocation3], %s229
        %p231 = pneg %p49
        %p232 = pneg %p46
        %s233 = smul.u32 256, %s19
        %p234 = scmp.lt.s32.totalorder %s233, 511
        %s235 = scalar_select %p234, %s233, 511
        %s236 = smul.addr %s235, 4
        %s237 = smul.addr %s236, 4
        %s238 = scalar_lea.vmem %s1, %s237
        %p239 = pneg %p75
        %p240 = pneg %p72
        %p241 = pneg %p96
        %p242 = pneg %p93
        %p243 = pneg %p122
        %p244 = pneg %p119
        %p245 = scmp.lt.s32.totalorder %s18, 1
        %s246 = scalar_select %p245, %s18, 1
        %s247 = smul.addr %s246, 8
        %s248 = smul.addr %s247, 8
        %s249 = scalar_lea.vmem %s3, %s248
        %s250 = smul.u32 16, %s19
        %s251 = smul.u32 256, %s19
        %p252 = scmp.lt.s32.totalorder %s251, 511
        %s253 = scalar_select %p252, %s251, 511
        %s254 = smul.addr %s253, 4
        %s255 = smul.addr %s254, 4
        %s256 = scalar_lea.vmem %s1, %s255
        %s257 = smul.u32 256, %s19
        %p258 = scmp.lt.s32.totalorder %s18, 1
        %s259 = scalar_select %p258, %s18, 1
        %s260 = smul.addr %s259, 8
        %s261 = smul.addr %s260, 8
        %s262 = scalar_lea.vmem %s3, %s261
        %p263 = scmp.eq.s32.totalorder %s19, 0
        // Predicated region
        $region56: #{discriminator_forward.8} parent=50 // pred_check
          %p264 = pneg %p263
        $region57: #{discriminator_forward.8} parent=50 // pred_check_branch
          %266 = sbr.rel (%p264) target = $region59
        $region58: #{discriminator_forward.8} parent=50 // pred_region
          %267 = vst [vmem:[#allocation2] sm:$0xff] 0.0
          %268 = vst [vmem:[#allocation2 + $0x8] sm:$0xff] 0.0
          %269 = vst [vmem:[#allocation2 + $0x10] sm:$0xff] 0.0
          %270 = vst [vmem:[#allocation2 + $0x18] sm:$0xff] 0.0
          %271 = vst [vmem:[#allocation2 + $0x20] sm:$0x1] 0.0
          %272 = vst [vmem:[#allocation2 + $0x28] sm:$0x1] 0.0
          %273 = vst [vmem:[#allocation2 + $0x30] sm:$0x1] 0.0
          %274 = vst [vmem:[#allocation2 + $0x38] sm:$0x1] 0.0
        $region59: #{discriminator_forward.8} parent=50 // pred_fallthru
          _
        %v275 = vld [vmem:[#allocation2] sm:$0xff]
        %v276 = vld [vmem:[#allocation2 + $0x8] sm:$0xff]
        %v277 = vld [vmem:[#allocation2 + $0x10] sm:$0xff]
        %v278 = vld [vmem:[#allocation2 + $0x18] sm:$0xff]
        %v279 = vld [vmem:[#allocation2 + $0x20] sm:$0x1]
        %v280 = vld [vmem:[#allocation2 + $0x28] sm:$0x1]
        %v281 = vld [vmem:[#allocation2 + $0x30] sm:$0x1]
        %v282 = vld [vmem:[#allocation2 + $0x38] sm:$0x1]
        %v283 = vld [vmem:[%s223] sm:$0xff]
        %v284 = vld [vmem:[%s223 + $0x8] sm:$0xff]
        %v285 = vld [vmem:[%s223 + $0x10] sm:$0xff]
        %v286 = vld [vmem:[%s223 + $0x18] sm:$0xff]
        %v287 = vld [vmem:[%s223 + $0x20] sm:$0xff]
        %v288 = vld [vmem:[%s223 + $0x28] sm:$0xff]
        %v289 = vld [vmem:[%s223 + $0x30] sm:$0xff]
        %v290 = vld [vmem:[%s223 + $0x38] sm:$0xff]
        %v291 = vld [vmem:[%s223 + $0x40] sm:$0x11]
        %v292 = vld [vmem:[%s223 + $0x48] sm:$0x11]
        %v293 = vld [vmem:[%s223 + $0x50] sm:$0x11]
        %v294 = vld [vmem:[%s223 + $0x58] sm:$0x11]
        %v295 = vld [vmem:[%s223 + $0x60] sm:$0x11]
        %v296 = vld [vmem:[%s223 + $0x68] sm:$0x11]
        %v297 = vld [vmem:[%s223 + $0x70] sm:$0x11]
        %v298 = vld [vmem:[%s223 + $0x78] sm:$0x11]
        %v299 = vld [vmem:[%s256] sm:$0xff]
        %v300 = vld [vmem:[%s256 + $0x8] sm:$0xff]
        %v301 = vld [vmem:[%s256 + $0x10] sm:$0xff]
        %v302 = vld [vmem:[%s256 + $0x18] sm:$0xff]
        %v303 = vld [vmem:[%s256 + $0x20] sm:$0xff]
        %v304 = vld [vmem:[%s256 + $0x28] sm:$0xff]
        %v305 = vld [vmem:[%s256 + $0x30] sm:$0xff]
        %v306 = vld [vmem:[%s256 + $0x38] sm:$0xff]
        %v307 = vld [vmem:[%s256 + $0x40] sm:$0xff]
        %v308 = vld [vmem:[%s256 + $0x48] sm:$0xff]
        %v309 = vld [vmem:[%s256 + $0x50] sm:$0xff]
        %v310 = vld [vmem:[%s256 + $0x58] sm:$0xff]
        %v311 = vld [vmem:[%s256 + $0x60] sm:$0xff]
        %v312 = vld [vmem:[%s256 + $0x68] sm:$0xff]
        %v313 = vld [vmem:[%s256 + $0x70] sm:$0xff]
        %v314 = vld [vmem:[%s256 + $0x78] sm:$0xff]
        %v315 = vld [vmem:[%s256 + $0x80] sm:$0xff]
        %v316 = vld [vmem:[%s256 + $0x88] sm:$0xff]
        %v317 = vld [vmem:[%s256 + $0x90] sm:$0xff]
        %v318 = vld [vmem:[%s256 + $0x98] sm:$0xff]
        %v319 = vld [vmem:[%s256 + $0xa0] sm:$0xff]
        %v320 = vld [vmem:[%s256 + $0xa8] sm:$0xff]
        %v321 = vld [vmem:[%s256 + $0xb0] sm:$0xff]
        %v322 = vld [vmem:[%s256 + $0xb8] sm:$0xff]
        %v323 = vld [vmem:[%s256 + $0xc0] sm:$0xff]
        %v324 = vld [vmem:[%s256 + $0xc8] sm:$0xff]
        %v325 = vld [vmem:[%s256 + $0xd0] sm:$0xff]
        %v326 = vld [vmem:[%s256 + $0xd8] sm:$0xff]
        %v327 = vld [vmem:[%s256 + $0xe0] sm:$0xff]
        %v328 = vld [vmem:[%s256 + $0xe8] sm:$0xff]
        %v329 = vld [vmem:[%s256 + $0xf0] sm:$0xff]
        %v330 = vld [vmem:[%s256 + $0xf8] sm:$0xff]
        %v331 = vld [vmem:[%s256 + $0x100] sm:$0xff]
        %v332 = vld [vmem:[%s256 + $0x108] sm:$0xff]
        %v333 = vld [vmem:[%s256 + $0x110] sm:$0xff]
        %v334 = vld [vmem:[%s256 + $0x118] sm:$0xff]
        %v335 = vld [vmem:[%s256 + $0x120] sm:$0xff]
        %v336 = vld [vmem:[%s256 + $0x128] sm:$0xff]
        %v337 = vld [vmem:[%s256 + $0x130] sm:$0xff]
        %v338 = vld [vmem:[%s256 + $0x138] sm:$0xff]
        %v339 = vld [vmem:[%s256 + $0x140] sm:$0xff]
        %v340 = vld [vmem:[%s256 + $0x148] sm:$0xff]
        %v341 = vld [vmem:[%s256 + $0x150] sm:$0xff]
        %v342 = vld [vmem:[%s256 + $0x158] sm:$0xff]
        %v343 = vld [vmem:[%s256 + $0x160] sm:$0xff]
        %v344 = vld [vmem:[%s256 + $0x168] sm:$0xff]
        %v345 = vld [vmem:[%s256 + $0x170] sm:$0xff]
        %v346 = vld [vmem:[%s256 + $0x178] sm:$0xff]
        %v347 = vld [vmem:[%s256 + $0x180] sm:$0xff]
        %v348 = vld [vmem:[%s256 + $0x188] sm:$0xff]
        %v349 = vld [vmem:[%s256 + $0x190] sm:$0xff]
        %v350 = vld [vmem:[%s256 + $0x198] sm:$0xff]
        %v351 = vld [vmem:[%s256 + $0x1a0] sm:$0xff]
        %v352 = vld [vmem:[%s256 + $0x1a8] sm:$0xff]
        %v353 = vld [vmem:[%s256 + $0x1b0] sm:$0xff]
        %v354 = vld [vmem:[%s256 + $0x1b8] sm:$0xff]
        %v355 = vld [vmem:[%s256 + $0x1c0] sm:$0xff]
        %v356 = vld [vmem:[%s256 + $0x1c8] sm:$0xff]
        %v357 = vld [vmem:[%s256 + $0x1d0] sm:$0xff]
        %v358 = vld [vmem:[%s256 + $0x1d8] sm:$0xff]
        %v359 = vld [vmem:[%s256 + $0x1e0] sm:$0xff]
        %v360 = vld [vmem:[%s256 + $0x1e8] sm:$0xff]
        %v361 = vld [vmem:[%s256 + $0x1f0] sm:$0xff]
        %v362 = vld [vmem:[%s256 + $0x1f8] sm:$0xff]
        %v363 = vld [vmem:[%s256 + $0x200] sm:$0xff]
        %v364 = vld [vmem:[%s256 + $0x208] sm:$0xff]
        %v365 = vld [vmem:[%s256 + $0x210] sm:$0xff]
        %v366 = vld [vmem:[%s256 + $0x218] sm:$0xff]
        %v367 = vld [vmem:[%s256 + $0x220] sm:$0xff]
        %v368 = vld [vmem:[%s256 + $0x228] sm:$0xff]
        %v369 = vld [vmem:[%s256 + $0x230] sm:$0xff]
        %v370 = vld [vmem:[%s256 + $0x238] sm:$0xff]
        %v371 = vld [vmem:[%s256 + $0x240] sm:$0xff]
        %v372 = vld [vmem:[%s256 + $0x248] sm:$0xff]
        %v373 = vld [vmem:[%s256 + $0x250] sm:$0xff]
        %v374 = vld [vmem:[%s256 + $0x258] sm:$0xff]
        %v375 = vld [vmem:[%s256 + $0x260] sm:$0xff]
        %v376 = vld [vmem:[%s256 + $0x268] sm:$0xff]
        %v377 = vld [vmem:[%s256 + $0x270] sm:$0xff]
        %v378 = vld [vmem:[%s256 + $0x278] sm:$0xff]
        %v379 = vld [vmem:[%s256 + $0x280] sm:$0xff]
        %v380 = vld [vmem:[%s256 + $0x288] sm:$0xff]
        %v381 = vld [vmem:[%s256 + $0x290] sm:$0xff]
        %v382 = vld [vmem:[%s256 + $0x298] sm:$0xff]
        %v383 = vld [vmem:[%s256 + $0x2a0] sm:$0xff]
        %v384 = vld [vmem:[%s256 + $0x2a8] sm:$0xff]
        %v385 = vld [vmem:[%s256 + $0x2b0] sm:$0xff]
        %v386 = vld [vmem:[%s256 + $0x2b8] sm:$0xff]
        %v387 = vld [vmem:[%s256 + $0x2c0] sm:$0xff]
        %v388 = vld [vmem:[%s256 + $0x2c8] sm:$0xff]
        %v389 = vld [vmem:[%s256 + $0x2d0] sm:$0xff]
        %v390 = vld [vmem:[%s256 + $0x2d8] sm:$0xff]
        %v391 = vld [vmem:[%s256 + $0x2e0] sm:$0xff]
        %v392 = vld [vmem:[%s256 + $0x2e8] sm:$0xff]
        %v393 = vld [vmem:[%s256 + $0x2f0] sm:$0xff]
        %v394 = vld [vmem:[%s256 + $0x2f8] sm:$0xff]
        %v395 = vld [vmem:[%s256 + $0x300] sm:$0xff]
        %v396 = vld [vmem:[%s256 + $0x308] sm:$0xff]
        %v397 = vld [vmem:[%s256 + $0x310] sm:$0xff]
        %v398 = vld [vmem:[%s256 + $0x318] sm:$0xff]
        %v399 = vld [vmem:[%s256 + $0x320] sm:$0xff]
        %v400 = vld [vmem:[%s256 + $0x328] sm:$0xff]
        %v401 = vld [vmem:[%s256 + $0x330] sm:$0xff]
        %v402 = vld [vmem:[%s256 + $0x338] sm:$0xff]
        %v403 = vld [vmem:[%s256 + $0x340] sm:$0xff]
        %v404 = vld [vmem:[%s256 + $0x348] sm:$0xff]
        %v405 = vld [vmem:[%s256 + $0x350] sm:$0xff]
        %v406 = vld [vmem:[%s256 + $0x358] sm:$0xff]
        %v407 = vld [vmem:[%s256 + $0x360] sm:$0xff]
        %v408 = vld [vmem:[%s256 + $0x368] sm:$0xff]
        %v409 = vld [vmem:[%s256 + $0x370] sm:$0xff]
        %v410 = vld [vmem:[%s256 + $0x378] sm:$0xff]
        %v411 = vld [vmem:[%s256 + $0x380] sm:$0xff]
        %v412 = vld [vmem:[%s256 + $0x388] sm:$0xff]
        %v413 = vld [vmem:[%s256 + $0x390] sm:$0xff]
        %v414 = vld [vmem:[%s256 + $0x398] sm:$0xff]
        %v415 = vld [vmem:[%s256 + $0x3a0] sm:$0xff]
        %v416 = vld [vmem:[%s256 + $0x3a8] sm:$0xff]
        %v417 = vld [vmem:[%s256 + $0x3b0] sm:$0xff]
        %v418 = vld [vmem:[%s256 + $0x3b8] sm:$0xff]
        %v419 = vld [vmem:[%s256 + $0x3c0] sm:$0xff]
        %v420 = vld [vmem:[%s256 + $0x3c8] sm:$0xff]
        %v421 = vld [vmem:[%s256 + $0x3d0] sm:$0xff]
        %v422 = vld [vmem:[%s256 + $0x3d8] sm:$0xff]
        %v423 = vld [vmem:[%s256 + $0x3e0] sm:$0xff]
        %v424 = vld [vmem:[%s256 + $0x3e8] sm:$0xff]
        %v425 = vld [vmem:[%s256 + $0x3f0] sm:$0xff]
        %v426 = vld [vmem:[%s256 + $0x3f8] sm:$0xff]
        %v427 = vld [vmem:[%s256 + $0x400] sm:$0xff]
        %v428 = vld [vmem:[%s256 + $0x408] sm:$0xff]
        %v429 = vld [vmem:[%s256 + $0x410] sm:$0xff]
        %v430 = vld [vmem:[%s256 + $0x418] sm:$0xff]
        %v431 = vld [vmem:[%s256 + $0x420] sm:$0xff]
        %v432 = vld [vmem:[%s256 + $0x428] sm:$0xff]
        %v433 = vld [vmem:[%s256 + $0x430] sm:$0xff]
        %v434 = vld [vmem:[%s256 + $0x438] sm:$0xff]
        %v435 = vld [vmem:[%s256 + $0x440] sm:$0xff]
        %v436 = vld [vmem:[%s256 + $0x448] sm:$0xff]
        %v437 = vld [vmem:[%s256 + $0x450] sm:$0xff]
        %v438 = vld [vmem:[%s256 + $0x458] sm:$0xff]
        %v439 = vld [vmem:[%s256 + $0x460] sm:$0xff]
        %v440 = vld [vmem:[%s256 + $0x468] sm:$0xff]
        %v441 = vld [vmem:[%s256 + $0x470] sm:$0xff]
        %v442 = vld [vmem:[%s256 + $0x478] sm:$0xff]
        %v443 = vld [vmem:[%s256 + $0x480] sm:$0xff]
        %v444 = vld [vmem:[%s256 + $0x488] sm:$0xff]
        %v445 = vld [vmem:[%s256 + $0x490] sm:$0xff]
        %v446 = vld [vmem:[%s256 + $0x498] sm:$0xff]
        %v447 = vld [vmem:[%s256 + $0x4a0] sm:$0xff]
        %v448 = vld [vmem:[%s256 + $0x4a8] sm:$0xff]
        %v449 = vld [vmem:[%s256 + $0x4b0] sm:$0xff]
        %v450 = vld [vmem:[%s256 + $0x4b8] sm:$0xff]
        %v451 = vld [vmem:[%s256 + $0x4c0] sm:$0xff]
        %v452 = vld [vmem:[%s256 + $0x4c8] sm:$0xff]
        %v453 = vld [vmem:[%s256 + $0x4d0] sm:$0xff]
        %v454 = vld [vmem:[%s256 + $0x4d8] sm:$0xff]
        %v455 = vld [vmem:[%s256 + $0x4e0] sm:$0xff]
        %v456 = vld [vmem:[%s256 + $0x4e8] sm:$0xff]
        %v457 = vld [vmem:[%s256 + $0x4f0] sm:$0xff]
        %v458 = vld [vmem:[%s256 + $0x4f8] sm:$0xff]
        %v459 = vld [vmem:[%s256 + $0x500] sm:$0xff]
        %v460 = vld [vmem:[%s256 + $0x508] sm:$0xff]
        %v461 = vld [vmem:[%s256 + $0x510] sm:$0xff]
        %v462 = vld [vmem:[%s256 + $0x518] sm:$0xff]
        %v463 = vld [vmem:[%s256 + $0x520] sm:$0xff]
        %v464 = vld [vmem:[%s256 + $0x528] sm:$0xff]
        %v465 = vld [vmem:[%s256 + $0x530] sm:$0xff]
        %v466 = vld [vmem:[%s256 + $0x538] sm:$0xff]
        %v467 = vld [vmem:[%s256 + $0x540] sm:$0xff]
        %v468 = vld [vmem:[%s256 + $0x548] sm:$0xff]
        %v469 = vld [vmem:[%s256 + $0x550] sm:$0xff]
        %v470 = vld [vmem:[%s256 + $0x558] sm:$0xff]
        %v471 = vld [vmem:[%s256 + $0x560] sm:$0xff]
        %v472 = vld [vmem:[%s256 + $0x568] sm:$0xff]
        %v473 = vld [vmem:[%s256 + $0x570] sm:$0xff]
        %v474 = vld [vmem:[%s256 + $0x578] sm:$0xff]
        %v475 = vld [vmem:[%s256 + $0x580] sm:$0xff]
        %v476 = vld [vmem:[%s256 + $0x588] sm:$0xff]
        %v477 = vld [vmem:[%s256 + $0x590] sm:$0xff]
        %v478 = vld [vmem:[%s256 + $0x598] sm:$0xff]
        %v479 = vld [vmem:[%s256 + $0x5a0] sm:$0xff]
        %v480 = vld [vmem:[%s256 + $0x5a8] sm:$0xff]
        %v481 = vld [vmem:[%s256 + $0x5b0] sm:$0xff]
        %v482 = vld [vmem:[%s256 + $0x5b8] sm:$0xff]
        %v483 = vld [vmem:[%s256 + $0x5c0] sm:$0xff]
        %v484 = vld [vmem:[%s256 + $0x5c8] sm:$0xff]
        %v485 = vld [vmem:[%s256 + $0x5d0] sm:$0xff]
        %v486 = vld [vmem:[%s256 + $0x5d8] sm:$0xff]
        %v487 = vld [vmem:[%s256 + $0x5e0] sm:$0xff]
        %v488 = vld [vmem:[%s256 + $0x5e8] sm:$0xff]
        %v489 = vld [vmem:[%s256 + $0x5f0] sm:$0xff]
        %v490 = vld [vmem:[%s256 + $0x5f8] sm:$0xff]
        %v491 = vld [vmem:[%s256 + $0x600] sm:$0xff]
        %v492 = vld [vmem:[%s256 + $0x608] sm:$0xff]
        %v493 = vld [vmem:[%s256 + $0x610] sm:$0xff]
        %v494 = vld [vmem:[%s256 + $0x618] sm:$0xff]
        %v495 = vld [vmem:[%s256 + $0x620] sm:$0xff]
        %v496 = vld [vmem:[%s256 + $0x628] sm:$0xff]
        %v497 = vld [vmem:[%s256 + $0x630] sm:$0xff]
        %v498 = vld [vmem:[%s256 + $0x638] sm:$0xff]
        %v499 = vld [vmem:[%s256 + $0x640] sm:$0xff]
        %v500 = vld [vmem:[%s256 + $0x648] sm:$0xff]
        %v501 = vld [vmem:[%s256 + $0x650] sm:$0xff]
        %v502 = vld [vmem:[%s256 + $0x658] sm:$0xff]
        %v503 = vld [vmem:[%s256 + $0x660] sm:$0xff]
        %v504 = vld [vmem:[%s256 + $0x668] sm:$0xff]
        %v505 = vld [vmem:[%s256 + $0x670] sm:$0xff]
        %v506 = vld [vmem:[%s256 + $0x678] sm:$0xff]
        %v507 = vld [vmem:[%s256 + $0x680] sm:$0xff]
        %v508 = vld [vmem:[%s256 + $0x688] sm:$0xff]
        %v509 = vld [vmem:[%s256 + $0x690] sm:$0xff]
        %v510 = vld [vmem:[%s256 + $0x698] sm:$0xff]
        %v511 = vld [vmem:[%s256 + $0x6a0] sm:$0xff]
        %v512 = vld [vmem:[%s256 + $0x6a8] sm:$0xff]
        %v513 = vld [vmem:[%s256 + $0x6b0] sm:$0xff]
        %v514 = vld [vmem:[%s256 + $0x6b8] sm:$0xff]
        %v515 = vld [vmem:[%s256 + $0x6c0] sm:$0xff]
        %v516 = vld [vmem:[%s256 + $0x6c8] sm:$0xff]
        %v517 = vld [vmem:[%s256 + $0x6d0] sm:$0xff]
        %v518 = vld [vmem:[%s256 + $0x6d8] sm:$0xff]
        %v519 = vld [vmem:[%s256 + $0x6e0] sm:$0xff]
        %v520 = vld [vmem:[%s256 + $0x6e8] sm:$0xff]
        %v521 = vld [vmem:[%s256 + $0x6f0] sm:$0xff]
        %v522 = vld [vmem:[%s256 + $0x6f8] sm:$0xff]
        %v523 = vld [vmem:[%s256 + $0x700] sm:$0xff]
        %v524 = vld [vmem:[%s256 + $0x708] sm:$0xff]
        %v525 = vld [vmem:[%s256 + $0x710] sm:$0xff]
        %v526 = vld [vmem:[%s256 + $0x718] sm:$0xff]
        %v527 = vld [vmem:[%s256 + $0x720] sm:$0xff]
        %v528 = vld [vmem:[%s256 + $0x728] sm:$0xff]
        %v529 = vld [vmem:[%s256 + $0x730] sm:$0xff]
        %v530 = vld [vmem:[%s256 + $0x738] sm:$0xff]
        %v531 = vld [vmem:[%s256 + $0x740] sm:$0xff]
        %v532 = vld [vmem:[%s256 + $0x748] sm:$0xff]
        %v533 = vld [vmem:[%s256 + $0x750] sm:$0xff]
        %v534 = vld [vmem:[%s256 + $0x758] sm:$0xff]
        %v535 = vld [vmem:[%s256 + $0x760] sm:$0xff]
        %v536 = vld [vmem:[%s256 + $0x768] sm:$0xff]
        %v537 = vld [vmem:[%s256 + $0x770] sm:$0xff]
        %v538 = vld [vmem:[%s256 + $0x778] sm:$0xff]
        %v539 = vld [vmem:[%s256 + $0x780] sm:$0xff]
        %v540 = vld [vmem:[%s256 + $0x788] sm:$0xff]
        %v541 = vld [vmem:[%s256 + $0x790] sm:$0xff]
        %v542 = vld [vmem:[%s256 + $0x798] sm:$0xff]
        %v543 = vld [vmem:[%s256 + $0x7a0] sm:$0xff]
        %v544 = vld [vmem:[%s256 + $0x7a8] sm:$0xff]
        %v545 = vld [vmem:[%s256 + $0x7b0] sm:$0xff]
        %v546 = vld [vmem:[%s256 + $0x7b8] sm:$0xff]
        %v547 = vld [vmem:[%s256 + $0x7c0] sm:$0xff]
        %v548 = vld [vmem:[%s256 + $0x7c8] sm:$0xff]
        %v549 = vld [vmem:[%s256 + $0x7d0] sm:$0xff]
        %v550 = vld [vmem:[%s256 + $0x7d8] sm:$0xff]
        %v551 = vld [vmem:[%s256 + $0x7e0] sm:$0xff]
        %v552 = vld [vmem:[%s256 + $0x7e8] sm:$0xff]
        %v553 = vld [vmem:[%s256 + $0x7f0] sm:$0xff]
        %v554 = vld [vmem:[%s256 + $0x7f8] sm:$0xff]
        %v555 = vld [vmem:[%s256 + $0x800] sm:$0xff]
        %v556 = vld [vmem:[%s256 + $0x808] sm:$0xff]
        %v557 = vld [vmem:[%s256 + $0x810] sm:$0xff]
        %v558 = vld [vmem:[%s256 + $0x818] sm:$0xff]
        %v559 = vld [vmem:[%s256 + $0x820] sm:$0xff]
        %v560 = vld [vmem:[%s256 + $0x828] sm:$0xff]
        %v561 = vld [vmem:[%s256 + $0x830] sm:$0xff]
        %v562 = vld [vmem:[%s256 + $0x838] sm:$0xff]
        %v563 = vld [vmem:[%s256 + $0x840] sm:$0xff]
        %v564 = vld [vmem:[%s256 + $0x848] sm:$0xff]
        %v565 = vld [vmem:[%s256 + $0x850] sm:$0xff]
        %v566 = vld [vmem:[%s256 + $0x858] sm:$0xff]
        %v567 = vld [vmem:[%s256 + $0x860] sm:$0xff]
        %v568 = vld [vmem:[%s256 + $0x868] sm:$0xff]
        %v569 = vld [vmem:[%s256 + $0x870] sm:$0xff]
        %v570 = vld [vmem:[%s256 + $0x878] sm:$0xff]
        %v571 = vld [vmem:[%s256 + $0x880] sm:$0xff]
        %v572 = vld [vmem:[%s256 + $0x888] sm:$0xff]
        %v573 = vld [vmem:[%s256 + $0x890] sm:$0xff]
        %v574 = vld [vmem:[%s256 + $0x898] sm:$0xff]
        %v575 = vld [vmem:[%s256 + $0x8a0] sm:$0xff]
        %v576 = vld [vmem:[%s256 + $0x8a8] sm:$0xff]
        %v577 = vld [vmem:[%s256 + $0x8b0] sm:$0xff]
        %v578 = vld [vmem:[%s256 + $0x8b8] sm:$0xff]
        %v579 = vld [vmem:[%s256 + $0x8c0] sm:$0xff]
        %v580 = vld [vmem:[%s256 + $0x8c8] sm:$0xff]
        %v581 = vld [vmem:[%s256 + $0x8d0] sm:$0xff]
        %v582 = vld [vmem:[%s256 + $0x8d8] sm:$0xff]
        %v583 = vld [vmem:[%s256 + $0x8e0] sm:$0xff]
        %v584 = vld [vmem:[%s256 + $0x8e8] sm:$0xff]
        %v585 = vld [vmem:[%s256 + $0x8f0] sm:$0xff]
        %v586 = vld [vmem:[%s256 + $0x8f8] sm:$0xff]
        %v587 = vld [vmem:[%s256 + $0x900] sm:$0xff]
        %v588 = vld [vmem:[%s256 + $0x908] sm:$0xff]
        %v589 = vld [vmem:[%s256 + $0x910] sm:$0xff]
        %v590 = vld [vmem:[%s256 + $0x918] sm:$0xff]
        %v591 = vld [vmem:[%s256 + $0x920] sm:$0xff]
        %v592 = vld [vmem:[%s256 + $0x928] sm:$0xff]
        %v593 = vld [vmem:[%s256 + $0x930] sm:$0xff]
        %v594 = vld [vmem:[%s256 + $0x938] sm:$0xff]
        %v595 = vld [vmem:[%s256 + $0x940] sm:$0xff]
        %v596 = vld [vmem:[%s256 + $0x948] sm:$0xff]
        %v597 = vld [vmem:[%s256 + $0x950] sm:$0xff]
        %v598 = vld [vmem:[%s256 + $0x958] sm:$0xff]
        %v599 = vld [vmem:[%s256 + $0x960] sm:$0xff]
        %v600 = vld [vmem:[%s256 + $0x968] sm:$0xff]
        %v601 = vld [vmem:[%s256 + $0x970] sm:$0xff]
        %v602 = vld [vmem:[%s256 + $0x978] sm:$0xff]
        %v603 = vld [vmem:[%s256 + $0x980] sm:$0xff]
        %v604 = vld [vmem:[%s256 + $0x988] sm:$0xff]
        %v605 = vld [vmem:[%s256 + $0x990] sm:$0xff]
        %v606 = vld [vmem:[%s256 + $0x998] sm:$0xff]
        %v607 = vld [vmem:[%s256 + $0x9a0] sm:$0xff]
        %v608 = vld [vmem:[%s256 + $0x9a8] sm:$0xff]
        %v609 = vld [vmem:[%s256 + $0x9b0] sm:$0xff]
        %v610 = vld [vmem:[%s256 + $0x9b8] sm:$0xff]
        %v611 = vld [vmem:[%s256 + $0x9c0] sm:$0xff]
        %v612 = vld [vmem:[%s256 + $0x9c8] sm:$0xff]
        %v613 = vld [vmem:[%s256 + $0x9d0] sm:$0xff]
        %v614 = vld [vmem:[%s256 + $0x9d8] sm:$0xff]
        %v615 = vld [vmem:[%s256 + $0x9e0] sm:$0xff]
        %v616 = vld [vmem:[%s256 + $0x9e8] sm:$0xff]
        %v617 = vld [vmem:[%s256 + $0x9f0] sm:$0xff]
        %v618 = vld [vmem:[%s256 + $0x9f8] sm:$0xff]
        %v619 = vld [vmem:[%s256 + $0xa00] sm:$0xff]
        %v620 = vld [vmem:[%s256 + $0xa08] sm:$0xff]
        %v621 = vld [vmem:[%s256 + $0xa10] sm:$0xff]
        %v622 = vld [vmem:[%s256 + $0xa18] sm:$0xff]
        %v623 = vld [vmem:[%s256 + $0xa20] sm:$0xff]
        %v624 = vld [vmem:[%s256 + $0xa28] sm:$0xff]
        %v625 = vld [vmem:[%s256 + $0xa30] sm:$0xff]
        %v626 = vld [vmem:[%s256 + $0xa38] sm:$0xff]
        %v627 = vld [vmem:[%s256 + $0xa40] sm:$0xff]
        %v628 = vld [vmem:[%s256 + $0xa48] sm:$0xff]
        %v629 = vld [vmem:[%s256 + $0xa50] sm:$0xff]
        %v630 = vld [vmem:[%s256 + $0xa58] sm:$0xff]
        %v631 = vld [vmem:[%s256 + $0xa60] sm:$0xff]
        %v632 = vld [vmem:[%s256 + $0xa68] sm:$0xff]
        %v633 = vld [vmem:[%s256 + $0xa70] sm:$0xff]
        %v634 = vld [vmem:[%s256 + $0xa78] sm:$0xff]
        %v635 = vld [vmem:[%s256 + $0xa80] sm:$0xff]
        %v636 = vld [vmem:[%s256 + $0xa88] sm:$0xff]
        %v637 = vld [vmem:[%s256 + $0xa90] sm:$0xff]
        %v638 = vld [vmem:[%s256 + $0xa98] sm:$0xff]
        %v639 = vld [vmem:[%s256 + $0xaa0] sm:$0xff]
        %v640 = vld [vmem:[%s256 + $0xaa8] sm:$0xff]
        %v641 = vld [vmem:[%s256 + $0xab0] sm:$0xff]
        %v642 = vld [vmem:[%s256 + $0xab8] sm:$0xff]
        %v643 = vld [vmem:[%s256 + $0xac0] sm:$0xff]
        %v644 = vld [vmem:[%s256 + $0xac8] sm:$0xff]
        %v645 = vld [vmem:[%s256 + $0xad0] sm:$0xff]
        %v646 = vld [vmem:[%s256 + $0xad8] sm:$0xff]
        %v647 = vld [vmem:[%s256 + $0xae0] sm:$0xff]
        %v648 = vld [vmem:[%s256 + $0xae8] sm:$0xff]
        %v649 = vld [vmem:[%s256 + $0xaf0] sm:$0xff]
        %v650 = vld [vmem:[%s256 + $0xaf8] sm:$0xff]
        %v651 = vld [vmem:[%s256 + $0xb00] sm:$0xff]
        %v652 = vld [vmem:[%s256 + $0xb08] sm:$0xff]
        %v653 = vld [vmem:[%s256 + $0xb10] sm:$0xff]
        %v654 = vld [vmem:[%s256 + $0xb18] sm:$0xff]
        %v655 = vld [vmem:[%s256 + $0xb20] sm:$0xff]
        %v656 = vld [vmem:[%s256 + $0xb28] sm:$0xff]
        %v657 = vld [vmem:[%s256 + $0xb30] sm:$0xff]
        %v658 = vld [vmem:[%s256 + $0xb38] sm:$0xff]
        %v659 = vld [vmem:[%s256 + $0xb40] sm:$0xff]
        %v660 = vld [vmem:[%s256 + $0xb48] sm:$0xff]
        %v661 = vld [vmem:[%s256 + $0xb50] sm:$0xff]
        %v662 = vld [vmem:[%s256 + $0xb58] sm:$0xff]
        %v663 = vld [vmem:[%s256 + $0xb60] sm:$0xff]
        %v664 = vld [vmem:[%s256 + $0xb68] sm:$0xff]
        %v665 = vld [vmem:[%s256 + $0xb70] sm:$0xff]
        %v666 = vld [vmem:[%s256 + $0xb78] sm:$0xff]
        %v667 = vld [vmem:[%s256 + $0xb80] sm:$0xff]
        %v668 = vld [vmem:[%s256 + $0xb88] sm:$0xff]
        %v669 = vld [vmem:[%s256 + $0xb90] sm:$0xff]
        %v670 = vld [vmem:[%s256 + $0xb98] sm:$0xff]
        %v671 = vld [vmem:[%s256 + $0xba0] sm:$0xff]
        %v672 = vld [vmem:[%s256 + $0xba8] sm:$0xff]
        %v673 = vld [vmem:[%s256 + $0xbb0] sm:$0xff]
        %v674 = vld [vmem:[%s256 + $0xbb8] sm:$0xff]
        %v675 = vld [vmem:[%s256 + $0xbc0] sm:$0xff]
        %v676 = vld [vmem:[%s256 + $0xbc8] sm:$0xff]
        %v677 = vld [vmem:[%s256 + $0xbd0] sm:$0xff]
        %v678 = vld [vmem:[%s256 + $0xbd8] sm:$0xff]
        %v679 = vld [vmem:[%s256 + $0xbe0] sm:$0xff]
        %v680 = vld [vmem:[%s256 + $0xbe8] sm:$0xff]
        %v681 = vld [vmem:[%s256 + $0xbf0] sm:$0xff]
        %v682 = vld [vmem:[%s256 + $0xbf8] sm:$0xff]
        %v683 = vld [vmem:[%s256 + $0xc00] sm:$0xff]
        %v684 = vld [vmem:[%s256 + $0xc08] sm:$0xff]
        %v685 = vld [vmem:[%s256 + $0xc10] sm:$0xff]
        %v686 = vld [vmem:[%s256 + $0xc18] sm:$0xff]
        %v687 = vld [vmem:[%s256 + $0xc20] sm:$0xff]
        %v688 = vld [vmem:[%s256 + $0xc28] sm:$0xff]
        %v689 = vld [vmem:[%s256 + $0xc30] sm:$0xff]
        %v690 = vld [vmem:[%s256 + $0xc38] sm:$0xff]
        %v691 = vld [vmem:[%s256 + $0xc40] sm:$0xff]
        %v692 = vld [vmem:[%s256 + $0xc48] sm:$0xff]
        %v693 = vld [vmem:[%s256 + $0xc50] sm:$0xff]
        %v694 = vld [vmem:[%s256 + $0xc58] sm:$0xff]
        %v695 = vld [vmem:[%s256 + $0xc60] sm:$0xff]
        %v696 = vld [vmem:[%s256 + $0xc68] sm:$0xff]
        %v697 = vld [vmem:[%s256 + $0xc70] sm:$0xff]
        %v698 = vld [vmem:[%s256 + $0xc78] sm:$0xff]
        %v699 = vld [vmem:[%s256 + $0xc80] sm:$0xff]
        %v700 = vld [vmem:[%s256 + $0xc88] sm:$0xff]
        %v701 = vld [vmem:[%s256 + $0xc90] sm:$0xff]
        %v702 = vld [vmem:[%s256 + $0xc98] sm:$0xff]
        %v703 = vld [vmem:[%s256 + $0xca0] sm:$0xff]
        %v704 = vld [vmem:[%s256 + $0xca8] sm:$0xff]
        %v705 = vld [vmem:[%s256 + $0xcb0] sm:$0xff]
        %v706 = vld [vmem:[%s256 + $0xcb8] sm:$0xff]
        %v707 = vld [vmem:[%s256 + $0xcc0] sm:$0xff]
        %v708 = vld [vmem:[%s256 + $0xcc8] sm:$0xff]
        %v709 = vld [vmem:[%s256 + $0xcd0] sm:$0xff]
        %v710 = vld [vmem:[%s256 + $0xcd8] sm:$0xff]
        %v711 = vld [vmem:[%s256 + $0xce0] sm:$0xff]
        %v712 = vld [vmem:[%s256 + $0xce8] sm:$0xff]
        %v713 = vld [vmem:[%s256 + $0xcf0] sm:$0xff]
        %v714 = vld [vmem:[%s256 + $0xcf8] sm:$0xff]
        %v715 = vld [vmem:[%s256 + $0xd00] sm:$0xff]
        %v716 = vld [vmem:[%s256 + $0xd08] sm:$0xff]
        %v717 = vld [vmem:[%s256 + $0xd10] sm:$0xff]
        %v718 = vld [vmem:[%s256 + $0xd18] sm:$0xff]
        %v719 = vld [vmem:[%s256 + $0xd20] sm:$0xff]
        %v720 = vld [vmem:[%s256 + $0xd28] sm:$0xff]
        %v721 = vld [vmem:[%s256 + $0xd30] sm:$0xff]
        %v722 = vld [vmem:[%s256 + $0xd38] sm:$0xff]
        %v723 = vld [vmem:[%s256 + $0xd40] sm:$0xff]
        %v724 = vld [vmem:[%s256 + $0xd48] sm:$0xff]
        %v725 = vld [vmem:[%s256 + $0xd50] sm:$0xff]
        %v726 = vld [vmem:[%s256 + $0xd58] sm:$0xff]
        %v727 = vld [vmem:[%s256 + $0xd60] sm:$0xff]
        %v728 = vld [vmem:[%s256 + $0xd68] sm:$0xff]
        %v729 = vld [vmem:[%s256 + $0xd70] sm:$0xff]
        %v730 = vld [vmem:[%s256 + $0xd78] sm:$0xff]
        %v731 = vld [vmem:[%s256 + $0xd80] sm:$0xff]
        %v732 = vld [vmem:[%s256 + $0xd88] sm:$0xff]
        %v733 = vld [vmem:[%s256 + $0xd90] sm:$0xff]
        %v734 = vld [vmem:[%s256 + $0xd98] sm:$0xff]
        %v735 = vld [vmem:[%s256 + $0xda0] sm:$0xff]
        %v736 = vld [vmem:[%s256 + $0xda8] sm:$0xff]
        %v737 = vld [vmem:[%s256 + $0xdb0] sm:$0xff]
        %v738 = vld [vmem:[%s256 + $0xdb8] sm:$0xff]
        %v739 = vld [vmem:[%s256 + $0xdc0] sm:$0xff]
        %v740 = vld [vmem:[%s256 + $0xdc8] sm:$0xff]
        %v741 = vld [vmem:[%s256 + $0xdd0] sm:$0xff]
        %v742 = vld [vmem:[%s256 + $0xdd8] sm:$0xff]
        %v743 = vld [vmem:[%s256 + $0xde0] sm:$0xff]
        %v744 = vld [vmem:[%s256 + $0xde8] sm:$0xff]
        %v745 = vld [vmem:[%s256 + $0xdf0] sm:$0xff]
        %v746 = vld [vmem:[%s256 + $0xdf8] sm:$0xff]
        %v747 = vld [vmem:[%s256 + $0xe00] sm:$0xff]
        %v748 = vld [vmem:[%s256 + $0xe08] sm:$0xff]
        %v749 = vld [vmem:[%s256 + $0xe10] sm:$0xff]
        %v750 = vld [vmem:[%s256 + $0xe18] sm:$0xff]
        %v751 = vld [vmem:[%s256 + $0xe20] sm:$0xff]
        %v752 = vld [vmem:[%s256 + $0xe28] sm:$0xff]
        %v753 = vld [vmem:[%s256 + $0xe30] sm:$0xff]
        %v754 = vld [vmem:[%s256 + $0xe38] sm:$0xff]
        %v755 = vld [vmem:[%s256 + $0xe40] sm:$0xff]
        %v756 = vld [vmem:[%s256 + $0xe48] sm:$0xff]
        %v757 = vld [vmem:[%s256 + $0xe50] sm:$0xff]
        %v758 = vld [vmem:[%s256 + $0xe58] sm:$0xff]
        %v759 = vld [vmem:[%s256 + $0xe60] sm:$0xff]
        %v760 = vld [vmem:[%s256 + $0xe68] sm:$0xff]
        %v761 = vld [vmem:[%s256 + $0xe70] sm:$0xff]
        %v762 = vld [vmem:[%s256 + $0xe78] sm:$0xff]
        %v763 = vld [vmem:[%s256 + $0xe80] sm:$0xff]
        %v764 = vld [vmem:[%s256 + $0xe88] sm:$0xff]
        %v765 = vld [vmem:[%s256 + $0xe90] sm:$0xff]
        %v766 = vld [vmem:[%s256 + $0xe98] sm:$0xff]
        %v767 = vld [vmem:[%s256 + $0xea0] sm:$0xff]
        %v768 = vld [vmem:[%s256 + $0xea8] sm:$0xff]
        %v769 = vld [vmem:[%s256 + $0xeb0] sm:$0xff]
        %v770 = vld [vmem:[%s256 + $0xeb8] sm:$0xff]
        %v771 = vld [vmem:[%s256 + $0xec0] sm:$0xff]
        %v772 = vld [vmem:[%s256 + $0xec8] sm:$0xff]
        %v773 = vld [vmem:[%s256 + $0xed0] sm:$0xff]
        %v774 = vld [vmem:[%s256 + $0xed8] sm:$0xff]
        %v775 = vld [vmem:[%s256 + $0xee0] sm:$0xff]
        %v776 = vld [vmem:[%s256 + $0xee8] sm:$0xff]
        %v777 = vld [vmem:[%s256 + $0xef0] sm:$0xff]
        %v778 = vld [vmem:[%s256 + $0xef8] sm:$0xff]
        %v779 = vld [vmem:[%s256 + $0xf00] sm:$0xff]
        %v780 = vld [vmem:[%s256 + $0xf08] sm:$0xff]
        %v781 = vld [vmem:[%s256 + $0xf10] sm:$0xff]
        %v782 = vld [vmem:[%s256 + $0xf18] sm:$0xff]
        %v783 = vld [vmem:[%s256 + $0xf20] sm:$0xff]
        %v784 = vld [vmem:[%s256 + $0xf28] sm:$0xff]
        %v785 = vld [vmem:[%s256 + $0xf30] sm:$0xff]
        %v786 = vld [vmem:[%s256 + $0xf38] sm:$0xff]
        %v787 = vld [vmem:[%s256 + $0xf40] sm:$0xff]
        %v788 = vld [vmem:[%s256 + $0xf48] sm:$0xff]
        %v789 = vld [vmem:[%s256 + $0xf50] sm:$0xff]
        %v790 = vld [vmem:[%s256 + $0xf58] sm:$0xff]
        %v791 = vld [vmem:[%s256 + $0xf60] sm:$0xff]
        %v792 = vld [vmem:[%s256 + $0xf68] sm:$0xff]
        %v793 = vld [vmem:[%s256 + $0xf70] sm:$0xff]
        %v794 = vld [vmem:[%s256 + $0xf78] sm:$0xff]
        %v795 = vld [vmem:[%s256 + $0xf80] sm:$0xff]
        %v796 = vld [vmem:[%s256 + $0xf88] sm:$0xff]
        %v797 = vld [vmem:[%s256 + $0xf90] sm:$0xff]
        %v798 = vld [vmem:[%s256 + $0xf98] sm:$0xff]
        %v799 = vld [vmem:[%s256 + $0xfa0] sm:$0xff]
        %v800 = vld [vmem:[%s256 + $0xfa8] sm:$0xff]
        %v801 = vld [vmem:[%s256 + $0xfb0] sm:$0xff]
        %v802 = vld [vmem:[%s256 + $0xfb8] sm:$0xff]
        %v803 = vld [vmem:[%s256 + $0xfc0] sm:$0xff]
        %v804 = vld [vmem:[%s256 + $0xfc8] sm:$0xff]
        %v805 = vld [vmem:[%s256 + $0xfd0] sm:$0xff]
        %v806 = vld [vmem:[%s256 + $0xfd8] sm:$0xff]
        %v807 = vld [vmem:[%s256 + $0xfe0] sm:$0xff]
        %v808 = vld [vmem:[%s256 + $0xfe8] sm:$0xff]
        %v809 = vld [vmem:[%s256 + $0xff0] sm:$0xff]
        %v810 = vld [vmem:[%s256 + $0xff8] sm:$0xff]
        %v827 = vunpack.c.l.b16 %v283
        %v828 = vunpack.c.h.b16 %v283
        %v829 = vunpack.c.l.b16 %v284
        %v830 = vunpack.c.h.b16 %v284
        %v831 = vunpack.c.l.b16 %v285
        %v832 = vunpack.c.h.b16 %v285
        %v833 = vunpack.c.l.b16 %v286
        %v834 = vunpack.c.h.b16 %v286
        %v835 = vunpack.c.l.b16 %v287
        %v836 = vunpack.c.h.b16 %v287
        %v837 = vunpack.c.l.b16 %v288
        %v838 = vunpack.c.h.b16 %v288
        %v839 = vunpack.c.l.b16 %v289
        %v840 = vunpack.c.h.b16 %v289
        %v841 = vunpack.c.l.b16 %v290
        %v842 = vunpack.c.h.b16 %v290
        %v843 = vunpack.c.l.b16 %v291
        %v844 = vunpack.c.h.b16 %v291
        %v845 = vunpack.c.l.b16 %v292
        %v846 = vunpack.c.h.b16 %v292
        %v847 = vunpack.c.l.b16 %v293
        %v848 = vunpack.c.h.b16 %v293
        %v849 = vunpack.c.l.b16 %v294
        %v850 = vunpack.c.h.b16 %v294
        %v851 = vunpack.c.l.b16 %v295
        %v852 = vunpack.c.h.b16 %v295
        %v853 = vunpack.c.l.b16 %v296
        %v854 = vunpack.c.h.b16 %v296
        %v855 = vunpack.c.l.b16 %v297
        %v856 = vunpack.c.h.b16 %v297
        %v857 = vunpack.c.l.b16 %v298
        %v858 = vunpack.c.h.b16 %v298
        %v859 = vpack.c.b16 %v843, %v827
        %v860 = vpack.c.b16 %v844, %v828
        %v861 = vpack.c.b16 %v845, %v829
        %v862 = vpack.c.b16 %v846, %v830
        %v863 = vpack.c.b16 %v847, %v831
        %v864 = vpack.c.b16 %v848, %v832
        %v865 = vpack.c.b16 %v849, %v833
        %v866 = vpack.c.b16 %v850, %v834
        %v867 = vpack.c.b16 %v851, %v835
        %v868 = vpack.c.b16 %v852, %v836
        %v869 = vpack.c.b16 %v853, %v837
        %v870 = vpack.c.b16 %v854, %v838
        %v871 = vpack.c.b16 %v855, %v839
        %v872 = vpack.c.b16 %v856, %v840
        %v873 = vpack.c.b16 %v857, %v841
        %v874 = vpack.c.b16 %v858, %v842
        %v1403 = vunpack.c.l.b16 %v299
        %v1404 = vunpack.c.h.b16 %v299
        %v1405 = vunpack.c.l.b16 %v300
        %v1406 = vunpack.c.h.b16 %v300
        %v1407 = vunpack.c.l.b16 %v301
        %v1408 = vunpack.c.h.b16 %v301
        %v1409 = vunpack.c.l.b16 %v302
        %v1410 = vunpack.c.h.b16 %v302
        %v1411 = vunpack.c.l.b16 %v303
        %v1412 = vunpack.c.h.b16 %v303
        %v1413 = vunpack.c.l.b16 %v304
        %v1414 = vunpack.c.h.b16 %v304
        %v1415 = vunpack.c.l.b16 %v305
        %v1416 = vunpack.c.h.b16 %v305
        %v1417 = vunpack.c.l.b16 %v306
        %v1418 = vunpack.c.h.b16 %v306
        %v1419 = vunpack.c.l.b16 %v307
        %v1420 = vunpack.c.h.b16 %v307
        %v1421 = vunpack.c.l.b16 %v308
        %v1422 = vunpack.c.h.b16 %v308
        %v1423 = vunpack.c.l.b16 %v309
        %v1424 = vunpack.c.h.b16 %v309
        %v1425 = vunpack.c.l.b16 %v310
        %v1426 = vunpack.c.h.b16 %v310
        %v1427 = vunpack.c.l.b16 %v311
        %v1428 = vunpack.c.h.b16 %v311
        %v1429 = vunpack.c.l.b16 %v312
        %v1430 = vunpack.c.h.b16 %v312
        %v1431 = vunpack.c.l.b16 %v313
        %v1432 = vunpack.c.h.b16 %v313
        %v1433 = vunpack.c.l.b16 %v314
        %v1434 = vunpack.c.h.b16 %v314
        %v1435 = vunpack.c.l.b16 %v315
        %v1436 = vunpack.c.h.b16 %v315
        %v1437 = vunpack.c.l.b16 %v316
        %v1438 = vunpack.c.h.b16 %v316
        %v1439 = vunpack.c.l.b16 %v317
        %v1440 = vunpack.c.h.b16 %v317
        %v1441 = vunpack.c.l.b16 %v318
        %v1442 = vunpack.c.h.b16 %v318
        %v1443 = vunpack.c.l.b16 %v319
        %v1444 = vunpack.c.h.b16 %v319
        %v1445 = vunpack.c.l.b16 %v320
        %v1446 = vunpack.c.h.b16 %v320
        %v1447 = vunpack.c.l.b16 %v321
        %v1448 = vunpack.c.h.b16 %v321
        %v1449 = vunpack.c.l.b16 %v322
        %v1450 = vunpack.c.h.b16 %v322
        %v1451 = vunpack.c.l.b16 %v323
        %v1452 = vunpack.c.h.b16 %v323
        %v1453 = vunpack.c.l.b16 %v324
        %v1454 = vunpack.c.h.b16 %v324
        %v1455 = vunpack.c.l.b16 %v325
        %v1456 = vunpack.c.h.b16 %v325
        %v1457 = vunpack.c.l.b16 %v326
        %v1458 = vunpack.c.h.b16 %v326
        %v1459 = vunpack.c.l.b16 %v327
        %v1460 = vunpack.c.h.b16 %v327
        %v1461 = vunpack.c.l.b16 %v328
        %v1462 = vunpack.c.h.b16 %v328
        %v1463 = vunpack.c.l.b16 %v329
        %v1464 = vunpack.c.h.b16 %v329
        %v1465 = vunpack.c.l.b16 %v330
        %v1466 = vunpack.c.h.b16 %v330
        %v1467 = vunpack.c.l.b16 %v331
        %v1468 = vunpack.c.h.b16 %v331
        %v1469 = vunpack.c.l.b16 %v332
        %v1470 = vunpack.c.h.b16 %v332
        %v1471 = vunpack.c.l.b16 %v333
        %v1472 = vunpack.c.h.b16 %v333
        %v1473 = vunpack.c.l.b16 %v334
        %v1474 = vunpack.c.h.b16 %v334
        %v1475 = vunpack.c.l.b16 %v335
        %v1476 = vunpack.c.h.b16 %v335
        %v1477 = vunpack.c.l.b16 %v336
        %v1478 = vunpack.c.h.b16 %v336
        %v1479 = vunpack.c.l.b16 %v337
        %v1480 = vunpack.c.h.b16 %v337
        %v1481 = vunpack.c.l.b16 %v338
        %v1482 = vunpack.c.h.b16 %v338
        %v1483 = vunpack.c.l.b16 %v339
        %v1484 = vunpack.c.h.b16 %v339
        %v1485 = vunpack.c.l.b16 %v340
        %v1486 = vunpack.c.h.b16 %v340
        %v1487 = vunpack.c.l.b16 %v341
        %v1488 = vunpack.c.h.b16 %v341
        %v1489 = vunpack.c.l.b16 %v342
        %v1490 = vunpack.c.h.b16 %v342
        %v1491 = vunpack.c.l.b16 %v343
        %v1492 = vunpack.c.h.b16 %v343
        %v1493 = vunpack.c.l.b16 %v344
        %v1494 = vunpack.c.h.b16 %v344
        %v1495 = vunpack.c.l.b16 %v345
        %v1496 = vunpack.c.h.b16 %v345
        %v1497 = vunpack.c.l.b16 %v346
        %v1498 = vunpack.c.h.b16 %v346
        %v1499 = vunpack.c.l.b16 %v347
        %v1500 = vunpack.c.h.b16 %v347
        %v1501 = vunpack.c.l.b16 %v348
        %v1502 = vunpack.c.h.b16 %v348
        %v1503 = vunpack.c.l.b16 %v349
        %v1504 = vunpack.c.h.b16 %v349
        %v1505 = vunpack.c.l.b16 %v350
        %v1506 = vunpack.c.h.b16 %v350
        %v1507 = vunpack.c.l.b16 %v351
        %v1508 = vunpack.c.h.b16 %v351
        %v1509 = vunpack.c.l.b16 %v352
        %v1510 = vunpack.c.h.b16 %v352
        %v1511 = vunpack.c.l.b16 %v353
        %v1512 = vunpack.c.h.b16 %v353
        %v1513 = vunpack.c.l.b16 %v354
        %v1514 = vunpack.c.h.b16 %v354
        %v1515 = vunpack.c.l.b16 %v355
        %v1516 = vunpack.c.h.b16 %v355
        %v1517 = vunpack.c.l.b16 %v356
        %v1518 = vunpack.c.h.b16 %v356
        %v1519 = vunpack.c.l.b16 %v357
        %v1520 = vunpack.c.h.b16 %v357
        %v1521 = vunpack.c.l.b16 %v358
        %v1522 = vunpack.c.h.b16 %v358
        %v1523 = vunpack.c.l.b16 %v359
        %v1524 = vunpack.c.h.b16 %v359
        %v1525 = vunpack.c.l.b16 %v360
        %v1526 = vunpack.c.h.b16 %v360
        %v1527 = vunpack.c.l.b16 %v361
        %v1528 = vunpack.c.h.b16 %v361
        %v1529 = vunpack.c.l.b16 %v362
        %v1530 = vunpack.c.h.b16 %v362
        %v1531 = vunpack.c.l.b16 %v363
        %v1532 = vunpack.c.h.b16 %v363
        %v1533 = vunpack.c.l.b16 %v364
        %v1534 = vunpack.c.h.b16 %v364
        %v1535 = vunpack.c.l.b16 %v365
        %v1536 = vunpack.c.h.b16 %v365
        %v1537 = vunpack.c.l.b16 %v366
        %v1538 = vunpack.c.h.b16 %v366
        %v1539 = vunpack.c.l.b16 %v367
        %v1540 = vunpack.c.h.b16 %v367
        %v1541 = vunpack.c.l.b16 %v368
        %v1542 = vunpack.c.h.b16 %v368
        %v1543 = vunpack.c.l.b16 %v369
        %v1544 = vunpack.c.h.b16 %v369
        %v1545 = vunpack.c.l.b16 %v370
        %v1546 = vunpack.c.h.b16 %v370
        %v1547 = vunpack.c.l.b16 %v371
        %v1548 = vunpack.c.h.b16 %v371
        %v1549 = vunpack.c.l.b16 %v372
        %v1550 = vunpack.c.h.b16 %v372
        %v1551 = vunpack.c.l.b16 %v373
        %v1552 = vunpack.c.h.b16 %v373
        %v1553 = vunpack.c.l.b16 %v374
        %v1554 = vunpack.c.h.b16 %v374
        %v1555 = vunpack.c.l.b16 %v375
        %v1556 = vunpack.c.h.b16 %v375
        %v1557 = vunpack.c.l.b16 %v376
        %v1558 = vunpack.c.h.b16 %v376
        %v1559 = vunpack.c.l.b16 %v377
        %v1560 = vunpack.c.h.b16 %v377
        %v1561 = vunpack.c.l.b16 %v378
        %v1562 = vunpack.c.h.b16 %v378
        %v1563 = vunpack.c.l.b16 %v379
        %v1564 = vunpack.c.h.b16 %v379
        %v1565 = vunpack.c.l.b16 %v380
        %v1566 = vunpack.c.h.b16 %v380
        %v1567 = vunpack.c.l.b16 %v381
        %v1568 = vunpack.c.h.b16 %v381
        %v1569 = vunpack.c.l.b16 %v382
        %v1570 = vunpack.c.h.b16 %v382
        %v1571 = vunpack.c.l.b16 %v383
        %v1572 = vunpack.c.h.b16 %v383
        %v1573 = vunpack.c.l.b16 %v384
        %v1574 = vunpack.c.h.b16 %v384
        %v1575 = vunpack.c.l.b16 %v385
        %v1576 = vunpack.c.h.b16 %v385
        %v1577 = vunpack.c.l.b16 %v386
        %v1578 = vunpack.c.h.b16 %v386
        %v1579 = vunpack.c.l.b16 %v387
        %v1580 = vunpack.c.h.b16 %v387
        %v1581 = vunpack.c.l.b16 %v388
        %v1582 = vunpack.c.h.b16 %v388
        %v1583 = vunpack.c.l.b16 %v389
        %v1584 = vunpack.c.h.b16 %v389
        %v1585 = vunpack.c.l.b16 %v390
        %v1586 = vunpack.c.h.b16 %v390
        %v1587 = vunpack.c.l.b16 %v391
        %v1588 = vunpack.c.h.b16 %v391
        %v1589 = vunpack.c.l.b16 %v392
        %v1590 = vunpack.c.h.b16 %v392
        %v1591 = vunpack.c.l.b16 %v393
        %v1592 = vunpack.c.h.b16 %v393
        %v1593 = vunpack.c.l.b16 %v394
        %v1594 = vunpack.c.h.b16 %v394
        %v1595 = vunpack.c.l.b16 %v395
        %v1596 = vunpack.c.h.b16 %v395
        %v1597 = vunpack.c.l.b16 %v396
        %v1598 = vunpack.c.h.b16 %v396
        %v1599 = vunpack.c.l.b16 %v397
        %v1600 = vunpack.c.h.b16 %v397
        %v1601 = vunpack.c.l.b16 %v398
        %v1602 = vunpack.c.h.b16 %v398
        %v1603 = vunpack.c.l.b16 %v399
        %v1604 = vunpack.c.h.b16 %v399
        %v1605 = vunpack.c.l.b16 %v400
        %v1606 = vunpack.c.h.b16 %v400
        %v1607 = vunpack.c.l.b16 %v401
        %v1608 = vunpack.c.h.b16 %v401
        %v1609 = vunpack.c.l.b16 %v402
        %v1610 = vunpack.c.h.b16 %v402
        %v1611 = vunpack.c.l.b16 %v403
        %v1612 = vunpack.c.h.b16 %v403
        %v1613 = vunpack.c.l.b16 %v404
        %v1614 = vunpack.c.h.b16 %v404
        %v1615 = vunpack.c.l.b16 %v405
        %v1616 = vunpack.c.h.b16 %v405
        %v1617 = vunpack.c.l.b16 %v406
        %v1618 = vunpack.c.h.b16 %v406
        %v1619 = vunpack.c.l.b16 %v407
        %v1620 = vunpack.c.h.b16 %v407
        %v1621 = vunpack.c.l.b16 %v408
        %v1622 = vunpack.c.h.b16 %v408
        %v1623 = vunpack.c.l.b16 %v409
        %v1624 = vunpack.c.h.b16 %v409
        %v1625 = vunpack.c.l.b16 %v410
        %v1626 = vunpack.c.h.b16 %v410
        %v1627 = vunpack.c.l.b16 %v411
        %v1628 = vunpack.c.h.b16 %v411
        %v1629 = vunpack.c.l.b16 %v412
        %v1630 = vunpack.c.h.b16 %v412
        %v1631 = vunpack.c.l.b16 %v413
        %v1632 = vunpack.c.h.b16 %v413
        %v1633 = vunpack.c.l.b16 %v414
        %v1634 = vunpack.c.h.b16 %v414
        %v1635 = vunpack.c.l.b16 %v415
        %v1636 = vunpack.c.h.b16 %v415
        %v1637 = vunpack.c.l.b16 %v416
        %v1638 = vunpack.c.h.b16 %v416
        %v1639 = vunpack.c.l.b16 %v417
        %v1640 = vunpack.c.h.b16 %v417
        %v1641 = vunpack.c.l.b16 %v418
        %v1642 = vunpack.c.h.b16 %v418
        %v1643 = vunpack.c.l.b16 %v419
        %v1644 = vunpack.c.h.b16 %v419
        %v1645 = vunpack.c.l.b16 %v420
        %v1646 = vunpack.c.h.b16 %v420
        %v1647 = vunpack.c.l.b16 %v421
        %v1648 = vunpack.c.h.b16 %v421
        %v1649 = vunpack.c.l.b16 %v422
        %v1650 = vunpack.c.h.b16 %v422
        %v1651 = vunpack.c.l.b16 %v423
        %v1652 = vunpack.c.h.b16 %v423
        %v1653 = vunpack.c.l.b16 %v424
        %v1654 = vunpack.c.h.b16 %v424
        %v1655 = vunpack.c.l.b16 %v425
        %v1656 = vunpack.c.h.b16 %v425
        %v1657 = vunpack.c.l.b16 %v426
        %v1658 = vunpack.c.h.b16 %v426
        %v1659 = vunpack.c.l.b16 %v427
        %v1660 = vunpack.c.h.b16 %v427
        %v1661 = vunpack.c.l.b16 %v428
        %v1662 = vunpack.c.h.b16 %v428
        %v1663 = vunpack.c.l.b16 %v429
        %v1664 = vunpack.c.h.b16 %v429
        %v1665 = vunpack.c.l.b16 %v430
        %v1666 = vunpack.c.h.b16 %v430
        %v1667 = vunpack.c.l.b16 %v431
        %v1668 = vunpack.c.h.b16 %v431
        %v1669 = vunpack.c.l.b16 %v432
        %v1670 = vunpack.c.h.b16 %v432
        %v1671 = vunpack.c.l.b16 %v433
        %v1672 = vunpack.c.h.b16 %v433
        %v1673 = vunpack.c.l.b16 %v434
        %v1674 = vunpack.c.h.b16 %v434
        %v1675 = vunpack.c.l.b16 %v435
        %v1676 = vunpack.c.h.b16 %v435
        %v1677 = vunpack.c.l.b16 %v436
        %v1678 = vunpack.c.h.b16 %v436
        %v1679 = vunpack.c.l.b16 %v437
        %v1680 = vunpack.c.h.b16 %v437
        %v1681 = vunpack.c.l.b16 %v438
        %v1682 = vunpack.c.h.b16 %v438
        %v1683 = vunpack.c.l.b16 %v439
        %v1684 = vunpack.c.h.b16 %v439
        %v1685 = vunpack.c.l.b16 %v440
        %v1686 = vunpack.c.h.b16 %v440
        %v1687 = vunpack.c.l.b16 %v441
        %v1688 = vunpack.c.h.b16 %v441
        %v1689 = vunpack.c.l.b16 %v442
        %v1690 = vunpack.c.h.b16 %v442
        %v1691 = vunpack.c.l.b16 %v443
        %v1692 = vunpack.c.h.b16 %v443
        %v1693 = vunpack.c.l.b16 %v444
        %v1694 = vunpack.c.h.b16 %v444
        %v1695 = vunpack.c.l.b16 %v445
        %v1696 = vunpack.c.h.b16 %v445
        %v1697 = vunpack.c.l.b16 %v446
        %v1698 = vunpack.c.h.b16 %v446
        %v1699 = vunpack.c.l.b16 %v447
        %v1700 = vunpack.c.h.b16 %v447
        %v1701 = vunpack.c.l.b16 %v448
        %v1702 = vunpack.c.h.b16 %v448
        %v1703 = vunpack.c.l.b16 %v449
        %v1704 = vunpack.c.h.b16 %v449
        %v1705 = vunpack.c.l.b16 %v450
        %v1706 = vunpack.c.h.b16 %v450
        %v1707 = vunpack.c.l.b16 %v451
        %v1708 = vunpack.c.h.b16 %v451
        %v1709 = vunpack.c.l.b16 %v452
        %v1710 = vunpack.c.h.b16 %v452
        %v1711 = vunpack.c.l.b16 %v453
        %v1712 = vunpack.c.h.b16 %v453
        %v1713 = vunpack.c.l.b16 %v454
        %v1714 = vunpack.c.h.b16 %v454
        %v1715 = vunpack.c.l.b16 %v455
        %v1716 = vunpack.c.h.b16 %v455
        %v1717 = vunpack.c.l.b16 %v456
        %v1718 = vunpack.c.h.b16 %v456
        %v1719 = vunpack.c.l.b16 %v457
        %v1720 = vunpack.c.h.b16 %v457
        %v1721 = vunpack.c.l.b16 %v458
        %v1722 = vunpack.c.h.b16 %v458
        %v1723 = vunpack.c.l.b16 %v459
        %v1724 = vunpack.c.h.b16 %v459
        %v1725 = vunpack.c.l.b16 %v460
        %v1726 = vunpack.c.h.b16 %v460
        %v1727 = vunpack.c.l.b16 %v461
        %v1728 = vunpack.c.h.b16 %v461
        %v1729 = vunpack.c.l.b16 %v462
        %v1730 = vunpack.c.h.b16 %v462
        %v1731 = vunpack.c.l.b16 %v463
        %v1732 = vunpack.c.h.b16 %v463
        %v1733 = vunpack.c.l.b16 %v464
        %v1734 = vunpack.c.h.b16 %v464
        %v1735 = vunpack.c.l.b16 %v465
        %v1736 = vunpack.c.h.b16 %v465
        %v1737 = vunpack.c.l.b16 %v466
        %v1738 = vunpack.c.h.b16 %v466
        %v1739 = vunpack.c.l.b16 %v467
        %v1740 = vunpack.c.h.b16 %v467
        %v1741 = vunpack.c.l.b16 %v468
        %v1742 = vunpack.c.h.b16 %v468
        %v1743 = vunpack.c.l.b16 %v469
        %v1744 = vunpack.c.h.b16 %v469
        %v1745 = vunpack.c.l.b16 %v470
        %v1746 = vunpack.c.h.b16 %v470
        %v1747 = vunpack.c.l.b16 %v471
        %v1748 = vunpack.c.h.b16 %v471
        %v1749 = vunpack.c.l.b16 %v472
        %v1750 = vunpack.c.h.b16 %v472
        %v1751 = vunpack.c.l.b16 %v473
        %v1752 = vunpack.c.h.b16 %v473
        %v1753 = vunpack.c.l.b16 %v474
        %v1754 = vunpack.c.h.b16 %v474
        %v1755 = vunpack.c.l.b16 %v475
        %v1756 = vunpack.c.h.b16 %v475
        %v1757 = vunpack.c.l.b16 %v476
        %v1758 = vunpack.c.h.b16 %v476
        %v1759 = vunpack.c.l.b16 %v477
        %v1760 = vunpack.c.h.b16 %v477
        %v1761 = vunpack.c.l.b16 %v478
        %v1762 = vunpack.c.h.b16 %v478
        %v1763 = vunpack.c.l.b16 %v479
        %v1764 = vunpack.c.h.b16 %v479
        %v1765 = vunpack.c.l.b16 %v480
        %v1766 = vunpack.c.h.b16 %v480
        %v1767 = vunpack.c.l.b16 %v481
        %v1768 = vunpack.c.h.b16 %v481
        %v1769 = vunpack.c.l.b16 %v482
        %v1770 = vunpack.c.h.b16 %v482
        %v1771 = vunpack.c.l.b16 %v483
        %v1772 = vunpack.c.h.b16 %v483
        %v1773 = vunpack.c.l.b16 %v484
        %v1774 = vunpack.c.h.b16 %v484
        %v1775 = vunpack.c.l.b16 %v485
        %v1776 = vunpack.c.h.b16 %v485
        %v1777 = vunpack.c.l.b16 %v486
        %v1778 = vunpack.c.h.b16 %v486
        %v1779 = vunpack.c.l.b16 %v487
        %v1780 = vunpack.c.h.b16 %v487
        %v1781 = vunpack.c.l.b16 %v488
        %v1782 = vunpack.c.h.b16 %v488
        %v1783 = vunpack.c.l.b16 %v489
        %v1784 = vunpack.c.h.b16 %v489
        %v1785 = vunpack.c.l.b16 %v490
        %v1786 = vunpack.c.h.b16 %v490
        %v1787 = vunpack.c.l.b16 %v491
        %v1788 = vunpack.c.h.b16 %v491
        %v1789 = vunpack.c.l.b16 %v492
        %v1790 = vunpack.c.h.b16 %v492
        %v1791 = vunpack.c.l.b16 %v493
        %v1792 = vunpack.c.h.b16 %v493
        %v1793 = vunpack.c.l.b16 %v494
        %v1794 = vunpack.c.h.b16 %v494
        %v1795 = vunpack.c.l.b16 %v495
        %v1796 = vunpack.c.h.b16 %v495
        %v1797 = vunpack.c.l.b16 %v496
        %v1798 = vunpack.c.h.b16 %v496
        %v1799 = vunpack.c.l.b16 %v497
        %v1800 = vunpack.c.h.b16 %v497
        %v1801 = vunpack.c.l.b16 %v498
        %v1802 = vunpack.c.h.b16 %v498
        %v1803 = vunpack.c.l.b16 %v499
        %v1804 = vunpack.c.h.b16 %v499
        %v1805 = vunpack.c.l.b16 %v500
        %v1806 = vunpack.c.h.b16 %v500
        %v1807 = vunpack.c.l.b16 %v501
        %v1808 = vunpack.c.h.b16 %v501
        %v1809 = vunpack.c.l.b16 %v502
        %v1810 = vunpack.c.h.b16 %v502
        %v1811 = vunpack.c.l.b16 %v503
        %v1812 = vunpack.c.h.b16 %v503
        %v1813 = vunpack.c.l.b16 %v504
        %v1814 = vunpack.c.h.b16 %v504
        %v1815 = vunpack.c.l.b16 %v505
        %v1816 = vunpack.c.h.b16 %v505
        %v1817 = vunpack.c.l.b16 %v506
        %v1818 = vunpack.c.h.b16 %v506
        %v1819 = vunpack.c.l.b16 %v507
        %v1820 = vunpack.c.h.b16 %v507
        %v1821 = vunpack.c.l.b16 %v508
        %v1822 = vunpack.c.h.b16 %v508
        %v1823 = vunpack.c.l.b16 %v509
        %v1824 = vunpack.c.h.b16 %v509
        %v1825 = vunpack.c.l.b16 %v510
        %v1826 = vunpack.c.h.b16 %v510
        %v1827 = vunpack.c.l.b16 %v511
        %v1828 = vunpack.c.h.b16 %v511
        %v1829 = vunpack.c.l.b16 %v512
        %v1830 = vunpack.c.h.b16 %v512
        %v1831 = vunpack.c.l.b16 %v513
        %v1832 = vunpack.c.h.b16 %v513
        %v1833 = vunpack.c.l.b16 %v514
        %v1834 = vunpack.c.h.b16 %v514
        %v1835 = vunpack.c.l.b16 %v515
        %v1836 = vunpack.c.h.b16 %v515
        %v1837 = vunpack.c.l.b16 %v516
        %v1838 = vunpack.c.h.b16 %v516
        %v1839 = vunpack.c.l.b16 %v517
        %v1840 = vunpack.c.h.b16 %v517
        %v1841 = vunpack.c.l.b16 %v518
        %v1842 = vunpack.c.h.b16 %v518
        %v1843 = vunpack.c.l.b16 %v519
        %v1844 = vunpack.c.h.b16 %v519
        %v1845 = vunpack.c.l.b16 %v520
        %v1846 = vunpack.c.h.b16 %v520
        %v1847 = vunpack.c.l.b16 %v521
        %v1848 = vunpack.c.h.b16 %v521
        %v1849 = vunpack.c.l.b16 %v522
        %v1850 = vunpack.c.h.b16 %v522
        %v1851 = vunpack.c.l.b16 %v523
        %v1852 = vunpack.c.h.b16 %v523
        %v1853 = vunpack.c.l.b16 %v524
        %v1854 = vunpack.c.h.b16 %v524
        %v1855 = vunpack.c.l.b16 %v525
        %v1856 = vunpack.c.h.b16 %v525
        %v1857 = vunpack.c.l.b16 %v526
        %v1858 = vunpack.c.h.b16 %v526
        %v1859 = vunpack.c.l.b16 %v527
        %v1860 = vunpack.c.h.b16 %v527
        %v1861 = vunpack.c.l.b16 %v528
        %v1862 = vunpack.c.h.b16 %v528
        %v1863 = vunpack.c.l.b16 %v529
        %v1864 = vunpack.c.h.b16 %v529
        %v1865 = vunpack.c.l.b16 %v530
        %v1866 = vunpack.c.h.b16 %v530
        %v1867 = vunpack.c.l.b16 %v531
        %v1868 = vunpack.c.h.b16 %v531
        %v1869 = vunpack.c.l.b16 %v532
        %v1870 = vunpack.c.h.b16 %v532
        %v1871 = vunpack.c.l.b16 %v533
        %v1872 = vunpack.c.h.b16 %v533
        %v1873 = vunpack.c.l.b16 %v534
        %v1874 = vunpack.c.h.b16 %v534
        %v1875 = vunpack.c.l.b16 %v535
        %v1876 = vunpack.c.h.b16 %v535
        %v1877 = vunpack.c.l.b16 %v536
        %v1878 = vunpack.c.h.b16 %v536
        %v1879 = vunpack.c.l.b16 %v537
        %v1880 = vunpack.c.h.b16 %v537
        %v1881 = vunpack.c.l.b16 %v538
        %v1882 = vunpack.c.h.b16 %v538
        %v1883 = vunpack.c.l.b16 %v539
        %v1884 = vunpack.c.h.b16 %v539
        %v1885 = vunpack.c.l.b16 %v540
        %v1886 = vunpack.c.h.b16 %v540
        %v1887 = vunpack.c.l.b16 %v541
        %v1888 = vunpack.c.h.b16 %v541
        %v1889 = vunpack.c.l.b16 %v542
        %v1890 = vunpack.c.h.b16 %v542
        %v1891 = vunpack.c.l.b16 %v543
        %v1892 = vunpack.c.h.b16 %v543
        %v1893 = vunpack.c.l.b16 %v544
        %v1894 = vunpack.c.h.b16 %v544
        %v1895 = vunpack.c.l.b16 %v545
        %v1896 = vunpack.c.h.b16 %v545
        %v1897 = vunpack.c.l.b16 %v546
        %v1898 = vunpack.c.h.b16 %v546
        %v1899 = vunpack.c.l.b16 %v547
        %v1900 = vunpack.c.h.b16 %v547
        %v1901 = vunpack.c.l.b16 %v548
        %v1902 = vunpack.c.h.b16 %v548
        %v1903 = vunpack.c.l.b16 %v549
        %v1904 = vunpack.c.h.b16 %v549
        %v1905 = vunpack.c.l.b16 %v550
        %v1906 = vunpack.c.h.b16 %v550
        %v1907 = vunpack.c.l.b16 %v551
        %v1908 = vunpack.c.h.b16 %v551
        %v1909 = vunpack.c.l.b16 %v552
        %v1910 = vunpack.c.h.b16 %v552
        %v1911 = vunpack.c.l.b16 %v553
        %v1912 = vunpack.c.h.b16 %v553
        %v1913 = vunpack.c.l.b16 %v554
        %v1914 = vunpack.c.h.b16 %v554
        %v1915 = vunpack.c.l.b16 %v555
        %v1916 = vunpack.c.h.b16 %v555
        %v1917 = vunpack.c.l.b16 %v556
        %v1918 = vunpack.c.h.b16 %v556
        %v1919 = vunpack.c.l.b16 %v557
        %v1920 = vunpack.c.h.b16 %v557
        %v1921 = vunpack.c.l.b16 %v558
        %v1922 = vunpack.c.h.b16 %v558
        %v1923 = vunpack.c.l.b16 %v559
        %v1924 = vunpack.c.h.b16 %v559
        %v1925 = vunpack.c.l.b16 %v560
        %v1926 = vunpack.c.h.b16 %v560
        %v1927 = vunpack.c.l.b16 %v561
        %v1928 = vunpack.c.h.b16 %v561
        %v1929 = vunpack.c.l.b16 %v562
        %v1930 = vunpack.c.h.b16 %v562
        %v1931 = vunpack.c.l.b16 %v563
        %v1932 = vunpack.c.h.b16 %v563
        %v1933 = vunpack.c.l.b16 %v564
        %v1934 = vunpack.c.h.b16 %v564
        %v1935 = vunpack.c.l.b16 %v565
        %v1936 = vunpack.c.h.b16 %v565
        %v1937 = vunpack.c.l.b16 %v566
        %v1938 = vunpack.c.h.b16 %v566
        %v1939 = vunpack.c.l.b16 %v567
        %v1940 = vunpack.c.h.b16 %v567
        %v1941 = vunpack.c.l.b16 %v568
        %v1942 = vunpack.c.h.b16 %v568
        %v1943 = vunpack.c.l.b16 %v569
        %v1944 = vunpack.c.h.b16 %v569
        %v1945 = vunpack.c.l.b16 %v570
        %v1946 = vunpack.c.h.b16 %v570
        %v1947 = vunpack.c.l.b16 %v571
        %v1948 = vunpack.c.h.b16 %v571
        %v1949 = vunpack.c.l.b16 %v572
        %v1950 = vunpack.c.h.b16 %v572
        %v1951 = vunpack.c.l.b16 %v573
        %v1952 = vunpack.c.h.b16 %v573
        %v1953 = vunpack.c.l.b16 %v574
        %v1954 = vunpack.c.h.b16 %v574
        %v1955 = vunpack.c.l.b16 %v575
        %v1956 = vunpack.c.h.b16 %v575
        %v1957 = vunpack.c.l.b16 %v576
        %v1958 = vunpack.c.h.b16 %v576
        %v1959 = vunpack.c.l.b16 %v577
        %v1960 = vunpack.c.h.b16 %v577
        %v1961 = vunpack.c.l.b16 %v578
        %v1962 = vunpack.c.h.b16 %v578
        %v1963 = vunpack.c.l.b16 %v579
        %v1964 = vunpack.c.h.b16 %v579
        %v1965 = vunpack.c.l.b16 %v580
        %v1966 = vunpack.c.h.b16 %v580
        %v1967 = vunpack.c.l.b16 %v581
        %v1968 = vunpack.c.h.b16 %v581
        %v1969 = vunpack.c.l.b16 %v582
        %v1970 = vunpack.c.h.b16 %v582
        %v1971 = vunpack.c.l.b16 %v583
        %v1972 = vunpack.c.h.b16 %v583
        %v1973 = vunpack.c.l.b16 %v584
        %v1974 = vunpack.c.h.b16 %v584
        %v1975 = vunpack.c.l.b16 %v585
        %v1976 = vunpack.c.h.b16 %v585
        %v1977 = vunpack.c.l.b16 %v586
        %v1978 = vunpack.c.h.b16 %v586
        %v1979 = vunpack.c.l.b16 %v587
        %v1980 = vunpack.c.h.b16 %v587
        %v1981 = vunpack.c.l.b16 %v588
        %v1982 = vunpack.c.h.b16 %v588
        %v1983 = vunpack.c.l.b16 %v589
        %v1984 = vunpack.c.h.b16 %v589
        %v1985 = vunpack.c.l.b16 %v590
        %v1986 = vunpack.c.h.b16 %v590
        %v1987 = vunpack.c.l.b16 %v591
        %v1988 = vunpack.c.h.b16 %v591
        %v1989 = vunpack.c.l.b16 %v592
        %v1990 = vunpack.c.h.b16 %v592
        %v1991 = vunpack.c.l.b16 %v593
        %v1992 = vunpack.c.h.b16 %v593
        %v1993 = vunpack.c.l.b16 %v594
        %v1994 = vunpack.c.h.b16 %v594
        %v1995 = vunpack.c.l.b16 %v595
        %v1996 = vunpack.c.h.b16 %v595
        %v1997 = vunpack.c.l.b16 %v596
        %v1998 = vunpack.c.h.b16 %v596
        %v1999 = vunpack.c.l.b16 %v597
        %v2000 = vunpack.c.h.b16 %v597
        %v2001 = vunpack.c.l.b16 %v598
        %v2002 = vunpack.c.h.b16 %v598
        %v2003 = vunpack.c.l.b16 %v599
        %v2004 = vunpack.c.h.b16 %v599
        %v2005 = vunpack.c.l.b16 %v600
        %v2006 = vunpack.c.h.b16 %v600
        %v2007 = vunpack.c.l.b16 %v601
        %v2008 = vunpack.c.h.b16 %v601
        %v2009 = vunpack.c.l.b16 %v602
        %v2010 = vunpack.c.h.b16 %v602
        %v2011 = vunpack.c.l.b16 %v603
        %v2012 = vunpack.c.h.b16 %v603
        %v2013 = vunpack.c.l.b16 %v604
        %v2014 = vunpack.c.h.b16 %v604
        %v2015 = vunpack.c.l.b16 %v605
        %v2016 = vunpack.c.h.b16 %v605
        %v2017 = vunpack.c.l.b16 %v606
        %v2018 = vunpack.c.h.b16 %v606
        %v2019 = vunpack.c.l.b16 %v607
        %v2020 = vunpack.c.h.b16 %v607
        %v2021 = vunpack.c.l.b16 %v608
        %v2022 = vunpack.c.h.b16 %v608
        %v2023 = vunpack.c.l.b16 %v609
        %v2024 = vunpack.c.h.b16 %v609
        %v2025 = vunpack.c.l.b16 %v610
        %v2026 = vunpack.c.h.b16 %v610
        %v2027 = vunpack.c.l.b16 %v611
        %v2028 = vunpack.c.h.b16 %v611
        %v2029 = vunpack.c.l.b16 %v612
        %v2030 = vunpack.c.h.b16 %v612
        %v2031 = vunpack.c.l.b16 %v613
        %v2032 = vunpack.c.h.b16 %v613
        %v2033 = vunpack.c.l.b16 %v614
        %v2034 = vunpack.c.h.b16 %v614
        %v2035 = vunpack.c.l.b16 %v615
        %v2036 = vunpack.c.h.b16 %v615
        %v2037 = vunpack.c.l.b16 %v616
        %v2038 = vunpack.c.h.b16 %v616
        %v2039 = vunpack.c.l.b16 %v617
        %v2040 = vunpack.c.h.b16 %v617
        %v2041 = vunpack.c.l.b16 %v618
        %v2042 = vunpack.c.h.b16 %v618
        %v2043 = vunpack.c.l.b16 %v619
        %v2044 = vunpack.c.h.b16 %v619
        %v2045 = vunpack.c.l.b16 %v620
        %v2046 = vunpack.c.h.b16 %v620
        %v2047 = vunpack.c.l.b16 %v621
        %v2048 = vunpack.c.h.b16 %v621
        %v2049 = vunpack.c.l.b16 %v622
        %v2050 = vunpack.c.h.b16 %v622
        %v2051 = vunpack.c.l.b16 %v623
        %v2052 = vunpack.c.h.b16 %v623
        %v2053 = vunpack.c.l.b16 %v624
        %v2054 = vunpack.c.h.b16 %v624
        %v2055 = vunpack.c.l.b16 %v625
        %v2056 = vunpack.c.h.b16 %v625
        %v2057 = vunpack.c.l.b16 %v626
        %v2058 = vunpack.c.h.b16 %v626
        %v2059 = vunpack.c.l.b16 %v627
        %v2060 = vunpack.c.h.b16 %v627
        %v2061 = vunpack.c.l.b16 %v628
        %v2062 = vunpack.c.h.b16 %v628
        %v2063 = vunpack.c.l.b16 %v629
        %v2064 = vunpack.c.h.b16 %v629
        %v2065 = vunpack.c.l.b16 %v630
        %v2066 = vunpack.c.h.b16 %v630
        %v2067 = vunpack.c.l.b16 %v631
        %v2068 = vunpack.c.h.b16 %v631
        %v2069 = vunpack.c.l.b16 %v632
        %v2070 = vunpack.c.h.b16 %v632
        %v2071 = vunpack.c.l.b16 %v633
        %v2072 = vunpack.c.h.b16 %v633
        %v2073 = vunpack.c.l.b16 %v634
        %v2074 = vunpack.c.h.b16 %v634
        %v2075 = vunpack.c.l.b16 %v635
        %v2076 = vunpack.c.h.b16 %v635
        %v2077 = vunpack.c.l.b16 %v636
        %v2078 = vunpack.c.h.b16 %v636
        %v2079 = vunpack.c.l.b16 %v637
        %v2080 = vunpack.c.h.b16 %v637
        %v2081 = vunpack.c.l.b16 %v638
        %v2082 = vunpack.c.h.b16 %v638
        %v2083 = vunpack.c.l.b16 %v639
        %v2084 = vunpack.c.h.b16 %v639
        %v2085 = vunpack.c.l.b16 %v640
        %v2086 = vunpack.c.h.b16 %v640
        %v2087 = vunpack.c.l.b16 %v641
        %v2088 = vunpack.c.h.b16 %v641
        %v2089 = vunpack.c.l.b16 %v642
        %v2090 = vunpack.c.h.b16 %v642
        %v2091 = vunpack.c.l.b16 %v643
        %v2092 = vunpack.c.h.b16 %v643
        %v2093 = vunpack.c.l.b16 %v644
        %v2094 = vunpack.c.h.b16 %v644
        %v2095 = vunpack.c.l.b16 %v645
        %v2096 = vunpack.c.h.b16 %v645
        %v2097 = vunpack.c.l.b16 %v646
        %v2098 = vunpack.c.h.b16 %v646
        %v2099 = vunpack.c.l.b16 %v647
        %v2100 = vunpack.c.h.b16 %v647
        %v2101 = vunpack.c.l.b16 %v648
        %v2102 = vunpack.c.h.b16 %v648
        %v2103 = vunpack.c.l.b16 %v649
        %v2104 = vunpack.c.h.b16 %v649
        %v2105 = vunpack.c.l.b16 %v650
        %v2106 = vunpack.c.h.b16 %v650
        %v2107 = vunpack.c.l.b16 %v651
        %v2108 = vunpack.c.h.b16 %v651
        %v2109 = vunpack.c.l.b16 %v652
        %v2110 = vunpack.c.h.b16 %v652
        %v2111 = vunpack.c.l.b16 %v653
        %v2112 = vunpack.c.h.b16 %v653
        %v2113 = vunpack.c.l.b16 %v654
        %v2114 = vunpack.c.h.b16 %v654
        %v2115 = vunpack.c.l.b16 %v655
        %v2116 = vunpack.c.h.b16 %v655
        %v2117 = vunpack.c.l.b16 %v656
        %v2118 = vunpack.c.h.b16 %v656
        %v2119 = vunpack.c.l.b16 %v657
        %v2120 = vunpack.c.h.b16 %v657
        %v2121 = vunpack.c.l.b16 %v658
        %v2122 = vunpack.c.h.b16 %v658
        %v2123 = vunpack.c.l.b16 %v659
        %v2124 = vunpack.c.h.b16 %v659
        %v2125 = vunpack.c.l.b16 %v660
        %v2126 = vunpack.c.h.b16 %v660
        %v2127 = vunpack.c.l.b16 %v661
        %v2128 = vunpack.c.h.b16 %v661
        %v2129 = vunpack.c.l.b16 %v662
        %v2130 = vunpack.c.h.b16 %v662
        %v2131 = vunpack.c.l.b16 %v663
        %v2132 = vunpack.c.h.b16 %v663
        %v2133 = vunpack.c.l.b16 %v664
        %v2134 = vunpack.c.h.b16 %v664
        %v2135 = vunpack.c.l.b16 %v665
        %v2136 = vunpack.c.h.b16 %v665
        %v2137 = vunpack.c.l.b16 %v666
        %v2138 = vunpack.c.h.b16 %v666
        %v2139 = vunpack.c.l.b16 %v667
        %v2140 = vunpack.c.h.b16 %v667
        %v2141 = vunpack.c.l.b16 %v668
        %v2142 = vunpack.c.h.b16 %v668
        %v2143 = vunpack.c.l.b16 %v669
        %v2144 = vunpack.c.h.b16 %v669
        %v2145 = vunpack.c.l.b16 %v670
        %v2146 = vunpack.c.h.b16 %v670
        %v2147 = vunpack.c.l.b16 %v671
        %v2148 = vunpack.c.h.b16 %v671
        %v2149 = vunpack.c.l.b16 %v672
        %v2150 = vunpack.c.h.b16 %v672
        %v2151 = vunpack.c.l.b16 %v673
        %v2152 = vunpack.c.h.b16 %v673
        %v2153 = vunpack.c.l.b16 %v674
        %v2154 = vunpack.c.h.b16 %v674
        %v2155 = vunpack.c.l.b16 %v675
        %v2156 = vunpack.c.h.b16 %v675
        %v2157 = vunpack.c.l.b16 %v676
        %v2158 = vunpack.c.h.b16 %v676
        %v2159 = vunpack.c.l.b16 %v677
        %v2160 = vunpack.c.h.b16 %v677
        %v2161 = vunpack.c.l.b16 %v678
        %v2162 = vunpack.c.h.b16 %v678
        %v2163 = vunpack.c.l.b16 %v679
        %v2164 = vunpack.c.h.b16 %v679
        %v2165 = vunpack.c.l.b16 %v680
        %v2166 = vunpack.c.h.b16 %v680
        %v2167 = vunpack.c.l.b16 %v681
        %v2168 = vunpack.c.h.b16 %v681
        %v2169 = vunpack.c.l.b16 %v682
        %v2170 = vunpack.c.h.b16 %v682
        %v2171 = vunpack.c.l.b16 %v683
        %v2172 = vunpack.c.h.b16 %v683
        %v2173 = vunpack.c.l.b16 %v684
        %v2174 = vunpack.c.h.b16 %v684
        %v2175 = vunpack.c.l.b16 %v685
        %v2176 = vunpack.c.h.b16 %v685
        %v2177 = vunpack.c.l.b16 %v686
        %v2178 = vunpack.c.h.b16 %v686
        %v2179 = vunpack.c.l.b16 %v687
        %v2180 = vunpack.c.h.b16 %v687
        %v2181 = vunpack.c.l.b16 %v688
        %v2182 = vunpack.c.h.b16 %v688
        %v2183 = vunpack.c.l.b16 %v689
        %v2184 = vunpack.c.h.b16 %v689
        %v2185 = vunpack.c.l.b16 %v690
        %v2186 = vunpack.c.h.b16 %v690
        %v2187 = vunpack.c.l.b16 %v691
        %v2188 = vunpack.c.h.b16 %v691
        %v2189 = vunpack.c.l.b16 %v692
        %v2190 = vunpack.c.h.b16 %v692
        %v2191 = vunpack.c.l.b16 %v693
        %v2192 = vunpack.c.h.b16 %v693
        %v2193 = vunpack.c.l.b16 %v694
        %v2194 = vunpack.c.h.b16 %v694
        %v2195 = vunpack.c.l.b16 %v695
        %v2196 = vunpack.c.h.b16 %v695
        %v2197 = vunpack.c.l.b16 %v696
        %v2198 = vunpack.c.h.b16 %v696
        %v2199 = vunpack.c.l.b16 %v697
        %v2200 = vunpack.c.h.b16 %v697
        %v2201 = vunpack.c.l.b16 %v698
        %v2202 = vunpack.c.h.b16 %v698
        %v2203 = vunpack.c.l.b16 %v699
        %v2204 = vunpack.c.h.b16 %v699
        %v2205 = vunpack.c.l.b16 %v700
        %v2206 = vunpack.c.h.b16 %v700
        %v2207 = vunpack.c.l.b16 %v701
        %v2208 = vunpack.c.h.b16 %v701
        %v2209 = vunpack.c.l.b16 %v702
        %v2210 = vunpack.c.h.b16 %v702
        %v2211 = vunpack.c.l.b16 %v703
        %v2212 = vunpack.c.h.b16 %v703
        %v2213 = vunpack.c.l.b16 %v704
        %v2214 = vunpack.c.h.b16 %v704
        %v2215 = vunpack.c.l.b16 %v705
        %v2216 = vunpack.c.h.b16 %v705
        %v2217 = vunpack.c.l.b16 %v706
        %v2218 = vunpack.c.h.b16 %v706
        %v2219 = vunpack.c.l.b16 %v707
        %v2220 = vunpack.c.h.b16 %v707
        %v2221 = vunpack.c.l.b16 %v708
        %v2222 = vunpack.c.h.b16 %v708
        %v2223 = vunpack.c.l.b16 %v709
        %v2224 = vunpack.c.h.b16 %v709
        %v2225 = vunpack.c.l.b16 %v710
        %v2226 = vunpack.c.h.b16 %v710
        %v2227 = vunpack.c.l.b16 %v711
        %v2228 = vunpack.c.h.b16 %v711
        %v2229 = vunpack.c.l.b16 %v712
        %v2230 = vunpack.c.h.b16 %v712
        %v2231 = vunpack.c.l.b16 %v713
        %v2232 = vunpack.c.h.b16 %v713
        %v2233 = vunpack.c.l.b16 %v714
        %v2234 = vunpack.c.h.b16 %v714
        %v2235 = vunpack.c.l.b16 %v715
        %v2236 = vunpack.c.h.b16 %v715
        %v2237 = vunpack.c.l.b16 %v716
        %v2238 = vunpack.c.h.b16 %v716
        %v2239 = vunpack.c.l.b16 %v717
        %v2240 = vunpack.c.h.b16 %v717
        %v2241 = vunpack.c.l.b16 %v718
        %v2242 = vunpack.c.h.b16 %v718
        %v2243 = vunpack.c.l.b16 %v719
        %v2244 = vunpack.c.h.b16 %v719
        %v2245 = vunpack.c.l.b16 %v720
        %v2246 = vunpack.c.h.b16 %v720
        %v2247 = vunpack.c.l.b16 %v721
        %v2248 = vunpack.c.h.b16 %v721
        %v2249 = vunpack.c.l.b16 %v722
        %v2250 = vunpack.c.h.b16 %v722
        %v2251 = vunpack.c.l.b16 %v723
        %v2252 = vunpack.c.h.b16 %v723
        %v2253 = vunpack.c.l.b16 %v724
        %v2254 = vunpack.c.h.b16 %v724
        %v2255 = vunpack.c.l.b16 %v725
        %v2256 = vunpack.c.h.b16 %v725
        %v2257 = vunpack.c.l.b16 %v726
        %v2258 = vunpack.c.h.b16 %v726
        %v2259 = vunpack.c.l.b16 %v727
        %v2260 = vunpack.c.h.b16 %v727
        %v2261 = vunpack.c.l.b16 %v728
        %v2262 = vunpack.c.h.b16 %v728
        %v2263 = vunpack.c.l.b16 %v729
        %v2264 = vunpack.c.h.b16 %v729
        %v2265 = vunpack.c.l.b16 %v730
        %v2266 = vunpack.c.h.b16 %v730
        %v2267 = vunpack.c.l.b16 %v731
        %v2268 = vunpack.c.h.b16 %v731
        %v2269 = vunpack.c.l.b16 %v732
        %v2270 = vunpack.c.h.b16 %v732
        %v2271 = vunpack.c.l.b16 %v733
        %v2272 = vunpack.c.h.b16 %v733
        %v2273 = vunpack.c.l.b16 %v734
        %v2274 = vunpack.c.h.b16 %v734
        %v2275 = vunpack.c.l.b16 %v735
        %v2276 = vunpack.c.h.b16 %v735
        %v2277 = vunpack.c.l.b16 %v736
        %v2278 = vunpack.c.h.b16 %v736
        %v2279 = vunpack.c.l.b16 %v737
        %v2280 = vunpack.c.h.b16 %v737
        %v2281 = vunpack.c.l.b16 %v738
        %v2282 = vunpack.c.h.b16 %v738
        %v2283 = vunpack.c.l.b16 %v739
        %v2284 = vunpack.c.h.b16 %v739
        %v2285 = vunpack.c.l.b16 %v740
        %v2286 = vunpack.c.h.b16 %v740
        %v2287 = vunpack.c.l.b16 %v741
        %v2288 = vunpack.c.h.b16 %v741
        %v2289 = vunpack.c.l.b16 %v742
        %v2290 = vunpack.c.h.b16 %v742
        %v2291 = vunpack.c.l.b16 %v743
        %v2292 = vunpack.c.h.b16 %v743
        %v2293 = vunpack.c.l.b16 %v744
        %v2294 = vunpack.c.h.b16 %v744
        %v2295 = vunpack.c.l.b16 %v745
        %v2296 = vunpack.c.h.b16 %v745
        %v2297 = vunpack.c.l.b16 %v746
        %v2298 = vunpack.c.h.b16 %v746
        %v2299 = vunpack.c.l.b16 %v747
        %v2300 = vunpack.c.h.b16 %v747
        %v2301 = vunpack.c.l.b16 %v748
        %v2302 = vunpack.c.h.b16 %v748
        %v2303 = vunpack.c.l.b16 %v749
        %v2304 = vunpack.c.h.b16 %v749
        %v2305 = vunpack.c.l.b16 %v750
        %v2306 = vunpack.c.h.b16 %v750
        %v2307 = vunpack.c.l.b16 %v751
        %v2308 = vunpack.c.h.b16 %v751
        %v2309 = vunpack.c.l.b16 %v752
        %v2310 = vunpack.c.h.b16 %v752
        %v2311 = vunpack.c.l.b16 %v753
        %v2312 = vunpack.c.h.b16 %v753
        %v2313 = vunpack.c.l.b16 %v754
        %v2314 = vunpack.c.h.b16 %v754
        %v2315 = vunpack.c.l.b16 %v755
        %v2316 = vunpack.c.h.b16 %v755
        %v2317 = vunpack.c.l.b16 %v756
        %v2318 = vunpack.c.h.b16 %v756
        %v2319 = vunpack.c.l.b16 %v757
        %v2320 = vunpack.c.h.b16 %v757
        %v2321 = vunpack.c.l.b16 %v758
        %v2322 = vunpack.c.h.b16 %v758
        %v2323 = vunpack.c.l.b16 %v759
        %v2324 = vunpack.c.h.b16 %v759
        %v2325 = vunpack.c.l.b16 %v760
        %v2326 = vunpack.c.h.b16 %v760
        %v2327 = vunpack.c.l.b16 %v761
        %v2328 = vunpack.c.h.b16 %v761
        %v2329 = vunpack.c.l.b16 %v762
        %v2330 = vunpack.c.h.b16 %v762
        %v2331 = vunpack.c.l.b16 %v763
        %v2332 = vunpack.c.h.b16 %v763
        %v2333 = vunpack.c.l.b16 %v764
        %v2334 = vunpack.c.h.b16 %v764
        %v2335 = vunpack.c.l.b16 %v765
        %v2336 = vunpack.c.h.b16 %v765
        %v2337 = vunpack.c.l.b16 %v766
        %v2338 = vunpack.c.h.b16 %v766
        %v2339 = vunpack.c.l.b16 %v767
        %v2340 = vunpack.c.h.b16 %v767
        %v2341 = vunpack.c.l.b16 %v768
        %v2342 = vunpack.c.h.b16 %v768
        %v2343 = vunpack.c.l.b16 %v769
        %v2344 = vunpack.c.h.b16 %v769
        %v2345 = vunpack.c.l.b16 %v770
        %v2346 = vunpack.c.h.b16 %v770
        %v2347 = vunpack.c.l.b16 %v771
        %v2348 = vunpack.c.h.b16 %v771
        %v2349 = vunpack.c.l.b16 %v772
        %v2350 = vunpack.c.h.b16 %v772
        %v2351 = vunpack.c.l.b16 %v773
        %v2352 = vunpack.c.h.b16 %v773
        %v2353 = vunpack.c.l.b16 %v774
        %v2354 = vunpack.c.h.b16 %v774
        %v2355 = vunpack.c.l.b16 %v775
        %v2356 = vunpack.c.h.b16 %v775
        %v2357 = vunpack.c.l.b16 %v776
        %v2358 = vunpack.c.h.b16 %v776
        %v2359 = vunpack.c.l.b16 %v777
        %v2360 = vunpack.c.h.b16 %v777
        %v2361 = vunpack.c.l.b16 %v778
        %v2362 = vunpack.c.h.b16 %v778
        %v2363 = vunpack.c.l.b16 %v779
        %v2364 = vunpack.c.h.b16 %v779
        %v2365 = vunpack.c.l.b16 %v780
        %v2366 = vunpack.c.h.b16 %v780
        %v2367 = vunpack.c.l.b16 %v781
        %v2368 = vunpack.c.h.b16 %v781
        %v2369 = vunpack.c.l.b16 %v782
        %v2370 = vunpack.c.h.b16 %v782
        %v2371 = vunpack.c.l.b16 %v783
        %v2372 = vunpack.c.h.b16 %v783
        %v2373 = vunpack.c.l.b16 %v784
        %v2374 = vunpack.c.h.b16 %v784
        %v2375 = vunpack.c.l.b16 %v785
        %v2376 = vunpack.c.h.b16 %v785
        %v2377 = vunpack.c.l.b16 %v786
        %v2378 = vunpack.c.h.b16 %v786
        %v2379 = vunpack.c.l.b16 %v787
        %v2380 = vunpack.c.h.b16 %v787
        %v2381 = vunpack.c.l.b16 %v788
        %v2382 = vunpack.c.h.b16 %v788
        %v2383 = vunpack.c.l.b16 %v789
        %v2384 = vunpack.c.h.b16 %v789
        %v2385 = vunpack.c.l.b16 %v790
        %v2386 = vunpack.c.h.b16 %v790
        %v2387 = vunpack.c.l.b16 %v791
        %v2388 = vunpack.c.h.b16 %v791
        %v2389 = vunpack.c.l.b16 %v792
        %v2390 = vunpack.c.h.b16 %v792
        %v2391 = vunpack.c.l.b16 %v793
        %v2392 = vunpack.c.h.b16 %v793
        %v2393 = vunpack.c.l.b16 %v794
        %v2394 = vunpack.c.h.b16 %v794
        %v2395 = vunpack.c.l.b16 %v795
        %v2396 = vunpack.c.h.b16 %v795
        %v2397 = vunpack.c.l.b16 %v796
        %v2398 = vunpack.c.h.b16 %v796
        %v2399 = vunpack.c.l.b16 %v797
        %v2400 = vunpack.c.h.b16 %v797
        %v2401 = vunpack.c.l.b16 %v798
        %v2402 = vunpack.c.h.b16 %v798
        %v2403 = vunpack.c.l.b16 %v799
        %v2404 = vunpack.c.h.b16 %v799
        %v2405 = vunpack.c.l.b16 %v800
        %v2406 = vunpack.c.h.b16 %v800
        %v2407 = vunpack.c.l.b16 %v801
        %v2408 = vunpack.c.h.b16 %v801
        %v2409 = vunpack.c.l.b16 %v802
        %v2410 = vunpack.c.h.b16 %v802
        %v2411 = vunpack.c.l.b16 %v803
        %v2412 = vunpack.c.h.b16 %v803
        %v2413 = vunpack.c.l.b16 %v804
        %v2414 = vunpack.c.h.b16 %v804
        %v2415 = vunpack.c.l.b16 %v805
        %v2416 = vunpack.c.h.b16 %v805
        %v2417 = vunpack.c.l.b16 %v806
        %v2418 = vunpack.c.h.b16 %v806
        %v2419 = vunpack.c.l.b16 %v807
        %v2420 = vunpack.c.h.b16 %v807
        %v2421 = vunpack.c.l.b16 %v808
        %v2422 = vunpack.c.h.b16 %v808
        %v2423 = vunpack.c.l.b16 %v809
        %v2424 = vunpack.c.h.b16 %v809
        %v2425 = vunpack.c.l.b16 %v810
        %v2426 = vunpack.c.h.b16 %v810
        %v2427 = vpack.c.b16 %v1407, %v1403
        %v2428 = vpack.c.b16 %v1408, %v1404
        %v2429 = vpack.c.b16 %v1409, %v1405
        %v2430 = vpack.c.b16 %v1410, %v1406
        %v2431 = vpack.c.b16 %v1415, %v1411
        %v2432 = vpack.c.b16 %v1416, %v1412
        %v2433 = vpack.c.b16 %v1417, %v1413
        %v2434 = vpack.c.b16 %v1418, %v1414
        %v2435 = vpack.c.b16 %v1423, %v1419
        %v2436 = vpack.c.b16 %v1424, %v1420
        %v2437 = vpack.c.b16 %v1425, %v1421
        %v2438 = vpack.c.b16 %v1426, %v1422
        %v2439 = vpack.c.b16 %v1431, %v1427
        %v2440 = vpack.c.b16 %v1432, %v1428
        %v2441 = vpack.c.b16 %v1433, %v1429
        %v2442 = vpack.c.b16 %v1434, %v1430
        %v2443 = vpack.c.b16 %v1439, %v1435
        %v2444 = vpack.c.b16 %v1440, %v1436
        %v2445 = vpack.c.b16 %v1441, %v1437
        %v2446 = vpack.c.b16 %v1442, %v1438
        %v2447 = vpack.c.b16 %v1447, %v1443
        %v2448 = vpack.c.b16 %v1448, %v1444
        %v2449 = vpack.c.b16 %v1449, %v1445
        %v2450 = vpack.c.b16 %v1450, %v1446
        %v2451 = vpack.c.b16 %v1455, %v1451
        %v2452 = vpack.c.b16 %v1456, %v1452
        %v2453 = vpack.c.b16 %v1457, %v1453
        %v2454 = vpack.c.b16 %v1458, %v1454
        %v2455 = vpack.c.b16 %v1463, %v1459
        %v2456 = vpack.c.b16 %v1464, %v1460
        %v2457 = vpack.c.b16 %v1465, %v1461
        %v2458 = vpack.c.b16 %v1466, %v1462
        %v2459 = vpack.c.b16 %v1471, %v1467
        %v2460 = vpack.c.b16 %v1472, %v1468
        %v2461 = vpack.c.b16 %v1473, %v1469
        %v2462 = vpack.c.b16 %v1474, %v1470
        %v2463 = vpack.c.b16 %v1479, %v1475
        %v2464 = vpack.c.b16 %v1480, %v1476
        %v2465 = vpack.c.b16 %v1481, %v1477
        %v2466 = vpack.c.b16 %v1482, %v1478
        %v2467 = vpack.c.b16 %v1487, %v1483
        %v2468 = vpack.c.b16 %v1488, %v1484
        %v2469 = vpack.c.b16 %v1489, %v1485
        %v2470 = vpack.c.b16 %v1490, %v1486
        %v2471 = vpack.c.b16 %v1495, %v1491
        %v2472 = vpack.c.b16 %v1496, %v1492
        %v2473 = vpack.c.b16 %v1497, %v1493
        %v2474 = vpack.c.b16 %v1498, %v1494
        %v2475 = vpack.c.b16 %v1503, %v1499
        %v2476 = vpack.c.b16 %v1504, %v1500
        %v2477 = vpack.c.b16 %v1505, %v1501
        %v2478 = vpack.c.b16 %v1506, %v1502
        %v2479 = vpack.c.b16 %v1511, %v1507
        %v2480 = vpack.c.b16 %v1512, %v1508
        %v2481 = vpack.c.b16 %v1513, %v1509
        %v2482 = vpack.c.b16 %v1514, %v1510
        %v2483 = vpack.c.b16 %v1519, %v1515
        %v2484 = vpack.c.b16 %v1520, %v1516
        %v2485 = vpack.c.b16 %v1521, %v1517
        %v2486 = vpack.c.b16 %v1522, %v1518
        %v2487 = vpack.c.b16 %v1527, %v1523
        %v2488 = vpack.c.b16 %v1528, %v1524
        %v2489 = vpack.c.b16 %v1529, %v1525
        %v2490 = vpack.c.b16 %v1530, %v1526
        %v2491 = vpack.c.b16 %v1535, %v1531
        %v2492 = vpack.c.b16 %v1536, %v1532
        %v2493 = vpack.c.b16 %v1537, %v1533
        %v2494 = vpack.c.b16 %v1538, %v1534
        %v2495 = vpack.c.b16 %v1543, %v1539
        %v2496 = vpack.c.b16 %v1544, %v1540
        %v2497 = vpack.c.b16 %v1545, %v1541
        %v2498 = vpack.c.b16 %v1546, %v1542
        %v2499 = vpack.c.b16 %v1551, %v1547
        %v2500 = vpack.c.b16 %v1552, %v1548
        %v2501 = vpack.c.b16 %v1553, %v1549
        %v2502 = vpack.c.b16 %v1554, %v1550
        %v2503 = vpack.c.b16 %v1559, %v1555
        %v2504 = vpack.c.b16 %v1560, %v1556
        %v2505 = vpack.c.b16 %v1561, %v1557
        %v2506 = vpack.c.b16 %v1562, %v1558
        %v2507 = vpack.c.b16 %v1567, %v1563
        %v2508 = vpack.c.b16 %v1568, %v1564
        %v2509 = vpack.c.b16 %v1569, %v1565
        %v2510 = vpack.c.b16 %v1570, %v1566
        %v2511 = vpack.c.b16 %v1575, %v1571
        %v2512 = vpack.c.b16 %v1576, %v1572
        %v2513 = vpack.c.b16 %v1577, %v1573
        %v2514 = vpack.c.b16 %v1578, %v1574
        %v2515 = vpack.c.b16 %v1583, %v1579
        %v2516 = vpack.c.b16 %v1584, %v1580
        %v2517 = vpack.c.b16 %v1585, %v1581
        %v2518 = vpack.c.b16 %v1586, %v1582
        %v2519 = vpack.c.b16 %v1591, %v1587
        %v2520 = vpack.c.b16 %v1592, %v1588
        %v2521 = vpack.c.b16 %v1593, %v1589
        %v2522 = vpack.c.b16 %v1594, %v1590
        %v2523 = vpack.c.b16 %v1599, %v1595
        %v2524 = vpack.c.b16 %v1600, %v1596
        %v2525 = vpack.c.b16 %v1601, %v1597
        %v2526 = vpack.c.b16 %v1602, %v1598
        %v2527 = vpack.c.b16 %v1607, %v1603
        %v2528 = vpack.c.b16 %v1608, %v1604
        %v2529 = vpack.c.b16 %v1609, %v1605
        %v2530 = vpack.c.b16 %v1610, %v1606
        %v2531 = vpack.c.b16 %v1615, %v1611
        %v2532 = vpack.c.b16 %v1616, %v1612
        %v2533 = vpack.c.b16 %v1617, %v1613
        %v2534 = vpack.c.b16 %v1618, %v1614
        %v2535 = vpack.c.b16 %v1623, %v1619
        %v2536 = vpack.c.b16 %v1624, %v1620
        %v2537 = vpack.c.b16 %v1625, %v1621
        %v2538 = vpack.c.b16 %v1626, %v1622
        %v2539 = vpack.c.b16 %v1631, %v1627
        %v2540 = vpack.c.b16 %v1632, %v1628
        %v2541 = vpack.c.b16 %v1633, %v1629
        %v2542 = vpack.c.b16 %v1634, %v1630
        %v2543 = vpack.c.b16 %v1639, %v1635
        %v2544 = vpack.c.b16 %v1640, %v1636
        %v2545 = vpack.c.b16 %v1641, %v1637
        %v2546 = vpack.c.b16 %v1642, %v1638
        %v2547 = vpack.c.b16 %v1647, %v1643
        %v2548 = vpack.c.b16 %v1648, %v1644
        %v2549 = vpack.c.b16 %v1649, %v1645
        %v2550 = vpack.c.b16 %v1650, %v1646
        %v2551 = vpack.c.b16 %v1655, %v1651
        %v2552 = vpack.c.b16 %v1656, %v1652
        %v2553 = vpack.c.b16 %v1657, %v1653
        %v2554 = vpack.c.b16 %v1658, %v1654
        %v2555 = vpack.c.b16 %v1663, %v1659
        %v2556 = vpack.c.b16 %v1664, %v1660
        %v2557 = vpack.c.b16 %v1665, %v1661
        %v2558 = vpack.c.b16 %v1666, %v1662
        %v2559 = vpack.c.b16 %v1671, %v1667
        %v2560 = vpack.c.b16 %v1672, %v1668
        %v2561 = vpack.c.b16 %v1673, %v1669
        %v2562 = vpack.c.b16 %v1674, %v1670
        %v2563 = vpack.c.b16 %v1679, %v1675
        %v2564 = vpack.c.b16 %v1680, %v1676
        %v2565 = vpack.c.b16 %v1681, %v1677
        %v2566 = vpack.c.b16 %v1682, %v1678
        %v2567 = vpack.c.b16 %v1687, %v1683
        %v2568 = vpack.c.b16 %v1688, %v1684
        %v2569 = vpack.c.b16 %v1689, %v1685
        %v2570 = vpack.c.b16 %v1690, %v1686
        %v2571 = vpack.c.b16 %v1695, %v1691
        %v2572 = vpack.c.b16 %v1696, %v1692
        %v2573 = vpack.c.b16 %v1697, %v1693
        %v2574 = vpack.c.b16 %v1698, %v1694
        %v2575 = vpack.c.b16 %v1703, %v1699
        %v2576 = vpack.c.b16 %v1704, %v1700
        %v2577 = vpack.c.b16 %v1705, %v1701
        %v2578 = vpack.c.b16 %v1706, %v1702
        %v2579 = vpack.c.b16 %v1711, %v1707
        %v2580 = vpack.c.b16 %v1712, %v1708
        %v2581 = vpack.c.b16 %v1713, %v1709
        %v2582 = vpack.c.b16 %v1714, %v1710
        %v2583 = vpack.c.b16 %v1719, %v1715
        %v2584 = vpack.c.b16 %v1720, %v1716
        %v2585 = vpack.c.b16 %v1721, %v1717
        %v2586 = vpack.c.b16 %v1722, %v1718
        %v2587 = vpack.c.b16 %v1727, %v1723
        %v2588 = vpack.c.b16 %v1728, %v1724
        %v2589 = vpack.c.b16 %v1729, %v1725
        %v2590 = vpack.c.b16 %v1730, %v1726
        %v2591 = vpack.c.b16 %v1735, %v1731
        %v2592 = vpack.c.b16 %v1736, %v1732
        %v2593 = vpack.c.b16 %v1737, %v1733
        %v2594 = vpack.c.b16 %v1738, %v1734
        %v2595 = vpack.c.b16 %v1743, %v1739
        %v2596 = vpack.c.b16 %v1744, %v1740
        %v2597 = vpack.c.b16 %v1745, %v1741
        %v2598 = vpack.c.b16 %v1746, %v1742
        %v2599 = vpack.c.b16 %v1751, %v1747
        %v2600 = vpack.c.b16 %v1752, %v1748
        %v2601 = vpack.c.b16 %v1753, %v1749
        %v2602 = vpack.c.b16 %v1754, %v1750
        %v2603 = vpack.c.b16 %v1759, %v1755
        %v2604 = vpack.c.b16 %v1760, %v1756
        %v2605 = vpack.c.b16 %v1761, %v1757
        %v2606 = vpack.c.b16 %v1762, %v1758
        %v2607 = vpack.c.b16 %v1767, %v1763
        %v2608 = vpack.c.b16 %v1768, %v1764
        %v2609 = vpack.c.b16 %v1769, %v1765
        %v2610 = vpack.c.b16 %v1770, %v1766
        %v2611 = vpack.c.b16 %v1775, %v1771
        %v2612 = vpack.c.b16 %v1776, %v1772
        %v2613 = vpack.c.b16 %v1777, %v1773
        %v2614 = vpack.c.b16 %v1778, %v1774
        %v2615 = vpack.c.b16 %v1783, %v1779
        %v2616 = vpack.c.b16 %v1784, %v1780
        %v2617 = vpack.c.b16 %v1785, %v1781
        %v2618 = vpack.c.b16 %v1786, %v1782
        %v2619 = vpack.c.b16 %v1791, %v1787
        %v2620 = vpack.c.b16 %v1792, %v1788
        %v2621 = vpack.c.b16 %v1793, %v1789
        %v2622 = vpack.c.b16 %v1794, %v1790
        %v2623 = vpack.c.b16 %v1799, %v1795
        %v2624 = vpack.c.b16 %v1800, %v1796
        %v2625 = vpack.c.b16 %v1801, %v1797
        %v2626 = vpack.c.b16 %v1802, %v1798
        %v2627 = vpack.c.b16 %v1807, %v1803
        %v2628 = vpack.c.b16 %v1808, %v1804
        %v2629 = vpack.c.b16 %v1809, %v1805
        %v2630 = vpack.c.b16 %v1810, %v1806
        %v2631 = vpack.c.b16 %v1815, %v1811
        %v2632 = vpack.c.b16 %v1816, %v1812
        %v2633 = vpack.c.b16 %v1817, %v1813
        %v2634 = vpack.c.b16 %v1818, %v1814
        %v2635 = vpack.c.b16 %v1823, %v1819
        %v2636 = vpack.c.b16 %v1824, %v1820
        %v2637 = vpack.c.b16 %v1825, %v1821
        %v2638 = vpack.c.b16 %v1826, %v1822
        %v2639 = vpack.c.b16 %v1831, %v1827
        %v2640 = vpack.c.b16 %v1832, %v1828
        %v2641 = vpack.c.b16 %v1833, %v1829
        %v2642 = vpack.c.b16 %v1834, %v1830
        %v2643 = vpack.c.b16 %v1839, %v1835
        %v2644 = vpack.c.b16 %v1840, %v1836
        %v2645 = vpack.c.b16 %v1841, %v1837
        %v2646 = vpack.c.b16 %v1842, %v1838
        %v2647 = vpack.c.b16 %v1847, %v1843
        %v2648 = vpack.c.b16 %v1848, %v1844
        %v2649 = vpack.c.b16 %v1849, %v1845
        %v2650 = vpack.c.b16 %v1850, %v1846
        %v2651 = vpack.c.b16 %v1855, %v1851
        %v2652 = vpack.c.b16 %v1856, %v1852
        %v2653 = vpack.c.b16 %v1857, %v1853
        %v2654 = vpack.c.b16 %v1858, %v1854
        %v2655 = vpack.c.b16 %v1863, %v1859
        %v2656 = vpack.c.b16 %v1864, %v1860
        %v2657 = vpack.c.b16 %v1865, %v1861
        %v2658 = vpack.c.b16 %v1866, %v1862
        %v2659 = vpack.c.b16 %v1871, %v1867
        %v2660 = vpack.c.b16 %v1872, %v1868
        %v2661 = vpack.c.b16 %v1873, %v1869
        %v2662 = vpack.c.b16 %v1874, %v1870
        %v2663 = vpack.c.b16 %v1879, %v1875
        %v2664 = vpack.c.b16 %v1880, %v1876
        %v2665 = vpack.c.b16 %v1881, %v1877
        %v2666 = vpack.c.b16 %v1882, %v1878
        %v2667 = vpack.c.b16 %v1887, %v1883
        %v2668 = vpack.c.b16 %v1888, %v1884
        %v2669 = vpack.c.b16 %v1889, %v1885
        %v2670 = vpack.c.b16 %v1890, %v1886
        %v2671 = vpack.c.b16 %v1895, %v1891
        %v2672 = vpack.c.b16 %v1896, %v1892
        %v2673 = vpack.c.b16 %v1897, %v1893
        %v2674 = vpack.c.b16 %v1898, %v1894
        %v2675 = vpack.c.b16 %v1903, %v1899
        %v2676 = vpack.c.b16 %v1904, %v1900
        %v2677 = vpack.c.b16 %v1905, %v1901
        %v2678 = vpack.c.b16 %v1906, %v1902
        %v2679 = vpack.c.b16 %v1911, %v1907
        %v2680 = vpack.c.b16 %v1912, %v1908
        %v2681 = vpack.c.b16 %v1913, %v1909
        %v2682 = vpack.c.b16 %v1914, %v1910
        %v2683 = vpack.c.b16 %v1919, %v1915
        %v2684 = vpack.c.b16 %v1920, %v1916
        %v2685 = vpack.c.b16 %v1921, %v1917
        %v2686 = vpack.c.b16 %v1922, %v1918
        %v2687 = vpack.c.b16 %v1927, %v1923
        %v2688 = vpack.c.b16 %v1928, %v1924
        %v2689 = vpack.c.b16 %v1929, %v1925
        %v2690 = vpack.c.b16 %v1930, %v1926
        %v2691 = vpack.c.b16 %v1935, %v1931
        %v2692 = vpack.c.b16 %v1936, %v1932
        %v2693 = vpack.c.b16 %v1937, %v1933
        %v2694 = vpack.c.b16 %v1938, %v1934
        %v2695 = vpack.c.b16 %v1943, %v1939
        %v2696 = vpack.c.b16 %v1944, %v1940
        %v2697 = vpack.c.b16 %v1945, %v1941
        %v2698 = vpack.c.b16 %v1946, %v1942
        %v2699 = vpack.c.b16 %v1951, %v1947
        %v2700 = vpack.c.b16 %v1952, %v1948
        %v2701 = vpack.c.b16 %v1953, %v1949
        %v2702 = vpack.c.b16 %v1954, %v1950
        %v2703 = vpack.c.b16 %v1959, %v1955
        %v2704 = vpack.c.b16 %v1960, %v1956
        %v2705 = vpack.c.b16 %v1961, %v1957
        %v2706 = vpack.c.b16 %v1962, %v1958
        %v2707 = vpack.c.b16 %v1967, %v1963
        %v2708 = vpack.c.b16 %v1968, %v1964
        %v2709 = vpack.c.b16 %v1969, %v1965
        %v2710 = vpack.c.b16 %v1970, %v1966
        %v2711 = vpack.c.b16 %v1975, %v1971
        %v2712 = vpack.c.b16 %v1976, %v1972
        %v2713 = vpack.c.b16 %v1977, %v1973
        %v2714 = vpack.c.b16 %v1978, %v1974
        %v2715 = vpack.c.b16 %v1983, %v1979
        %v2716 = vpack.c.b16 %v1984, %v1980
        %v2717 = vpack.c.b16 %v1985, %v1981
        %v2718 = vpack.c.b16 %v1986, %v1982
        %v2719 = vpack.c.b16 %v1991, %v1987
        %v2720 = vpack.c.b16 %v1992, %v1988
        %v2721 = vpack.c.b16 %v1993, %v1989
        %v2722 = vpack.c.b16 %v1994, %v1990
        %v2723 = vpack.c.b16 %v1999, %v1995
        %v2724 = vpack.c.b16 %v2000, %v1996
        %v2725 = vpack.c.b16 %v2001, %v1997
        %v2726 = vpack.c.b16 %v2002, %v1998
        %v2727 = vpack.c.b16 %v2007, %v2003
        %v2728 = vpack.c.b16 %v2008, %v2004
        %v2729 = vpack.c.b16 %v2009, %v2005
        %v2730 = vpack.c.b16 %v2010, %v2006
        %v2731 = vpack.c.b16 %v2015, %v2011
        %v2732 = vpack.c.b16 %v2016, %v2012
        %v2733 = vpack.c.b16 %v2017, %v2013
        %v2734 = vpack.c.b16 %v2018, %v2014
        %v2735 = vpack.c.b16 %v2023, %v2019
        %v2736 = vpack.c.b16 %v2024, %v2020
        %v2737 = vpack.c.b16 %v2025, %v2021
        %v2738 = vpack.c.b16 %v2026, %v2022
        %v2739 = vpack.c.b16 %v2031, %v2027
        %v2740 = vpack.c.b16 %v2032, %v2028
        %v2741 = vpack.c.b16 %v2033, %v2029
        %v2742 = vpack.c.b16 %v2034, %v2030
        %v2743 = vpack.c.b16 %v2039, %v2035
        %v2744 = vpack.c.b16 %v2040, %v2036
        %v2745 = vpack.c.b16 %v2041, %v2037
        %v2746 = vpack.c.b16 %v2042, %v2038
        %v2747 = vpack.c.b16 %v2047, %v2043
        %v2748 = vpack.c.b16 %v2048, %v2044
        %v2749 = vpack.c.b16 %v2049, %v2045
        %v2750 = vpack.c.b16 %v2050, %v2046
        %v2751 = vpack.c.b16 %v2055, %v2051
        %v2752 = vpack.c.b16 %v2056, %v2052
        %v2753 = vpack.c.b16 %v2057, %v2053
        %v2754 = vpack.c.b16 %v2058, %v2054
        %v2755 = vpack.c.b16 %v2063, %v2059
        %v2756 = vpack.c.b16 %v2064, %v2060
        %v2757 = vpack.c.b16 %v2065, %v2061
        %v2758 = vpack.c.b16 %v2066, %v2062
        %v2759 = vpack.c.b16 %v2071, %v2067
        %v2760 = vpack.c.b16 %v2072, %v2068
        %v2761 = vpack.c.b16 %v2073, %v2069
        %v2762 = vpack.c.b16 %v2074, %v2070
        %v2763 = vpack.c.b16 %v2079, %v2075
        %v2764 = vpack.c.b16 %v2080, %v2076
        %v2765 = vpack.c.b16 %v2081, %v2077
        %v2766 = vpack.c.b16 %v2082, %v2078
        %v2767 = vpack.c.b16 %v2087, %v2083
        %v2768 = vpack.c.b16 %v2088, %v2084
        %v2769 = vpack.c.b16 %v2089, %v2085
        %v2770 = vpack.c.b16 %v2090, %v2086
        %v2771 = vpack.c.b16 %v2095, %v2091
        %v2772 = vpack.c.b16 %v2096, %v2092
        %v2773 = vpack.c.b16 %v2097, %v2093
        %v2774 = vpack.c.b16 %v2098, %v2094
        %v2775 = vpack.c.b16 %v2103, %v2099
        %v2776 = vpack.c.b16 %v2104, %v2100
        %v2777 = vpack.c.b16 %v2105, %v2101
        %v2778 = vpack.c.b16 %v2106, %v2102
        %v2779 = vpack.c.b16 %v2111, %v2107
        %v2780 = vpack.c.b16 %v2112, %v2108
        %v2781 = vpack.c.b16 %v2113, %v2109
        %v2782 = vpack.c.b16 %v2114, %v2110
        %v2783 = vpack.c.b16 %v2119, %v2115
        %v2784 = vpack.c.b16 %v2120, %v2116
        %v2785 = vpack.c.b16 %v2121, %v2117
        %v2786 = vpack.c.b16 %v2122, %v2118
        %v2787 = vpack.c.b16 %v2127, %v2123
        %v2788 = vpack.c.b16 %v2128, %v2124
        %v2789 = vpack.c.b16 %v2129, %v2125
        %v2790 = vpack.c.b16 %v2130, %v2126
        %v2791 = vpack.c.b16 %v2135, %v2131
        %v2792 = vpack.c.b16 %v2136, %v2132
        %v2793 = vpack.c.b16 %v2137, %v2133
        %v2794 = vpack.c.b16 %v2138, %v2134
        %v2795 = vpack.c.b16 %v2143, %v2139
        %v2796 = vpack.c.b16 %v2144, %v2140
        %v2797 = vpack.c.b16 %v2145, %v2141
        %v2798 = vpack.c.b16 %v2146, %v2142
        %v2799 = vpack.c.b16 %v2151, %v2147
        %v2800 = vpack.c.b16 %v2152, %v2148
        %v2801 = vpack.c.b16 %v2153, %v2149
        %v2802 = vpack.c.b16 %v2154, %v2150
        %v2803 = vpack.c.b16 %v2159, %v2155
        %v2804 = vpack.c.b16 %v2160, %v2156
        %v2805 = vpack.c.b16 %v2161, %v2157
        %v2806 = vpack.c.b16 %v2162, %v2158
        %v2807 = vpack.c.b16 %v2167, %v2163
        %v2808 = vpack.c.b16 %v2168, %v2164
        %v2809 = vpack.c.b16 %v2169, %v2165
        %v2810 = vpack.c.b16 %v2170, %v2166
        %v2811 = vpack.c.b16 %v2175, %v2171
        %v2812 = vpack.c.b16 %v2176, %v2172
        %v2813 = vpack.c.b16 %v2177, %v2173
        %v2814 = vpack.c.b16 %v2178, %v2174
        %v2815 = vpack.c.b16 %v2183, %v2179
        %v2816 = vpack.c.b16 %v2184, %v2180
        %v2817 = vpack.c.b16 %v2185, %v2181
        %v2818 = vpack.c.b16 %v2186, %v2182
        %v2819 = vpack.c.b16 %v2191, %v2187
        %v2820 = vpack.c.b16 %v2192, %v2188
        %v2821 = vpack.c.b16 %v2193, %v2189
        %v2822 = vpack.c.b16 %v2194, %v2190
        %v2823 = vpack.c.b16 %v2199, %v2195
        %v2824 = vpack.c.b16 %v2200, %v2196
        %v2825 = vpack.c.b16 %v2201, %v2197
        %v2826 = vpack.c.b16 %v2202, %v2198
        %v2827 = vpack.c.b16 %v2207, %v2203
        %v2828 = vpack.c.b16 %v2208, %v2204
        %v2829 = vpack.c.b16 %v2209, %v2205
        %v2830 = vpack.c.b16 %v2210, %v2206
        %v2831 = vpack.c.b16 %v2215, %v2211
        %v2832 = vpack.c.b16 %v2216, %v2212
        %v2833 = vpack.c.b16 %v2217, %v2213
        %v2834 = vpack.c.b16 %v2218, %v2214
        %v2835 = vpack.c.b16 %v2223, %v2219
        %v2836 = vpack.c.b16 %v2224, %v2220
        %v2837 = vpack.c.b16 %v2225, %v2221
        %v2838 = vpack.c.b16 %v2226, %v2222
        %v2839 = vpack.c.b16 %v2231, %v2227
        %v2840 = vpack.c.b16 %v2232, %v2228
        %v2841 = vpack.c.b16 %v2233, %v2229
        %v2842 = vpack.c.b16 %v2234, %v2230
        %v2843 = vpack.c.b16 %v2239, %v2235
        %v2844 = vpack.c.b16 %v2240, %v2236
        %v2845 = vpack.c.b16 %v2241, %v2237
        %v2846 = vpack.c.b16 %v2242, %v2238
        %v2847 = vpack.c.b16 %v2247, %v2243
        %v2848 = vpack.c.b16 %v2248, %v2244
        %v2849 = vpack.c.b16 %v2249, %v2245
        %v2850 = vpack.c.b16 %v2250, %v2246
        %v2851 = vpack.c.b16 %v2255, %v2251
        %v2852 = vpack.c.b16 %v2256, %v2252
        %v2853 = vpack.c.b16 %v2257, %v2253
        %v2854 = vpack.c.b16 %v2258, %v2254
        %v2855 = vpack.c.b16 %v2263, %v2259
        %v2856 = vpack.c.b16 %v2264, %v2260
        %v2857 = vpack.c.b16 %v2265, %v2261
        %v2858 = vpack.c.b16 %v2266, %v2262
        %v2859 = vpack.c.b16 %v2271, %v2267
        %v2860 = vpack.c.b16 %v2272, %v2268
        %v2861 = vpack.c.b16 %v2273, %v2269
        %v2862 = vpack.c.b16 %v2274, %v2270
        %v2863 = vpack.c.b16 %v2279, %v2275
        %v2864 = vpack.c.b16 %v2280, %v2276
        %v2865 = vpack.c.b16 %v2281, %v2277
        %v2866 = vpack.c.b16 %v2282, %v2278
        %v2867 = vpack.c.b16 %v2287, %v2283
        %v2868 = vpack.c.b16 %v2288, %v2284
        %v2869 = vpack.c.b16 %v2289, %v2285
        %v2870 = vpack.c.b16 %v2290, %v2286
        %v2871 = vpack.c.b16 %v2295, %v2291
        %v2872 = vpack.c.b16 %v2296, %v2292
        %v2873 = vpack.c.b16 %v2297, %v2293
        %v2874 = vpack.c.b16 %v2298, %v2294
        %v2875 = vpack.c.b16 %v2303, %v2299
        %v2876 = vpack.c.b16 %v2304, %v2300
        %v2877 = vpack.c.b16 %v2305, %v2301
        %v2878 = vpack.c.b16 %v2306, %v2302
        %v2879 = vpack.c.b16 %v2311, %v2307
        %v2880 = vpack.c.b16 %v2312, %v2308
        %v2881 = vpack.c.b16 %v2313, %v2309
        %v2882 = vpack.c.b16 %v2314, %v2310
        %v2883 = vpack.c.b16 %v2319, %v2315
        %v2884 = vpack.c.b16 %v2320, %v2316
        %v2885 = vpack.c.b16 %v2321, %v2317
        %v2886 = vpack.c.b16 %v2322, %v2318
        %v2887 = vpack.c.b16 %v2327, %v2323
        %v2888 = vpack.c.b16 %v2328, %v2324
        %v2889 = vpack.c.b16 %v2329, %v2325
        %v2890 = vpack.c.b16 %v2330, %v2326
        %v2891 = vpack.c.b16 %v2335, %v2331
        %v2892 = vpack.c.b16 %v2336, %v2332
        %v2893 = vpack.c.b16 %v2337, %v2333
        %v2894 = vpack.c.b16 %v2338, %v2334
        %v2895 = vpack.c.b16 %v2343, %v2339
        %v2896 = vpack.c.b16 %v2344, %v2340
        %v2897 = vpack.c.b16 %v2345, %v2341
        %v2898 = vpack.c.b16 %v2346, %v2342
        %v2899 = vpack.c.b16 %v2351, %v2347
        %v2900 = vpack.c.b16 %v2352, %v2348
        %v2901 = vpack.c.b16 %v2353, %v2349
        %v2902 = vpack.c.b16 %v2354, %v2350
        %v2903 = vpack.c.b16 %v2359, %v2355
        %v2904 = vpack.c.b16 %v2360, %v2356
        %v2905 = vpack.c.b16 %v2361, %v2357
        %v2906 = vpack.c.b16 %v2362, %v2358
        %v2907 = vpack.c.b16 %v2367, %v2363
        %v2908 = vpack.c.b16 %v2368, %v2364
        %v2909 = vpack.c.b16 %v2369, %v2365
        %v2910 = vpack.c.b16 %v2370, %v2366
        %v2911 = vpack.c.b16 %v2375, %v2371
        %v2912 = vpack.c.b16 %v2376, %v2372
        %v2913 = vpack.c.b16 %v2377, %v2373
        %v2914 = vpack.c.b16 %v2378, %v2374
        %v2915 = vpack.c.b16 %v2383, %v2379
        %v2916 = vpack.c.b16 %v2384, %v2380
        %v2917 = vpack.c.b16 %v2385, %v2381
        %v2918 = vpack.c.b16 %v2386, %v2382
        %v2919 = vpack.c.b16 %v2391, %v2387
        %v2920 = vpack.c.b16 %v2392, %v2388
        %v2921 = vpack.c.b16 %v2393, %v2389
        %v2922 = vpack.c.b16 %v2394, %v2390
        %v2923 = vpack.c.b16 %v2399, %v2395
        %v2924 = vpack.c.b16 %v2400, %v2396
        %v2925 = vpack.c.b16 %v2401, %v2397
        %v2926 = vpack.c.b16 %v2402, %v2398
        %v2927 = vpack.c.b16 %v2407, %v2403
        %v2928 = vpack.c.b16 %v2408, %v2404
        %v2929 = vpack.c.b16 %v2409, %v2405
        %v2930 = vpack.c.b16 %v2410, %v2406
        %v2931 = vpack.c.b16 %v2415, %v2411
        %v2932 = vpack.c.b16 %v2416, %v2412
        %v2933 = vpack.c.b16 %v2417, %v2413
        %v2934 = vpack.c.b16 %v2418, %v2414
        %v2935 = vpack.c.b16 %v2423, %v2419
        %v2936 = vpack.c.b16 %v2424, %v2420
        %v2937 = vpack.c.b16 %v2425, %v2421
        %v2938 = vpack.c.b16 %v2426, %v2422
        %3451 = vmatprep.subr.bf16.mxu0 %v2428
        %3452 = vmatpush1.bf16.msra.mxu0 %v2427
        %3453 = vmatprep.subr.bf16.mxu0 %v2432
        %3454 = vmatpush1.bf16.msra.mxu0 %v2431
        %3455 = vmatprep.subr.bf16.mxu0 %v2436
        %3456 = vmatpush1.bf16.msra.mxu0 %v2435
        %3457 = vmatprep.subr.bf16.mxu0 %v2440
        %3458 = vmatpush1.bf16.msra.mxu0 %v2439
        %3459 = vmatprep.subr.bf16.mxu0 %v2444
        %3460 = vmatpush1.bf16.msra.mxu0 %v2443
        %3461 = vmatprep.subr.bf16.mxu0 %v2448
        %3462 = vmatpush1.bf16.msra.mxu0 %v2447
        %3463 = vmatprep.subr.bf16.mxu0 %v2452
        %3464 = vmatpush1.bf16.msra.mxu0 %v2451
        %3465 = vmatprep.subr.bf16.mxu0 %v2456
        %3466 = vmatpush1.bf16.msra.mxu0 %v2455
        %3467 = vmatprep.subr.bf16.mxu0 %v2460
        %3468 = vmatpush1.bf16.msra.mxu0 %v2459
        %3469 = vmatprep.subr.bf16.mxu0 %v2464
        %3470 = vmatpush1.bf16.msra.mxu0 %v2463
        %3471 = vmatprep.subr.bf16.mxu0 %v2468
        %3472 = vmatpush1.bf16.msra.mxu0 %v2467
        %3473 = vmatprep.subr.bf16.mxu0 %v2472
        %3474 = vmatpush1.bf16.msra.mxu0 %v2471
        %3475 = vmatprep.subr.bf16.mxu0 %v2476
        %3476 = vmatpush1.bf16.msra.mxu0 %v2475
        %3477 = vmatprep.subr.bf16.mxu0 %v2480
        %3478 = vmatpush1.bf16.msra.mxu0 %v2479
        %3479 = vmatprep.subr.bf16.mxu0 %v2484
        %3480 = vmatpush1.bf16.msra.mxu0 %v2483
        %3481 = vmatprep.subr.bf16.mxu0 %v2488
        %3482 = vmatpush1.bf16.msra.mxu0 %v2487
        %3483 = vmatprep.mubr.bf16.mxu0 %v860
        %3484 = vmatmul.mubr.bf16.gmra.mrb[0].mxu0 %v859
        %v3485 = vpop.f32.mrb[0].mxu0
        %v3486 = vadd.f32 0.0, %v3485
        %v3487 = vpop.f32.mrb[0].mxu0
        %v3488 = vadd.f32 0.0, %v3487
        %v3489 = vpop.f32.mrb[0].mxu0
        %v3490 = vadd.f32 0.0, %v3489
        %v3491 = vpop.f32.mrb[0].mxu0
        %v3492 = vadd.f32 0.0, %v3491
        %3493 = vdwg.mxu0
        %3494 = vmatprep.subr.bf16.mxu0 %v2492
        %3495 = vmatpush1.bf16.msra.mxu0 %v2491
        %3496 = vmatprep.subr.bf16.mxu0 %v2496
        %3497 = vmatpush1.bf16.msra.mxu0 %v2495
        %3498 = vmatprep.subr.bf16.mxu0 %v2500
        %3499 = vmatpush1.bf16.msra.mxu0 %v2499
        %3500 = vmatprep.subr.bf16.mxu0 %v2504
        %3501 = vmatpush1.bf16.msra.mxu0 %v2503
        %3502 = vmatprep.subr.bf16.mxu0 %v2508
        %3503 = vmatpush1.bf16.msra.mxu0 %v2507
        %3504 = vmatprep.subr.bf16.mxu0 %v2512
        %3505 = vmatpush1.bf16.msra.mxu0 %v2511
        %3506 = vmatprep.subr.bf16.mxu0 %v2516
        %3507 = vmatpush1.bf16.msra.mxu0 %v2515
        %3508 = vmatprep.subr.bf16.mxu0 %v2520
        %3509 = vmatpush1.bf16.msra.mxu0 %v2519
        %3510 = vmatprep.subr.bf16.mxu0 %v2524
        %3511 = vmatpush1.bf16.msra.mxu0 %v2523
        %3512 = vmatprep.subr.bf16.mxu0 %v2528
        %3513 = vmatpush1.bf16.msra.mxu0 %v2527
        %3514 = vmatprep.subr.bf16.mxu0 %v2532
        %3515 = vmatpush1.bf16.msra.mxu0 %v2531
        %3516 = vmatprep.subr.bf16.mxu0 %v2536
        %3517 = vmatpush1.bf16.msra.mxu0 %v2535
        %3518 = vmatprep.subr.bf16.mxu0 %v2540
        %3519 = vmatpush1.bf16.msra.mxu0 %v2539
        %3520 = vmatprep.subr.bf16.mxu0 %v2544
        %3521 = vmatpush1.bf16.msra.mxu0 %v2543
        %3522 = vmatprep.subr.bf16.mxu0 %v2548
        %3523 = vmatpush1.bf16.msra.mxu0 %v2547
        %3524 = vmatprep.subr.bf16.mxu0 %v2552
        %3525 = vmatpush1.bf16.msra.mxu0 %v2551
        %3526 = vmatprep.mubr.bf16.mxu0 %v862
        %3527 = vmatmul.mubr.bf16.gmra.mrb[0].mxu0 %v861
        %v3528 = vpop.f32.mrb[0].mxu0
        %v3529 = vadd.f32 %v3486, %v3528
        %v3530 = vpop.f32.mrb[0].mxu0
        %v3531 = vadd.f32 %v3488, %v3530
        %v3532 = vpop.f32.mrb[0].mxu0
        %v3533 = vadd.f32 %v3490, %v3532
        %v3534 = vpop.f32.mrb[0].mxu0
        %v3535 = vadd.f32 %v3492, %v3534
        %3536 = vdwg.mxu0
        %3537 = vmatprep.subr.bf16.mxu0 %v2556
        %3538 = vmatpush1.bf16.msra.mxu0 %v2555
        %3539 = vmatprep.subr.bf16.mxu0 %v2560
        %3540 = vmatpush1.bf16.msra.mxu0 %v2559
        %3541 = vmatprep.subr.bf16.mxu0 %v2564
        %3542 = vmatpush1.bf16.msra.mxu0 %v2563
        %3543 = vmatprep.subr.bf16.mxu0 %v2568
        %3544 = vmatpush1.bf16.msra.mxu0 %v2567
        %3545 = vmatprep.subr.bf16.mxu0 %v2572
        %3546 = vmatpush1.bf16.msra.mxu0 %v2571
        %3547 = vmatprep.subr.bf16.mxu0 %v2576
        %3548 = vmatpush1.bf16.msra.mxu0 %v2575
        %3549 = vmatprep.subr.bf16.mxu0 %v2580
        %3550 = vmatpush1.bf16.msra.mxu0 %v2579
        %3551 = vmatprep.subr.bf16.mxu0 %v2584
        %3552 = vmatpush1.bf16.msra.mxu0 %v2583
        %3553 = vmatprep.subr.bf16.mxu0 %v2588
        %3554 = vmatpush1.bf16.msra.mxu0 %v2587
        %3555 = vmatprep.subr.bf16.mxu0 %v2592
        %3556 = vmatpush1.bf16.msra.mxu0 %v2591
        %3557 = vmatprep.subr.bf16.mxu0 %v2596
        %3558 = vmatpush1.bf16.msra.mxu0 %v2595
        %3559 = vmatprep.subr.bf16.mxu0 %v2600
        %3560 = vmatpush1.bf16.msra.mxu0 %v2599
        %3561 = vmatprep.subr.bf16.mxu0 %v2604
        %3562 = vmatpush1.bf16.msra.mxu0 %v2603
        %3563 = vmatprep.subr.bf16.mxu0 %v2608
        %3564 = vmatpush1.bf16.msra.mxu0 %v2607
        %3565 = vmatprep.subr.bf16.mxu0 %v2612
        %3566 = vmatpush1.bf16.msra.mxu0 %v2611
        %3567 = vmatprep.subr.bf16.mxu0 %v2616
        %3568 = vmatpush1.bf16.msra.mxu0 %v2615
        %3569 = vmatprep.mubr.bf16.mxu0 %v864
        %3570 = vmatmul.mubr.bf16.gmra.mrb[0].mxu0 %v863
        %v3571 = vpop.f32.mrb[0].mxu0
        %v3572 = vadd.f32 %v3529, %v3571
        %v3573 = vpop.f32.mrb[0].mxu0
        %v3574 = vadd.f32 %v3531, %v3573
        %v3575 = vpop.f32.mrb[0].mxu0
        %v3576 = vadd.f32 %v3533, %v3575
        %v3577 = vpop.f32.mrb[0].mxu0
        %v3578 = vadd.f32 %v3535, %v3577
        %3579 = vdwg.mxu0
        %3580 = vmatprep.subr.bf16.mxu0 %v2620
        %3581 = vmatpush1.bf16.msra.mxu0 %v2619
        %3582 = vmatprep.subr.bf16.mxu0 %v2624
        %3583 = vmatpush1.bf16.msra.mxu0 %v2623
        %3584 = vmatprep.subr.bf16.mxu0 %v2628
        %3585 = vmatpush1.bf16.msra.mxu0 %v2627
        %3586 = vmatprep.subr.bf16.mxu0 %v2632
        %3587 = vmatpush1.bf16.msra.mxu0 %v2631
        %3588 = vmatprep.subr.bf16.mxu0 %v2636
        %3589 = vmatpush1.bf16.msra.mxu0 %v2635
        %3590 = vmatprep.subr.bf16.mxu0 %v2640
        %3591 = vmatpush1.bf16.msra.mxu0 %v2639
        %3592 = vmatprep.subr.bf16.mxu0 %v2644
        %3593 = vmatpush1.bf16.msra.mxu0 %v2643
        %3594 = vmatprep.subr.bf16.mxu0 %v2648
        %3595 = vmatpush1.bf16.msra.mxu0 %v2647
        %3596 = vmatprep.subr.bf16.mxu0 %v2652
        %3597 = vmatpush1.bf16.msra.mxu0 %v2651
        %3598 = vmatprep.subr.bf16.mxu0 %v2656
        %3599 = vmatpush1.bf16.msra.mxu0 %v2655
        %3600 = vmatprep.subr.bf16.mxu0 %v2660
        %3601 = vmatpush1.bf16.msra.mxu0 %v2659
        %3602 = vmatprep.subr.bf16.mxu0 %v2664
        %3603 = vmatpush1.bf16.msra.mxu0 %v2663
        %3604 = vmatprep.subr.bf16.mxu0 %v2668
        %3605 = vmatpush1.bf16.msra.mxu0 %v2667
        %3606 = vmatprep.subr.bf16.mxu0 %v2672
        %3607 = vmatpush1.bf16.msra.mxu0 %v2671
        %3608 = vmatprep.subr.bf16.mxu0 %v2676
        %3609 = vmatpush1.bf16.msra.mxu0 %v2675
        %3610 = vmatprep.subr.bf16.mxu0 %v2680
        %3611 = vmatpush1.bf16.msra.mxu0 %v2679
        %3612 = vmatprep.mubr.bf16.mxu0 %v866
        %3613 = vmatmul.mubr.bf16.gmra.mrb[0].mxu0 %v865
        %v3614 = vpop.f32.mrb[0].mxu0
        %v3615 = vadd.f32 %v3572, %v3614
        %v3616 = vpop.f32.mrb[0].mxu0
        %v3617 = vadd.f32 %v3574, %v3616
        %v3618 = vpop.f32.mrb[0].mxu0
        %v3619 = vadd.f32 %v3576, %v3618
        %v3620 = vpop.f32.mrb[0].mxu0
        %v3621 = vadd.f32 %v3578, %v3620
        %3622 = vdwg.mxu0
        %3623 = vmatprep.subr.bf16.mxu0 %v2684
        %3624 = vmatpush1.bf16.msra.mxu0 %v2683
        %3625 = vmatprep.subr.bf16.mxu0 %v2688
        %3626 = vmatpush1.bf16.msra.mxu0 %v2687
        %3627 = vmatprep.subr.bf16.mxu0 %v2692
        %3628 = vmatpush1.bf16.msra.mxu0 %v2691
        %3629 = vmatprep.subr.bf16.mxu0 %v2696
        %3630 = vmatpush1.bf16.msra.mxu0 %v2695
        %3631 = vmatprep.subr.bf16.mxu0 %v2700
        %3632 = vmatpush1.bf16.msra.mxu0 %v2699
        %3633 = vmatprep.subr.bf16.mxu0 %v2704
        %3634 = vmatpush1.bf16.msra.mxu0 %v2703
        %3635 = vmatprep.subr.bf16.mxu0 %v2708
        %3636 = vmatpush1.bf16.msra.mxu0 %v2707
        %3637 = vmatprep.subr.bf16.mxu0 %v2712
        %3638 = vmatpush1.bf16.msra.mxu0 %v2711
        %3639 = vmatprep.subr.bf16.mxu0 %v2716
        %3640 = vmatpush1.bf16.msra.mxu0 %v2715
        %3641 = vmatprep.subr.bf16.mxu0 %v2720
        %3642 = vmatpush1.bf16.msra.mxu0 %v2719
        %3643 = vmatprep.subr.bf16.mxu0 %v2724
        %3644 = vmatpush1.bf16.msra.mxu0 %v2723
        %3645 = vmatprep.subr.bf16.mxu0 %v2728
        %3646 = vmatpush1.bf16.msra.mxu0 %v2727
        %3647 = vmatprep.subr.bf16.mxu0 %v2732
        %3648 = vmatpush1.bf16.msra.mxu0 %v2731
        %3649 = vmatprep.subr.bf16.mxu0 %v2736
        %3650 = vmatpush1.bf16.msra.mxu0 %v2735
        %3651 = vmatprep.subr.bf16.mxu0 %v2740
        %3652 = vmatpush1.bf16.msra.mxu0 %v2739
        %3653 = vmatprep.subr.bf16.mxu0 %v2744
        %3654 = vmatpush1.bf16.msra.mxu0 %v2743
        %3655 = vmatprep.mubr.bf16.mxu0 %v868
        %3656 = vmatmul.mubr.bf16.gmra.mrb[0].mxu0 %v867
        %v3657 = vpop.f32.mrb[0].mxu0
        %v3658 = vadd.f32 %v3615, %v3657
        %v3659 = vpop.f32.mrb[0].mxu0
        %v3660 = vadd.f32 %v3617, %v3659
        %v3661 = vpop.f32.mrb[0].mxu0
        %v3662 = vadd.f32 %v3619, %v3661
        %v3663 = vpop.f32.mrb[0].mxu0
        %v3664 = vadd.f32 %v3621, %v3663
        %3665 = vdwg.mxu0
        %3666 = vmatprep.subr.bf16.mxu0 %v2748
        %3667 = vmatpush1.bf16.msra.mxu0 %v2747
        %3668 = vmatprep.subr.bf16.mxu0 %v2752
        %3669 = vmatpush1.bf16.msra.mxu0 %v2751
        %3670 = vmatprep.subr.bf16.mxu0 %v2756
        %3671 = vmatpush1.bf16.msra.mxu0 %v2755
        %3672 = vmatprep.subr.bf16.mxu0 %v2760
        %3673 = vmatpush1.bf16.msra.mxu0 %v2759
        %3674 = vmatprep.subr.bf16.mxu0 %v2764
        %3675 = vmatpush1.bf16.msra.mxu0 %v2763
        %3676 = vmatprep.subr.bf16.mxu0 %v2768
        %3677 = vmatpush1.bf16.msra.mxu0 %v2767
        %3678 = vmatprep.subr.bf16.mxu0 %v2772
        %3679 = vmatpush1.bf16.msra.mxu0 %v2771
        %3680 = vmatprep.subr.bf16.mxu0 %v2776
        %3681 = vmatpush1.bf16.msra.mxu0 %v2775
        %3682 = vmatprep.subr.bf16.mxu0 %v2780
        %3683 = vmatpush1.bf16.msra.mxu0 %v2779
        %3684 = vmatprep.subr.bf16.mxu0 %v2784
        %3685 = vmatpush1.bf16.msra.mxu0 %v2783
        %3686 = vmatprep.subr.bf16.mxu0 %v2788
        %3687 = vmatpush1.bf16.msra.mxu0 %v2787
        %3688 = vmatprep.subr.bf16.mxu0 %v2792
        %3689 = vmatpush1.bf16.msra.mxu0 %v2791
        %3690 = vmatprep.subr.bf16.mxu0 %v2796
        %3691 = vmatpush1.bf16.msra.mxu0 %v2795
        %3692 = vmatprep.subr.bf16.mxu0 %v2800
        %3693 = vmatpush1.bf16.msra.mxu0 %v2799
        %3694 = vmatprep.subr.bf16.mxu0 %v2804
        %3695 = vmatpush1.bf16.msra.mxu0 %v2803
        %3696 = vmatprep.subr.bf16.mxu0 %v2808
        %3697 = vmatpush1.bf16.msra.mxu0 %v2807
        %3698 = vmatprep.mubr.bf16.mxu0 %v870
        %3699 = vmatmul.mubr.bf16.gmra.mrb[0].mxu0 %v869
        %v3700 = vpop.f32.mrb[0].mxu0
        %v3701 = vadd.f32 %v3658, %v3700
        %v3702 = vpop.f32.mrb[0].mxu0
        %v3703 = vadd.f32 %v3660, %v3702
        %v3704 = vpop.f32.mrb[0].mxu0
        %v3705 = vadd.f32 %v3662, %v3704
        %v3706 = vpop.f32.mrb[0].mxu0
        %v3707 = vadd.f32 %v3664, %v3706
        %3708 = vdwg.mxu0
        %3709 = vmatprep.subr.bf16.mxu0 %v2812
        %3710 = vmatpush1.bf16.msra.mxu0 %v2811
        %3711 = vmatprep.subr.bf16.mxu0 %v2816
        %3712 = vmatpush1.bf16.msra.mxu0 %v2815
        %3713 = vmatprep.subr.bf16.mxu0 %v2820
        %3714 = vmatpush1.bf16.msra.mxu0 %v2819
        %3715 = vmatprep.subr.bf16.mxu0 %v2824
        %3716 = vmatpush1.bf16.msra.mxu0 %v2823
        %3717 = vmatprep.subr.bf16.mxu0 %v2828
        %3718 = vmatpush1.bf16.msra.mxu0 %v2827
        %3719 = vmatprep.subr.bf16.mxu0 %v2832
        %3720 = vmatpush1.bf16.msra.mxu0 %v2831
        %3721 = vmatprep.subr.bf16.mxu0 %v2836
        %3722 = vmatpush1.bf16.msra.mxu0 %v2835
        %3723 = vmatprep.subr.bf16.mxu0 %v2840
        %3724 = vmatpush1.bf16.msra.mxu0 %v2839
        %3725 = vmatprep.subr.bf16.mxu0 %v2844
        %3726 = vmatpush1.bf16.msra.mxu0 %v2843
        %3727 = vmatprep.subr.bf16.mxu0 %v2848
        %3728 = vmatpush1.bf16.msra.mxu0 %v2847
        %3729 = vmatprep.subr.bf16.mxu0 %v2852
        %3730 = vmatpush1.bf16.msra.mxu0 %v2851
        %3731 = vmatprep.subr.bf16.mxu0 %v2856
        %3732 = vmatpush1.bf16.msra.mxu0 %v2855
        %3733 = vmatprep.subr.bf16.mxu0 %v2860
        %3734 = vmatpush1.bf16.msra.mxu0 %v2859
        %3735 = vmatprep.subr.bf16.mxu0 %v2864
        %3736 = vmatpush1.bf16.msra.mxu0 %v2863
        %3737 = vmatprep.subr.bf16.mxu0 %v2868
        %3738 = vmatpush1.bf16.msra.mxu0 %v2867
        %3739 = vmatprep.subr.bf16.mxu0 %v2872
        %3740 = vmatpush1.bf16.msra.mxu0 %v2871
        %3741 = vmatprep.mubr.bf16.mxu0 %v872
        %3742 = vmatmul.mubr.bf16.gmra.mrb[0].mxu0 %v871
        %v3743 = vpop.f32.mrb[0].mxu0
        %v3744 = vadd.f32 %v3701, %v3743
        %v3745 = vpop.f32.mrb[0].mxu0
        %v3746 = vadd.f32 %v3703, %v3745
        %v3747 = vpop.f32.mrb[0].mxu0
        %v3748 = vadd.f32 %v3705, %v3747
        %v3749 = vpop.f32.mrb[0].mxu0
        %v3750 = vadd.f32 %v3707, %v3749
        %3751 = vdwg.mxu0
        %3752 = vmatprep.subr.bf16.mxu0 %v2876
        %3753 = vmatpush1.bf16.msra.mxu0 %v2875
        %3754 = vmatprep.subr.bf16.mxu0 %v2880
        %3755 = vmatpush1.bf16.msra.mxu0 %v2879
        %3756 = vmatprep.subr.bf16.mxu0 %v2884
        %3757 = vmatpush1.bf16.msra.mxu0 %v2883
        %3758 = vmatprep.subr.bf16.mxu0 %v2888
        %3759 = vmatpush1.bf16.msra.mxu0 %v2887
        %3760 = vmatprep.subr.bf16.mxu0 %v2892
        %3761 = vmatpush1.bf16.msra.mxu0 %v2891
        %3762 = vmatprep.subr.bf16.mxu0 %v2896
        %3763 = vmatpush1.bf16.msra.mxu0 %v2895
        %3764 = vmatprep.subr.bf16.mxu0 %v2900
        %3765 = vmatpush1.bf16.msra.mxu0 %v2899
        %3766 = vmatprep.subr.bf16.mxu0 %v2904
        %3767 = vmatpush1.bf16.msra.mxu0 %v2903
        %3768 = vmatprep.subr.bf16.mxu0 %v2908
        %3769 = vmatpush1.bf16.msra.mxu0 %v2907
        %3770 = vmatprep.subr.bf16.mxu0 %v2912
        %3771 = vmatpush1.bf16.msra.mxu0 %v2911
        %3772 = vmatprep.subr.bf16.mxu0 %v2916
        %3773 = vmatpush1.bf16.msra.mxu0 %v2915
        %3774 = vmatprep.subr.bf16.mxu0 %v2920
        %3775 = vmatpush1.bf16.msra.mxu0 %v2919
        %3776 = vmatprep.subr.bf16.mxu0 %v2924
        %3777 = vmatpush1.bf16.msra.mxu0 %v2923
        %3778 = vmatprep.subr.bf16.mxu0 %v2928
        %3779 = vmatpush1.bf16.msra.mxu0 %v2927
        %3780 = vmatprep.subr.bf16.mxu0 %v2932
        %3781 = vmatpush1.bf16.msra.mxu0 %v2931
        %3782 = vmatprep.subr.bf16.mxu0 %v2936
        %3783 = vmatpush1.bf16.msra.mxu0 %v2935
        %3784 = vmatprep.mubr.bf16.mxu0 %v874
        %3785 = vmatmul.mubr.bf16.gmra.mrb[0].mxu0 %v873
        %v3786 = vpop.f32.mrb[0].mxu0
        %v3787 = vadd.f32 %v3744, %v3786
        %v3788 = vpop.f32.mrb[0].mxu0
        %v3789 = vadd.f32 %v3746, %v3788
        %v3790 = vpop.f32.mrb[0].mxu0
        %v3791 = vadd.f32 %v3748, %v3790
        %v3792 = vpop.f32.mrb[0].mxu0
        %v3793 = vadd.f32 %v3750, %v3792
        %3794 = vdwg.mxu0
        %3795 = vmatprep.subr.bf16.mxu0 %v2430
        %3796 = vmatpush1.bf16.msra.mxu0 %v2429
        %3797 = vmatprep.subr.bf16.mxu0 %v2434
        %3798 = vmatpush1.bf16.msra.mxu0 %v2433
        %3799 = vmatprep.subr.bf16.mxu0 %v2438
        %3800 = vmatpush1.bf16.msra.mxu0 %v2437
        %3801 = vmatprep.subr.bf16.mxu0 %v2442
        %3802 = vmatpush1.bf16.msra.mxu0 %v2441
        %3803 = vmatprep.subr.bf16.mxu0 %v2446
        %3804 = vmatpush1.bf16.msra.mxu0 %v2445
        %3805 = vmatprep.subr.bf16.mxu0 %v2450
        %3806 = vmatpush1.bf16.msra.mxu0 %v2449
        %3807 = vmatprep.subr.bf16.mxu0 %v2454
        %3808 = vmatpush1.bf16.msra.mxu0 %v2453
        %3809 = vmatprep.subr.bf16.mxu0 %v2458
        %3810 = vmatpush1.bf16.msra.mxu0 %v2457
        %3811 = vmatprep.subr.bf16.mxu0 %v2462
        %3812 = vmatpush1.bf16.msra.mxu0 %v2461
        %3813 = vmatprep.subr.bf16.mxu0 %v2466
        %3814 = vmatpush1.bf16.msra.mxu0 %v2465
        %3815 = vmatprep.subr.bf16.mxu0 %v2470
        %3816 = vmatpush1.bf16.msra.mxu0 %v2469
        %3817 = vmatprep.subr.bf16.mxu0 %v2474
        %3818 = vmatpush1.bf16.msra.mxu0 %v2473
        %3819 = vmatprep.subr.bf16.mxu0 %v2478
        %3820 = vmatpush1.bf16.msra.mxu0 %v2477
        %3821 = vmatprep.subr.bf16.mxu0 %v2482
        %3822 = vmatpush1.bf16.msra.mxu0 %v2481
        %3823 = vmatprep.subr.bf16.mxu0 %v2486
        %3824 = vmatpush1.bf16.msra.mxu0 %v2485
        %3825 = vmatprep.subr.bf16.mxu0 %v2490
        %3826 = vmatpush1.bf16.msra.mxu0 %v2489
        %3827 = vmatprep.mubr.bf16.mxu0 %v860
        %3828 = vmatmul.mubr.bf16.gmra.mrb[0].mxu0 %v859
        %v3829 = vpop.f32.mrb[0].mxu0
        %v3830 = vadd.f32 0.0, %v3829
        %v3831 = vpop.f32.mrb[0].mxu0
        %v3832 = vadd.f32 0.0, %v3831
        %v3833 = vpop.f32.mrb[0].mxu0
        %v3834 = vadd.f32 0.0, %v3833
        %v3835 = vpop.f32.mrb[0].mxu0
        %v3836 = vadd.f32 0.0, %v3835
        %3837 = vdwg.mxu0
        %3838 = vmatprep.subr.bf16.mxu0 %v2494
        %3839 = vmatpush1.bf16.msra.mxu0 %v2493
        %3840 = vmatprep.subr.bf16.mxu0 %v2498
        %3841 = vmatpush1.bf16.msra.mxu0 %v2497
        %3842 = vmatprep.subr.bf16.mxu0 %v2502
        %3843 = vmatpush1.bf16.msra.mxu0 %v2501
        %3844 = vmatprep.subr.bf16.mxu0 %v2506
        %3845 = vmatpush1.bf16.msra.mxu0 %v2505
        %3846 = vmatprep.subr.bf16.mxu0 %v2510
        %3847 = vmatpush1.bf16.msra.mxu0 %v2509
        %3848 = vmatprep.subr.bf16.mxu0 %v2514
        %3849 = vmatpush1.bf16.msra.mxu0 %v2513
        %3850 = vmatprep.subr.bf16.mxu0 %v2518
        %3851 = vmatpush1.bf16.msra.mxu0 %v2517
        %3852 = vmatprep.subr.bf16.mxu0 %v2522
        %3853 = vmatpush1.bf16.msra.mxu0 %v2521
        %3854 = vmatprep.subr.bf16.mxu0 %v2526
        %3855 = vmatpush1.bf16.msra.mxu0 %v2525
        %3856 = vmatprep.subr.bf16.mxu0 %v2530
        %3857 = vmatpush1.bf16.msra.mxu0 %v2529
        %3858 = vmatprep.subr.bf16.mxu0 %v2534
        %3859 = vmatpush1.bf16.msra.mxu0 %v2533
        %3860 = vmatprep.subr.bf16.mxu0 %v2538
        %3861 = vmatpush1.bf16.msra.mxu0 %v2537
        %3862 = vmatprep.subr.bf16.mxu0 %v2542
        %3863 = vmatpush1.bf16.msra.mxu0 %v2541
        %3864 = vmatprep.subr.bf16.mxu0 %v2546
        %3865 = vmatpush1.bf16.msra.mxu0 %v2545
        %3866 = vmatprep.subr.bf16.mxu0 %v2550
        %3867 = vmatpush1.bf16.msra.mxu0 %v2549
        %3868 = vmatprep.subr.bf16.mxu0 %v2554
        %3869 = vmatpush1.bf16.msra.mxu0 %v2553
        %3870 = vmatprep.mubr.bf16.mxu0 %v862
        %3871 = vmatmul.mubr.bf16.gmra.mrb[0].mxu0 %v861
        %v3872 = vpop.f32.mrb[0].mxu0
        %v3873 = vadd.f32 %v3830, %v3872
        %v3874 = vpop.f32.mrb[0].mxu0
        %v3875 = vadd.f32 %v3832, %v3874
        %v3876 = vpop.f32.mrb[0].mxu0
        %v3877 = vadd.f32 %v3834, %v3876
        %v3878 = vpop.f32.mrb[0].mxu0
        %v3879 = vadd.f32 %v3836, %v3878
        %3880 = vdwg.mxu0
        %3881 = vmatprep.subr.bf16.mxu0 %v2558
        %3882 = vmatpush1.bf16.msra.mxu0 %v2557
        %3883 = vmatprep.subr.bf16.mxu0 %v2562
        %3884 = vmatpush1.bf16.msra.mxu0 %v2561
        %3885 = vmatprep.subr.bf16.mxu0 %v2566
        %3886 = vmatpush1.bf16.msra.mxu0 %v2565
        %3887 = vmatprep.subr.bf16.mxu0 %v2570
        %3888 = vmatpush1.bf16.msra.mxu0 %v2569
        %3889 = vmatprep.subr.bf16.mxu0 %v2574
        %3890 = vmatpush1.bf16.msra.mxu0 %v2573
        %3891 = vmatprep.subr.bf16.mxu0 %v2578
        %3892 = vmatpush1.bf16.msra.mxu0 %v2577
        %3893 = vmatprep.subr.bf16.mxu0 %v2582
        %3894 = vmatpush1.bf16.msra.mxu0 %v2581
        %3895 = vmatprep.subr.bf16.mxu0 %v2586
        %3896 = vmatpush1.bf16.msra.mxu0 %v2585
        %3897 = vmatprep.subr.bf16.mxu0 %v2590
        %3898 = vmatpush1.bf16.msra.mxu0 %v2589
        %3899 = vmatprep.subr.bf16.mxu0 %v2594
        %3900 = vmatpush1.bf16.msra.mxu0 %v2593
        %3901 = vmatprep.subr.bf16.mxu0 %v2598
        %3902 = vmatpush1.bf16.msra.mxu0 %v2597
        %3903 = vmatprep.subr.bf16.mxu0 %v2602
        %3904 = vmatpush1.bf16.msra.mxu0 %v2601
        %3905 = vmatprep.subr.bf16.mxu0 %v2606
        %3906 = vmatpush1.bf16.msra.mxu0 %v2605
        %3907 = vmatprep.subr.bf16.mxu0 %v2610
        %3908 = vmatpush1.bf16.msra.mxu0 %v2609
        %3909 = vmatprep.subr.bf16.mxu0 %v2614
        %3910 = vmatpush1.bf16.msra.mxu0 %v2613
        %3911 = vmatprep.subr.bf16.mxu0 %v2618
        %3912 = vmatpush1.bf16.msra.mxu0 %v2617
        %3913 = vmatprep.mubr.bf16.mxu0 %v864
        %3914 = vmatmul.mubr.bf16.gmra.mrb[0].mxu0 %v863
        %v3915 = vpop.f32.mrb[0].mxu0
        %v3916 = vadd.f32 %v3873, %v3915
        %v3917 = vpop.f32.mrb[0].mxu0
        %v3918 = vadd.f32 %v3875, %v3917
        %v3919 = vpop.f32.mrb[0].mxu0
        %v3920 = vadd.f32 %v3877, %v3919
        %v3921 = vpop.f32.mrb[0].mxu0
        %v3922 = vadd.f32 %v3879, %v3921
        %3923 = vdwg.mxu0
        %3924 = vmatprep.subr.bf16.mxu0 %v2622
        %3925 = vmatpush1.bf16.msra.mxu0 %v2621
        %3926 = vmatprep.subr.bf16.mxu0 %v2626
        %3927 = vmatpush1.bf16.msra.mxu0 %v2625
        %3928 = vmatprep.subr.bf16.mxu0 %v2630
        %3929 = vmatpush1.bf16.msra.mxu0 %v2629
        %3930 = vmatprep.subr.bf16.mxu0 %v2634
        %3931 = vmatpush1.bf16.msra.mxu0 %v2633
        %3932 = vmatprep.subr.bf16.mxu0 %v2638
        %3933 = vmatpush1.bf16.msra.mxu0 %v2637
        %3934 = vmatprep.subr.bf16.mxu0 %v2642
        %3935 = vmatpush1.bf16.msra.mxu0 %v2641
        %3936 = vmatprep.subr.bf16.mxu0 %v2646
        %3937 = vmatpush1.bf16.msra.mxu0 %v2645
        %3938 = vmatprep.subr.bf16.mxu0 %v2650
        %3939 = vmatpush1.bf16.msra.mxu0 %v2649
        %3940 = vmatprep.subr.bf16.mxu0 %v2654
        %3941 = vmatpush1.bf16.msra.mxu0 %v2653
        %3942 = vmatprep.subr.bf16.mxu0 %v2658
        %3943 = vmatpush1.bf16.msra.mxu0 %v2657
        %3944 = vmatprep.subr.bf16.mxu0 %v2662
        %3945 = vmatpush1.bf16.msra.mxu0 %v2661
        %3946 = vmatprep.subr.bf16.mxu0 %v2666
        %3947 = vmatpush1.bf16.msra.mxu0 %v2665
        %3948 = vmatprep.subr.bf16.mxu0 %v2670
        %3949 = vmatpush1.bf16.msra.mxu0 %v2669
        %3950 = vmatprep.subr.bf16.mxu0 %v2674
        %3951 = vmatpush1.bf16.msra.mxu0 %v2673
        %3952 = vmatprep.subr.bf16.mxu0 %v2678
        %3953 = vmatpush1.bf16.msra.mxu0 %v2677
        %3954 = vmatprep.subr.bf16.mxu0 %v2682
        %3955 = vmatpush1.bf16.msra.mxu0 %v2681
        %3956 = vmatprep.mubr.bf16.mxu0 %v866
        %3957 = vmatmul.mubr.bf16.gmra.mrb[0].mxu0 %v865
        %v3958 = vpop.f32.mrb[0].mxu0
        %v3959 = vadd.f32 %v3916, %v3958
        %v3960 = vpop.f32.mrb[0].mxu0
        %v3961 = vadd.f32 %v3918, %v3960
        %v3962 = vpop.f32.mrb[0].mxu0
        %v3963 = vadd.f32 %v3920, %v3962
        %v3964 = vpop.f32.mrb[0].mxu0
        %v3965 = vadd.f32 %v3922, %v3964
        %3966 = vdwg.mxu0
        %3967 = vmatprep.subr.bf16.mxu0 %v2686
        %3968 = vmatpush1.bf16.msra.mxu0 %v2685
        %3969 = vmatprep.subr.bf16.mxu0 %v2690
        %3970 = vmatpush1.bf16.msra.mxu0 %v2689
        %3971 = vmatprep.subr.bf16.mxu0 %v2694
        %3972 = vmatpush1.bf16.msra.mxu0 %v2693
        %3973 = vmatprep.subr.bf16.mxu0 %v2698
        %3974 = vmatpush1.bf16.msra.mxu0 %v2697
        %3975 = vmatprep.subr.bf16.mxu0 %v2702
        %3976 = vmatpush1.bf16.msra.mxu0 %v2701
        %3977 = vmatprep.subr.bf16.mxu0 %v2706
        %3978 = vmatpush1.bf16.msra.mxu0 %v2705
        %3979 = vmatprep.subr.bf16.mxu0 %v2710
        %3980 = vmatpush1.bf16.msra.mxu0 %v2709
        %3981 = vmatprep.subr.bf16.mxu0 %v2714
        %3982 = vmatpush1.bf16.msra.mxu0 %v2713
        %3983 = vmatprep.subr.bf16.mxu0 %v2718
        %3984 = vmatpush1.bf16.msra.mxu0 %v2717
        %3985 = vmatprep.subr.bf16.mxu0 %v2722
        %3986 = vmatpush1.bf16.msra.mxu0 %v2721
        %3987 = vmatprep.subr.bf16.mxu0 %v2726
        %3988 = vmatpush1.bf16.msra.mxu0 %v2725
        %3989 = vmatprep.subr.bf16.mxu0 %v2730
        %3990 = vmatpush1.bf16.msra.mxu0 %v2729
        %3991 = vmatprep.subr.bf16.mxu0 %v2734
        %3992 = vmatpush1.bf16.msra.mxu0 %v2733
        %3993 = vmatprep.subr.bf16.mxu0 %v2738
        %3994 = vmatpush1.bf16.msra.mxu0 %v2737
        %3995 = vmatprep.subr.bf16.mxu0 %v2742
        %3996 = vmatpush1.bf16.msra.mxu0 %v2741
        %3997 = vmatprep.subr.bf16.mxu0 %v2746
        %3998 = vmatpush1.bf16.msra.mxu0 %v2745
        %3999 = vmatprep.mubr.bf16.mxu0 %v868
        %4000 = vmatmul.mubr.bf16.gmra.mrb[0].mxu0 %v867
        %v4001 = vpop.f32.mrb[0].mxu0
        %v4002 = vadd.f32 %v3959, %v4001
        %v4003 = vpop.f32.mrb[0].mxu0
        %v4004 = vadd.f32 %v3961, %v4003
        %v4005 = vpop.f32.mrb[0].mxu0
        %v4006 = vadd.f32 %v3963, %v4005
        %v4007 = vpop.f32.mrb[0].mxu0
        %v4008 = vadd.f32 %v3965, %v4007
        %4009 = vdwg.mxu0
        %4010 = vmatprep.subr.bf16.mxu0 %v2750
        %4011 = vmatpush1.bf16.msra.mxu0 %v2749
        %4012 = vmatprep.subr.bf16.mxu0 %v2754
        %4013 = vmatpush1.bf16.msra.mxu0 %v2753
        %4014 = vmatprep.subr.bf16.mxu0 %v2758
        %4015 = vmatpush1.bf16.msra.mxu0 %v2757
        %4016 = vmatprep.subr.bf16.mxu0 %v2762
        %4017 = vmatpush1.bf16.msra.mxu0 %v2761
        %4018 = vmatprep.subr.bf16.mxu0 %v2766
        %4019 = vmatpush1.bf16.msra.mxu0 %v2765
        %4020 = vmatprep.subr.bf16.mxu0 %v2770
        %4021 = vmatpush1.bf16.msra.mxu0 %v2769
        %4022 = vmatprep.subr.bf16.mxu0 %v2774
        %4023 = vmatpush1.bf16.msra.mxu0 %v2773
        %4024 = vmatprep.subr.bf16.mxu0 %v2778
        %4025 = vmatpush1.bf16.msra.mxu0 %v2777
        %4026 = vmatprep.subr.bf16.mxu0 %v2782
        %4027 = vmatpush1.bf16.msra.mxu0 %v2781
        %4028 = vmatprep.subr.bf16.mxu0 %v2786
        %4029 = vmatpush1.bf16.msra.mxu0 %v2785
        %4030 = vmatprep.subr.bf16.mxu0 %v2790
        %4031 = vmatpush1.bf16.msra.mxu0 %v2789
        %4032 = vmatprep.subr.bf16.mxu0 %v2794
        %4033 = vmatpush1.bf16.msra.mxu0 %v2793
        %4034 = vmatprep.subr.bf16.mxu0 %v2798
        %4035 = vmatpush1.bf16.msra.mxu0 %v2797
        %4036 = vmatprep.subr.bf16.mxu0 %v2802
        %4037 = vmatpush1.bf16.msra.mxu0 %v2801
        %4038 = vmatprep.subr.bf16.mxu0 %v2806
        %4039 = vmatpush1.bf16.msra.mxu0 %v2805
        %4040 = vmatprep.subr.bf16.mxu0 %v2810
        %4041 = vmatpush1.bf16.msra.mxu0 %v2809
        %4042 = vmatprep.mubr.bf16.mxu0 %v870
        %4043 = vmatmul.mubr.bf16.gmra.mrb[0].mxu0 %v869
        %v4044 = vpop.f32.mrb[0].mxu0
        %v4045 = vadd.f32 %v4002, %v4044
        %v4046 = vpop.f32.mrb[0].mxu0
        %v4047 = vadd.f32 %v4004, %v4046
        %v4048 = vpop.f32.mrb[0].mxu0
        %v4049 = vadd.f32 %v4006, %v4048
        %v4050 = vpop.f32.mrb[0].mxu0
        %v4051 = vadd.f32 %v4008, %v4050
        %4052 = vdwg.mxu0
        %4053 = vmatprep.subr.bf16.mxu0 %v2814
        %4054 = vmatpush1.bf16.msra.mxu0 %v2813
        %4055 = vmatprep.subr.bf16.mxu0 %v2818
        %4056 = vmatpush1.bf16.msra.mxu0 %v2817
        %4057 = vmatprep.subr.bf16.mxu0 %v2822
        %4058 = vmatpush1.bf16.msra.mxu0 %v2821
        %4059 = vmatprep.subr.bf16.mxu0 %v2826
        %4060 = vmatpush1.bf16.msra.mxu0 %v2825
        %4061 = vmatprep.subr.bf16.mxu0 %v2830
        %4062 = vmatpush1.bf16.msra.mxu0 %v2829
        %4063 = vmatprep.subr.bf16.mxu0 %v2834
        %4064 = vmatpush1.bf16.msra.mxu0 %v2833
        %4065 = vmatprep.subr.bf16.mxu0 %v2838
        %4066 = vmatpush1.bf16.msra.mxu0 %v2837
        %4067 = vmatprep.subr.bf16.mxu0 %v2842
        %4068 = vmatpush1.bf16.msra.mxu0 %v2841
        %4069 = vmatprep.subr.bf16.mxu0 %v2846
        %4070 = vmatpush1.bf16.msra.mxu0 %v2845
        %4071 = vmatprep.subr.bf16.mxu0 %v2850
        %4072 = vmatpush1.bf16.msra.mxu0 %v2849
        %4073 = vmatprep.subr.bf16.mxu0 %v2854
        %4074 = vmatpush1.bf16.msra.mxu0 %v2853
        %4075 = vmatprep.subr.bf16.mxu0 %v2858
        %4076 = vmatpush1.bf16.msra.mxu0 %v2857
        %4077 = vmatprep.subr.bf16.mxu0 %v2862
        %4078 = vmatpush1.bf16.msra.mxu0 %v2861
        %4079 = vmatprep.subr.bf16.mxu0 %v2866
        %4080 = vmatpush1.bf16.msra.mxu0 %v2865
        %4081 = vmatprep.subr.bf16.mxu0 %v2870
        %4082 = vmatpush1.bf16.msra.mxu0 %v2869
        %4083 = vmatprep.subr.bf16.mxu0 %v2874
        %4084 = vmatpush1.bf16.msra.mxu0 %v2873
        %4085 = vmatprep.mubr.bf16.mxu0 %v872
        %4086 = vmatmul.mubr.bf16.gmra.mrb[0].mxu0 %v871
        %v4087 = vpop.f32.mrb[0].mxu0
        %v4088 = vadd.f32 %v4045, %v4087
        %v4089 = vpop.f32.mrb[0].mxu0
        %v4090 = vadd.f32 %v4047, %v4089
        %v4091 = vpop.f32.mrb[0].mxu0
        %v4092 = vadd.f32 %v4049, %v4091
        %v4093 = vpop.f32.mrb[0].mxu0
        %v4094 = vadd.f32 %v4051, %v4093
        %4095 = vdwg.mxu0
        %4096 = vmatprep.subr.bf16.mxu0 %v2878
        %4097 = vmatpush1.bf16.msra.mxu0 %v2877
        %4098 = vmatprep.subr.bf16.mxu0 %v2882
        %4099 = vmatpush1.bf16.msra.mxu0 %v2881
        %4100 = vmatprep.subr.bf16.mxu0 %v2886
        %4101 = vmatpush1.bf16.msra.mxu0 %v2885
        %4102 = vmatprep.subr.bf16.mxu0 %v2890
        %4103 = vmatpush1.bf16.msra.mxu0 %v2889
        %4104 = vmatprep.subr.bf16.mxu0 %v2894
        %4105 = vmatpush1.bf16.msra.mxu0 %v2893
        %4106 = vmatprep.subr.bf16.mxu0 %v2898
        %4107 = vmatpush1.bf16.msra.mxu0 %v2897
        %4108 = vmatprep.subr.bf16.mxu0 %v2902
        %4109 = vmatpush1.bf16.msra.mxu0 %v2901
        %4110 = vmatprep.subr.bf16.mxu0 %v2906
        %4111 = vmatpush1.bf16.msra.mxu0 %v2905
        %4112 = vmatprep.subr.bf16.mxu0 %v2910
        %4113 = vmatpush1.bf16.msra.mxu0 %v2909
        %4114 = vmatprep.subr.bf16.mxu0 %v2914
        %4115 = vmatpush1.bf16.msra.mxu0 %v2913
        %4116 = vmatprep.subr.bf16.mxu0 %v2918
        %4117 = vmatpush1.bf16.msra.mxu0 %v2917
        %4118 = vmatprep.subr.bf16.mxu0 %v2922
        %4119 = vmatpush1.bf16.msra.mxu0 %v2921
        %4120 = vmatprep.subr.bf16.mxu0 %v2926
        %4121 = vmatpush1.bf16.msra.mxu0 %v2925
        %4122 = vmatprep.subr.bf16.mxu0 %v2930
        %4123 = vmatpush1.bf16.msra.mxu0 %v2929
        %4124 = vmatprep.subr.bf16.mxu0 %v2934
        %4125 = vmatpush1.bf16.msra.mxu0 %v2933
        %4126 = vmatprep.subr.bf16.mxu0 %v2938
        %4127 = vmatpush1.bf16.msra.mxu0 %v2937
        %4128 = vmatprep.mubr.bf16.mxu0 %v874
        %4129 = vmatmul.mubr.bf16.gmra.mrb[0].mxu0 %v873
        %v4130 = vpop.f32.mrb[0].mxu0
        %v4131 = vadd.f32 %v4088, %v4130
        %v4132 = vpop.f32.mrb[0].mxu0
        %v4133 = vadd.f32 %v4090, %v4132
        %v4134 = vpop.f32.mrb[0].mxu0
        %v4135 = vadd.f32 %v4092, %v4134
        %v4136 = vpop.f32.mrb[0].mxu0
        %v4137 = vadd.f32 %v4094, %v4136
        %4138 = vdwg.mxu0
        %v4139 = vadd.f32 %v275, %v3787
        %v4140 = vadd.f32 %v276, %v3789
        %v4141 = vadd.f32 %v277, %v4131
        %v4142 = vadd.f32 %v278, %v4133
        %v4143 = vadd.f32 %v279, %v3791
        %v4144 = vadd.f32 %v280, %v3793
        %v4145 = vadd.f32 %v281, %v4135
        %v4146 = vadd.f32 %v282, %v4137
        %4147 = vst [vmem:[#allocation2] sm:$0xff] %v4139
        %4148 = vst [vmem:[#allocation2 + $0x8] sm:$0xff] %v4140
        %4149 = vst [vmem:[#allocation2 + $0x10] sm:$0xff] %v4141
        %4150 = vst [vmem:[#allocation2 + $0x18] sm:$0xff] %v4142
        %4151 = vst [vmem:[#allocation2 + $0x20] sm:$0x1] %v4143
        %4152 = vst [vmem:[#allocation2 + $0x28] sm:$0x1] %v4144
        %4153 = vst [vmem:[#allocation2 + $0x30] sm:$0x1] %v4145
        %4154 = vst [vmem:[#allocation2 + $0x38] sm:$0x1] %v4146
        %p4155 = scmp.eq.s32.totalorder %s19, 1
        // Predicated region
        $region60: #{discriminator_forward.8} parent=50 // pred_check
          %p4156 = pneg %p4155
        $region61: #{discriminator_forward.8} parent=50 // pred_check_branch
          %4158 = sbr.rel (%p4156) target = $region63
        $region62: #{discriminator_forward.8} parent=50 // pred_region
          %v4159 = vld [vmem:[#allocation2] sm:$0xff]
          %v4160 = vld [vmem:[#allocation2 + $0x8] sm:$0xff]
          %v4161 = vld [vmem:[#allocation2 + $0x10] sm:$0xff]
          %v4162 = vld [vmem:[#allocation2 + $0x18] sm:$0xff]
          %v4163 = vld [vmem:[#allocation2 + $0x20] sm:$0x1]
          %v4164 = vld [vmem:[#allocation2 + $0x28] sm:$0x1]
          %v4165 = vld [vmem:[#allocation2 + $0x30] sm:$0x1]
          %v4166 = vld [vmem:[#allocation2 + $0x38] sm:$0x1]
          %v4167 = vld [vmem:[%s2] sm:$0xf]
          %v4169 = vlaneseq
          %v4170 = vshrl.u32 %v4169, 7
          %v4171 = vsub.s32 0, %v4170
          %v4172 = vrot.slane %v4167, %v4171
          %v4173 = vlaneseq
          %v4174 = vshrl.u32 %v4173, 7
          %v4175 = vsub.s32 1, %v4174
          %v4176 = vrot.slane %v4167, %v4175
          %v4177 = vlaneseq
          %v4178 = vshrl.u32 %v4177, 7
          %v4179 = vsub.s32 2, %v4178
          %v4180 = vrot.slane %v4167, %v4179
          %v4181 = vlaneseq
          %v4182 = vshrl.u32 %v4181, 7
          %v4183 = vsub.s32 3, %v4182
          %v4184 = vrot.slane %v4167, %v4183
          %v4189 = vadd.f32 %v4159, %v4172
          %v4190 = vadd.f32 %v4160, %v4176
          %v4191 = vadd.f32 %v4161, %v4180
          %v4192 = vadd.f32 %v4162, %v4184
          %v4193 = vadd.f32 %v4163, %v4172
          %v4194 = vadd.f32 %v4164, %v4176
          %v4195 = vadd.f32 %v4165, %v4180
          %v4196 = vadd.f32 %v4166, %v4184
          %vm4197 = vcmask 1040384
          %v4198 = vsel %vm4197, %v4193, 0.0
          %v4199 = vadd.f32 %v4189, %v4198
          %v4200 = vrot.slane %v4199, 4
          %v4201 = vadd.f32 %v4199, %v4200
          %v4202 = vrot.slane %v4201, 2
          %v4203 = vadd.f32 %v4201, %v4202
          %v4204 = vrot.slane %v4203, 1
          %v4205 = vadd.f32 %v4203, %v4204
          %v4206 = vsel %vm4197, %v4194, 0.0
          %v4207 = vadd.f32 %v4190, %v4206
          %v4208 = vrot.slane %v4207, 4
          %v4209 = vadd.f32 %v4207, %v4208
          %v4210 = vrot.slane %v4209, 2
          %v4211 = vadd.f32 %v4209, %v4210
          %v4212 = vrot.slane %v4211, 1
          %v4213 = vadd.f32 %v4211, %v4212
          %v4214 = vsel %vm4197, %v4195, 0.0
          %v4215 = vadd.f32 %v4191, %v4214
          %v4216 = vrot.slane %v4215, 4
          %v4217 = vadd.f32 %v4215, %v4216
          %v4218 = vrot.slane %v4217, 2
          %v4219 = vadd.f32 %v4217, %v4218
          %v4220 = vrot.slane %v4219, 1
          %v4221 = vadd.f32 %v4219, %v4220
          %v4222 = vsel %vm4197, %v4196, 0.0
          %v4223 = vadd.f32 %v4192, %v4222
          %v4224 = vrot.slane %v4223, 4
          %v4225 = vadd.f32 %v4223, %v4224
          %v4226 = vrot.slane %v4225, 2
          %v4227 = vadd.f32 %v4225, %v4226
          %v4228 = vrot.slane %v4227, 1
          %v4229 = vadd.f32 %v4227, %v4228
          %v4230 = vrcp.pop 9.0
          %v4231 = vmul.f32 %v4205, %v4230
          %v4232 = vmul.f32 %v4213, %v4230
          %v4233 = vmul.f32 %v4221, %v4230
          %v4234 = vmul.f32 %v4229, %v4230
          %v4235 = vsub.f32 %v4189, %v4231
          %v4236 = vsub.f32 %v4190, %v4232
          %v4237 = vsub.f32 %v4191, %v4233
          %v4238 = vsub.f32 %v4192, %v4234
          %v4239 = vsub.f32 %v4193, %v4231
          %v4240 = vsub.f32 %v4194, %v4232
          %v4241 = vsub.f32 %v4195, %v4233
          %v4242 = vsub.f32 %v4196, %v4234
          %v4243 = vmul.f32 %v4235, %v4235
          %v4244 = vmul.f32 %v4236, %v4236
          %v4245 = vmul.f32 %v4237, %v4237
          %v4246 = vmul.f32 %v4238, %v4238
          %v4247 = vmul.f32 %v4239, %v4239
          %v4248 = vmul.f32 %v4240, %v4240
          %v4249 = vmul.f32 %v4241, %v4241
          %v4250 = vmul.f32 %v4242, %v4242
          %v4251 = vsel %vm4197, %v4247, 0.0
          %v4252 = vadd.f32 %v4243, %v4251
          %v4253 = vrot.slane %v4252, 4
          %v4254 = vadd.f32 %v4252, %v4253
          %v4255 = vrot.slane %v4254, 2
          %v4256 = vadd.f32 %v4254, %v4255
          %v4257 = vrot.slane %v4256, 1
          %v4258 = vadd.f32 %v4256, %v4257
          %v4259 = vsel %vm4197, %v4248, 0.0
          %v4260 = vadd.f32 %v4244, %v4259
          %v4261 = vrot.slane %v4260, 4
          %v4262 = vadd.f32 %v4260, %v4261
          %v4263 = vrot.slane %v4262, 2
          %v4264 = vadd.f32 %v4262, %v4263
          %v4265 = vrot.slane %v4264, 1
          %v4266 = vadd.f32 %v4264, %v4265
          %v4267 = vsel %vm4197, %v4249, 0.0
          %v4268 = vadd.f32 %v4245, %v4267
          %v4269 = vrot.slane %v4268, 4
          %v4270 = vadd.f32 %v4268, %v4269
          %v4271 = vrot.slane %v4270, 2
          %v4272 = vadd.f32 %v4270, %v4271
          %v4273 = vrot.slane %v4272, 1
          %v4274 = vadd.f32 %v4272, %v4273
          %v4275 = vsel %vm4197, %v4250, 0.0
          %v4276 = vadd.f32 %v4246, %v4275
          %v4277 = vrot.slane %v4276, 4
          %v4278 = vadd.f32 %v4276, %v4277
          %v4279 = vrot.slane %v4278, 2
          %v4280 = vadd.f32 %v4278, %v4279
          %v4281 = vrot.slane %v4280, 1
          %v4282 = vadd.f32 %v4280, %v4281
          %v4283 = vmul.f32 %v4258, %v4230
          %v4284 = vmul.f32 %v4266, %v4230
          %v4285 = vmul.f32 %v4274, %v4230
          %v4286 = vmul.f32 %v4282, %v4230
          %v4287 = vadd.f32 %v4283, 1e-05
          %v4288 = vadd.f32 %v4284, 1e-05
          %v4289 = vadd.f32 %v4285, 1e-05
          %v4290 = vadd.f32 %v4286, 1e-05
          %v4291 = vrsqrt.pop %v4287
          %v4292 = vrsqrt.pop %v4288
          %v4293 = vrsqrt.pop %v4289
          %v4294 = vrsqrt.pop %v4290
          %v4295 = vmul.f32 %v4235, %v4291
          %v4296 = vmul.f32 %v4236, %v4292
          %v4297 = vmul.f32 %v4237, %v4293
          %v4298 = vmul.f32 %v4238, %v4294
          %v4299 = vmul.f32 %v4239, %v4291
          %v4300 = vmul.f32 %v4240, %v4292
          %v4301 = vmul.f32 %v4241, %v4293
          %v4302 = vmul.f32 %v4242, %v4294
          %vm4303 = vcmp.ge.f32.partialorder %v4295, 0.0
          %vm4304 = vcmp.ge.f32.partialorder %v4296, 0.0
          %vm4305 = vcmp.ge.f32.partialorder %v4297, 0.0
          %vm4306 = vcmp.ge.f32.partialorder %v4298, 0.0
          %vm4307 = vcmp.ge.f32.partialorder %v4299, 0.0
          %vm4308 = vcmp.ge.f32.partialorder %v4300, 0.0
          %vm4309 = vcmp.ge.f32.partialorder %v4301, 0.0
          %vm4310 = vcmp.ge.f32.partialorder %v4302, 0.0
          %v4311 = vmul.f32 %v4295, 0.2
          %v4312 = vmul.f32 %v4296, 0.2
          %v4313 = vmul.f32 %v4297, 0.2
          %v4314 = vmul.f32 %v4298, 0.2
          %v4315 = vmul.f32 %v4299, 0.2
          %v4316 = vmul.f32 %v4300, 0.2
          %v4317 = vmul.f32 %v4301, 0.2
          %v4318 = vmul.f32 %v4302, 0.2
          %v4319 = vsel %vm4303, %v4295, %v4311
          %v4320 = vsel %vm4304, %v4296, %v4312
          %v4321 = vsel %vm4305, %v4297, %v4313
          %v4322 = vsel %vm4306, %v4298, %v4314
          %v4323 = vsel %vm4307, %v4299, %v4315
          %v4324 = vsel %vm4308, %v4300, %v4316
          %v4325 = vsel %vm4309, %v4301, %v4317
          %v4326 = vsel %vm4310, %v4302, %v4318
          %4327 = vst [vmem:[%s262] sm:$0xff] %v4319
          %4328 = vst [vmem:[%s262 + $0x8] sm:$0xff] %v4320
          %4329 = vst [vmem:[%s262 + $0x10] sm:$0xff] %v4321
          %4330 = vst [vmem:[%s262 + $0x18] sm:$0xff] %v4322
          %4331 = vst [vmem:[%s262 + $0x20] sm:$0x1] %v4323
          %4332 = vst [vmem:[%s262 + $0x28] sm:$0x1] %v4324
          %4333 = vst [vmem:[%s262 + $0x30] sm:$0x1] %v4325
          %4334 = vst [vmem:[%s262 + $0x38] sm:$0x1] %v4326
        $region63: #{discriminator_forward.8} parent=50 // pred_fallthru
          _
        %p4335 = scmp.lt.s32.totalorder %s18, 1
        %s4336 = scalar_select %p4335, %s18, 1
        %s4337 = smul.addr %s4336, 8
        %s4338 = smul.addr %s4337, 8
        %s4339 = scalar_lea.vmem %s3, %s4338
        // Predicated region
        $region64: #{discriminator_forward.8} parent=50 // pred_check
          %p4340 = pneg %p119
        $region65: #{discriminator_forward.8} parent=50 // pred_check_branch
          %4342 = sbr.rel (%p4340) target = $region67
        $region66: #{discriminator_forward.8} parent=50 // pred_region
          _
        $region67: #{discriminator_forward.8} parent=50 // pred_fallthru
          _
      $region51: #{discriminator_forward.8} parent=5 // pred_fallthru
        _
      %p4343 = scmp.le.s32.totalorder 2, %s9
      // Predicated region
      $region68: #{discriminator_forward.8} parent=5 // pred_check
        %p4344 = pneg %p4343
      $region69: #{discriminator_forward.8} parent=5 // pred_check_branch
        %4346 = sbr.rel (%p4344) target = $region71
      $region70: #{discriminator_forward.8} parent=5 // pred_region
        %s4347 = ssub.s32 %s9, 2
        // Predicated region
        $region72: #{discriminator_forward.8} parent=70 // pred_check
          %p4348 = pneg %p125
        $region73: #{discriminator_forward.8} parent=70 // pred_check_branch
          %4350 = sbr.rel (%p4348) target = $region75
        $region74: #{discriminator_forward.8} parent=70 // pred_region
          %p4351 = scmp.lt.s32.totalorder %s20, 1
          %s4352 = scalar_select %p4351, %s20, 1
          %s4353 = smul.addr %s4352, 8
          %s4354 = smul.addr %s4353, 8
          %s4355 = scalar_lea.vmem %s3, %s4354
        $region75: #{discriminator_forward.8} parent=70 // pred_fallthru
          _
      $region71: #{discriminator_forward.8} parent=5 // pred_fallthru
        _
    $region6: #{discriminator_forward.8} parent=1 // loop_footer
      %s13 = sadd.s32 1, %s9
    $region7: #{discriminator_forward.8} parent=1 // loop_footer_branch
      %8 = sbr.rel target = $region3
    $region8: #{discriminator_forward.8} parent=1 // loop_exit
      _

// kernel: discriminator_forward.9
$region0: #{discriminator_forward.9}
  #allocation0 [shape = 'u32[]', space=smem, size = 0x4, offset = 0x4, fixed_abs, tag = 'smem constant byte address 0x4 - core index']
  #allocation1 [shape = 'u32[144,128]{1,0:T(1,128)}', space=vmem, size = 0x12000, scoped, tag = 'internal scratch']
  #allocation2 [shape = 'f32[4,128]{1,0:T(4,128)}', space=vmem, size = 0x800, scoped, tag = 'scratch operand']
  %s0 = inlined_call_operand.vmem [shape: bf16[2,4,8192], index: 0, kind: input, shape index: {}]
  %s1 = inlined_call_operand.vmem [shape: bf16[8192,128], index: 1, kind: input, shape index: {}]
  %s2 = inlined_call_operand.vmem [shape: f32[1,128], index: 2, kind: input, shape index: {}]
  %s3 = inlined_call_operand.vmem [shape: f32[2,4,128], index: 3, kind: output, shape index: {}]
  %s4 = sld [smem:[#allocation0]]
  $region53: #{discriminator_forward.9} parent=0
    _
  %s6 = ssub.s32 1, %s4
  %s7 = scalar_select 0, %s6, %s4
  loop: start=0, step=1, limit=10
  $region2: #{discriminator_forward.9} parent=0 // loop_pre_header
    _
  $region3: #{discriminator_forward.9} parent=0 // loop_header
    %s9 = sphi 0, %s13
    %p10 = scmp.ge.s32.totalorder %s9, 10
    %s16 = sphi 0, %s28
    %s17 = sphi 0, %s24
    %s18 = sphi 0, %s16
    %s19 = sphi 0, %s17
    %s20 = sphi 0, %s18
    %s21 = sphi 0, %s19
    %s33 = sphi 0, %s35
    %s36 = sphi 0, %s33
    %s37 = sphi 0, %s36
    %s53 = sphi 0, %s37
    %s59 = sphi 0, %s61
    %s62 = sphi 0, %s59
    %s63 = sphi 0, %s62
    %s79 = sphi 0, %s63
    %s83 = sphi 0, %s83
    %s85 = sphi 0, %s83
    %s86 = sphi 0, %s85
    %s100 = sphi 0, %s86
    %s106 = sphi 0, %s108
    %s109 = sphi 0, %s106
    %s110 = sphi 0, %s109
    %s126 = sphi 0, %s110
  $region4: #{discriminator_forward.9} parent=0 // loop_header_branch
    %12 = sbr.rel (%p10) target = $region8
  $region5: #{discriminator_forward.9} parent=0 // loop_body
    %s14 = ssub.s32 %s9, 1
    %s15 = ssub.s32 %s9, 2
    %s22 = sadd.s32 1, %s17
    %p23 = scmp.ge.s32.totalorder %s22, 4
    %s24 = scalar_select %p23, 0, %s22
    %s25 = sadd.s32 1, %s16
    %s26 = scalar_select %p23, %s25, %s16
    %p27 = scmp.ge.s32.totalorder %s26, 2
    %s28 = scalar_select %p27, 0, %s26
    %s29 = ssub.s32 %s16, %s28
    %s30 = ssub.s32 %s17, %s24
    %s31 = sor.u32 %s29, %s30
    %p32 = scmp.eq.s32.totalorder %s31, 0
    %s34 = sadd.s32 %s33, 1
    %s35 = scalar_select %p32, %s33, %s34
    %p38 = pneg %p32
    %p39 = scmp.eq.s32.totalorder %s9, 7
    %p40 = por %p38, %p39
    %p41 = scmp.ne.s32.totalorder %s33, %s36
    %p42 = scmp.eq.s32.totalorder %s9, 0
    %p43 = por %p41, %p42
    %p44 = scmp.ne.s32.totalorder %s33, %s36
    %p45 = scmp.eq.s32.totalorder %s14, 7
    %p46 = por %p44, %p45
    %p47 = scmp.ne.s32.totalorder %s36, %s37
    %p48 = scmp.eq.s32.totalorder %s14, 0
    %p49 = por %p47, %p48
    %p50 = scmp.ne.s32.totalorder %s36, %s37
    %p51 = scmp.eq.s32.totalorder %s15, 7
    %p52 = por %p50, %p51
    %p54 = scmp.ne.s32.totalorder %s37, %s53
    %p55 = scmp.eq.s32.totalorder %s15, 0
    %p56 = por %p54, %p55
    %s57 = ssub.s32 %s17, %s24
    %p58 = scmp.eq.s32.totalorder %s57, 0
    %s60 = sadd.s32 %s59, 1
    %s61 = scalar_select %p58, %s59, %s60
    %p64 = pneg %p58
    %p65 = scmp.eq.s32.totalorder %s9, 7
    %p66 = por %p64, %p65
    %p67 = scmp.ne.s32.totalorder %s59, %s62
    %p68 = scmp.eq.s32.totalorder %s9, 0
    %p69 = por %p67, %p68
    %p70 = scmp.ne.s32.totalorder %s59, %s62
    %p71 = scmp.eq.s32.totalorder %s14, 7
    %p72 = por %p70, %p71
    %p73 = scmp.ne.s32.totalorder %s62, %s63
    %p74 = scmp.eq.s32.totalorder %s14, 0
    %p75 = por %p73, %p74
    %p76 = scmp.ne.s32.totalorder %s62, %s63
    %p77 = scmp.eq.s32.totalorder %s15, 7
    %p78 = por %p76, %p77
    %p80 = scmp.ne.s32.totalorder %s63, %s79
    %p81 = scmp.eq.s32.totalorder %s15, 0
    %p82 = por %p80, %p81
    %s84 = sadd.s32 %s83, 1
    %p87 = scmp.eq.s32.totalorder %s9, 7
    %p88 = scmp.ne.s32.totalorder %s83, %s85
    %p89 = scmp.eq.s32.totalorder %s9, 0
    %p90 = por %p88, %p89
    %p91 = scmp.ne.s32.totalorder %s83, %s85
    %p92 = scmp.eq.s32.totalorder %s14, 7
    %p93 = por %p91, %p92
    %p94 = scmp.ne.s32.totalorder %s85, %s86
    %p95 = scmp.eq.s32.totalorder %s14, 0
    %p96 = por %p94, %p95
    %p97 = scmp.ne.s32.totalorder %s85, %s86
    %p98 = scmp.eq.s32.totalorder %s15, 7
    %p99 = por %p97, %p98
    %p101 = scmp.ne.s32.totalorder %s86, %s100
    %p102 = scmp.eq.s32.totalorder %s15, 0
    %p103 = por %p101, %p102
    %s104 = ssub.s32 %s16, %s28
    %p105 = scmp.eq.s32.totalorder %s104, 0
    %s107 = sadd.s32 %s106, 1
    %s108 = scalar_select %p105, %s106, %s107
    %p111 = pneg %p105
    %p112 = scmp.eq.s32.totalorder %s9, 7
    %p113 = por %p111, %p112
    %p114 = scmp.ne.s32.totalorder %s106, %s109
    %p115 = scmp.eq.s32.totalorder %s9, 0
    %p116 = por %p114, %p115
    %p117 = scmp.ne.s32.totalorder %s106, %s109
    %p118 = scmp.eq.s32.totalorder %s14, 7
    %p119 = por %p117, %p118
    %p120 = scmp.ne.s32.totalorder %s109, %s110
    %p121 = scmp.eq.s32.totalorder %s14, 0
    %p122 = por %p120, %p121
    %p123 = scmp.ne.s32.totalorder %s109, %s110
    %p124 = scmp.eq.s32.totalorder %s15, 7
    %p125 = por %p123, %p124
    %p127 = scmp.ne.s32.totalorder %s110, %s126
    %p128 = scmp.eq.s32.totalorder %s15, 0
    %p129 = por %p127, %p128
    %p130 = scmp.le.s32.totalorder 1, %s9
    %p131 = scmp.lt.s32.totalorder %s9, 9
    %p132 = pnand %p130, %p131
    %p133 = pneg %p132
    // Predicated region
    $region9: #{discriminator_forward.9} parent=5 // pred_check
      _
    $region10: #{discriminator_forward.9} parent=5 // pred_check_branch
      %135 = sbr.rel (%p132) target = $region12
    $region11: #{discriminator_forward.9} parent=5 // pred_region
      %s136 = ssub.s32 %s9, 1
      // Predicated region
      $region13: #{discriminator_forward.9} parent=11 // pred_check
        %p137 = pneg %p96
      $region14: #{discriminator_forward.9} parent=11 // pred_check_branch
        %139 = sbr.rel (%p137) target = $region16
      $region15: #{discriminator_forward.9} parent=11 // pred_region
        _
      $region16: #{discriminator_forward.9} parent=11 // pred_fallthru
        _
    $region12: #{discriminator_forward.9} parent=5 // pred_fallthru
      _
    %p140 = scmp.lt.s32.totalorder %s9, 8
    // Predicated region
    $region17: #{discriminator_forward.9} parent=5 // pred_check
      %p141 = pneg %p140
    $region18: #{discriminator_forward.9} parent=5 // pred_check_branch
      %143 = sbr.rel (%p141) target = $region20
    $region19: #{discriminator_forward.9} parent=5 // pred_region
      // Predicated region
      $region21: #{discriminator_forward.9} parent=19 // pred_check
        %p144 = pneg %p43
      $region22: #{discriminator_forward.9} parent=19 // pred_check_branch
        %146 = sbr.rel (%p144) target = $region24
      $region23: #{discriminator_forward.9} parent=19 // pred_region
        %s147 = smul.u32 16, %s17
        %p148 = scmp.lt.s32.totalorder %s16, 1
        %s149 = scalar_select %p148, %s16, 1
        %p150 = scmp.lt.s32.totalorder %s147, 63
        %s151 = scalar_select %p150, %s147, 63
        %s152 = smul.addr %s149, 64
        %s153 = sadd.s32 %s151, %s152
        %s154 = smul.addr %s153, 2
        %s155 = scalar_lea.vmem %s0, %s154
        %s156 = smul.u32 16, %s17
      $region24: #{discriminator_forward.9} parent=19 // pred_fallthru
        _
      // Predicated region
      $region25: #{discriminator_forward.9} parent=19 // pred_check
        %p157 = pneg %p69
      $region26: #{discriminator_forward.9} parent=19 // pred_check_branch
        %159 = sbr.rel (%p157) target = $region28
      $region27: #{discriminator_forward.9} parent=19 // pred_region
        %s160 = smul.u32 256, %s17
        %p161 = scmp.lt.s32.totalorder %s160, 1023
        %s162 = scalar_select %p161, %s160, 1023
        %s163 = smul.addr %s162, 4
        %s164 = scalar_lea.vmem %s1, %s163
        %s165 = smul.u32 256, %s17
      $region28: #{discriminator_forward.9} parent=19 // pred_fallthru
        _
    $region20: #{discriminator_forward.9} parent=5 // pred_fallthru
      _
    %p166 = scmp.le.s32.totalorder 1, %s9
    %p167 = scmp.lt.s32.totalorder %s9, 9
    %p168 = pnand %p166, %p167
    %p169 = pneg %p168
    // Predicated region
    $region29: #{discriminator_forward.9} parent=5 // pred_check
      _
    $region30: #{discriminator_forward.9} parent=5 // pred_check_branch
      %171 = sbr.rel (%p168) target = $region32
    $region31: #{discriminator_forward.9} parent=5 // pred_region
      %s172 = ssub.s32 %s9, 1
      %s173 = smul.u32 16, %s19
      %p174 = scmp.lt.s32.totalorder %s18, 1
      %s175 = scalar_select %p174, %s18, 1
      %p176 = scmp.lt.s32.totalorder %s173, 63
      %s177 = scalar_select %p176, %s173, 63
      %s178 = smul.addr %s175, 64
      %s179 = sadd.s32 %s177, %s178
      %s180 = smul.addr %s179, 2
      %s181 = scalar_lea.vmem %s0, %s180
      %p182 = pneg %p49
      %p183 = pneg %p46
      %s184 = smul.u32 256, %s19
      %p185 = scmp.lt.s32.totalorder %s184, 1023
      %s186 = scalar_select %p185, %s184, 1023
      %s187 = smul.addr %s186, 4
      %s188 = scalar_lea.vmem %s1, %s187
      %p189 = pneg %p75
      %p190 = pneg %p72
      %p191 = pneg %p96
      %p192 = pneg %p93
      %p193 = pneg %p122
      %p194 = pneg %p119
      %p195 = scmp.lt.s32.totalorder %s18, 1
      %s196 = scalar_select %p195, %s18, 1
      %s197 = smul.addr %s196, 4
      %s198 = scalar_lea.vmem %s3, %s197
      %s199 = smul.u32 16, %s19
      %p200 = scmp.lt.s32.totalorder %s18, 1
      %s201 = scalar_select %p200, %s18, 1
      %p202 = scmp.lt.s32.totalorder %s199, 63
      %s203 = scalar_select %p202, %s199, 63
      %s204 = smul.addr %s201, 64
      %s205 = sadd.s32 %s203, %s204
      %s206 = smul.addr %s205, 2
      %s207 = scalar_lea.vmem %s0, %s206
      %s208 = smul.u32 16, %s19
      %s209 = smul.u32 256, %s19
      %p210 = scmp.lt.s32.totalorder %s209, 1023
      %s211 = scalar_select %p210, %s209, 1023
      %s212 = smul.addr %s211, 4
      %s213 = scalar_lea.vmem %s1, %s212
      %s214 = smul.u32 256, %s19
      %p215 = scmp.lt.s32.totalorder %s18, 1
      %s216 = scalar_select %p215, %s18, 1
      %s217 = smul.addr %s216, 4
      %s218 = scalar_lea.vmem %s3, %s217
      %p220 = scmp.eq.s32.totalorder %s19, 0
      // Predicated region
      $region33: #{discriminator_forward.9} parent=31 // pred_check
        %p221 = pneg %p220
      $region34: #{discriminator_forward.9} parent=31 // pred_check_branch
        %223 = sbr.rel (%p221) target = $region36
      $region35: #{discriminator_forward.9} parent=31 // pred_region
        %224 = vst [vmem:[#allocation2] sm:$0xf] 0.0
      $region36: #{discriminator_forward.9} parent=31 // pred_fallthru
        _
      %v225 = vld [vmem:[#allocation2] sm:$0xf]
      %v226 = vld [vmem:[%s207] sm:$0xff]
      %v227 = vld [vmem:[%s207 + $0x8] sm:$0xff]
      %v228 = vld [vmem:[%s207 + $0x10] sm:$0xff]
      %v229 = vld [vmem:[%s207 + $0x18] sm:$0xff]
      %v230 = vld [vmem:[%s213] sm:$0xf]
      %v231 = vld [vmem:[%s213 + $0x4] sm:$0xf]
      %v232 = vld [vmem:[%s213 + $0x8] sm:$0xf]
      %v233 = vld [vmem:[%s213 + $0xc] sm:$0xf]
      %v234 = vld [vmem:[%s213 + $0x10] sm:$0xf]
      %v235 = vld [vmem:[%s213 + $0x14] sm:$0xf]
      %v236 = vld [vmem:[%s213 + $0x18] sm:$0xf]
      %v237 = vld [vmem:[%s213 + $0x1c] sm:$0xf]
      %v238 = vld [vmem:[%s213 + $0x20] sm:$0xf]
      %v239 = vld [vmem:[%s213 + $0x24] sm:$0xf]
      %v240 = vld [vmem:[%s213 + $0x28] sm:$0xf]
      %v241 = vld [vmem:[%s213 + $0x2c] sm:$0xf]
      %v242 = vld [vmem:[%s213 + $0x30] sm:$0xf]
      %v243 = vld [vmem:[%s213 + $0x34] sm:$0xf]
      %v244 = vld [vmem:[%s213 + $0x38] sm:$0xf]
      %v245 = vld [vmem:[%s213 + $0x3c] sm:$0xf]
      %v246 = vld [vmem:[%s213 + $0x40] sm:$0xf]
      %v247 = vld [vmem:[%s213 + $0x44] sm:$0xf]
      %v248 = vld [vmem:[%s213 + $0x48] sm:$0xf]
      %v249 = vld [vmem:[%s213 + $0x4c] sm:$0xf]
      %v250 = vld [vmem:[%s213 + $0x50] sm:$0xf]
      %v251 = vld [vmem:[%s213 + $0x54] sm:$0xf]
      %v252 = vld [vmem:[%s213 + $0x58] sm:$0xf]
      %v253 = vld [vmem:[%s213 + $0x5c] sm:$0xf]
      %v254 = vld [vmem:[%s213 + $0x60] sm:$0xf]
      %v255 = vld [vmem:[%s213 + $0x64] sm:$0xf]
      %v256 = vld [vmem:[%s213 + $0x68] sm:$0xf]
      %v257 = vld [vmem:[%s213 + $0x6c] sm:$0xf]
      %v258 = vld [vmem:[%s213 + $0x70] sm:$0xf]
      %v259 = vld [vmem:[%s213 + $0x74] sm:$0xf]
      %v260 = vld [vmem:[%s213 + $0x78] sm:$0xf]
      %v261 = vld [vmem:[%s213 + $0x7c] sm:$0xf]
      %v262 = vld [vmem:[%s213 + $0x80] sm:$0xf]
      %v263 = vld [vmem:[%s213 + $0x84] sm:$0xf]
      %v264 = vld [vmem:[%s213 + $0x88] sm:$0xf]
      %v265 = vld [vmem:[%s213 + $0x8c] sm:$0xf]
      %v266 = vld [vmem:[%s213 + $0x90] sm:$0xf]
      %v267 = vld [vmem:[%s213 + $0x94] sm:$0xf]
      %v268 = vld [vmem:[%s213 + $0x98] sm:$0xf]
      %v269 = vld [vmem:[%s213 + $0x9c] sm:$0xf]
      %v270 = vld [vmem:[%s213 + $0xa0] sm:$0xf]
      %v271 = vld [vmem:[%s213 + $0xa4] sm:$0xf]
      %v272 = vld [vmem:[%s213 + $0xa8] sm:$0xf]
      %v273 = vld [vmem:[%s213 + $0xac] sm:$0xf]
      %v274 = vld [vmem:[%s213 + $0xb0] sm:$0xf]
      %v275 = vld [vmem:[%s213 + $0xb4] sm:$0xf]
      %v276 = vld [vmem:[%s213 + $0xb8] sm:$0xf]
      %v277 = vld [vmem:[%s213 + $0xbc] sm:$0xf]
      %v278 = vld [vmem:[%s213 + $0xc0] sm:$0xf]
      %v279 = vld [vmem:[%s213 + $0xc4] sm:$0xf]
      %v280 = vld [vmem:[%s213 + $0xc8] sm:$0xf]
      %v281 = vld [vmem:[%s213 + $0xcc] sm:$0xf]
      %v282 = vld [vmem:[%s213 + $0xd0] sm:$0xf]
      %v283 = vld [vmem:[%s213 + $0xd4] sm:$0xf]
      %v284 = vld [vmem:[%s213 + $0xd8] sm:$0xf]
      %v285 = vld [vmem:[%s213 + $0xdc] sm:$0xf]
      %v286 = vld [vmem:[%s213 + $0xe0] sm:$0xf]
      %v287 = vld [vmem:[%s213 + $0xe4] sm:$0xf]
      %v288 = vld [vmem:[%s213 + $0xe8] sm:$0xf]
      %v289 = vld [vmem:[%s213 + $0xec] sm:$0xf]
      %v290 = vld [vmem:[%s213 + $0xf0] sm:$0xf]
      %v291 = vld [vmem:[%s213 + $0xf4] sm:$0xf]
      %v292 = vld [vmem:[%s213 + $0xf8] sm:$0xf]
      %v293 = vld [vmem:[%s213 + $0xfc] sm:$0xf]
      %v294 = vld [vmem:[%s213 + $0x100] sm:$0xf]
      %v295 = vld [vmem:[%s213 + $0x104] sm:$0xf]
      %v296 = vld [vmem:[%s213 + $0x108] sm:$0xf]
      %v297 = vld [vmem:[%s213 + $0x10c] sm:$0xf]
      %v298 = vld [vmem:[%s213 + $0x110] sm:$0xf]
      %v299 = vld [vmem:[%s213 + $0x114] sm:$0xf]
      %v300 = vld [vmem:[%s213 + $0x118] sm:$0xf]
      %v301 = vld [vmem:[%s213 + $0x11c] sm:$0xf]
      %v302 = vld [vmem:[%s213 + $0x120] sm:$0xf]
      %v303 = vld [vmem:[%s213 + $0x124] sm:$0xf]
      %v304 = vld [vmem:[%s213 + $0x128] sm:$0xf]
      %v305 = vld [vmem:[%s213 + $0x12c] sm:$0xf]
      %v306 = vld [vmem:[%s213 + $0x130] sm:$0xf]
      %v307 = vld [vmem:[%s213 + $0x134] sm:$0xf]
      %v308 = vld [vmem:[%s213 + $0x138] sm:$0xf]
      %v309 = vld [vmem:[%s213 + $0x13c] sm:$0xf]
      %v310 = vld [vmem:[%s213 + $0x140] sm:$0xf]
      %v311 = vld [vmem:[%s213 + $0x144] sm:$0xf]
      %v312 = vld [vmem:[%s213 + $0x148] sm:$0xf]
      %v313 = vld [vmem:[%s213 + $0x14c] sm:$0xf]
      %v314 = vld [vmem:[%s213 + $0x150] sm:$0xf]
      %v315 = vld [vmem:[%s213 + $0x154] sm:$0xf]
      %v316 = vld [vmem:[%s213 + $0x158] sm:$0xf]
      %v317 = vld [vmem:[%s213 + $0x15c] sm:$0xf]
      %v318 = vld [vmem:[%s213 + $0x160] sm:$0xf]
      %v319 = vld [vmem:[%s213 + $0x164] sm:$0xf]
      %v320 = vld [vmem:[%s213 + $0x168] sm:$0xf]
      %v321 = vld [vmem:[%s213 + $0x16c] sm:$0xf]
      %v322 = vld [vmem:[%s213 + $0x170] sm:$0xf]
      %v323 = vld [vmem:[%s213 + $0x174] sm:$0xf]
      %v324 = vld [vmem:[%s213 + $0x178] sm:$0xf]
      %v325 = vld [vmem:[%s213 + $0x17c] sm:$0xf]
      %v326 = vld [vmem:[%s213 + $0x180] sm:$0xf]
      %v327 = vld [vmem:[%s213 + $0x184] sm:$0xf]
      %v328 = vld [vmem:[%s213 + $0x188] sm:$0xf]
      %v329 = vld [vmem:[%s213 + $0x18c] sm:$0xf]
      %v330 = vld [vmem:[%s213 + $0x190] sm:$0xf]
      %v331 = vld [vmem:[%s213 + $0x194] sm:$0xf]
      %v332 = vld [vmem:[%s213 + $0x198] sm:$0xf]
      %v333 = vld [vmem:[%s213 + $0x19c] sm:$0xf]
      %v334 = vld [vmem:[%s213 + $0x1a0] sm:$0xf]
      %v335 = vld [vmem:[%s213 + $0x1a4] sm:$0xf]
      %v336 = vld [vmem:[%s213 + $0x1a8] sm:$0xf]
      %v337 = vld [vmem:[%s213 + $0x1ac] sm:$0xf]
      %v338 = vld [vmem:[%s213 + $0x1b0] sm:$0xf]
      %v339 = vld [vmem:[%s213 + $0x1b4] sm:$0xf]
      %v340 = vld [vmem:[%s213 + $0x1b8] sm:$0xf]
      %v341 = vld [vmem:[%s213 + $0x1bc] sm:$0xf]
      %v342 = vld [vmem:[%s213 + $0x1c0] sm:$0xf]
      %v343 = vld [vmem:[%s213 + $0x1c4] sm:$0xf]
      %v344 = vld [vmem:[%s213 + $0x1c8] sm:$0xf]
      %v345 = vld [vmem:[%s213 + $0x1cc] sm:$0xf]
      %v346 = vld [vmem:[%s213 + $0x1d0] sm:$0xf]
      %v347 = vld [vmem:[%s213 + $0x1d4] sm:$0xf]
      %v348 = vld [vmem:[%s213 + $0x1d8] sm:$0xf]
      %v349 = vld [vmem:[%s213 + $0x1dc] sm:$0xf]
      %v350 = vld [vmem:[%s213 + $0x1e0] sm:$0xf]
      %v351 = vld [vmem:[%s213 + $0x1e4] sm:$0xf]
      %v352 = vld [vmem:[%s213 + $0x1e8] sm:$0xf]
      %v353 = vld [vmem:[%s213 + $0x1ec] sm:$0xf]
      %v354 = vld [vmem:[%s213 + $0x1f0] sm:$0xf]
      %v355 = vld [vmem:[%s213 + $0x1f4] sm:$0xf]
      %v356 = vld [vmem:[%s213 + $0x1f8] sm:$0xf]
      %v357 = vld [vmem:[%s213 + $0x1fc] sm:$0xf]
      %v358 = vld [vmem:[%s213 + $0x200] sm:$0xf]
      %v359 = vld [vmem:[%s213 + $0x204] sm:$0xf]
      %v360 = vld [vmem:[%s213 + $0x208] sm:$0xf]
      %v361 = vld [vmem:[%s213 + $0x20c] sm:$0xf]
      %v362 = vld [vmem:[%s213 + $0x210] sm:$0xf]
      %v363 = vld [vmem:[%s213 + $0x214] sm:$0xf]
      %v364 = vld [vmem:[%s213 + $0x218] sm:$0xf]
      %v365 = vld [vmem:[%s213 + $0x21c] sm:$0xf]
      %v366 = vld [vmem:[%s213 + $0x220] sm:$0xf]
      %v367 = vld [vmem:[%s213 + $0x224] sm:$0xf]
      %v368 = vld [vmem:[%s213 + $0x228] sm:$0xf]
      %v369 = vld [vmem:[%s213 + $0x22c] sm:$0xf]
      %v370 = vld [vmem:[%s213 + $0x230] sm:$0xf]
      %v371 = vld [vmem:[%s213 + $0x234] sm:$0xf]
      %v372 = vld [vmem:[%s213 + $0x238] sm:$0xf]
      %v373 = vld [vmem:[%s213 + $0x23c] sm:$0xf]
      %v374 = vld [vmem:[%s213 + $0x240] sm:$0xf]
      %v375 = vld [vmem:[%s213 + $0x244] sm:$0xf]
      %v376 = vld [vmem:[%s213 + $0x248] sm:$0xf]
      %v377 = vld [vmem:[%s213 + $0x24c] sm:$0xf]
      %v378 = vld [vmem:[%s213 + $0x250] sm:$0xf]
      %v379 = vld [vmem:[%s213 + $0x254] sm:$0xf]
      %v380 = vld [vmem:[%s213 + $0x258] sm:$0xf]
      %v381 = vld [vmem:[%s213 + $0x25c] sm:$0xf]
      %v382 = vld [vmem:[%s213 + $0x260] sm:$0xf]
      %v383 = vld [vmem:[%s213 + $0x264] sm:$0xf]
      %v384 = vld [vmem:[%s213 + $0x268] sm:$0xf]
      %v385 = vld [vmem:[%s213 + $0x26c] sm:$0xf]
      %v386 = vld [vmem:[%s213 + $0x270] sm:$0xf]
      %v387 = vld [vmem:[%s213 + $0x274] sm:$0xf]
      %v388 = vld [vmem:[%s213 + $0x278] sm:$0xf]
      %v389 = vld [vmem:[%s213 + $0x27c] sm:$0xf]
      %v390 = vld [vmem:[%s213 + $0x280] sm:$0xf]
      %v391 = vld [vmem:[%s213 + $0x284] sm:$0xf]
      %v392 = vld [vmem:[%s213 + $0x288] sm:$0xf]
      %v393 = vld [vmem:[%s213 + $0x28c] sm:$0xf]
      %v394 = vld [vmem:[%s213 + $0x290] sm:$0xf]
      %v395 = vld [vmem:[%s213 + $0x294] sm:$0xf]
      %v396 = vld [vmem:[%s213 + $0x298] sm:$0xf]
      %v397 = vld [vmem:[%s213 + $0x29c] sm:$0xf]
      %v398 = vld [vmem:[%s213 + $0x2a0] sm:$0xf]
      %v399 = vld [vmem:[%s213 + $0x2a4] sm:$0xf]
      %v400 = vld [vmem:[%s213 + $0x2a8] sm:$0xf]
      %v401 = vld [vmem:[%s213 + $0x2ac] sm:$0xf]
      %v402 = vld [vmem:[%s213 + $0x2b0] sm:$0xf]
      %v403 = vld [vmem:[%s213 + $0x2b4] sm:$0xf]
      %v404 = vld [vmem:[%s213 + $0x2b8] sm:$0xf]
      %v405 = vld [vmem:[%s213 + $0x2bc] sm:$0xf]
      %v406 = vld [vmem:[%s213 + $0x2c0] sm:$0xf]
      %v407 = vld [vmem:[%s213 + $0x2c4] sm:$0xf]
      %v408 = vld [vmem:[%s213 + $0x2c8] sm:$0xf]
      %v409 = vld [vmem:[%s213 + $0x2cc] sm:$0xf]
      %v410 = vld [vmem:[%s213 + $0x2d0] sm:$0xf]
      %v411 = vld [vmem:[%s213 + $0x2d4] sm:$0xf]
      %v412 = vld [vmem:[%s213 + $0x2d8] sm:$0xf]
      %v413 = vld [vmem:[%s213 + $0x2dc] sm:$0xf]
      %v414 = vld [vmem:[%s213 + $0x2e0] sm:$0xf]
      %v415 = vld [vmem:[%s213 + $0x2e4] sm:$0xf]
      %v416 = vld [vmem:[%s213 + $0x2e8] sm:$0xf]
      %v417 = vld [vmem:[%s213 + $0x2ec] sm:$0xf]
      %v418 = vld [vmem:[%s213 + $0x2f0] sm:$0xf]
      %v419 = vld [vmem:[%s213 + $0x2f4] sm:$0xf]
      %v420 = vld [vmem:[%s213 + $0x2f8] sm:$0xf]
      %v421 = vld [vmem:[%s213 + $0x2fc] sm:$0xf]
      %v422 = vld [vmem:[%s213 + $0x300] sm:$0xf]
      %v423 = vld [vmem:[%s213 + $0x304] sm:$0xf]
      %v424 = vld [vmem:[%s213 + $0x308] sm:$0xf]
      %v425 = vld [vmem:[%s213 + $0x30c] sm:$0xf]
      %v426 = vld [vmem:[%s213 + $0x310] sm:$0xf]
      %v427 = vld [vmem:[%s213 + $0x314] sm:$0xf]
      %v428 = vld [vmem:[%s213 + $0x318] sm:$0xf]
      %v429 = vld [vmem:[%s213 + $0x31c] sm:$0xf]
      %v430 = vld [vmem:[%s213 + $0x320] sm:$0xf]
      %v431 = vld [vmem:[%s213 + $0x324] sm:$0xf]
      %v432 = vld [vmem:[%s213 + $0x328] sm:$0xf]
      %v433 = vld [vmem:[%s213 + $0x32c] sm:$0xf]
      %v434 = vld [vmem:[%s213 + $0x330] sm:$0xf]
      %v435 = vld [vmem:[%s213 + $0x334] sm:$0xf]
      %v436 = vld [vmem:[%s213 + $0x338] sm:$0xf]
      %v437 = vld [vmem:[%s213 + $0x33c] sm:$0xf]
      %v438 = vld [vmem:[%s213 + $0x340] sm:$0xf]
      %v439 = vld [vmem:[%s213 + $0x344] sm:$0xf]
      %v440 = vld [vmem:[%s213 + $0x348] sm:$0xf]
      %v441 = vld [vmem:[%s213 + $0x34c] sm:$0xf]
      %v442 = vld [vmem:[%s213 + $0x350] sm:$0xf]
      %v443 = vld [vmem:[%s213 + $0x354] sm:$0xf]
      %v444 = vld [vmem:[%s213 + $0x358] sm:$0xf]
      %v445 = vld [vmem:[%s213 + $0x35c] sm:$0xf]
      %v446 = vld [vmem:[%s213 + $0x360] sm:$0xf]
      %v447 = vld [vmem:[%s213 + $0x364] sm:$0xf]
      %v448 = vld [vmem:[%s213 + $0x368] sm:$0xf]
      %v449 = vld [vmem:[%s213 + $0x36c] sm:$0xf]
      %v450 = vld [vmem:[%s213 + $0x370] sm:$0xf]
      %v451 = vld [vmem:[%s213 + $0x374] sm:$0xf]
      %v452 = vld [vmem:[%s213 + $0x378] sm:$0xf]
      %v453 = vld [vmem:[%s213 + $0x37c] sm:$0xf]
      %v454 = vld [vmem:[%s213 + $0x380] sm:$0xf]
      %v455 = vld [vmem:[%s213 + $0x384] sm:$0xf]
      %v456 = vld [vmem:[%s213 + $0x388] sm:$0xf]
      %v457 = vld [vmem:[%s213 + $0x38c] sm:$0xf]
      %v458 = vld [vmem:[%s213 + $0x390] sm:$0xf]
      %v459 = vld [vmem:[%s213 + $0x394] sm:$0xf]
      %v460 = vld [vmem:[%s213 + $0x398] sm:$0xf]
      %v461 = vld [vmem:[%s213 + $0x39c] sm:$0xf]
      %v462 = vld [vmem:[%s213 + $0x3a0] sm:$0xf]
      %v463 = vld [vmem:[%s213 + $0x3a4] sm:$0xf]
      %v464 = vld [vmem:[%s213 + $0x3a8] sm:$0xf]
      %v465 = vld [vmem:[%s213 + $0x3ac] sm:$0xf]
      %v466 = vld [vmem:[%s213 + $0x3b0] sm:$0xf]
      %v467 = vld [vmem:[%s213 + $0x3b4] sm:$0xf]
      %v468 = vld [vmem:[%s213 + $0x3b8] sm:$0xf]
      %v469 = vld [vmem:[%s213 + $0x3bc] sm:$0xf]
      %v470 = vld [vmem:[%s213 + $0x3c0] sm:$0xf]
      %v471 = vld [vmem:[%s213 + $0x3c4] sm:$0xf]
      %v472 = vld [vmem:[%s213 + $0x3c8] sm:$0xf]
      %v473 = vld [vmem:[%s213 + $0x3cc] sm:$0xf]
      %v474 = vld [vmem:[%s213 + $0x3d0] sm:$0xf]
      %v475 = vld [vmem:[%s213 + $0x3d4] sm:$0xf]
      %v476 = vld [vmem:[%s213 + $0x3d8] sm:$0xf]
      %v477 = vld [vmem:[%s213 + $0x3dc] sm:$0xf]
      %v478 = vld [vmem:[%s213 + $0x3e0] sm:$0xf]
      %v479 = vld [vmem:[%s213 + $0x3e4] sm:$0xf]
      %v480 = vld [vmem:[%s213 + $0x3e8] sm:$0xf]
      %v481 = vld [vmem:[%s213 + $0x3ec] sm:$0xf]
      %v482 = vld [vmem:[%s213 + $0x3f0] sm:$0xf]
      %v483 = vld [vmem:[%s213 + $0x3f4] sm:$0xf]
      %v484 = vld [vmem:[%s213 + $0x3f8] sm:$0xf]
      %v485 = vld [vmem:[%s213 + $0x3fc] sm:$0xf]
      %v490 = vcombine.high %v226, %v226
      %v492 = vunpack.c.l.s4 1983009808
      %v493 = vunpack.c.0.s8 %v492
      %v494 = vlaneseq
      %v495 = vshrl.u32 %v494, 7
      %v496 = vsub.s32 %v493, %v495
      %v497 = vrot.slane %v226, %v496
      %v499 = vunpack.c.l.s4 1983009808
      %v500 = vunpack.c.0.s8 %v499
      %v501 = vlaneseq
      %v502 = vshrl.u32 %v501, 7
      %v503 = vsub.s32 %v500, %v502
      %v504 = vrot.slane %v490, %v503
      %v505 = vcombine.high %v497, %v497
      %v506 = vcombine.high %v504, %v504
      %v507 = vcombine.high %v227, %v227
      %v509 = vunpack.c.l.s4 1983009808
      %v510 = vunpack.c.0.s8 %v509
      %v511 = vlaneseq
      %v512 = vshrl.u32 %v511, 7
      %v513 = vsub.s32 %v510, %v512
      %v514 = vrot.slane %v227, %v513
      %v516 = vunpack.c.l.s4 1983009808
      %v517 = vunpack.c.0.s8 %v516
      %v518 = vlaneseq
      %v519 = vshrl.u32 %v518, 7
      %v520 = vsub.s32 %v517, %v519
      %v521 = vrot.slane %v507, %v520
      %v522 = vcombine.high %v514, %v514
      %v523 = vcombine.high %v521, %v521
      %v524 = vcombine.high %v228, %v228
      %v526 = vunpack.c.l.s4 1983009808
      %v527 = vunpack.c.0.s8 %v526
      %v528 = vlaneseq
      %v529 = vshrl.u32 %v528, 7
      %v530 = vsub.s32 %v527, %v529
      %v531 = vrot.slane %v228, %v530
      %v533 = vunpack.c.l.s4 1983009808
      %v534 = vunpack.c.0.s8 %v533
      %v535 = vlaneseq
      %v536 = vshrl.u32 %v535, 7
      %v537 = vsub.s32 %v534, %v536
      %v538 = vrot.slane %v524, %v537
      %v539 = vcombine.high %v531, %v531
      %v540 = vcombine.high %v538, %v538
      %v541 = vcombine.high %v229, %v229
      %v543 = vunpack.c.l.s4 1983009808
      %v544 = vunpack.c.0.s8 %v543
      %v545 = vlaneseq
      %v546 = vshrl.u32 %v545, 7
      %v547 = vsub.s32 %v544, %v546
      %v548 = vrot.slane %v229, %v547
      %v550 = vunpack.c.l.s4 1983009808
      %v551 = vunpack.c.0.s8 %v550
      %v552 = vlaneseq
      %v553 = vshrl.u32 %v552, 7
      %v554 = vsub.s32 %v551, %v553
      %v555 = vrot.slane %v541, %v554
      %v556 = vcombine.high %v548, %v548
      %v557 = vcombine.high %v555, %v555
      %v830 = vunpack.c.l.b16 %v230
      %v831 = vunpack.c.l.b16 %v231
      %v832 = vunpack.c.l.b16 %v232
      %v833 = vunpack.c.l.b16 %v233
      %v834 = vunpack.c.l.b16 %v234
      %v835 = vunpack.c.l.b16 %v235
      %v836 = vunpack.c.l.b16 %v236
      %v837 = vunpack.c.l.b16 %v237
      %v838 = vunpack.c.l.b16 %v238
      %v839 = vunpack.c.l.b16 %v239
      %v840 = vunpack.c.l.b16 %v240
      %v841 = vunpack.c.l.b16 %v241
      %v842 = vunpack.c.l.b16 %v242
      %v843 = vunpack.c.l.b16 %v243
      %v844 = vunpack.c.l.b16 %v244
      %v845 = vunpack.c.l.b16 %v245
      %v846 = vunpack.c.l.b16 %v246
      %v847 = vunpack.c.l.b16 %v247
      %v848 = vunpack.c.l.b16 %v248
      %v849 = vunpack.c.l.b16 %v249
      %v850 = vunpack.c.l.b16 %v250
      %v851 = vunpack.c.l.b16 %v251
      %v852 = vunpack.c.l.b16 %v252
      %v853 = vunpack.c.l.b16 %v253
      %v854 = vunpack.c.l.b16 %v254
      %v855 = vunpack.c.l.b16 %v255
      %v856 = vunpack.c.l.b16 %v256
      %v857 = vunpack.c.l.b16 %v257
      %v858 = vunpack.c.l.b16 %v258
      %v859 = vunpack.c.l.b16 %v259
      %v860 = vunpack.c.l.b16 %v260
      %v861 = vunpack.c.l.b16 %v261
      %v862 = vunpack.c.l.b16 %v262
      %v863 = vunpack.c.l.b16 %v263
      %v864 = vunpack.c.l.b16 %v264
      %v865 = vunpack.c.l.b16 %v265
      %v866 = vunpack.c.l.b16 %v266
      %v867 = vunpack.c.l.b16 %v267
      %v868 = vunpack.c.l.b16 %v268
      %v869 = vunpack.c.l.b16 %v269
      %v870 = vunpack.c.l.b16 %v270
      %v871 = vunpack.c.l.b16 %v271
      %v872 = vunpack.c.l.b16 %v272
      %v873 = vunpack.c.l.b16 %v273
      %v874 = vunpack.c.l.b16 %v274
      %v875 = vunpack.c.l.b16 %v275
      %v876 = vunpack.c.l.b16 %v276
      %v877 = vunpack.c.l.b16 %v277
      %v878 = vunpack.c.l.b16 %v278
      %v879 = vunpack.c.l.b16 %v279
      %v880 = vunpack.c.l.b16 %v280
      %v881 = vunpack.c.l.b16 %v281
      %v882 = vunpack.c.l.b16 %v282
      %v883 = vunpack.c.l.b16 %v283
      %v884 = vunpack.c.l.b16 %v284
      %v885 = vunpack.c.l.b16 %v285
      %v886 = vunpack.c.l.b16 %v286
      %v887 = vunpack.c.l.b16 %v287
      %v888 = vunpack.c.l.b16 %v288
      %v889 = vunpack.c.l.b16 %v289
      %v890 = vunpack.c.l.b16 %v290
      %v891 = vunpack.c.l.b16 %v291
      %v892 = vunpack.c.l.b16 %v292
      %v893 = vunpack.c.l.b16 %v293
      %v894 = vunpack.c.l.b16 %v294
      %v895 = vunpack.c.l.b16 %v295
      %v896 = vunpack.c.l.b16 %v296
      %v897 = vunpack.c.l.b16 %v297
      %v898 = vunpack.c.l.b16 %v298
      %v899 = vunpack.c.l.b16 %v299
      %v900 = vunpack.c.l.b16 %v300
      %v901 = vunpack.c.l.b16 %v301
      %v902 = vunpack.c.l.b16 %v302
      %v903 = vunpack.c.l.b16 %v303
      %v904 = vunpack.c.l.b16 %v304
      %v905 = vunpack.c.l.b16 %v305
      %v906 = vunpack.c.l.b16 %v306
      %v907 = vunpack.c.l.b16 %v307
      %v908 = vunpack.c.l.b16 %v308
      %v909 = vunpack.c.l.b16 %v309
      %v910 = vunpack.c.l.b16 %v310
      %v911 = vunpack.c.l.b16 %v311
      %v912 = vunpack.c.l.b16 %v312
      %v913 = vunpack.c.l.b16 %v313
      %v914 = vunpack.c.l.b16 %v314
      %v915 = vunpack.c.l.b16 %v315
      %v916 = vunpack.c.l.b16 %v316
      %v917 = vunpack.c.l.b16 %v317
      %v918 = vunpack.c.l.b16 %v318
      %v919 = vunpack.c.l.b16 %v319
      %v920 = vunpack.c.l.b16 %v320
      %v921 = vunpack.c.l.b16 %v321
      %v922 = vunpack.c.l.b16 %v322
      %v923 = vunpack.c.l.b16 %v323
      %v924 = vunpack.c.l.b16 %v324
      %v925 = vunpack.c.l.b16 %v325
      %v926 = vunpack.c.l.b16 %v326
      %v927 = vunpack.c.l.b16 %v327
      %v928 = vunpack.c.l.b16 %v328
      %v929 = vunpack.c.l.b16 %v329
      %v930 = vunpack.c.l.b16 %v330
      %v931 = vunpack.c.l.b16 %v331
      %v932 = vunpack.c.l.b16 %v332
      %v933 = vunpack.c.l.b16 %v333
      %v934 = vunpack.c.l.b16 %v334
      %v935 = vunpack.c.l.b16 %v335
      %v936 = vunpack.c.l.b16 %v336
      %v937 = vunpack.c.l.b16 %v337
      %v938 = vunpack.c.l.b16 %v338
      %v939 = vunpack.c.l.b16 %v339
      %v940 = vunpack.c.l.b16 %v340
      %v941 = vunpack.c.l.b16 %v341
      %v942 = vunpack.c.l.b16 %v342
      %v943 = vunpack.c.l.b16 %v343
      %v944 = vunpack.c.l.b16 %v344
      %v945 = vunpack.c.l.b16 %v345
      %v946 = vunpack.c.l.b16 %v346
      %v947 = vunpack.c.l.b16 %v347
      %v948 = vunpack.c.l.b16 %v348
      %v949 = vunpack.c.l.b16 %v349
      %v950 = vunpack.c.l.b16 %v350
      %v951 = vunpack.c.l.b16 %v351
      %v952 = vunpack.c.l.b16 %v352
      %v953 = vunpack.c.l.b16 %v353
      %v954 = vunpack.c.l.b16 %v354
      %v955 = vunpack.c.l.b16 %v355
      %v956 = vunpack.c.l.b16 %v356
      %v957 = vunpack.c.l.b16 %v357
      %v958 = vunpack.c.l.b16 %v358
      %v959 = vunpack.c.l.b16 %v359
      %v960 = vunpack.c.l.b16 %v360
      %v961 = vunpack.c.l.b16 %v361
      %v962 = vunpack.c.l.b16 %v362
      %v963 = vunpack.c.l.b16 %v363
      %v964 = vunpack.c.l.b16 %v364
      %v965 = vunpack.c.l.b16 %v365
      %v966 = vunpack.c.l.b16 %v366
      %v967 = vunpack.c.l.b16 %v367
      %v968 = vunpack.c.l.b16 %v368
      %v969 = vunpack.c.l.b16 %v369
      %v970 = vunpack.c.l.b16 %v370
      %v971 = vunpack.c.l.b16 %v371
      %v972 = vunpack.c.l.b16 %v372
      %v973 = vunpack.c.l.b16 %v373
      %v974 = vunpack.c.l.b16 %v374
      %v975 = vunpack.c.l.b16 %v375
      %v976 = vunpack.c.l.b16 %v376
      %v977 = vunpack.c.l.b16 %v377
      %v978 = vunpack.c.l.b16 %v378
      %v979 = vunpack.c.l.b16 %v379
      %v980 = vunpack.c.l.b16 %v380
      %v981 = vunpack.c.l.b16 %v381
      %v982 = vunpack.c.l.b16 %v382
      %v983 = vunpack.c.l.b16 %v383
      %v984 = vunpack.c.l.b16 %v384
      %v985 = vunpack.c.l.b16 %v385
      %v986 = vunpack.c.l.b16 %v386
      %v987 = vunpack.c.l.b16 %v387
      %v988 = vunpack.c.l.b16 %v388
      %v989 = vunpack.c.l.b16 %v389
      %v990 = vunpack.c.l.b16 %v390
      %v991 = vunpack.c.l.b16 %v391
      %v992 = vunpack.c.l.b16 %v392
      %v993 = vunpack.c.l.b16 %v393
      %v994 = vunpack.c.l.b16 %v394
      %v995 = vunpack.c.l.b16 %v395
      %v996 = vunpack.c.l.b16 %v396
      %v997 = vunpack.c.l.b16 %v397
      %v998 = vunpack.c.l.b16 %v398
      %v999 = vunpack.c.l.b16 %v399
      %v1000 = vunpack.c.l.b16 %v400
      %v1001 = vunpack.c.l.b16 %v401
      %v1002 = vunpack.c.l.b16 %v402
      %v1003 = vunpack.c.l.b16 %v403
      %v1004 = vunpack.c.l.b16 %v404
      %v1005 = vunpack.c.l.b16 %v405
      %v1006 = vunpack.c.l.b16 %v406
      %v1007 = vunpack.c.l.b16 %v407
      %v1008 = vunpack.c.l.b16 %v408
      %v1009 = vunpack.c.l.b16 %v409
      %v1010 = vunpack.c.l.b16 %v410
      %v1011 = vunpack.c.l.b16 %v411
      %v1012 = vunpack.c.l.b16 %v412
      %v1013 = vunpack.c.l.b16 %v413
      %v1014 = vunpack.c.l.b16 %v414
      %v1015 = vunpack.c.l.b16 %v415
      %v1016 = vunpack.c.l.b16 %v416
      %v1017 = vunpack.c.l.b16 %v417
      %v1018 = vunpack.c.l.b16 %v418
      %v1019 = vunpack.c.l.b16 %v419
      %v1020 = vunpack.c.l.b16 %v420
      %v1021 = vunpack.c.l.b16 %v421
      %v1022 = vunpack.c.l.b16 %v422
      %v1023 = vunpack.c.l.b16 %v423
      %v1024 = vunpack.c.l.b16 %v424
      %v1025 = vunpack.c.l.b16 %v425
      %v1026 = vunpack.c.l.b16 %v426
      %v1027 = vunpack.c.l.b16 %v427
      %v1028 = vunpack.c.l.b16 %v428
      %v1029 = vunpack.c.l.b16 %v429
      %v1030 = vunpack.c.l.b16 %v430
      %v1031 = vunpack.c.l.b16 %v431
      %v1032 = vunpack.c.l.b16 %v432
      %v1033 = vunpack.c.l.b16 %v433
      %v1034 = vunpack.c.l.b16 %v434
      %v1035 = vunpack.c.l.b16 %v435
      %v1036 = vunpack.c.l.b16 %v436
      %v1037 = vunpack.c.l.b16 %v437
      %v1038 = vunpack.c.l.b16 %v438
      %v1039 = vunpack.c.l.b16 %v439
      %v1040 = vunpack.c.l.b16 %v440
      %v1041 = vunpack.c.l.b16 %v441
      %v1042 = vunpack.c.l.b16 %v442
      %v1043 = vunpack.c.l.b16 %v443
      %v1044 = vunpack.c.l.b16 %v444
      %v1045 = vunpack.c.l.b16 %v445
      %v1046 = vunpack.c.l.b16 %v446
      %v1047 = vunpack.c.l.b16 %v447
      %v1048 = vunpack.c.l.b16 %v448
      %v1049 = vunpack.c.l.b16 %v449
      %v1050 = vunpack.c.l.b16 %v450
      %v1051 = vunpack.c.l.b16 %v451
      %v1052 = vunpack.c.l.b16 %v452
      %v1053 = vunpack.c.l.b16 %v453
      %v1054 = vunpack.c.l.b16 %v454
      %v1055 = vunpack.c.l.b16 %v455
      %v1056 = vunpack.c.l.b16 %v456
      %v1057 = vunpack.c.l.b16 %v457
      %v1058 = vunpack.c.l.b16 %v458
      %v1059 = vunpack.c.l.b16 %v459
      %v1060 = vunpack.c.l.b16 %v460
      %v1061 = vunpack.c.l.b16 %v461
      %v1062 = vunpack.c.l.b16 %v462
      %v1063 = vunpack.c.l.b16 %v463
      %v1064 = vunpack.c.l.b16 %v464
      %v1065 = vunpack.c.l.b16 %v465
      %v1066 = vunpack.c.l.b16 %v466
      %v1067 = vunpack.c.l.b16 %v467
      %v1068 = vunpack.c.l.b16 %v468
      %v1069 = vunpack.c.l.b16 %v469
      %v1070 = vunpack.c.l.b16 %v470
      %v1071 = vunpack.c.l.b16 %v471
      %v1072 = vunpack.c.l.b16 %v472
      %v1073 = vunpack.c.l.b16 %v473
      %v1074 = vunpack.c.l.b16 %v474
      %v1075 = vunpack.c.l.b16 %v475
      %v1076 = vunpack.c.l.b16 %v476
      %v1077 = vunpack.c.l.b16 %v477
      %v1078 = vunpack.c.l.b16 %v478
      %v1079 = vunpack.c.l.b16 %v479
      %v1080 = vunpack.c.l.b16 %v480
      %v1081 = vunpack.c.l.b16 %v481
      %v1082 = vunpack.c.l.b16 %v482
      %v1083 = vunpack.c.l.b16 %v483
      %v1084 = vunpack.c.l.b16 %v484
      %v1085 = vunpack.c.l.b16 %v485
      %v1086 = vpack.c.b16 %v831, %v830
      %v1087 = vpack.c.b16 %v833, %v832
      %v1088 = vpack.c.b16 %v835, %v834
      %v1089 = vpack.c.b16 %v837, %v836
      %v1090 = vpack.c.b16 %v839, %v838
      %v1091 = vpack.c.b16 %v841, %v840
      %v1092 = vpack.c.b16 %v843, %v842
      %v1093 = vpack.c.b16 %v845, %v844
      %v1094 = vpack.c.b16 %v847, %v846
      %v1095 = vpack.c.b16 %v849, %v848
      %v1096 = vpack.c.b16 %v851, %v850
      %v1097 = vpack.c.b16 %v853, %v852
      %v1098 = vpack.c.b16 %v855, %v854
      %v1099 = vpack.c.b16 %v857, %v856
      %v1100 = vpack.c.b16 %v859, %v858
      %v1101 = vpack.c.b16 %v861, %v860
      %v1102 = vpack.c.b16 %v863, %v862
      %v1103 = vpack.c.b16 %v865, %v864
      %v1104 = vpack.c.b16 %v867, %v866
      %v1105 = vpack.c.b16 %v869, %v868
      %v1106 = vpack.c.b16 %v871, %v870
      %v1107 = vpack.c.b16 %v873, %v872
      %v1108 = vpack.c.b16 %v875, %v874
      %v1109 = vpack.c.b16 %v877, %v876
      %v1110 = vpack.c.b16 %v879, %v878
      %v1111 = vpack.c.b16 %v881, %v880
      %v1112 = vpack.c.b16 %v883, %v882
      %v1113 = vpack.c.b16 %v885, %v884
      %v1114 = vpack.c.b16 %v887, %v886
      %v1115 = vpack.c.b16 %v889, %v888
      %v1116 = vpack.c.b16 %v891, %v890
      %v1117 = vpack.c.b16 %v893, %v892
      %v1118 = vpack.c.b16 %v895, %v894
      %v1119 = vpack.c.b16 %v897, %v896
      %v1120 = vpack.c.b16 %v899, %v898
      %v1121 = vpack.c.b16 %v901, %v900
      %v1122 = vpack.c.b16 %v903, %v902
      %v1123 = vpack.c.b16 %v905, %v904
      %v1124 = vpack.c.b16 %v907, %v906
      %v1125 = vpack.c.b16 %v909, %v908
      %v1126 = vpack.c.b16 %v911, %v910
      %v1127 = vpack.c.b16 %v913, %v912
      %v1128 = vpack.c.b16 %v915, %v914
      %v1129 = vpack.c.b16 %v917, %v916
      %v1130 = vpack.c.b16 %v919, %v918
      %v1131 = vpack.c.b16 %v921, %v920
      %v1132 = vpack.c.b16 %v923, %v922
      %v1133 = vpack.c.b16 %v925, %v924
      %v1134 = vpack.c.b16 %v927, %v926
      %v1135 = vpack.c.b16 %v929, %v928
      %v1136 = vpack.c.b16 %v931, %v930
      %v1137 = vpack.c.b16 %v933, %v932
      %v1138 = vpack.c.b16 %v935, %v934
      %v1139 = vpack.c.b16 %v937, %v936
      %v1140 = vpack.c.b16 %v939, %v938
      %v1141 = vpack.c.b16 %v941, %v940
      %v1142 = vpack.c.b16 %v943, %v942
      %v1143 = vpack.c.b16 %v945, %v944
      %v1144 = vpack.c.b16 %v947, %v946
      %v1145 = vpack.c.b16 %v949, %v948
      %v1146 = vpack.c.b16 %v951, %v950
      %v1147 = vpack.c.b16 %v953, %v952
      %v1148 = vpack.c.b16 %v955, %v954
      %v1149 = vpack.c.b16 %v957, %v956
      %v1150 = vpack.c.b16 %v959, %v958
      %v1151 = vpack.c.b16 %v961, %v960
      %v1152 = vpack.c.b16 %v963, %v962
      %v1153 = vpack.c.b16 %v965, %v964
      %v1154 = vpack.c.b16 %v967, %v966
      %v1155 = vpack.c.b16 %v969, %v968
      %v1156 = vpack.c.b16 %v971, %v970
      %v1157 = vpack.c.b16 %v973, %v972
      %v1158 = vpack.c.b16 %v975, %v974
      %v1159 = vpack.c.b16 %v977, %v976
      %v1160 = vpack.c.b16 %v979, %v978
      %v1161 = vpack.c.b16 %v981, %v980
      %v1162 = vpack.c.b16 %v983, %v982
      %v1163 = vpack.c.b16 %v985, %v984
      %v1164 = vpack.c.b16 %v987, %v986
      %v1165 = vpack.c.b16 %v989, %v988
      %v1166 = vpack.c.b16 %v991, %v990
      %v1167 = vpack.c.b16 %v993, %v992
      %v1168 = vpack.c.b16 %v995, %v994
      %v1169 = vpack.c.b16 %v997, %v996
      %v1170 = vpack.c.b16 %v999, %v998
      %v1171 = vpack.c.b16 %v1001, %v1000
      %v1172 = vpack.c.b16 %v1003, %v1002
      %v1173 = vpack.c.b16 %v1005, %v1004
      %v1174 = vpack.c.b16 %v1007, %v1006
      %v1175 = vpack.c.b16 %v1009, %v1008
      %v1176 = vpack.c.b16 %v1011, %v1010
      %v1177 = vpack.c.b16 %v1013, %v1012
      %v1178 = vpack.c.b16 %v1015, %v1014
      %v1179 = vpack.c.b16 %v1017, %v1016
      %v1180 = vpack.c.b16 %v1019, %v1018
      %v1181 = vpack.c.b16 %v1021, %v1020
      %v1182 = vpack.c.b16 %v1023, %v1022
      %v1183 = vpack.c.b16 %v1025, %v1024
      %v1184 = vpack.c.b16 %v1027, %v1026
      %v1185 = vpack.c.b16 %v1029, %v1028
      %v1186 = vpack.c.b16 %v1031, %v1030
      %v1187 = vpack.c.b16 %v1033, %v1032
      %v1188 = vpack.c.b16 %v1035, %v1034
      %v1189 = vpack.c.b16 %v1037, %v1036
      %v1190 = vpack.c.b16 %v1039, %v1038
      %v1191 = vpack.c.b16 %v1041, %v1040
      %v1192 = vpack.c.b16 %v1043, %v1042
      %v1193 = vpack.c.b16 %v1045, %v1044
      %v1194 = vpack.c.b16 %v1047, %v1046
      %v1195 = vpack.c.b16 %v1049, %v1048
      %v1196 = vpack.c.b16 %v1051, %v1050
      %v1197 = vpack.c.b16 %v1053, %v1052
      %v1198 = vpack.c.b16 %v1055, %v1054
      %v1199 = vpack.c.b16 %v1057, %v1056
      %v1200 = vpack.c.b16 %v1059, %v1058
      %v1201 = vpack.c.b16 %v1061, %v1060
      %v1202 = vpack.c.b16 %v1063, %v1062
      %v1203 = vpack.c.b16 %v1065, %v1064
      %v1204 = vpack.c.b16 %v1067, %v1066
      %v1205 = vpack.c.b16 %v1069, %v1068
      %v1206 = vpack.c.b16 %v1071, %v1070
      %v1207 = vpack.c.b16 %v1073, %v1072
      %v1208 = vpack.c.b16 %v1075, %v1074
      %v1209 = vpack.c.b16 %v1077, %v1076
      %v1210 = vpack.c.b16 %v1079, %v1078
      %v1211 = vpack.c.b16 %v1081, %v1080
      %v1212 = vpack.c.b16 %v1083, %v1082
      %v1213 = vpack.c.b16 %v1085, %v1084
      %1342 = vmatprep.subr.bf16.mxu0 0
      %1343 = vmatpush1.bf16.msra.mxu0 %v1086
      %1344 = vmatprep.subr.bf16.mxu0 0
      %1345 = vmatpush1.bf16.msra.mxu0 %v1087
      %1346 = vmatprep.subr.bf16.mxu0 0
      %1347 = vmatpush1.bf16.msra.mxu0 %v1088
      %1348 = vmatprep.subr.bf16.mxu0 0
      %1349 = vmatpush1.bf16.msra.mxu0 %v1089
      %1350 = vmatprep.subr.bf16.mxu0 0
      %1351 = vmatpush1.bf16.msra.mxu0 %v1090
      %1352 = vmatprep.subr.bf16.mxu0 0
      %1353 = vmatpush1.bf16.msra.mxu0 %v1091
      %1354 = vmatprep.subr.bf16.mxu0 0
      %1355 = vmatpush1.bf16.msra.mxu0 %v1092
      %1356 = vmatprep.subr.bf16.mxu0 0
      %1357 = vmatpush1.bf16.msra.mxu0 %v1093
      %1358 = vmatprep.subr.bf16.mxu0 0
      %1359 = vmatpush1.bf16.msra.mxu0 %v1094
      %1360 = vmatprep.subr.bf16.mxu0 0
      %1361 = vmatpush1.bf16.msra.mxu0 %v1095
      %1362 = vmatprep.subr.bf16.mxu0 0
      %1363 = vmatpush1.bf16.msra.mxu0 %v1096
      %1364 = vmatprep.subr.bf16.mxu0 0
      %1365 = vmatpush1.bf16.msra.mxu0 %v1097
      %1366 = vmatprep.subr.bf16.mxu0 0
      %1367 = vmatpush1.bf16.msra.mxu0 %v1098
      %1368 = vmatprep.subr.bf16.mxu0 0
      %1369 = vmatpush1.bf16.msra.mxu0 %v1099
      %1370 = vmatprep.subr.bf16.mxu0 0
      %1371 = vmatpush1.bf16.msra.mxu0 %v1100
      %1372 = vmatprep.subr.bf16.mxu0 0
      %1373 = vmatpush1.bf16.msra.mxu0 %v1101
      %1374 = vmatprep.mubr.bf16.mxu0 %v505
      %1375 = vmatmul.mubr.bf16.gmra.mrb[0].mxu0 %v497
      %v1376 = vpop.f32.mrb[0].mxu0
      %v1377 = vadd.f32 0.0, %v1376
      %v1378 = vpop.f32.mrb[0].mxu0
      %v1379 = vpop.f32.mrb[0].mxu0
      %v1380 = vpop.f32.mrb[0].mxu0
      %1381 = vdwg.mxu0
      %1382 = vmatprep.subr.bf16.mxu0 0
      %1383 = vmatpush1.bf16.msra.mxu0 %v1102
      %1384 = vmatprep.subr.bf16.mxu0 0
      %1385 = vmatpush1.bf16.msra.mxu0 %v1103
      %1386 = vmatprep.subr.bf16.mxu0 0
      %1387 = vmatpush1.bf16.msra.mxu0 %v1104
      %1388 = vmatprep.subr.bf16.mxu0 0
      %1389 = vmatpush1.bf16.msra.mxu0 %v1105
      %1390 = vmatprep.subr.bf16.mxu0 0
      %1391 = vmatpush1.bf16.msra.mxu0 %v1106
      %1392 = vmatprep.subr.bf16.mxu0 0
      %1393 = vmatpush1.bf16.msra.mxu0 %v1107
      %1394 = vmatprep.subr.bf16.mxu0 0
      %1395 = vmatpush1.bf16.msra.mxu0 %v1108
      %1396 = vmatprep.subr.bf16.mxu0 0
      %1397 = vmatpush1.bf16.msra.mxu0 %v1109
      %1398 = vmatprep.subr.bf16.mxu0 0
      %1399 = vmatpush1.bf16.msra.mxu0 %v1110
      %1400 = vmatprep.subr.bf16.mxu0 0
      %1401 = vmatpush1.bf16.msra.mxu0 %v1111
      %1402 = vmatprep.subr.bf16.mxu0 0
      %1403 = vmatpush1.bf16.msra.mxu0 %v1112
      %1404 = vmatprep.subr.bf16.mxu0 0
      %1405 = vmatpush1.bf16.msra.mxu0 %v1113
      %1406 = vmatprep.subr.bf16.mxu0 0
      %1407 = vmatpush1.bf16.msra.mxu0 %v1114
      %1408 = vmatprep.subr.bf16.mxu0 0
      %1409 = vmatpush1.bf16.msra.mxu0 %v1115
      %1410 = vmatprep.subr.bf16.mxu0 0
      %1411 = vmatpush1.bf16.msra.mxu0 %v1116
      %1412 = vmatprep.subr.bf16.mxu0 0
      %1413 = vmatpush1.bf16.msra.mxu0 %v1117
      %1414 = vmatprep.mubr.bf16.mxu0 %v506
      %1415 = vmatmul.mubr.bf16.gmra.mrb[0].mxu0 %v504
      %v1416 = vpop.f32.mrb[0].mxu0
      %v1417 = vadd.f32 %v1377, %v1416
      %v1418 = vpop.f32.mrb[0].mxu0
      %v1419 = vpop.f32.mrb[0].mxu0
      %v1420 = vpop.f32.mrb[0].mxu0
      %1421 = vdwg.mxu0
      %1422 = vmatprep.subr.bf16.mxu0 0
      %1423 = vmatpush1.bf16.msra.mxu0 %v1118
      %1424 = vmatprep.subr.bf16.mxu0 0
      %1425 = vmatpush1.bf16.msra.mxu0 %v1119
      %1426 = vmatprep.subr.bf16.mxu0 0
      %1427 = vmatpush1.bf16.msra.mxu0 %v1120
      %1428 = vmatprep.subr.bf16.mxu0 0
      %1429 = vmatpush1.bf16.msra.mxu0 %v1121
      %1430 = vmatprep.subr.bf16.mxu0 0
      %1431 = vmatpush1.bf16.msra.mxu0 %v1122
      %1432 = vmatprep.subr.bf16.mxu0 0
      %1433 = vmatpush1.bf16.msra.mxu0 %v1123
      %1434 = vmatprep.subr.bf16.mxu0 0
      %1435 = vmatpush1.bf16.msra.mxu0 %v1124
      %1436 = vmatprep.subr.bf16.mxu0 0
      %1437 = vmatpush1.bf16.msra.mxu0 %v1125
      %1438 = vmatprep.subr.bf16.mxu0 0
      %1439 = vmatpush1.bf16.msra.mxu0 %v1126
      %1440 = vmatprep.subr.bf16.mxu0 0
      %1441 = vmatpush1.bf16.msra.mxu0 %v1127
      %1442 = vmatprep.subr.bf16.mxu0 0
      %1443 = vmatpush1.bf16.msra.mxu0 %v1128
      %1444 = vmatprep.subr.bf16.mxu0 0
      %1445 = vmatpush1.bf16.msra.mxu0 %v1129
      %1446 = vmatprep.subr.bf16.mxu0 0
      %1447 = vmatpush1.bf16.msra.mxu0 %v1130
      %1448 = vmatprep.subr.bf16.mxu0 0
      %1449 = vmatpush1.bf16.msra.mxu0 %v1131
      %1450 = vmatprep.subr.bf16.mxu0 0
      %1451 = vmatpush1.bf16.msra.mxu0 %v1132
      %1452 = vmatprep.subr.bf16.mxu0 0
      %1453 = vmatpush1.bf16.msra.mxu0 %v1133
      %1454 = vmatprep.mubr.bf16.mxu0 %v522
      %1455 = vmatmul.mubr.bf16.gmra.mrb[0].mxu0 %v514
      %v1456 = vpop.f32.mrb[0].mxu0
      %v1457 = vadd.f32 %v1417, %v1456
      %v1458 = vpop.f32.mrb[0].mxu0
      %v1459 = vpop.f32.mrb[0].mxu0
      %v1460 = vpop.f32.mrb[0].mxu0
      %1461 = vdwg.mxu0
      %1462 = vmatprep.subr.bf16.mxu0 0
      %1463 = vmatpush1.bf16.msra.mxu0 %v1134
      %1464 = vmatprep.subr.bf16.mxu0 0
      %1465 = vmatpush1.bf16.msra.mxu0 %v1135
      %1466 = vmatprep.subr.bf16.mxu0 0
      %1467 = vmatpush1.bf16.msra.mxu0 %v1136
      %1468 = vmatprep.subr.bf16.mxu0 0
      %1469 = vmatpush1.bf16.msra.mxu0 %v1137
      %1470 = vmatprep.subr.bf16.mxu0 0
      %1471 = vmatpush1.bf16.msra.mxu0 %v1138
      %1472 = vmatprep.subr.bf16.mxu0 0
      %1473 = vmatpush1.bf16.msra.mxu0 %v1139
      %1474 = vmatprep.subr.bf16.mxu0 0
      %1475 = vmatpush1.bf16.msra.mxu0 %v1140
      %1476 = vmatprep.subr.bf16.mxu0 0
      %1477 = vmatpush1.bf16.msra.mxu0 %v1141
      %1478 = vmatprep.subr.bf16.mxu0 0
      %1479 = vmatpush1.bf16.msra.mxu0 %v1142
      %1480 = vmatprep.subr.bf16.mxu0 0
      %1481 = vmatpush1.bf16.msra.mxu0 %v1143
      %1482 = vmatprep.subr.bf16.mxu0 0
      %1483 = vmatpush1.bf16.msra.mxu0 %v1144
      %1484 = vmatprep.subr.bf16.mxu0 0
      %1485 = vmatpush1.bf16.msra.mxu0 %v1145
      %1486 = vmatprep.subr.bf16.mxu0 0
      %1487 = vmatpush1.bf16.msra.mxu0 %v1146
      %1488 = vmatprep.subr.bf16.mxu0 0
      %1489 = vmatpush1.bf16.msra.mxu0 %v1147
      %1490 = vmatprep.subr.bf16.mxu0 0
      %1491 = vmatpush1.bf16.msra.mxu0 %v1148
      %1492 = vmatprep.subr.bf16.mxu0 0
      %1493 = vmatpush1.bf16.msra.mxu0 %v1149
      %1494 = vmatprep.mubr.bf16.mxu0 %v523
      %1495 = vmatmul.mubr.bf16.gmra.mrb[0].mxu0 %v521
      %v1496 = vpop.f32.mrb[0].mxu0
      %v1497 = vadd.f32 %v1457, %v1496
      %v1498 = vpop.f32.mrb[0].mxu0
      %v1499 = vpop.f32.mrb[0].mxu0
      %v1500 = vpop.f32.mrb[0].mxu0
      %1501 = vdwg.mxu0
      %1502 = vmatprep.subr.bf16.mxu0 0
      %1503 = vmatpush1.bf16.msra.mxu0 %v1150
      %1504 = vmatprep.subr.bf16.mxu0 0
      %1505 = vmatpush1.bf16.msra.mxu0 %v1151
      %1506 = vmatprep.subr.bf16.mxu0 0
      %1507 = vmatpush1.bf16.msra.mxu0 %v1152
      %1508 = vmatprep.subr.bf16.mxu0 0
      %1509 = vmatpush1.bf16.msra.mxu0 %v1153
      %1510 = vmatprep.subr.bf16.mxu0 0
      %1511 = vmatpush1.bf16.msra.mxu0 %v1154
      %1512 = vmatprep.subr.bf16.mxu0 0
      %1513 = vmatpush1.bf16.msra.mxu0 %v1155
      %1514 = vmatprep.subr.bf16.mxu0 0
      %1515 = vmatpush1.bf16.msra.mxu0 %v1156
      %1516 = vmatprep.subr.bf16.mxu0 0
      %1517 = vmatpush1.bf16.msra.mxu0 %v1157
      %1518 = vmatprep.subr.bf16.mxu0 0
      %1519 = vmatpush1.bf16.msra.mxu0 %v1158
      %1520 = vmatprep.subr.bf16.mxu0 0
      %1521 = vmatpush1.bf16.msra.mxu0 %v1159
      %1522 = vmatprep.subr.bf16.mxu0 0
      %1523 = vmatpush1.bf16.msra.mxu0 %v1160
      %1524 = vmatprep.subr.bf16.mxu0 0
      %1525 = vmatpush1.bf16.msra.mxu0 %v1161
      %1526 = vmatprep.subr.bf16.mxu0 0
      %1527 = vmatpush1.bf16.msra.mxu0 %v1162
      %1528 = vmatprep.subr.bf16.mxu0 0
      %1529 = vmatpush1.bf16.msra.mxu0 %v1163
      %1530 = vmatprep.subr.bf16.mxu0 0
      %1531 = vmatpush1.bf16.msra.mxu0 %v1164
      %1532 = vmatprep.subr.bf16.mxu0 0
      %1533 = vmatpush1.bf16.msra.mxu0 %v1165
      %1534 = vmatprep.mubr.bf16.mxu0 %v539
      %1535 = vmatmul.mubr.bf16.gmra.mrb[0].mxu0 %v531
      %v1536 = vpop.f32.mrb[0].mxu0
      %v1537 = vadd.f32 %v1497, %v1536
      %v1538 = vpop.f32.mrb[0].mxu0
      %v1539 = vpop.f32.mrb[0].mxu0
      %v1540 = vpop.f32.mrb[0].mxu0
      %1541 = vdwg.mxu0
      %1542 = vmatprep.subr.bf16.mxu0 0
      %1543 = vmatpush1.bf16.msra.mxu0 %v1166
      %1544 = vmatprep.subr.bf16.mxu0 0
      %1545 = vmatpush1.bf16.msra.mxu0 %v1167
      %1546 = vmatprep.subr.bf16.mxu0 0
      %1547 = vmatpush1.bf16.msra.mxu0 %v1168
      %1548 = vmatprep.subr.bf16.mxu0 0
      %1549 = vmatpush1.bf16.msra.mxu0 %v1169
      %1550 = vmatprep.subr.bf16.mxu0 0
      %1551 = vmatpush1.bf16.msra.mxu0 %v1170
      %1552 = vmatprep.subr.bf16.mxu0 0
      %1553 = vmatpush1.bf16.msra.mxu0 %v1171
      %1554 = vmatprep.subr.bf16.mxu0 0
      %1555 = vmatpush1.bf16.msra.mxu0 %v1172
      %1556 = vmatprep.subr.bf16.mxu0 0
      %1557 = vmatpush1.bf16.msra.mxu0 %v1173
      %1558 = vmatprep.subr.bf16.mxu0 0
      %1559 = vmatpush1.bf16.msra.mxu0 %v1174
      %1560 = vmatprep.subr.bf16.mxu0 0
      %1561 = vmatpush1.bf16.msra.mxu0 %v1175
      %1562 = vmatprep.subr.bf16.mxu0 0
      %1563 = vmatpush1.bf16.msra.mxu0 %v1176
      %1564 = vmatprep.subr.bf16.mxu0 0
      %1565 = vmatpush1.bf16.msra.mxu0 %v1177
      %1566 = vmatprep.subr.bf16.mxu0 0
      %1567 = vmatpush1.bf16.msra.mxu0 %v1178
      %1568 = vmatprep.subr.bf16.mxu0 0
      %1569 = vmatpush1.bf16.msra.mxu0 %v1179
      %1570 = vmatprep.subr.bf16.mxu0 0
      %1571 = vmatpush1.bf16.msra.mxu0 %v1180
      %1572 = vmatprep.subr.bf16.mxu0 0
      %1573 = vmatpush1.bf16.msra.mxu0 %v1181
      %1574 = vmatprep.mubr.bf16.mxu0 %v540
      %1575 = vmatmul.mubr.bf16.gmra.mrb[0].mxu0 %v538
      %v1576 = vpop.f32.mrb[0].mxu0
      %v1577 = vadd.f32 %v1537, %v1576
      %v1578 = vpop.f32.mrb[0].mxu0
      %v1579 = vpop.f32.mrb[0].mxu0
      %v1580 = vpop.f32.mrb[0].mxu0
      %1581 = vdwg.mxu0
      %1582 = vmatprep.subr.bf16.mxu0 0
      %1583 = vmatpush1.bf16.msra.mxu0 %v1182
      %1584 = vmatprep.subr.bf16.mxu0 0
      %1585 = vmatpush1.bf16.msra.mxu0 %v1183
      %1586 = vmatprep.subr.bf16.mxu0 0
      %1587 = vmatpush1.bf16.msra.mxu0 %v1184
      %1588 = vmatprep.subr.bf16.mxu0 0
      %1589 = vmatpush1.bf16.msra.mxu0 %v1185
      %1590 = vmatprep.subr.bf16.mxu0 0
      %1591 = vmatpush1.bf16.msra.mxu0 %v1186
      %1592 = vmatprep.subr.bf16.mxu0 0
      %1593 = vmatpush1.bf16.msra.mxu0 %v1187
      %1594 = vmatprep.subr.bf16.mxu0 0
      %1595 = vmatpush1.bf16.msra.mxu0 %v1188
      %1596 = vmatprep.subr.bf16.mxu0 0
      %1597 = vmatpush1.bf16.msra.mxu0 %v1189
      %1598 = vmatprep.subr.bf16.mxu0 0
      %1599 = vmatpush1.bf16.msra.mxu0 %v1190
      %1600 = vmatprep.subr.bf16.mxu0 0
      %1601 = vmatpush1.bf16.msra.mxu0 %v1191
      %1602 = vmatprep.subr.bf16.mxu0 0
      %1603 = vmatpush1.bf16.msra.mxu0 %v1192
      %1604 = vmatprep.subr.bf16.mxu0 0
      %1605 = vmatpush1.bf16.msra.mxu0 %v1193
      %1606 = vmatprep.subr.bf16.mxu0 0
      %1607 = vmatpush1.bf16.msra.mxu0 %v1194
      %1608 = vmatprep.subr.bf16.mxu0 0
      %1609 = vmatpush1.bf16.msra.mxu0 %v1195
      %1610 = vmatprep.subr.bf16.mxu0 0
      %1611 = vmatpush1.bf16.msra.mxu0 %v1196
      %1612 = vmatprep.subr.bf16.mxu0 0
      %1613 = vmatpush1.bf16.msra.mxu0 %v1197
      %1614 = vmatprep.mubr.bf16.mxu0 %v556
      %1615 = vmatmul.mubr.bf16.gmra.mrb[0].mxu0 %v548
      %v1616 = vpop.f32.mrb[0].mxu0
      %v1617 = vadd.f32 %v1577, %v1616
      %v1618 = vpop.f32.mrb[0].mxu0
      %v1619 = vpop.f32.mrb[0].mxu0
      %v1620 = vpop.f32.mrb[0].mxu0
      %1621 = vdwg.mxu0
      %1622 = vmatprep.subr.bf16.mxu0 0
      %1623 = vmatpush1.bf16.msra.mxu0 %v1198
      %1624 = vmatprep.subr.bf16.mxu0 0
      %1625 = vmatpush1.bf16.msra.mxu0 %v1199
      %1626 = vmatprep.subr.bf16.mxu0 0
      %1627 = vmatpush1.bf16.msra.mxu0 %v1200
      %1628 = vmatprep.subr.bf16.mxu0 0
      %1629 = vmatpush1.bf16.msra.mxu0 %v1201
      %1630 = vmatprep.subr.bf16.mxu0 0
      %1631 = vmatpush1.bf16.msra.mxu0 %v1202
      %1632 = vmatprep.subr.bf16.mxu0 0
      %1633 = vmatpush1.bf16.msra.mxu0 %v1203
      %1634 = vmatprep.subr.bf16.mxu0 0
      %1635 = vmatpush1.bf16.msra.mxu0 %v1204
      %1636 = vmatprep.subr.bf16.mxu0 0
      %1637 = vmatpush1.bf16.msra.mxu0 %v1205
      %1638 = vmatprep.subr.bf16.mxu0 0
      %1639 = vmatpush1.bf16.msra.mxu0 %v1206
      %1640 = vmatprep.subr.bf16.mxu0 0
      %1641 = vmatpush1.bf16.msra.mxu0 %v1207
      %1642 = vmatprep.subr.bf16.mxu0 0
      %1643 = vmatpush1.bf16.msra.mxu0 %v1208
      %1644 = vmatprep.subr.bf16.mxu0 0
      %1645 = vmatpush1.bf16.msra.mxu0 %v1209
      %1646 = vmatprep.subr.bf16.mxu0 0
      %1647 = vmatpush1.bf16.msra.mxu0 %v1210
      %1648 = vmatprep.subr.bf16.mxu0 0
      %1649 = vmatpush1.bf16.msra.mxu0 %v1211
      %1650 = vmatprep.subr.bf16.mxu0 0
      %1651 = vmatpush1.bf16.msra.mxu0 %v1212
      %1652 = vmatprep.subr.bf16.mxu0 0
      %1653 = vmatpush1.bf16.msra.mxu0 %v1213
      %1654 = vmatprep.mubr.bf16.mxu0 %v557
      %1655 = vmatmul.mubr.bf16.gmra.mrb[0].mxu0 %v555
      %v1656 = vpop.f32.mrb[0].mxu0
      %v1657 = vadd.f32 %v1617, %v1656
      %v1658 = vpop.f32.mrb[0].mxu0
      %v1659 = vpop.f32.mrb[0].mxu0
      %v1660 = vpop.f32.mrb[0].mxu0
      %1661 = vdwg.mxu0
      %v1662 = vadd.f32 %v225, %v1657
      %1663 = vst [vmem:[#allocation2] sm:$0xf] %v1662
      %p1664 = scmp.eq.s32.totalorder %s19, 3
      // Predicated region
      $region37: #{discriminator_forward.9} parent=31 // pred_check
        %p1665 = pneg %p1664
      $region38: #{discriminator_forward.9} parent=31 // pred_check_branch
        %1667 = sbr.rel (%p1665) target = $region40
      $region39: #{discriminator_forward.9} parent=31 // pred_region
        %v1668 = vld [vmem:[#allocation2] sm:$0xf]
        %v1669 = vld [vmem:[%s2] sm:$0x1]
        %v1671 = vlaneseq
        %v1672 = vshrl.u32 %v1671, 7
        %v1673 = vsub.s32 0, %v1672
        %v1674 = vrot.slane %v1669, %v1673
        %v1676 = vadd.f32 %v1668, %v1674
        %1677 = vst [vmem:[%s218] sm:$0xf] %v1676
      $region40: #{discriminator_forward.9} parent=31 // pred_fallthru
        _
      %p1678 = scmp.lt.s32.totalorder %s18, 1
      %s1679 = scalar_select %p1678, %s18, 1
      %s1680 = smul.addr %s1679, 4
      %s1681 = scalar_lea.vmem %s3, %s1680
      // Predicated region
      $region41: #{discriminator_forward.9} parent=31 // pred_check
        %p1682 = pneg %p119
      $region42: #{discriminator_forward.9} parent=31 // pred_check_branch
        %1684 = sbr.rel (%p1682) target = $region44
      $region43: #{discriminator_forward.9} parent=31 // pred_region
        _
      $region44: #{discriminator_forward.9} parent=31 // pred_fallthru
        _
    $region32: #{discriminator_forward.9} parent=5 // pred_fallthru
      _
    %p1685 = scmp.le.s32.totalorder 2, %s9
    // Predicated region
    $region45: #{discriminator_forward.9} parent=5 // pred_check
      %p1686 = pneg %p1685
    $region46: #{discriminator_forward.9} parent=5 // pred_check_branch
      %1688 = sbr.rel (%p1686) target = $region48
    $region47: #{discriminator_forward.9} parent=5 // pred_region
      %s1689 = ssub.s32 %s9, 2
      // Predicated region
      $region49: #{discriminator_forward.9} parent=47 // pred_check
        %p1690 = pneg %p125
      $region50: #{discriminator_forward.9} parent=47 // pred_check_branch
        %1692 = sbr.rel (%p1690) target = $region52
      $region51: #{discriminator_forward.9} parent=47 // pred_region
        %p1693 = scmp.lt.s32.totalorder %s20, 1
        %s1694 = scalar_select %p1693, %s20, 1
        %s1695 = smul.addr %s1694, 4
        %s1696 = scalar_lea.vmem %s3, %s1695
      $region52: #{discriminator_forward.9} parent=47 // pred_fallthru
        _
    $region48: #{discriminator_forward.9} parent=5 // pred_fallthru
      _
  $region6: #{discriminator_forward.9} parent=0 // loop_footer
    %s13 = sadd.s32 1, %s9
  $region7: #{discriminator_forward.9} parent=0 // loop_footer_branch
    %8 = sbr.rel target = $region3
  $region8: #{discriminator_forward.9} parent=0 // loop_exit
    _

</llo_original>
